<compile_context>
chip_gen: v5e
topology: v5e:2x2
jax: 0.10.0
libtpu: 0.0.40
codegen_flags: <defaults>
</compile_context>

<pallas_src>
import functools
import math

import jax
import jax.numpy as jnp
from jax.experimental import pallas as pl
from jax.experimental.pallas import tpu as pltpu

PERSON_ATTRS_DIM = 8
NUM_ZONES = 8
DIFFUSION_STRENGTH = 0.2
OUT_LANES = 128          # merged lane-dense output: lanes [0:Z) logits, lane Z zone index


def _physics_diffusion_kernel(
    pa_ref,        # (PB, P)        f32   person attributes (gridded per person block)
    times_ref,     # (T, 1)         f32   raw times (resident)
    w0_ref,        # (P+Z+1, 256)   f32   trajectory layer-0 rows [person | zone | time]
    w1_ref,        # (256, 128)     bf16  trajectory layer-1
    w2v1_ref,      # (2, 128, 64)   bf16  [trajectory layer-2 ; diversity layer-1]
    v0_ref,        # (P+1, 128)     f32   diversity layer-0 rows [person | time]
    ws_ref,        # (136, Z)       f32   [w3 (64 rows) ; v2 (64 rows) ; -1000*(1-adj) (Z rows)]
    bias_ref,      # (8, 256)       f32   packed biases: rows b0,b1,c0,b2,c1,b3,c2
    out_ref,       # (PB*T, 128)    f32   merged logits + zone output
    *,
    diffusion_strength,
    num_zones,
):
    f32 = jnp.float32
    bf16 = jnp.bfloat16

    PB, P = pa_ref.shape
    T = times_ref.shape[0]
    Z = num_zones
    PT = PB * T
    M = PT * Z
    H1 = w0_ref.shape[1]        # 256
    H2 = w1_ref.shape[1]        # 128
    H3 = w2v1_ref.shape[2]      # 64

    # ---- unpack packed weights (static, sublane-aligned ref slices) ----------
    w0p = w0_ref[0:P, :]                   # (P, 256)
    w0z = w0_ref[P:P + Z, :]               # (Z, 256)
    w0t = w0_ref[P + Z:P + Z + 1, :]       # (1, 256)
    v0p = v0_ref[0:P, :]                   # (P, 128)
    v0t = v0_ref[P:P + 1, :]               # (1, 128)
    w3 = ws_ref[0:H3, :]                   # (64, Z)
    v2 = ws_ref[H3:2 * H3, :]              # (64, Z)
    pen = ws_ref[2 * H3:2 * H3 + Z, :]     # (Z, Z) == -1000*(1-adj)
    b0 = bias_ref[0:1, :]                  # (1, 256)
    b1 = bias_ref[1:2, 0:H2]               # (1, 128)
    c0 = bias_ref[2:3, 0:H2]               # (1, 128)
    b2 = bias_ref[3:4, 0:H3]               # (1, 64)
    c1 = bias_ref[4:5, 0:H3]               # (1, 64)
    b3 = bias_ref[5:6, 0:Z]                # (1, Z)
    c2 = bias_ref[6:7, 0:Z]                # (1, Z)

    # ---- normalized times (torch: t / t[-1] if t[-1] > 0 else 0.0) -----------
    times = times_ref[...]                                   # (T, 1)
    t_last = times[T - 1:T, :]                               # (1, 1)
    norm_t = jnp.where(t_last > 0.0,
                       times / jnp.where(t_last > 0.0, t_last, 1.0),
                       0.0)                                  # (T, 1)

    pa = pa_ref[...]                                         # (PB, P)

    # ---- trajectory_net batched over (person, timestep, candidate prev zone) --
    pa_traj = jnp.dot(pa, w0p, preferred_element_type=f32)   # (PB, 256)
    th = norm_t * w0t + b0                                   # (T, 256)
    h0 = (pa_traj[:, None, None, :] + th[None, :, None, :] + w0z[None, None, :, :])
    h0 = jnp.maximum(h0, 0.0).reshape(M, H1)                 # (M, 256)
    # TODO(synk): Dropout(p=0.1) of the training path is stochastic; eval/identity semantics used.
    h1 = jnp.dot(h0.astype(bf16), w1_ref[...], preferred_element_type=f32) + b1
    h1 = jnp.maximum(h1, 0.0)                                # (M, 128)
    h2 = jnp.dot(h1.astype(bf16), w2v1_ref[0], preferred_element_type=f32) + b2
    h2 = jnp.maximum(h2, 0.0)                                # (M, 64)
    base = jnp.dot(h2, w3, preferred_element_type=f32) + b3  # (M, Z)  final proj in f32

    # ---- diversity_net batched over (person, timestep) ------------------------
    pa_div = jnp.dot(pa, v0p, preferred_element_type=f32)    # (PB, 128)
    d0 = jnp.maximum(pa_div[:, None, :] + (norm_t * v0t + c0)[None, :, :], 0.0)
    d0 = d0.reshape(PT, H2)                                  # (PT, 128)
    d1 = jnp.dot(d0.astype(bf16), w2v1_ref[1], preferred_element_type=f32) + c1
    d1 = jnp.maximum(d1, 0.0)                                # (PT, 64)
    div = jnp.tanh(jnp.dot(d1, v2, preferred_element_type=f32) + c2)   # (PT, Z)

    # ---- physics-constrained candidate logits for every previous zone (f32) ---
    cand = (base.reshape(PT, Z, Z)
            + diffusion_strength * div.reshape(PT, 1, Z)
            + pen[None, :, :])                               # (PT, Zprev, Znext)
    cand2 = cand.reshape(M, Z)

    # ---- batched first-argmax over next zone for every (p, t, prev) row -------
    # TODO(synk): Gumbel noise is stochastic; deterministic (zero-noise) hard sample is
    # one_hot(argmax(constrained_logits)) (temperature drops out).
    lane_i = jax.lax.broadcasted_iota(jnp.int32, (M, Z), 1)
    row_max = jnp.max(cand2, axis=-1, keepdims=True)
    next_idx = jnp.min(jnp.where(cand2 >= row_max, lane_i, Z),
                       axis=-1, keepdims=True)               # (M, 1) int32
    next_tbl = next_idx.reshape(PB, T, Z, 1)                 # relabel only (prev on sublanes)

    # ---- serial rollout: pure integer index chasing, one tiny reduce per step -
    sub_i = jax.lax.broadcasted_iota(jnp.int32, (PB, Z, 1), 1)
    prev_oh = (sub_i == 0).astype(jnp.int32)                 # every person starts in zone 0
    prev_list = []
    zone_list = []
    for t in range(T):                                       # T static -> fully unrolled
        prev_list.append(prev_oh)
        sel = jnp.sum(next_tbl[:, t] * prev_oh, axis=1, keepdims=True)   # (PB,1,1) int32
        zone_list.append(sel)
        prev_oh = (sub_i == sel).astype(jnp.int32)

    prev_all = jnp.stack(prev_list, axis=1).astype(f32)      # (PB, T, Z, 1)
    zones = jnp.concatenate(zone_list, axis=1).astype(f32)   # (PB, T, 1)

    # gather the selected constrained-logit row for each (person, timestep)
    logits = jnp.sum(cand.reshape(PB, T, Z, Z) * prev_all, axis=2)       # (PB, T, Z)

    pad = out_ref.shape[1] - Z - 1
    out_ref[...] = jnp.concatenate(
        [logits.reshape(PT, Z), zones.reshape(PT, 1), jnp.zeros((PT, pad), f32)],
        axis=-1)                                             # one unmasked (PB*T,128) store


def build_adjacency(edge_index, num_zones):
    adj = jnp.zeros((num_zones, num_zones), jnp.float32)
    adj = adj.at[edge_index[0], edge_index[1]].set(1.0)
    adj = adj.at[edge_index[1], edge_index[0]].set(1.0)
    d = jnp.arange(num_zones)
    adj = adj.at[d, d].set(1.0)
    return adj


def init_params(key, person_attrs_dim=PERSON_ATTRS_DIM, num_zones=NUM_ZONES):
    """nn.Linear-style init; weights stored as (in_features, out_features)."""
    def linear(k, fan_in, fan_out):
        k1, k2 = jax.random.split(k)
        bound = 1.0 / math.sqrt(fan_in)
        W = jax.random.uniform(k1, (fan_in, fan_out), jnp.float32, -bound, bound)
        b = jax.random.uniform(k2, (fan_out,), jnp.float32, -bound, bound)
        return W, b

    keys = jax.random.split(key, 7)
    W0, b0 = linear(keys[0], person_attrs_dim + 1 + num_zones, 256)   # trajectory_net
    W1, b1 = linear(keys[1], 256, 128)
    W2, b2 = linear(keys[2], 128, 64)
    W3, b3 = linear(keys[3], 64, num_zones)
    V0, c0 = linear(keys[4], person_attrs_dim + 1, 128)               # diversity_net
    V1, c1 = linear(keys[5], 128, 64)
    V2, c2 = linear(keys[6], 64, num_zones)
    return dict(W0=W0, b0=b0, W1=W1, b1=b1, W2=W2, b2=b2, W3=W3, b3=b3,
                V0=V0, c0=c0, V1=V1, c1=c1, V2=V2, c2=c2)


def _pack_params(params, adj, num_zones):
    """Pack the 14 per-layer params (+adjacency penalty) into 6 kernel arrays."""
    f32 = jnp.float32
    W0 = params["W0"].astype(f32)
    P = W0.shape[0] - 1 - num_zones
    # trajectory layer-0 rows regrouped as [person | zone | time] -> 8-aligned kernel slices
    w0_packed = jnp.concatenate([W0[:P], W0[P + 1:P + 1 + num_zones], W0[P:P + 1]], axis=0)
    w1_bf = params["W1"].astype(jnp.bfloat16)
    w2v1_bf = jnp.stack([params["W2"], params["V1"]], axis=0).astype(jnp.bfloat16)
    v0_packed = params["V0"].astype(f32)
    pen = -1000.0 * (1.0 - adj)
    w_small = jnp.concatenate(
        [params["W3"].astype(f32), params["V2"].astype(f32), pen], axis=0)     # (136, Z)
    bias = jnp.zeros((8, 256), f32)
    bias = bias.at[0, :256].set(params["b0"])
    bias = bias.at[1, :128].set(params["b1"])
    bias = bias.at[2, :128].set(params["c0"])
    bias = bias.at[3, :64].set(params["b2"])
    bias = bias.at[4, :64].set(params["c1"])
    bias = bias.at[5, :num_zones].set(params["b3"])
    bias = bias.at[6, :num_zones].set(params["c2"])
    return w0_packed, w1_bf, w2v1_bf, v0_packed, w_small, bias


@functools.partial(jax.jit, static_argnames=("num_zones", "block_persons"))
def physics_diffusion_forward(person_attrs, times, edge_index, params,
                              num_zones=NUM_ZONES, block_persons=16):
    """Batched training-path forward.

    person_attrs: (N, P) batch of persons, or (P,) for a single person.
    Returns (trajectory_logits (N, T, Z) f32, trajectory_zones (N, T) i32);
    the leading N is dropped for a single-person input.
    """
    single = person_attrs.ndim == 1
    pa = person_attrs.reshape(1, -1) if single else person_attrs
    pa = pa.astype(jnp.float32)
    N, P = pa.shape
    T = times.shape[0]
    Z = num_zones

    adj = build_adjacency(edge_index, Z)
    w0_p, w1_p, w2v1_p, v0_p, ws_p, bias_p = _pack_params(params, adj, Z)

    PB = block_persons
    NB = pl.cdiv(N, PB)
    n_pad = NB * PB
    if n_pad != N:
        pa = jnp.concatenate([pa, jnp.zeros((n_pad - N, P), jnp.float32)], axis=0)

    kernel = functools.partial(
        _physics_diffusion_kernel,
        diffusion_strength=DIFFUSION_STRENGTH,
        num_zones=Z,
    )

    out = pl.pallas_call(
        kernel,
        out_shape=jax.ShapeDtypeStruct((n_pad * T, OUT_LANES), jnp.float32),
        grid=(NB,),
        in_specs=[
            pl.BlockSpec((PB, P), lambda b: (b, 0)),          # person block (gridded)
            pl.BlockSpec((T, 1), lambda b: (0, 0)),           # times   (VMEM-resident)
            pl.BlockSpec(w0_p.shape, lambda b: (0, 0)),       # weights (VMEM-resident)
            pl.BlockSpec(w1_p.shape, lambda b: (0, 0)),
            pl.BlockSpec(w2v1_p.shape, lambda b: (0, 0, 0)),
            pl.BlockSpec(v0_p.shape, lambda b: (0, 0)),
            pl.BlockSpec(ws_p.shape, lambda b: (0, 0)),
            pl.BlockSpec(bias_p.shape, lambda b: (0, 0)),
        ],
        out_specs=pl.BlockSpec((PB * T, OUT_LANES), lambda b: (b, 0)),
        compiler_params=pltpu.CompilerParams(
            dimension_semantics=("parallel",)),               # persons split across TCs on v7x
    )(pa, times.reshape(T, 1).astype(jnp.float32),
      w0_p, w1_p, w2v1_p, v0_p, ws_p, bias_p)

    out = out.reshape(n_pad, T, OUT_LANES)[:N]
    logits = out[..., :Z]
    zones = out[..., Z].astype(jnp.int32)
    if single:
        return logits[0], zones[0]
    return logits, zones


if __name__ == "__main__":
    key = jax.random.PRNGKey(0)
    k_params, k_pa = jax.random.split(key)
    params = init_params(k_params)

    N, T = 32, 8
    person_attrs = jax.random.normal(k_pa, (N, PERSON_ATTRS_DIM), jnp.float32)
    times = jnp.linspace(0.0, 7.0, T, dtype=jnp.float32)
    src = jnp.arange(NUM_ZONES, dtype=jnp.int32)
    dst = (src + 1) % NUM_ZONES
    edge_index = jnp.stack([src, dst], axis=0)               # ring graph over the 8 zones

    logits, zones = physics_diffusion_forward(person_attrs, times, edge_index, params)
    jax.block_until_ready((logits, zones))

    assert logits.shape == (N, T, NUM_ZONES) and logits.dtype == jnp.float32
    assert zones.shape == (N, T) and zones.dtype == jnp.int32
    assert bool(jnp.all(jnp.isfinite(logits)))
    assert bool(jnp.all((zones >= 0) & (zones < NUM_ZONES)))
    # hard physics constraint: every transition must respect the (ring + self) adjacency
    adj_check = build_adjacency(edge_index, NUM_ZONES)
    prev = jnp.concatenate([jnp.zeros((N, 1), jnp.int32), zones[:, :-1]], axis=1)
    assert bool(jnp.all(adj_check[prev, zones] == 1.0))
    print("KERNEL_OK")
</pallas_src>

<mosaic_0001>
module attributes {stable_mosaic.version = 11 : i64} {
  func.func @_physics_diffusion_kernel(%arg0: i32, %arg1: memref<16x8xf32, #tpu.memory_space<vmem>>, %arg2: memref<8x1xf32, #tpu.memory_space<vmem>>, %arg3: memref<17x256xf32, #tpu.memory_space<vmem>>, %arg4: memref<256x128xbf16, #tpu.memory_space<vmem>>, %arg5: memref<2x128x64xbf16, #tpu.memory_space<vmem>>, %arg6: memref<9x128xf32, #tpu.memory_space<vmem>>, %arg7: memref<136x8xf32, #tpu.memory_space<vmem>>, %arg8: memref<8x256xf32, #tpu.memory_space<vmem>>, %arg9: memref<128x128xf32, #tpu.memory_space<vmem>>) attributes {dimension_semantics = [#tpu.dimension_semantics<parallel>], iteration_bounds = array<i64: 2>, scalar_prefetch = 0 : i64, scratch_operands = 0 : i64, tpu.core_type = #tpu.core_type<tc>, window_params = [{transform_indices = @transform_0, window_bounds = array<i64: 16, 8>}, {pipeline_mode = #tpu.pipeline_mode<synchronous>, transform_indices = @transform_1, window_bounds = array<i64: 8, 1>}, {pipeline_mode = #tpu.pipeline_mode<synchronous>, transform_indices = @transform_2, window_bounds = array<i64: 17, 256>}, {pipeline_mode = #tpu.pipeline_mode<synchronous>, transform_indices = @transform_3, window_bounds = array<i64: 256, 128>}, {pipeline_mode = #tpu.pipeline_mode<synchronous>, transform_indices = @transform_4, window_bounds = array<i64: 2, 128, 64>}, {pipeline_mode = #tpu.pipeline_mode<synchronous>, transform_indices = @transform_5, window_bounds = array<i64: 9, 128>}, {pipeline_mode = #tpu.pipeline_mode<synchronous>, transform_indices = @transform_6, window_bounds = array<i64: 136, 8>}, {pipeline_mode = #tpu.pipeline_mode<synchronous>, transform_indices = @transform_7, window_bounds = array<i64: 8, 256>}, {transform_indices = @transform_8, window_bounds = array<i64: 128, 128>}]} {
    %c0 = arith.constant 0 : index
    %c0_0 = arith.constant 0 : index
    %0 = vector.load %arg3[%c0, %c0_0] : memref<17x256xf32, #tpu.memory_space<vmem>>, vector<8x256xf32>
    %c8 = arith.constant 8 : index
    %c0_1 = arith.constant 0 : index
    %1 = vector.load %arg3[%c8, %c0_1] : memref<17x256xf32, #tpu.memory_space<vmem>>, vector<8x256xf32>
    %c16 = arith.constant 16 : index
    %c0_2 = arith.constant 0 : index
    %2 = vector.load %arg3[%c16, %c0_2] : memref<17x256xf32, #tpu.memory_space<vmem>>, vector<1x256xf32>
    %c0_3 = arith.constant 0 : index
    %c0_4 = arith.constant 0 : index
    %3 = vector.load %arg6[%c0_3, %c0_4] : memref<9x128xf32, #tpu.memory_space<vmem>>, vector<8x128xf32>
    %c8_5 = arith.constant 8 : index
    %c0_6 = arith.constant 0 : index
    %4 = vector.load %arg6[%c8_5, %c0_6] : memref<9x128xf32, #tpu.memory_space<vmem>>, vector<1x128xf32>
    %c0_7 = arith.constant 0 : index
    %c0_8 = arith.constant 0 : index
    %5 = vector.load %arg7[%c0_7, %c0_8] : memref<136x8xf32, #tpu.memory_space<vmem>>, vector<64x8xf32>
    %c64 = arith.constant 64 : index
    %c0_9 = arith.constant 0 : index
    %6 = vector.load %arg7[%c64, %c0_9] : memref<136x8xf32, #tpu.memory_space<vmem>>, vector<64x8xf32>
    %c128 = arith.constant 128 : index
    %c0_10 = arith.constant 0 : index
    %7 = vector.load %arg7[%c128, %c0_10] : memref<136x8xf32, #tpu.memory_space<vmem>>, vector<8x8xf32>
    %c0_11 = arith.constant 0 : index
    %c0_12 = arith.constant 0 : index
    %8 = vector.load %arg8[%c0_11, %c0_12] : memref<8x256xf32, #tpu.memory_space<vmem>>, vector<1x256xf32>
    %c1 = arith.constant 1 : index
    %c0_13 = arith.constant 0 : index
    %9 = vector.load %arg8[%c1, %c0_13] : memref<8x256xf32, #tpu.memory_space<vmem>>, vector<1x128xf32>
    %c2 = arith.constant 2 : index
    %c0_14 = arith.constant 0 : index
    %10 = vector.load %arg8[%c2, %c0_14] : memref<8x256xf32, #tpu.memory_space<vmem>>, vector<1x128xf32>
    %c3 = arith.constant 3 : index
    %c0_15 = arith.constant 0 : index
    %11 = vector.load %arg8[%c3, %c0_15] : memref<8x256xf32, #tpu.memory_space<vmem>>, vector<1x64xf32>
    %c4 = arith.constant 4 : index
    %c0_16 = arith.constant 0 : index
    %12 = vector.load %arg8[%c4, %c0_16] : memref<8x256xf32, #tpu.memory_space<vmem>>, vector<1x64xf32>
    %c5 = arith.constant 5 : index
    %c0_17 = arith.constant 0 : index
    %13 = vector.load %arg8[%c5, %c0_17] : memref<8x256xf32, #tpu.memory_space<vmem>>, vector<1x8xf32>
    %c6 = arith.constant 6 : index
    %c0_18 = arith.constant 0 : index
    %14 = vector.load %arg8[%c6, %c0_18] : memref<8x256xf32, #tpu.memory_space<vmem>>, vector<1x8xf32>
    %c0_19 = arith.constant 0 : index
    %c0_20 = arith.constant 0 : index
    %15 = vector.load %arg2[%c0_19, %c0_20] : memref<8x1xf32, #tpu.memory_space<vmem>>, vector<8x1xf32>
    %16 = vector.extract_strided_slice %15 {offsets = [7, 0], sizes = [1, 1], strides = [1, 1]} : vector<8x1xf32> to vector<1x1xf32>
    %cst = arith.constant 0.000000e+00 : f32
    %17 = vector.broadcast %cst : f32 to vector<1x1xf32>
    %18 = arith.cmpf ogt, %16, %17 : vector<1x1xf32>
    %cst_21 = arith.constant 0.000000e+00 : f32
    %19 = vector.broadcast %cst_21 : f32 to vector<1x1xf32>
    %20 = arith.cmpf ogt, %16, %19 : vector<1x1xf32>
    %cst_22 = arith.constant 1.000000e+00 : f32
    %21 = vector.broadcast %cst_22 : f32 to vector<1x1xf32>
    %22 = arith.select %20, %16, %21 : vector<1x1xi1>, vector<1x1xf32>
    %23 = vector.broadcast %22 : vector<1x1xf32> to vector<8x1xf32>
    %24 = arith.divf %15, %23 : vector<8x1xf32>
    %cst_23 = arith.constant 0.000000e+00 : f32
    %25 = vector.shape_cast %18 : vector<1x1xi1> to vector<1x1xi1>
    %26 = vector.broadcast %25 : vector<1x1xi1> to vector<8x1xi1>
    %27 = vector.broadcast %cst_23 : f32 to vector<8x1xf32>
    %28 = arith.select %26, %24, %27 : vector<8x1xi1>, vector<8x1xf32>
    %c0_24 = arith.constant 0 : index
    %c0_25 = arith.constant 0 : index
    %29 = vector.load %arg1[%c0_24, %c0_25] : memref<16x8xf32, #tpu.memory_space<vmem>>, vector<16x8xf32>
    %cst_26 = arith.constant dense<0.000000e+00> : vector<16x256xf32>
    %30 = tpu.matmul %29, %0, %cst_26 {dimension_numbers = #tpu.dot_dimension_numbers<[1], [0], [0], [1], [0, 0, 1, 1], [], []>} : vector<16x8xf32>, vector<8x256xf32>, vector<16x256xf32> -> vector<16x256xf32>
    %31 = vector.broadcast %28 : vector<8x1xf32> to vector<8x256xf32>
    %32 = vector.broadcast %2 : vector<1x256xf32> to vector<8x256xf32>
    %33 = arith.mulf %31, %32 : vector<8x256xf32>
    %34 = vector.broadcast %8 : vector<1x256xf32> to vector<8x256xf32>
    %35 = arith.addf %33, %34 : vector<8x256xf32>
    %36 = vector.shape_cast %30 : vector<16x256xf32> to vector<16x1x1x256xf32>
    %37 = vector.shape_cast %35 : vector<8x256xf32> to vector<1x8x1x256xf32>
    %38 = vector.broadcast %36 : vector<16x1x1x256xf32> to vector<16x8x1x256xf32>
    %39 = vector.broadcast %37 : vector<1x8x1x256xf32> to vector<16x8x1x256xf32>
    %40 = arith.addf %38, %39 : vector<16x8x1x256xf32>
    %41 = vector.shape_cast %1 : vector<8x256xf32> to vector<1x1x8x256xf32>
    %42 = vector.broadcast %40 : vector<16x8x1x256xf32> to vector<16x8x8x256xf32>
    %43 = vector.broadcast %41 : vector<1x1x8x256xf32> to vector<16x8x8x256xf32>
    %44 = arith.addf %42, %43 : vector<16x8x8x256xf32>
    %cst_27 = arith.constant 0.000000e+00 : f32
    %45 = vector.broadcast %cst_27 : f32 to vector<16x8x8x256xf32>
    %46 = arith.maximumf %44, %45 : vector<16x8x8x256xf32>
    %47 = vector.shape_cast %46 : vector<16x8x8x256xf32> to vector<1024x256xf32>
    %48 = arith.truncf %47 : vector<1024x256xf32> to vector<1024x256xbf16>
    %c0_28 = arith.constant 0 : index
    %c0_29 = arith.constant 0 : index
    %49 = vector.load %arg4[%c0_28, %c0_29] : memref<256x128xbf16, #tpu.memory_space<vmem>>, vector<256x128xbf16>
    %cst_30 = arith.constant dense<0.000000e+00> : vector<1024x128xf32>
    %50 = tpu.matmul %48, %49, %cst_30 {dimension_numbers = #tpu.dot_dimension_numbers<[1], [0], [0], [1], [0, 0, 1, 1], [], []>} : vector<1024x256xbf16>, vector<256x128xbf16>, vector<1024x128xf32> -> vector<1024x128xf32>
    %51 = vector.broadcast %9 : vector<1x128xf32> to vector<1024x128xf32>
    %52 = arith.addf %50, %51 : vector<1024x128xf32>
    %cst_31 = arith.constant 0.000000e+00 : f32
    %53 = vector.broadcast %cst_31 : f32 to vector<1024x128xf32>
    %54 = arith.maximumf %52, %53 : vector<1024x128xf32>
    %55 = arith.truncf %54 : vector<1024x128xf32> to vector<1024x128xbf16>
    %c0_32 = arith.constant 0 : index
    %c0_33 = arith.constant 0 : index
    %c0_34 = arith.constant 0 : index
    %56 = vector.load %arg5[%c0_32, %c0_33, %c0_34] : memref<2x128x64xbf16, #tpu.memory_space<vmem>>, vector<1x128x64xbf16>
    %57 = vector.shape_cast %56 : vector<1x128x64xbf16> to vector<128x64xbf16>
    %cst_35 = arith.constant dense<0.000000e+00> : vector<1024x64xf32>
    %58 = tpu.matmul %55, %57, %cst_35 {dimension_numbers = #tpu.dot_dimension_numbers<[1], [0], [0], [1], [0, 0, 1, 1], [], []>} : vector<1024x128xbf16>, vector<128x64xbf16>, vector<1024x64xf32> -> vector<1024x64xf32>
    %59 = vector.broadcast %11 : vector<1x64xf32> to vector<1024x64xf32>
    %60 = arith.addf %58, %59 : vector<1024x64xf32>
    %cst_36 = arith.constant 0.000000e+00 : f32
    %61 = vector.broadcast %cst_36 : f32 to vector<1024x64xf32>
    %62 = arith.maximumf %60, %61 : vector<1024x64xf32>
    %cst_37 = arith.constant dense<0.000000e+00> : vector<1024x8xf32>
    %63 = tpu.matmul %62, %5, %cst_37 {dimension_numbers = #tpu.dot_dimension_numbers<[1], [0], [0], [1], [0, 0, 1, 1], [], []>} : vector<1024x64xf32>, vector<64x8xf32>, vector<1024x8xf32> -> vector<1024x8xf32>
    %64 = vector.broadcast %13 : vector<1x8xf32> to vector<1024x8xf32>
    %65 = arith.addf %63, %64 : vector<1024x8xf32>
    %cst_38 = arith.constant dense<0.000000e+00> : vector<16x128xf32>
    %66 = tpu.matmul %29, %3, %cst_38 {dimension_numbers = #tpu.dot_dimension_numbers<[1], [0], [0], [1], [0, 0, 1, 1], [], []>} : vector<16x8xf32>, vector<8x128xf32>, vector<16x128xf32> -> vector<16x128xf32>
    %67 = vector.shape_cast %66 : vector<16x128xf32> to vector<16x1x128xf32>
    %68 = vector.broadcast %28 : vector<8x1xf32> to vector<8x128xf32>
    %69 = vector.broadcast %4 : vector<1x128xf32> to vector<8x128xf32>
    %70 = arith.mulf %68, %69 : vector<8x128xf32>
    %71 = vector.broadcast %10 : vector<1x128xf32> to vector<8x128xf32>
    %72 = arith.addf %70, %71 : vector<8x128xf32>
    %73 = vector.shape_cast %72 : vector<8x128xf32> to vector<1x8x128xf32>
    %74 = vector.broadcast %67 : vector<16x1x128xf32> to vector<16x8x128xf32>
    %75 = vector.broadcast %73 : vector<1x8x128xf32> to vector<16x8x128xf32>
    %76 = arith.addf %74, %75 : vector<16x8x128xf32>
    %cst_39 = arith.constant 0.000000e+00 : f32
    %77 = vector.broadcast %cst_39 : f32 to vector<16x8x128xf32>
    %78 = arith.maximumf %76, %77 : vector<16x8x128xf32>
    %79 = vector.shape_cast %78 : vector<16x8x128xf32> to vector<128x128xf32>
    %80 = arith.truncf %79 : vector<128x128xf32> to vector<128x128xbf16>
    %c1_40 = arith.constant 1 : index
    %c0_41 = arith.constant 0 : index
    %c0_42 = arith.constant 0 : index
    %81 = vector.load %arg5[%c1_40, %c0_41, %c0_42] : memref<2x128x64xbf16, #tpu.memory_space<vmem>>, vector<1x128x64xbf16>
    %82 = vector.shape_cast %81 : vector<1x128x64xbf16> to vector<128x64xbf16>
    %cst_43 = arith.constant dense<0.000000e+00> : vector<128x64xf32>
    %83 = tpu.matmul %80, %82, %cst_43 {dimension_numbers = #tpu.dot_dimension_numbers<[1], [0], [0], [1], [0, 0, 1, 1], [], []>} : vector<128x128xbf16>, vector<128x64xbf16>, vector<128x64xf32> -> vector<128x64xf32>
    %84 = vector.broadcast %12 : vector<1x64xf32> to vector<128x64xf32>
    %85 = arith.addf %83, %84 : vector<128x64xf32>
    %cst_44 = arith.constant 0.000000e+00 : f32
    %86 = vector.broadcast %cst_44 : f32 to vector<128x64xf32>
    %87 = arith.maximumf %85, %86 : vector<128x64xf32>
    %cst_45 = arith.constant dense<0.000000e+00> : vector<128x8xf32>
    %88 = tpu.matmul %87, %6, %cst_45 {dimension_numbers = #tpu.dot_dimension_numbers<[1], [0], [0], [1], [0, 0, 1, 1], [], []>} : vector<128x64xf32>, vector<64x8xf32>, vector<128x8xf32> -> vector<128x8xf32>
    %89 = vector.broadcast %14 : vector<1x8xf32> to vector<128x8xf32>
    %90 = arith.addf %88, %89 : vector<128x8xf32>
    %91 = math.tanh %90 : vector<128x8xf32>
    %92 = vector.shape_cast %65 : vector<1024x8xf32> to vector<128x8x8xf32>
    %93 = vector.shape_cast %91 : vector<128x8xf32> to vector<128x1x8xf32>
    %cst_46 = arith.constant 2.000000e-01 : f32
    %94 = vector.broadcast %cst_46 : f32 to vector<128x1x8xf32>
    %95 = arith.mulf %94, %93 : vector<128x1x8xf32>
    %96 = vector.broadcast %95 : vector<128x1x8xf32> to vector<128x8x8xf32>
    %97 = arith.addf %92, %96 : vector<128x8x8xf32>
    %98 = vector.shape_cast %7 : vector<8x8xf32> to vector<1x8x8xf32>
    %99 = vector.broadcast %98 : vector<1x8x8xf32> to vector<128x8x8xf32>
    %100 = arith.addf %97, %99 : vector<128x8x8xf32>
    %101 = vector.shape_cast %100 : vector<128x8x8xf32> to vector<1024x8xf32>
    %102 = tpu.iota {dimensions = array<i32: 1>} : vector<1024x8xi32>
    %cst_47 = arith.constant dense<0xFF800000> : vector<1024xf32>
    %103 = vector.multi_reduction <maximumf>, %101, %cst_47 [1] : vector<1024x8xf32> to vector<1024xf32>
    %104 = vector.shape_cast %103 : vector<1024xf32> to vector<1024x1xf32>
    %105 = vector.broadcast %104 : vector<1024x1xf32> to vector<1024x8xf32>
    %106 = arith.cmpf oge, %101, %105 : vector<1024x8xf32>
    %c8_i32 = arith.constant 8 : i32
    %107 = vector.broadcast %c8_i32 : i32 to vector<1024x8xi32>
    %108 = arith.select %106, %102, %107 : vector<1024x8xi1>, vector<1024x8xi32>
    %cst_48 = arith.constant dense<2147483647> : vector<1024xi32>
    %109 = vector.multi_reduction <minsi>, %108, %cst_48 [1] : vector<1024x8xi32> to vector<1024xi32>
    %110 = vector.shape_cast %109 : vector<1024xi32> to vector<1024x1xi32>
    %111 = vector.shape_cast %110 : vector<1024x1xi32> to vector<16x8x8x1xi32>
    %112 = tpu.iota {dimensions = array<i32: 1>} : vector<16x8x1xi32>
    %c0_i32 = arith.constant 0 : i32
    %113 = vector.broadcast %c0_i32 : i32 to vector<16x8x1xi32>
    %114 = arith.cmpi eq, %112, %113 : vector<16x8x1xi32>
    %115 = arith.extui %114 : vector<16x8x1xi1> to vector<16x8x1xi32>
    %116 = vector.extract_strided_slice %111 {offsets = [0, 0, 0, 0], sizes = [16, 1, 8, 1], strides = [1, 1, 1, 1]} : vector<16x8x8x1xi32> to vector<16x1x8x1xi32>
    %117 = vector.shape_cast %116 : vector<16x1x8x1xi32> to vector<16x8x1xi32>
    %118 = arith.muli %117, %115 : vector<16x8x1xi32>
    %cst_49 = arith.constant dense<0> : vector<16x1xi32>
    %119 = vector.multi_reduction <add>, %118, %cst_49 [1] : vector<16x8x1xi32> to vector<16x1xi32>
    %120 = vector.shape_cast %119 : vector<16x1xi32> to vector<16x1x1xi32>
    %121 = vector.broadcast %120 : vector<16x1x1xi32> to vector<16x8x1xi32>
    %122 = arith.cmpi eq, %112, %121 : vector<16x8x1xi32>
    %123 = arith.extui %122 : vector<16x8x1xi1> to vector<16x8x1xi32>
    %124 = vector.extract_strided_slice %111 {offsets = [0, 1, 0, 0], sizes = [16, 1, 8, 1], strides = [1, 1, 1, 1]} : vector<16x8x8x1xi32> to vector<16x1x8x1xi32>
    %125 = vector.shape_cast %124 : vector<16x1x8x1xi32> to vector<16x8x1xi32>
    %126 = arith.muli %125, %123 : vector<16x8x1xi32>
    %cst_50 = arith.constant dense<0> : vector<16x1xi32>
    %127 = vector.multi_reduction <add>, %126, %cst_50 [1] : vector<16x8x1xi32> to vector<16x1xi32>
    %128 = vector.shape_cast %127 : vector<16x1xi32> to vector<16x1x1xi32>
    %129 = vector.broadcast %128 : vector<16x1x1xi32> to vector<16x8x1xi32>
    %130 = arith.cmpi eq, %112, %129 : vector<16x8x1xi32>
    %131 = arith.extui %130 : vector<16x8x1xi1> to vector<16x8x1xi32>
    %132 = vector.extract_strided_slice %111 {offsets = [0, 2, 0, 0], sizes = [16, 1, 8, 1], strides = [1, 1, 1, 1]} : vector<16x8x8x1xi32> to vector<16x1x8x1xi32>
    %133 = vector.shape_cast %132 : vector<16x1x8x1xi32> to vector<16x8x1xi32>
    %134 = arith.muli %133, %131 : vector<16x8x1xi32>
    %cst_51 = arith.constant dense<0> : vector<16x1xi32>
    %135 = vector.multi_reduction <add>, %134, %cst_51 [1] : vector<16x8x1xi32> to vector<16x1xi32>
    %136 = vector.shape_cast %135 : vector<16x1xi32> to vector<16x1x1xi32>
    %137 = vector.broadcast %136 : vector<16x1x1xi32> to vector<16x8x1xi32>
    %138 = arith.cmpi eq, %112, %137 : vector<16x8x1xi32>
    %139 = arith.extui %138 : vector<16x8x1xi1> to vector<16x8x1xi32>
    %140 = vector.extract_strided_slice %111 {offsets = [0, 3, 0, 0], sizes = [16, 1, 8, 1], strides = [1, 1, 1, 1]} : vector<16x8x8x1xi32> to vector<16x1x8x1xi32>
    %141 = vector.shape_cast %140 : vector<16x1x8x1xi32> to vector<16x8x1xi32>
    %142 = arith.muli %141, %139 : vector<16x8x1xi32>
    %cst_52 = arith.constant dense<0> : vector<16x1xi32>
    %143 = vector.multi_reduction <add>, %142, %cst_52 [1] : vector<16x8x1xi32> to vector<16x1xi32>
    %144 = vector.shape_cast %143 : vector<16x1xi32> to vector<16x1x1xi32>
    %145 = vector.broadcast %144 : vector<16x1x1xi32> to vector<16x8x1xi32>
    %146 = arith.cmpi eq, %112, %145 : vector<16x8x1xi32>
    %147 = arith.extui %146 : vector<16x8x1xi1> to vector<16x8x1xi32>
    %148 = vector.extract_strided_slice %111 {offsets = [0, 4, 0, 0], sizes = [16, 1, 8, 1], strides = [1, 1, 1, 1]} : vector<16x8x8x1xi32> to vector<16x1x8x1xi32>
    %149 = vector.shape_cast %148 : vector<16x1x8x1xi32> to vector<16x8x1xi32>
    %150 = arith.muli %149, %147 : vector<16x8x1xi32>
    %cst_53 = arith.constant dense<0> : vector<16x1xi32>
    %151 = vector.multi_reduction <add>, %150, %cst_53 [1] : vector<16x8x1xi32> to vector<16x1xi32>
    %152 = vector.shape_cast %151 : vector<16x1xi32> to vector<16x1x1xi32>
    %153 = vector.broadcast %152 : vector<16x1x1xi32> to vector<16x8x1xi32>
    %154 = arith.cmpi eq, %112, %153 : vector<16x8x1xi32>
    %155 = arith.extui %154 : vector<16x8x1xi1> to vector<16x8x1xi32>
    %156 = vector.extract_strided_slice %111 {offsets = [0, 5, 0, 0], sizes = [16, 1, 8, 1], strides = [1, 1, 1, 1]} : vector<16x8x8x1xi32> to vector<16x1x8x1xi32>
    %157 = vector.shape_cast %156 : vector<16x1x8x1xi32> to vector<16x8x1xi32>
    %158 = arith.muli %157, %155 : vector<16x8x1xi32>
    %cst_54 = arith.constant dense<0> : vector<16x1xi32>
    %159 = vector.multi_reduction <add>, %158, %cst_54 [1] : vector<16x8x1xi32> to vector<16x1xi32>
    %160 = vector.shape_cast %159 : vector<16x1xi32> to vector<16x1x1xi32>
    %161 = vector.broadcast %160 : vector<16x1x1xi32> to vector<16x8x1xi32>
    %162 = arith.cmpi eq, %112, %161 : vector<16x8x1xi32>
    %163 = arith.extui %162 : vector<16x8x1xi1> to vector<16x8x1xi32>
    %164 = vector.extract_strided_slice %111 {offsets = [0, 6, 0, 0], sizes = [16, 1, 8, 1], strides = [1, 1, 1, 1]} : vector<16x8x8x1xi32> to vector<16x1x8x1xi32>
    %165 = vector.shape_cast %164 : vector<16x1x8x1xi32> to vector<16x8x1xi32>
    %166 = arith.muli %165, %163 : vector<16x8x1xi32>
    %cst_55 = arith.constant dense<0> : vector<16x1xi32>
    %167 = vector.multi_reduction <add>, %166, %cst_55 [1] : vector<16x8x1xi32> to vector<16x1xi32>
    %168 = vector.shape_cast %167 : vector<16x1xi32> to vector<16x1x1xi32>
    %169 = vector.broadcast %168 : vector<16x1x1xi32> to vector<16x8x1xi32>
    %170 = arith.cmpi eq, %112, %169 : vector<16x8x1xi32>
    %171 = arith.extui %170 : vector<16x8x1xi1> to vector<16x8x1xi32>
    %172 = vector.extract_strided_slice %111 {offsets = [0, 7, 0, 0], sizes = [16, 1, 8, 1], strides = [1, 1, 1, 1]} : vector<16x8x8x1xi32> to vector<16x1x8x1xi32>
    %173 = vector.shape_cast %172 : vector<16x1x8x1xi32> to vector<16x8x1xi32>
    %174 = arith.muli %173, %171 : vector<16x8x1xi32>
    %cst_56 = arith.constant dense<0> : vector<16x1xi32>
    %175 = vector.multi_reduction <add>, %174, %cst_56 [1] : vector<16x8x1xi32> to vector<16x1xi32>
    %176 = vector.shape_cast %175 : vector<16x1xi32> to vector<16x1x1xi32>
    %177 = vector.shape_cast %115 : vector<16x8x1xi32> to vector<16x1x8x1xi32>
    %178 = vector.shape_cast %123 : vector<16x8x1xi32> to vector<16x1x8x1xi32>
    %179 = vector.shape_cast %131 : vector<16x8x1xi32> to vector<16x1x8x1xi32>
    %180 = vector.shape_cast %139 : vector<16x8x1xi32> to vector<16x1x8x1xi32>
    %181 = vector.shape_cast %147 : vector<16x8x1xi32> to vector<16x1x8x1xi32>
    %182 = vector.shape_cast %155 : vector<16x8x1xi32> to vector<16x1x8x1xi32>
    %183 = vector.shape_cast %163 : vector<16x8x1xi32> to vector<16x1x8x1xi32>
    %184 = vector.shape_cast %171 : vector<16x8x1xi32> to vector<16x1x8x1xi32>
    %185 = tpu.concatenate %177, %178, %179, %180, %181, %182, %183, %184 in 1 : vector<16x1x8x1xi32>, vector<16x1x8x1xi32>, vector<16x1x8x1xi32>, vector<16x1x8x1xi32>, vector<16x1x8x1xi32>, vector<16x1x8x1xi32>, vector<16x1x8x1xi32>, vector<16x1x8x1xi32> -> vector<16x8x8x1xi32>
    %186 = arith.sitofp %185 : vector<16x8x8x1xi32> to vector<16x8x8x1xf32>
    %187 = tpu.concatenate %120, %128, %136, %144, %152, %160, %168, %176 in 1 : vector<16x1x1xi32>, vector<16x1x1xi32>, vector<16x1x1xi32>, vector<16x1x1xi32>, vector<16x1x1xi32>, vector<16x1x1xi32>, vector<16x1x1xi32>, vector<16x1x1xi32> -> vector<16x8x1xi32>
    %188 = arith.sitofp %187 : vector<16x8x1xi32> to vector<16x8x1xf32>
    %189 = vector.shape_cast %100 : vector<128x8x8xf32> to vector<16x8x8x8xf32>
    %190 = vector.broadcast %186 : vector<16x8x8x1xf32> to vector<16x8x8x8xf32>
    %191 = arith.mulf %189, %190 : vector<16x8x8x8xf32>
    %cst_57 = arith.constant dense<0.000000e+00> : vector<16x8x8xf32>
    %192 = vector.multi_reduction <add>, %191, %cst_57 [2] : vector<16x8x8x8xf32> to vector<16x8x8xf32>
    %193 = vector.shape_cast %192 : vector<16x8x8xf32> to vector<128x8xf32>
    %194 = vector.shape_cast %188 : vector<16x8x1xf32> to vector<128x1xf32>
    %cst_58 = arith.constant 0.000000e+00 : f32
    %195 = vector.broadcast %cst_58 : f32 to vector<128x119xf32>
    %196 = tpu.concatenate %193, %194, %195 in 1 : vector<128x8xf32>, vector<128x1xf32>, vector<128x119xf32> -> vector<128x128xf32>
    %c0_59 = arith.constant 0 : index
    %c0_60 = arith.constant 0 : index
    %197 = vector.load %arg9[%c0_59, %c0_60] : memref<128x128xf32, #tpu.memory_space<vmem>>, vector<128x128xf32>
    tpu.vector_store %arg9[%c0_59, %c0_60], %196 {strides = array<i32>} : memref<128x128xf32, #tpu.memory_space<vmem>>, vector<128x128xf32>,
    return
  }
  func.func @transform_0(%arg0: i32) -> (i32, i32) {
    %c0_i32 = arith.constant 0 : i32
    %c0_i32_0 = arith.constant 0 : i32
    return %arg0, %c0_i32 : i32, i32
  }
  func.func @transform_1(%arg0: i32) -> (i32, i32) {
    %c0_i32 = arith.constant 0 : i32
    %c0_i32_0 = arith.constant 0 : i32
    %c0_i32_1 = arith.constant 0 : i32
    return %c0_i32, %c0_i32_0 : i32, i32
  }
  func.func @transform_2(%arg0: i32) -> (i32, i32) {
    %c0_i32 = arith.constant 0 : i32
    %c0_i32_0 = arith.constant 0 : i32
    %c0_i32_1 = arith.constant 0 : i32
    return %c0_i32, %c0_i32_0 : i32, i32
  }
  func.func @transform_3(%arg0: i32) -> (i32, i32) {
    %c0_i32 = arith.constant 0 : i32
    %c0_i32_0 = arith.constant 0 : i32
    %c0_i32_1 = arith.constant 0 : i32
    return %c0_i32, %c0_i32_0 : i32, i32
  }
  func.func @transform_4(%arg0: i32) -> (i32, i32, i32) {
    %c0_i32 = arith.constant 0 : i32
    %c0_i32_0 = arith.constant 0 : i32
    %c0_i32_1 = arith.constant 0 : i32
    %c0_i32_2 = arith.constant 0 : i32
    return %c0_i32, %c0_i32_0, %c0_i32_1 : i32, i32, i32
  }
  func.func @transform_5(%arg0: i32) -> (i32, i32) {
    %c0_i32 = arith.constant 0 : i32
    %c0_i32_0 = arith.constant 0 : i32
    %c0_i32_1 = arith.constant 0 : i32
    return %c0_i32, %c0_i32_0 : i32, i32
  }
  func.func @transform_6(%arg0: i32) -> (i32, i32) {
    %c0_i32 = arith.constant 0 : i32
    %c0_i32_0 = arith.constant 0 : i32
    %c0_i32_1 = arith.constant 0 : i32
    return %c0_i32, %c0_i32_0 : i32, i32
  }
  func.func @transform_7(%arg0: i32) -> (i32, i32) {
    %c0_i32 = arith.constant 0 : i32
    %c0_i32_0 = arith.constant 0 : i32
    %c0_i32_1 = arith.constant 0 : i32
    return %c0_i32, %c0_i32_0 : i32, i32
  }
  func.func @transform_8(%arg0: i32) -> (i32, i32) {
    %c0_i32 = arith.constant 0 : i32
    %c0_i32_0 = arith.constant 0 : i32
    return %arg0, %c0_i32 : i32, i32
  }
}

</mosaic_0001>

<llo_original>
// kernel: physics_diffusion_forward.1
$region0: #{physics_diffusion_forward.1}
  #allocation0 [shape = 'u32[]', space=smem, size = 0x4, offset = 0x4, fixed_abs, tag = 'smem constant byte address 0x4 - core index']
  #allocation1 [shape = 'u32[72,128]{1,0:T(1,128)}', space=vmem, size = 0x9000, scoped, tag = 'internal scratch']
  %s0 = inlined_call_operand.vmem [shape: f32[32,8], index: 0, kind: input, shape index: {}]
  %s1 = inlined_call_operand.vmem [shape: f32[8,1], index: 1, kind: input, shape index: {}]
  %s2 = inlined_call_operand.vmem [shape: f32[17,256], index: 2, kind: input, shape index: {}]
  %s3 = inlined_call_operand.vmem [shape: bf16[256,128], index: 3, kind: input, shape index: {}]
  %s4 = inlined_call_operand.vmem [shape: bf16[2,128,64], index: 4, kind: input, shape index: {}]
  %s5 = inlined_call_operand.vmem [shape: f32[9,128], index: 5, kind: input, shape index: {}]
  %s6 = inlined_call_operand.vmem [shape: f32[136,8], index: 6, kind: input, shape index: {}]
  %s7 = inlined_call_operand.vmem [shape: f32[8,256], index: 7, kind: input, shape index: {}]
  %s8 = inlined_call_operand.vmem [shape: f32[256,128], index: 8, kind: output, shape index: {}]
  %s9 = sld [smem:[#allocation0]]
  $region65: #{physics_diffusion_forward.1} parent=0
    _
  %s11 = ssub.s32 1, %s9
  %s12 = scalar_select 0, %s11, %s9
  loop: start=0, step=1, limit=4
  $region2: #{physics_diffusion_forward.1} parent=0 // loop_pre_header
    _
  $region3: #{physics_diffusion_forward.1} parent=0 // loop_header
    %s14 = sphi 0, %s18
    %p15 = scmp.ge.s32.totalorder %s14, 4
    %s24 = sphi 0, %s26
    %s27 = sphi 0, %s24
    %s28 = sphi 0, %s27
    %s44 = sphi 0, %s28
    %s48 = sphi 0, %s48
    %s50 = sphi 0, %s48
    %s51 = sphi 0, %s50
    %s65 = sphi 0, %s51
    %s69 = sphi 0, %s69
    %s71 = sphi 0, %s69
    %s72 = sphi 0, %s71
    %s86 = sphi 0, %s72
    %s90 = sphi 0, %s90
    %s92 = sphi 0, %s90
    %s93 = sphi 0, %s92
    %s107 = sphi 0, %s93
    %s111 = sphi 0, %s111
    %s113 = sphi 0, %s111
    %s114 = sphi 0, %s113
    %s128 = sphi 0, %s114
    %s132 = sphi 0, %s132
    %s134 = sphi 0, %s132
    %s135 = sphi 0, %s134
    %s149 = sphi 0, %s135
    %s153 = sphi 0, %s153
    %s155 = sphi 0, %s153
    %s156 = sphi 0, %s155
    %s170 = sphi 0, %s156
    %s174 = sphi 0, %s174
    %s176 = sphi 0, %s174
    %s177 = sphi 0, %s176
    %s191 = sphi 0, %s177
    %s197 = sphi 0, %s199
    %s200 = sphi 0, %s197
    %s201 = sphi 0, %s200
    %s217 = sphi 0, %s201
  $region4: #{physics_diffusion_forward.1} parent=0 // loop_header_branch
    %17 = sbr.rel (%p15) target = $region8
  $region5: #{physics_diffusion_forward.1} parent=0 // loop_body
    %s19 = ssub.s32 %s14, 1
    %s20 = ssub.s32 %s14, 2
    %s21 = sadd.s32 %s14, 1
    %s22 = ssub.s32 %s14, %s21
    %p23 = scmp.eq.s32.totalorder %s22, 0
    %s25 = sadd.s32 %s24, 1
    %s26 = scalar_select %p23, %s24, %s25
    %p29 = pneg %p23
    %p30 = scmp.eq.s32.totalorder %s14, 1
    %p31 = por %p29, %p30
    %p32 = scmp.ne.s32.totalorder %s24, %s27
    %p33 = scmp.eq.s32.totalorder %s14, 0
    %p34 = por %p32, %p33
    %p35 = scmp.ne.s32.totalorder %s24, %s27
    %p36 = scmp.eq.s32.totalorder %s19, 1
    %p37 = por %p35, %p36
    %p38 = scmp.ne.s32.totalorder %s27, %s28
    %p39 = scmp.eq.s32.totalorder %s19, 0
    %p40 = por %p38, %p39
    %p41 = scmp.ne.s32.totalorder %s27, %s28
    %p42 = scmp.eq.s32.totalorder %s20, 1
    %p43 = por %p41, %p42
    %p45 = scmp.ne.s32.totalorder %s28, %s44
    %p46 = scmp.eq.s32.totalorder %s20, 0
    %p47 = por %p45, %p46
    %s49 = sadd.s32 %s48, 1
    %p52 = scmp.eq.s32.totalorder %s14, 1
    %p53 = scmp.ne.s32.totalorder %s48, %s50
    %p54 = scmp.eq.s32.totalorder %s14, 0
    %p55 = por %p53, %p54
    %p56 = scmp.ne.s32.totalorder %s48, %s50
    %p57 = scmp.eq.s32.totalorder %s19, 1
    %p58 = por %p56, %p57
    %p59 = scmp.ne.s32.totalorder %s50, %s51
    %p60 = scmp.eq.s32.totalorder %s19, 0
    %p61 = por %p59, %p60
    %p62 = scmp.ne.s32.totalorder %s50, %s51
    %p63 = scmp.eq.s32.totalorder %s20, 1
    %p64 = por %p62, %p63
    %p66 = scmp.ne.s32.totalorder %s51, %s65
    %p67 = scmp.eq.s32.totalorder %s20, 0
    %p68 = por %p66, %p67
    %s70 = sadd.s32 %s69, 1
    %p73 = scmp.eq.s32.totalorder %s14, 1
    %p74 = scmp.ne.s32.totalorder %s69, %s71
    %p75 = scmp.eq.s32.totalorder %s14, 0
    %p76 = por %p74, %p75
    %p77 = scmp.ne.s32.totalorder %s69, %s71
    %p78 = scmp.eq.s32.totalorder %s19, 1
    %p79 = por %p77, %p78
    %p80 = scmp.ne.s32.totalorder %s71, %s72
    %p81 = scmp.eq.s32.totalorder %s19, 0
    %p82 = por %p80, %p81
    %p83 = scmp.ne.s32.totalorder %s71, %s72
    %p84 = scmp.eq.s32.totalorder %s20, 1
    %p85 = por %p83, %p84
    %p87 = scmp.ne.s32.totalorder %s72, %s86
    %p88 = scmp.eq.s32.totalorder %s20, 0
    %p89 = por %p87, %p88
    %s91 = sadd.s32 %s90, 1
    %p94 = scmp.eq.s32.totalorder %s14, 1
    %p95 = scmp.ne.s32.totalorder %s90, %s92
    %p96 = scmp.eq.s32.totalorder %s14, 0
    %p97 = por %p95, %p96
    %p98 = scmp.ne.s32.totalorder %s90, %s92
    %p99 = scmp.eq.s32.totalorder %s19, 1
    %p100 = por %p98, %p99
    %p101 = scmp.ne.s32.totalorder %s92, %s93
    %p102 = scmp.eq.s32.totalorder %s19, 0
    %p103 = por %p101, %p102
    %p104 = scmp.ne.s32.totalorder %s92, %s93
    %p105 = scmp.eq.s32.totalorder %s20, 1
    %p106 = por %p104, %p105
    %p108 = scmp.ne.s32.totalorder %s93, %s107
    %p109 = scmp.eq.s32.totalorder %s20, 0
    %p110 = por %p108, %p109
    %s112 = sadd.s32 %s111, 1
    %p115 = scmp.eq.s32.totalorder %s14, 1
    %p116 = scmp.ne.s32.totalorder %s111, %s113
    %p117 = scmp.eq.s32.totalorder %s14, 0
    %p118 = por %p116, %p117
    %p119 = scmp.ne.s32.totalorder %s111, %s113
    %p120 = scmp.eq.s32.totalorder %s19, 1
    %p121 = por %p119, %p120
    %p122 = scmp.ne.s32.totalorder %s113, %s114
    %p123 = scmp.eq.s32.totalorder %s19, 0
    %p124 = por %p122, %p123
    %p125 = scmp.ne.s32.totalorder %s113, %s114
    %p126 = scmp.eq.s32.totalorder %s20, 1
    %p127 = por %p125, %p126
    %p129 = scmp.ne.s32.totalorder %s114, %s128
    %p130 = scmp.eq.s32.totalorder %s20, 0
    %p131 = por %p129, %p130
    %s133 = sadd.s32 %s132, 1
    %p136 = scmp.eq.s32.totalorder %s14, 1
    %p137 = scmp.ne.s32.totalorder %s132, %s134
    %p138 = scmp.eq.s32.totalorder %s14, 0
    %p139 = por %p137, %p138
    %p140 = scmp.ne.s32.totalorder %s132, %s134
    %p141 = scmp.eq.s32.totalorder %s19, 1
    %p142 = por %p140, %p141
    %p143 = scmp.ne.s32.totalorder %s134, %s135
    %p144 = scmp.eq.s32.totalorder %s19, 0
    %p145 = por %p143, %p144
    %p146 = scmp.ne.s32.totalorder %s134, %s135
    %p147 = scmp.eq.s32.totalorder %s20, 1
    %p148 = por %p146, %p147
    %p150 = scmp.ne.s32.totalorder %s135, %s149
    %p151 = scmp.eq.s32.totalorder %s20, 0
    %p152 = por %p150, %p151
    %s154 = sadd.s32 %s153, 1
    %p157 = scmp.eq.s32.totalorder %s14, 1
    %p158 = scmp.ne.s32.totalorder %s153, %s155
    %p159 = scmp.eq.s32.totalorder %s14, 0
    %p160 = por %p158, %p159
    %p161 = scmp.ne.s32.totalorder %s153, %s155
    %p162 = scmp.eq.s32.totalorder %s19, 1
    %p163 = por %p161, %p162
    %p164 = scmp.ne.s32.totalorder %s155, %s156
    %p165 = scmp.eq.s32.totalorder %s19, 0
    %p166 = por %p164, %p165
    %p167 = scmp.ne.s32.totalorder %s155, %s156
    %p168 = scmp.eq.s32.totalorder %s20, 1
    %p169 = por %p167, %p168
    %p171 = scmp.ne.s32.totalorder %s156, %s170
    %p172 = scmp.eq.s32.totalorder %s20, 0
    %p173 = por %p171, %p172
    %s175 = sadd.s32 %s174, 1
    %p178 = scmp.eq.s32.totalorder %s14, 1
    %p179 = scmp.ne.s32.totalorder %s174, %s176
    %p180 = scmp.eq.s32.totalorder %s14, 0
    %p181 = por %p179, %p180
    %p182 = scmp.ne.s32.totalorder %s174, %s176
    %p183 = scmp.eq.s32.totalorder %s19, 1
    %p184 = por %p182, %p183
    %p185 = scmp.ne.s32.totalorder %s176, %s177
    %p186 = scmp.eq.s32.totalorder %s19, 0
    %p187 = por %p185, %p186
    %p188 = scmp.ne.s32.totalorder %s176, %s177
    %p189 = scmp.eq.s32.totalorder %s20, 1
    %p190 = por %p188, %p189
    %p192 = scmp.ne.s32.totalorder %s177, %s191
    %p193 = scmp.eq.s32.totalorder %s20, 0
    %p194 = por %p192, %p193
    %s195 = ssub.s32 %s14, %s21
    %p196 = scmp.eq.s32.totalorder %s195, 0
    %s198 = sadd.s32 %s197, 1
    %s199 = scalar_select %p196, %s197, %s198
    %p202 = pneg %p196
    %p203 = scmp.eq.s32.totalorder %s14, 1
    %p204 = por %p202, %p203
    %p205 = scmp.ne.s32.totalorder %s197, %s200
    %p206 = scmp.eq.s32.totalorder %s14, 0
    %p207 = por %p205, %p206
    %p208 = scmp.ne.s32.totalorder %s197, %s200
    %p209 = scmp.eq.s32.totalorder %s19, 1
    %p210 = por %p208, %p209
    %p211 = scmp.ne.s32.totalorder %s200, %s201
    %p212 = scmp.eq.s32.totalorder %s19, 0
    %p213 = por %p211, %p212
    %p214 = scmp.ne.s32.totalorder %s200, %s201
    %p215 = scmp.eq.s32.totalorder %s20, 1
    %p216 = por %p214, %p215
    %p218 = scmp.ne.s32.totalorder %s201, %s217
    %p219 = scmp.eq.s32.totalorder %s20, 0
    %p220 = por %p218, %p219
    %p221 = scmp.le.s32.totalorder 1, %s14
    %p222 = scmp.lt.s32.totalorder %s14, 3
    %p223 = pnand %p221, %p222
    %p224 = pneg %p223
    // Predicated region
    $region9: #{physics_diffusion_forward.1} parent=5 // pred_check
      _
    $region10: #{physics_diffusion_forward.1} parent=5 // pred_check_branch
      %226 = sbr.rel (%p223) target = $region12
    $region11: #{physics_diffusion_forward.1} parent=5 // pred_region
      %s227 = ssub.s32 %s14, 1
      // Predicated region
      $region13: #{physics_diffusion_forward.1} parent=11 // pred_check
        %p228 = pneg %p61
      $region14: #{physics_diffusion_forward.1} parent=11 // pred_check_branch
        %230 = sbr.rel (%p228) target = $region16
      $region15: #{physics_diffusion_forward.1} parent=11 // pred_region
        _
      $region16: #{physics_diffusion_forward.1} parent=11 // pred_fallthru
        _
      // Predicated region
      $region17: #{physics_diffusion_forward.1} parent=11 // pred_check
        %p231 = pneg %p82
      $region18: #{physics_diffusion_forward.1} parent=11 // pred_check_branch
        %233 = sbr.rel (%p231) target = $region20
      $region19: #{physics_diffusion_forward.1} parent=11 // pred_region
        _
      $region20: #{physics_diffusion_forward.1} parent=11 // pred_fallthru
        _
      // Predicated region
      $region21: #{physics_diffusion_forward.1} parent=11 // pred_check
        %p234 = pneg %p103
      $region22: #{physics_diffusion_forward.1} parent=11 // pred_check_branch
        %236 = sbr.rel (%p234) target = $region24
      $region23: #{physics_diffusion_forward.1} parent=11 // pred_region
        _
      $region24: #{physics_diffusion_forward.1} parent=11 // pred_fallthru
        _
      // Predicated region
      $region25: #{physics_diffusion_forward.1} parent=11 // pred_check
        %p237 = pneg %p124
      $region26: #{physics_diffusion_forward.1} parent=11 // pred_check_branch
        %239 = sbr.rel (%p237) target = $region28
      $region27: #{physics_diffusion_forward.1} parent=11 // pred_region
        _
      $region28: #{physics_diffusion_forward.1} parent=11 // pred_fallthru
        _
      // Predicated region
      $region29: #{physics_diffusion_forward.1} parent=11 // pred_check
        %p240 = pneg %p145
      $region30: #{physics_diffusion_forward.1} parent=11 // pred_check_branch
        %242 = sbr.rel (%p240) target = $region32
      $region31: #{physics_diffusion_forward.1} parent=11 // pred_region
        _
      $region32: #{physics_diffusion_forward.1} parent=11 // pred_fallthru
        _
      // Predicated region
      $region33: #{physics_diffusion_forward.1} parent=11 // pred_check
        %p243 = pneg %p166
      $region34: #{physics_diffusion_forward.1} parent=11 // pred_check_branch
        %245 = sbr.rel (%p243) target = $region36
      $region35: #{physics_diffusion_forward.1} parent=11 // pred_region
        _
      $region36: #{physics_diffusion_forward.1} parent=11 // pred_fallthru
        _
      // Predicated region
      $region37: #{physics_diffusion_forward.1} parent=11 // pred_check
        %p246 = pneg %p187
      $region38: #{physics_diffusion_forward.1} parent=11 // pred_check_branch
        %248 = sbr.rel (%p246) target = $region40
      $region39: #{physics_diffusion_forward.1} parent=11 // pred_region
        _
      $region40: #{physics_diffusion_forward.1} parent=11 // pred_fallthru
        _
    $region12: #{physics_diffusion_forward.1} parent=5 // pred_fallthru
      _
    %p249 = scmp.lt.s32.totalorder %s14, 2
    // Predicated region
    $region41: #{physics_diffusion_forward.1} parent=5 // pred_check
      %p250 = pneg %p249
    $region42: #{physics_diffusion_forward.1} parent=5 // pred_check_branch
      %252 = sbr.rel (%p250) target = $region44
    $region43: #{physics_diffusion_forward.1} parent=5 // pred_region
      // Predicated region
      $region45: #{physics_diffusion_forward.1} parent=43 // pred_check
        %p253 = pneg %p34
      $region46: #{physics_diffusion_forward.1} parent=43 // pred_check_branch
        %255 = sbr.rel (%p253) target = $region48
      $region47: #{physics_diffusion_forward.1} parent=43 // pred_region
        %s256 = smul.u32 2, %s14
        %p257 = scmp.lt.s32.totalorder %s256, 3
        %s258 = scalar_select %p257, %s256, 3
        %s259 = smul.addr %s258, 8
        %s260 = scalar_lea.vmem %s0, %s259
        %s261 = smul.u32 2, %s14
      $region48: #{physics_diffusion_forward.1} parent=43 // pred_fallthru
        _
    $region44: #{physics_diffusion_forward.1} parent=5 // pred_fallthru
      _
    %p262 = scmp.le.s32.totalorder 1, %s14
    %p263 = scmp.lt.s32.totalorder %s14, 3
    %p264 = pnand %p262, %p263
    %p265 = pneg %p264
    // Predicated region
    $region49: #{physics_diffusion_forward.1} parent=5 // pred_check
      _
    $region50: #{physics_diffusion_forward.1} parent=5 // pred_check_branch
      %267 = sbr.rel (%p264) target = $region52
    $region51: #{physics_diffusion_forward.1} parent=5 // pred_region
      %s268 = ssub.s32 %s14, 1
      %s269 = smul.u32 2, %s19
      %p270 = scmp.lt.s32.totalorder %s269, 3
      %s271 = scalar_select %p270, %s269, 3
      %s272 = smul.addr %s271, 8
      %s273 = scalar_lea.vmem %s0, %s272
      %p274 = pneg %p40
      %p275 = pneg %p37
      %p276 = pneg %p61
      %p277 = pneg %p58
      %p278 = pneg %p82
      %p279 = pneg %p79
      %p280 = pneg %p103
      %p281 = pneg %p100
      %p282 = pneg %p124
      %p283 = pneg %p121
      %p284 = pneg %p145
      %p285 = pneg %p142
      %p286 = pneg %p166
      %p287 = pneg %p163
      %p288 = pneg %p187
      %p289 = pneg %p184
      %p290 = pneg %p213
      %p291 = pneg %p210
      %s292 = smul.u32 16, %s19
      %p293 = scmp.lt.s32.totalorder %s292, 31
      %s294 = scalar_select %p293, %s292, 31
      %s295 = smul.addr %s294, 8
      %s296 = scalar_lea.vmem %s8, %s295
      %s297 = smul.u32 2, %s19
      %p298 = scmp.lt.s32.totalorder %s297, 3
      %s299 = scalar_select %p298, %s297, 3
      %s300 = smul.addr %s299, 8
      %s301 = scalar_lea.vmem %s0, %s300
      %s302 = smul.u32 2, %s19
      %s303 = smul.u32 16, %s19
      %p304 = scmp.lt.s32.totalorder %s303, 31
      %s305 = scalar_select %p304, %s303, 31
      %s306 = smul.addr %s305, 8
      %s307 = scalar_lea.vmem %s8, %s306
      %s308 = smul.u32 16, %s19
      %v309 = vld [vmem:[%s2] sm:$0xff]
      %v310 = vld [vmem:[%s2 + $0x8] sm:$0xff]
      %v311 = vld [vmem:[%s2 + $0x10] sm:$0xff]
      %v312 = vld [vmem:[%s2 + $0x18] sm:$0xff]
      %s313 = scalar_lea.vmem %s2, 32
      %v314 = vld [vmem:[%s313] ss:$8 sm:$0x3]
      %v315 = vld [vmem:[%s5] sm:$0xff]
      %v316 = vld [vmem:[%s5 + $0x8] sm:$0x1]
      %v317 = vld [vmem:[%s6] sm:$0xff]
      %v318 = vld [vmem:[%s6 + $0x8] sm:$0xff]
      %v319 = vld [vmem:[%s6 + $0x10] sm:$0xff]
      %v320 = vld [vmem:[%s6 + $0x18] sm:$0xff]
      %v321 = vld [vmem:[%s6 + $0x20] sm:$0xff]
      %v322 = vld [vmem:[%s6 + $0x28] sm:$0xff]
      %v323 = vld [vmem:[%s6 + $0x30] sm:$0xff]
      %v324 = vld [vmem:[%s6 + $0x38] sm:$0xff]
      %v325 = vld [vmem:[%s6 + $0x40] sm:$0xff]
      %v326 = vld [vmem:[%s6 + $0x48] sm:$0xff]
      %v327 = vld [vmem:[%s6 + $0x50] sm:$0xff]
      %v328 = vld [vmem:[%s6 + $0x58] sm:$0xff]
      %v329 = vld [vmem:[%s6 + $0x60] sm:$0xff]
      %v330 = vld [vmem:[%s6 + $0x68] sm:$0xff]
      %v331 = vld [vmem:[%s6 + $0x70] sm:$0xff]
      %v332 = vld [vmem:[%s6 + $0x78] sm:$0xff]
      %v333 = vld [vmem:[%s6 + $0x80] sm:$0xff]
      %v334 = vld [vmem:[%s7] ss:$8 sm:$0x3]
      %v335 = vld [vmem:[%s7 + $0x1] ss:$0 sm:$0xff]
      %v336 = vld [vmem:[%s7 + $0x2] ss:$0 sm:$0xff]
      %v337 = vld [vmem:[%s7 + $0x3] ss:$0 sm:$0xff]
      %v338 = vld [vmem:[%s7 + $0x4] ss:$0 sm:$0xff]
      %v339 = vld [vmem:[%s7 + $0x5] ss:$0 sm:$0xff]
      %v340 = vld [vmem:[%s7 + $0x6] ss:$0 sm:$0xff]
      %v341 = vld [vmem:[%s1] sm:$0xff]
      %vm342 = vcmp.gt.f32.partialorder %v341, 0.0
      %v343 = vsel %vm342, %v341, 1.0
      %v344 = vperm.slane %v343, 7
      %v345 = vrcp.pop %v344
      %v346 = vmul.f32 %v344, %v345
      %v347 = vsub.f32 1.0, %v346
      %v348 = vmul.f32 %v345, %v347
      %v349 = vadd.f32 %v345, %v348
      %vm350 = vweird.f32 %v344
      %vm351 = vweird.f32 %v345
      %vm352 = vmor %vm350, %vm351
      %v353 = vsel %vm352, %v345, %v349
      %v354 = vand.u32 2147483647, %v344
      %vm355 = vcmp.eq.f32.partialorder %v354, 8.507059e+37
      %v356 = vand.u32 %v344, 2147483648
      %v357 = vor.u32 1.1754944e-38, %v356
      %v358 = vsel %vm355, %v357, %v353
      %v359 = vmul.f32 %v341, %v358
      %v360 = vsel %vm342, 1, 0
      %v361 = vperm.slane %v360, 7
      %vm362 = vcmp.eq.s32.totalorder %v361, 1
      %v363 = vsel %vm362, %v359, 0.0
      %v364 = vld [vmem:[%s301] sm:$0xff]
      %v365 = vld [vmem:[%s301 + $0x8] sm:$0xff]
      %vm366 = vcmask 64512
      %v368 = vsel %vm366, %v364, 0
      %v371 = vsel %vm366, %v365, 0
      %373 = vmatpush.msra.mxu0 0.0
      %374 = vmatpush.msra.mxu0 0.0
      %375 = vmatpush.msra.mxu0 0.0
      %376 = vmatpush.msra.mxu0 0.0
      %377 = vmatpush.msra.mxu0 0.0
      %378 = vmatpush.msra.mxu0 0.0
      %379 = vmatpush.msra.mxu0 0.0
      %380 = vmatpush.msra.mxu0 0.0
      %381 = vmatpush.msra.mxu0 0.0
      %382 = vmatpush.msra.mxu0 0.0
      %383 = vmatpush.msra.mxu0 0.0
      %384 = vmatpush.msra.mxu0 0.0
      %385 = vmatpush.msra.mxu0 0.0
      %386 = vmatpush.msra.mxu0 0.0
      %387 = vmatpush.msra.mxu0 0.0
      %388 = vmatpush.msra.mxu0 %v309
      %389 = vmatmul.f32.gmra.mxu0 %v368
      %v390 = vpop.f32.mrf.mxu0
      %v391 = vadd.f32 0.0, %v390
      %392 = vmatmul.f32.gmra.mxu0 %v371
      %v393 = vpop.f32.mrf.mxu0
      %v394 = vadd.f32 0.0, %v393
      %395 = vdwg.mxu0
      %396 = vmatpush.msra.mxu0 0.0
      %397 = vmatpush.msra.mxu0 0.0
      %398 = vmatpush.msra.mxu0 0.0
      %399 = vmatpush.msra.mxu0 0.0
      %400 = vmatpush.msra.mxu0 0.0
      %401 = vmatpush.msra.mxu0 0.0
      %402 = vmatpush.msra.mxu0 0.0
      %403 = vmatpush.msra.mxu0 0.0
      %404 = vmatpush.msra.mxu0 0.0
      %405 = vmatpush.msra.mxu0 0.0
      %406 = vmatpush.msra.mxu0 0.0
      %407 = vmatpush.msra.mxu0 0.0
      %408 = vmatpush.msra.mxu0 0.0
      %409 = vmatpush.msra.mxu0 0.0
      %410 = vmatpush.msra.mxu0 0.0
      %411 = vmatpush.msra.mxu0 %v310
      %412 = vmatmul.f32.gmra.mxu0 %v368
      %v413 = vpop.f32.mrf.mxu0
      %v414 = vadd.f32 0.0, %v413
      %415 = vmatmul.f32.gmra.mxu0 %v371
      %v416 = vpop.f32.mrf.mxu0
      %v417 = vadd.f32 0.0, %v416
      %418 = vdwg.mxu0
      %420 = vset.pattern.permute.xlu0 0
      %421 = vperm.xlu0 %420, %v363
      %v422 = vpop.permute.xlu0 %421
      %v425 = vperm.slane %v314, 0
      %v426 = vperm.slane %v314, 1
      %v429 = vmul.f32 %v422, %v425
      %v430 = vmul.f32 %v422, %v426
      %v432 = vperm.slane %v334, 0
      %v433 = vperm.slane %v334, 1
      %v436 = vadd.f32 %v429, %v432
      %v437 = vadd.f32 %v430, %v433
      %v442 = vrot.slane %v414, 7
      %v443 = vrot.slane %v417, 7
      %vm444 = vcmask 1040384
      %v445 = vsel %vm444, %v391, %v442
      %vm446 = vcmask 1041409
      %v447 = vsel %vm446, %v391, %v442
      %v448 = vrot.slane %v447, 1
      %vm449 = vcmask 1042434
      %v450 = vsel %vm449, %v391, %v442
      %v451 = vrot.slane %v450, 2
      %vm452 = vcmask 1043459
      %v453 = vsel %vm452, %v391, %v442
      %v454 = vrot.slane %v453, 3
      %vm455 = vcmask 1044484
      %v456 = vsel %vm455, %v391, %v442
      %v457 = vrot.slane %v456, 4
      %vm458 = vcmask 1045509
      %v459 = vsel %vm458, %v391, %v442
      %v460 = vrot.slane %v459, 5
      %vm461 = vcmask 1046534
      %v462 = vsel %vm461, %v391, %v442
      %v463 = vrot.slane %v462, 6
      %vm464 = vcmask 1046528
      %v465 = vsel %vm464, %v442, %v391
      %v466 = vrot.slane %v465, 7
      %v467 = vsel %vm444, %v394, %v443
      %v468 = vsel %vm446, %v394, %v443
      %v469 = vrot.slane %v468, 1
      %v470 = vsel %vm449, %v394, %v443
      %v471 = vrot.slane %v470, 2
      %v472 = vsel %vm452, %v394, %v443
      %v473 = vrot.slane %v472, 3
      %v474 = vsel %vm455, %v394, %v443
      %v475 = vrot.slane %v474, 4
      %v476 = vsel %vm458, %v394, %v443
      %v477 = vrot.slane %v476, 5
      %v478 = vsel %vm461, %v394, %v443
      %v479 = vrot.slane %v478, 6
      %v480 = vsel %vm464, %v443, %v394
      %v481 = vrot.slane %v480, 7
      %v500 = vrot.slane %v437, 7
      %v501 = vsel %vm444, %v436, %v500
      %v502 = vsel %vm446, %v436, %v500
      %v503 = vrot.slane %v502, 1
      %v504 = vsel %vm449, %v436, %v500
      %v505 = vrot.slane %v504, 2
      %v506 = vsel %vm452, %v436, %v500
      %v507 = vrot.slane %v506, 3
      %v508 = vsel %vm455, %v436, %v500
      %v509 = vrot.slane %v508, 4
      %v510 = vsel %vm458, %v436, %v500
      %v511 = vrot.slane %v510, 5
      %v512 = vsel %vm461, %v436, %v500
      %v513 = vrot.slane %v512, 6
      %v514 = vsel %vm464, %v500, %v436
      %v515 = vrot.slane %v514, 7
      %v524 = vadd.f32 %v445, %v501
      %v525 = vadd.f32 %v445, %v503
      %v526 = vadd.f32 %v445, %v505
      %v527 = vadd.f32 %v445, %v507
      %v528 = vadd.f32 %v445, %v509
      %v529 = vadd.f32 %v445, %v511
      %v530 = vadd.f32 %v445, %v513
      %v531 = vadd.f32 %v445, %v515
      %v532 = vadd.f32 %v448, %v501
      %v533 = vadd.f32 %v448, %v503
      %v534 = vadd.f32 %v448, %v505
      %v535 = vadd.f32 %v448, %v507
      %v536 = vadd.f32 %v448, %v509
      %v537 = vadd.f32 %v448, %v511
      %v538 = vadd.f32 %v448, %v513
      %v539 = vadd.f32 %v448, %v515
      %v540 = vadd.f32 %v451, %v501
      %v541 = vadd.f32 %v451, %v503
      %v542 = vadd.f32 %v451, %v505
      %v543 = vadd.f32 %v451, %v507
      %v544 = vadd.f32 %v451, %v509
      %v545 = vadd.f32 %v451, %v511
      %v546 = vadd.f32 %v451, %v513
      %v547 = vadd.f32 %v451, %v515
      %v548 = vadd.f32 %v454, %v501
      %v549 = vadd.f32 %v454, %v503
      %v550 = vadd.f32 %v454, %v505
      %v551 = vadd.f32 %v454, %v507
      %v552 = vadd.f32 %v454, %v509
      %v553 = vadd.f32 %v454, %v511
      %v554 = vadd.f32 %v454, %v513
      %v555 = vadd.f32 %v454, %v515
      %v556 = vadd.f32 %v457, %v501
      %v557 = vadd.f32 %v457, %v503
      %v558 = vadd.f32 %v457, %v505
      %v559 = vadd.f32 %v457, %v507
      %v560 = vadd.f32 %v457, %v509
      %v561 = vadd.f32 %v457, %v511
      %v562 = vadd.f32 %v457, %v513
      %v563 = vadd.f32 %v457, %v515
      %v564 = vadd.f32 %v460, %v501
      %v565 = vadd.f32 %v460, %v503
      %v566 = vadd.f32 %v460, %v505
      %v567 = vadd.f32 %v460, %v507
      %v568 = vadd.f32 %v460, %v509
      %v569 = vadd.f32 %v460, %v511
      %v570 = vadd.f32 %v460, %v513
      %v571 = vadd.f32 %v460, %v515
      %v572 = vadd.f32 %v463, %v501
      %v573 = vadd.f32 %v463, %v503
      %v574 = vadd.f32 %v463, %v505
      %v575 = vadd.f32 %v463, %v507
      %v576 = vadd.f32 %v463, %v509
      %v577 = vadd.f32 %v463, %v511
      %v578 = vadd.f32 %v463, %v513
      %v579 = vadd.f32 %v463, %v515
      %v580 = vadd.f32 %v466, %v501
      %v581 = vadd.f32 %v466, %v503
      %v582 = vadd.f32 %v466, %v505
      %v583 = vadd.f32 %v466, %v507
      %v584 = vadd.f32 %v466, %v509
      %v585 = vadd.f32 %v466, %v511
      %v586 = vadd.f32 %v466, %v513
      %v587 = vadd.f32 %v466, %v515
      %v588 = vadd.f32 %v467, %v501
      %v589 = vadd.f32 %v467, %v503
      %v590 = vadd.f32 %v467, %v505
      %v591 = vadd.f32 %v467, %v507
      %v592 = vadd.f32 %v467, %v509
      %v593 = vadd.f32 %v467, %v511
      %v594 = vadd.f32 %v467, %v513
      %v595 = vadd.f32 %v467, %v515
      %v596 = vadd.f32 %v469, %v501
      %v597 = vadd.f32 %v469, %v503
      %v598 = vadd.f32 %v469, %v505
      %v599 = vadd.f32 %v469, %v507
      %v600 = vadd.f32 %v469, %v509
      %v601 = vadd.f32 %v469, %v511
      %v602 = vadd.f32 %v469, %v513
      %v603 = vadd.f32 %v469, %v515
      %v604 = vadd.f32 %v471, %v501
      %v605 = vadd.f32 %v471, %v503
      %v606 = vadd.f32 %v471, %v505
      %v607 = vadd.f32 %v471, %v507
      %v608 = vadd.f32 %v471, %v509
      %v609 = vadd.f32 %v471, %v511
      %v610 = vadd.f32 %v471, %v513
      %v611 = vadd.f32 %v471, %v515
      %v612 = vadd.f32 %v473, %v501
      %v613 = vadd.f32 %v473, %v503
      %v614 = vadd.f32 %v473, %v505
      %v615 = vadd.f32 %v473, %v507
      %v616 = vadd.f32 %v473, %v509
      %v617 = vadd.f32 %v473, %v511
      %v618 = vadd.f32 %v473, %v513
      %v619 = vadd.f32 %v473, %v515
      %v620 = vadd.f32 %v475, %v501
      %v621 = vadd.f32 %v475, %v503
      %v622 = vadd.f32 %v475, %v505
      %v623 = vadd.f32 %v475, %v507
      %v624 = vadd.f32 %v475, %v509
      %v625 = vadd.f32 %v475, %v511
      %v626 = vadd.f32 %v475, %v513
      %v627 = vadd.f32 %v475, %v515
      %v628 = vadd.f32 %v477, %v501
      %v629 = vadd.f32 %v477, %v503
      %v630 = vadd.f32 %v477, %v505
      %v631 = vadd.f32 %v477, %v507
      %v632 = vadd.f32 %v477, %v509
      %v633 = vadd.f32 %v477, %v511
      %v634 = vadd.f32 %v477, %v513
      %v635 = vadd.f32 %v477, %v515
      %v636 = vadd.f32 %v479, %v501
      %v637 = vadd.f32 %v479, %v503
      %v638 = vadd.f32 %v479, %v505
      %v639 = vadd.f32 %v479, %v507
      %v640 = vadd.f32 %v479, %v509
      %v641 = vadd.f32 %v479, %v511
      %v642 = vadd.f32 %v479, %v513
      %v643 = vadd.f32 %v479, %v515
      %v644 = vadd.f32 %v481, %v501
      %v645 = vadd.f32 %v481, %v503
      %v646 = vadd.f32 %v481, %v505
      %v647 = vadd.f32 %v481, %v507
      %v648 = vadd.f32 %v481, %v509
      %v649 = vadd.f32 %v481, %v511
      %v650 = vadd.f32 %v481, %v513
      %v651 = vadd.f32 %v481, %v515
      %v780 = vperm.slane %v524, 0
      %v781 = vperm.slane %v524, 1
      %v782 = vperm.slane %v525, 0
      %v783 = vperm.slane %v525, 1
      %v784 = vperm.slane %v526, 0
      %v785 = vperm.slane %v526, 1
      %v786 = vperm.slane %v527, 0
      %v787 = vperm.slane %v527, 1
      %v788 = vperm.slane %v528, 0
      %v789 = vperm.slane %v528, 1
      %v790 = vperm.slane %v529, 0
      %v791 = vperm.slane %v529, 1
      %v792 = vperm.slane %v530, 0
      %v793 = vperm.slane %v530, 1
      %v794 = vperm.slane %v531, 0
      %v795 = vperm.slane %v531, 1
      %v796 = vperm.slane %v532, 0
      %v797 = vperm.slane %v532, 1
      %v798 = vperm.slane %v533, 0
      %v799 = vperm.slane %v533, 1
      %v800 = vperm.slane %v534, 0
      %v801 = vperm.slane %v534, 1
      %v802 = vperm.slane %v535, 0
      %v803 = vperm.slane %v535, 1
      %v804 = vperm.slane %v536, 0
      %v805 = vperm.slane %v536, 1
      %v806 = vperm.slane %v537, 0
      %v807 = vperm.slane %v537, 1
      %v808 = vperm.slane %v538, 0
      %v809 = vperm.slane %v538, 1
      %v810 = vperm.slane %v539, 0
      %v811 = vperm.slane %v539, 1
      %v812 = vperm.slane %v540, 0
      %v813 = vperm.slane %v540, 1
      %v814 = vperm.slane %v541, 0
      %v815 = vperm.slane %v541, 1
      %v816 = vperm.slane %v542, 0
      %v817 = vperm.slane %v542, 1
      %v818 = vperm.slane %v543, 0
      %v819 = vperm.slane %v543, 1
      %v820 = vperm.slane %v544, 0
      %v821 = vperm.slane %v544, 1
      %v822 = vperm.slane %v545, 0
      %v823 = vperm.slane %v545, 1
      %v824 = vperm.slane %v546, 0
      %v825 = vperm.slane %v546, 1
      %v826 = vperm.slane %v547, 0
      %v827 = vperm.slane %v547, 1
      %v828 = vperm.slane %v548, 0
      %v829 = vperm.slane %v548, 1
      %v830 = vperm.slane %v549, 0
      %v831 = vperm.slane %v549, 1
      %v832 = vperm.slane %v550, 0
      %v833 = vperm.slane %v550, 1
      %v834 = vperm.slane %v551, 0
      %v835 = vperm.slane %v551, 1
      %v836 = vperm.slane %v552, 0
      %v837 = vperm.slane %v552, 1
      %v838 = vperm.slane %v553, 0
      %v839 = vperm.slane %v553, 1
      %v840 = vperm.slane %v554, 0
      %v841 = vperm.slane %v554, 1
      %v842 = vperm.slane %v555, 0
      %v843 = vperm.slane %v555, 1
      %v844 = vperm.slane %v556, 0
      %v845 = vperm.slane %v556, 1
      %v846 = vperm.slane %v557, 0
      %v847 = vperm.slane %v557, 1
      %v848 = vperm.slane %v558, 0
      %v849 = vperm.slane %v558, 1
      %v850 = vperm.slane %v559, 0
      %v851 = vperm.slane %v559, 1
      %v852 = vperm.slane %v560, 0
      %v853 = vperm.slane %v560, 1
      %v854 = vperm.slane %v561, 0
      %v855 = vperm.slane %v561, 1
      %v856 = vperm.slane %v562, 0
      %v857 = vperm.slane %v562, 1
      %v858 = vperm.slane %v563, 0
      %v859 = vperm.slane %v563, 1
      %v860 = vperm.slane %v564, 0
      %v861 = vperm.slane %v564, 1
      %v862 = vperm.slane %v565, 0
      %v863 = vperm.slane %v565, 1
      %v864 = vperm.slane %v566, 0
      %v865 = vperm.slane %v566, 1
      %v866 = vperm.slane %v567, 0
      %v867 = vperm.slane %v567, 1
      %v868 = vperm.slane %v568, 0
      %v869 = vperm.slane %v568, 1
      %v870 = vperm.slane %v569, 0
      %v871 = vperm.slane %v569, 1
      %v872 = vperm.slane %v570, 0
      %v873 = vperm.slane %v570, 1
      %v874 = vperm.slane %v571, 0
      %v875 = vperm.slane %v571, 1
      %v876 = vperm.slane %v572, 0
      %v877 = vperm.slane %v572, 1
      %v878 = vperm.slane %v573, 0
      %v879 = vperm.slane %v573, 1
      %v880 = vperm.slane %v574, 0
      %v881 = vperm.slane %v574, 1
      %v882 = vperm.slane %v575, 0
      %v883 = vperm.slane %v575, 1
      %v884 = vperm.slane %v576, 0
      %v885 = vperm.slane %v576, 1
      %v886 = vperm.slane %v577, 0
      %v887 = vperm.slane %v577, 1
      %v888 = vperm.slane %v578, 0
      %v889 = vperm.slane %v578, 1
      %v890 = vperm.slane %v579, 0
      %v891 = vperm.slane %v579, 1
      %v892 = vperm.slane %v580, 0
      %v893 = vperm.slane %v580, 1
      %v894 = vperm.slane %v581, 0
      %v895 = vperm.slane %v581, 1
      %v896 = vperm.slane %v582, 0
      %v897 = vperm.slane %v582, 1
      %v898 = vperm.slane %v583, 0
      %v899 = vperm.slane %v583, 1
      %v900 = vperm.slane %v584, 0
      %v901 = vperm.slane %v584, 1
      %v902 = vperm.slane %v585, 0
      %v903 = vperm.slane %v585, 1
      %v904 = vperm.slane %v586, 0
      %v905 = vperm.slane %v586, 1
      %v906 = vperm.slane %v587, 0
      %v907 = vperm.slane %v587, 1
      %v908 = vperm.slane %v588, 0
      %v909 = vperm.slane %v588, 1
      %v910 = vperm.slane %v589, 0
      %v911 = vperm.slane %v589, 1
      %v912 = vperm.slane %v590, 0
      %v913 = vperm.slane %v590, 1
      %v914 = vperm.slane %v591, 0
      %v915 = vperm.slane %v591, 1
      %v916 = vperm.slane %v592, 0
      %v917 = vperm.slane %v592, 1
      %v918 = vperm.slane %v593, 0
      %v919 = vperm.slane %v593, 1
      %v920 = vperm.slane %v594, 0
      %v921 = vperm.slane %v594, 1
      %v922 = vperm.slane %v595, 0
      %v923 = vperm.slane %v595, 1
      %v924 = vperm.slane %v596, 0
      %v925 = vperm.slane %v596, 1
      %v926 = vperm.slane %v597, 0
      %v927 = vperm.slane %v597, 1
      %v928 = vperm.slane %v598, 0
      %v929 = vperm.slane %v598, 1
      %v930 = vperm.slane %v599, 0
      %v931 = vperm.slane %v599, 1
      %v932 = vperm.slane %v600, 0
      %v933 = vperm.slane %v600, 1
      %v934 = vperm.slane %v601, 0
      %v935 = vperm.slane %v601, 1
      %v936 = vperm.slane %v602, 0
      %v937 = vperm.slane %v602, 1
      %v938 = vperm.slane %v603, 0
      %v939 = vperm.slane %v603, 1
      %v940 = vperm.slane %v604, 0
      %v941 = vperm.slane %v604, 1
      %v942 = vperm.slane %v605, 0
      %v943 = vperm.slane %v605, 1
      %v944 = vperm.slane %v606, 0
      %v945 = vperm.slane %v606, 1
      %v946 = vperm.slane %v607, 0
      %v947 = vperm.slane %v607, 1
      %v948 = vperm.slane %v608, 0
      %v949 = vperm.slane %v608, 1
      %v950 = vperm.slane %v609, 0
      %v951 = vperm.slane %v609, 1
      %v952 = vperm.slane %v610, 0
      %v953 = vperm.slane %v610, 1
      %v954 = vperm.slane %v611, 0
      %v955 = vperm.slane %v611, 1
      %v956 = vperm.slane %v612, 0
      %v957 = vperm.slane %v612, 1
      %v958 = vperm.slane %v613, 0
      %v959 = vperm.slane %v613, 1
      %v960 = vperm.slane %v614, 0
      %v961 = vperm.slane %v614, 1
      %v962 = vperm.slane %v615, 0
      %v963 = vperm.slane %v615, 1
      %v964 = vperm.slane %v616, 0
      %v965 = vperm.slane %v616, 1
      %v966 = vperm.slane %v617, 0
      %v967 = vperm.slane %v617, 1
      %v968 = vperm.slane %v618, 0
      %v969 = vperm.slane %v618, 1
      %v970 = vperm.slane %v619, 0
      %v971 = vperm.slane %v619, 1
      %v972 = vperm.slane %v620, 0
      %v973 = vperm.slane %v620, 1
      %v974 = vperm.slane %v621, 0
      %v975 = vperm.slane %v621, 1
      %v976 = vperm.slane %v622, 0
      %v977 = vperm.slane %v622, 1
      %v978 = vperm.slane %v623, 0
      %v979 = vperm.slane %v623, 1
      %v980 = vperm.slane %v624, 0
      %v981 = vperm.slane %v624, 1
      %v982 = vperm.slane %v625, 0
      %v983 = vperm.slane %v625, 1
      %v984 = vperm.slane %v626, 0
      %v985 = vperm.slane %v626, 1
      %v986 = vperm.slane %v627, 0
      %v987 = vperm.slane %v627, 1
      %v988 = vperm.slane %v628, 0
      %v989 = vperm.slane %v628, 1
      %v990 = vperm.slane %v629, 0
      %v991 = vperm.slane %v629, 1
      %v992 = vperm.slane %v630, 0
      %v993 = vperm.slane %v630, 1
      %v994 = vperm.slane %v631, 0
      %v995 = vperm.slane %v631, 1
      %v996 = vperm.slane %v632, 0
      %v997 = vperm.slane %v632, 1
      %v998 = vperm.slane %v633, 0
      %v999 = vperm.slane %v633, 1
      %v1000 = vperm.slane %v634, 0
      %v1001 = vperm.slane %v634, 1
      %v1002 = vperm.slane %v635, 0
      %v1003 = vperm.slane %v635, 1
      %v1004 = vperm.slane %v636, 0
      %v1005 = vperm.slane %v636, 1
      %v1006 = vperm.slane %v637, 0
      %v1007 = vperm.slane %v637, 1
      %v1008 = vperm.slane %v638, 0
      %v1009 = vperm.slane %v638, 1
      %v1010 = vperm.slane %v639, 0
      %v1011 = vperm.slane %v639, 1
      %v1012 = vperm.slane %v640, 0
      %v1013 = vperm.slane %v640, 1
      %v1014 = vperm.slane %v641, 0
      %v1015 = vperm.slane %v641, 1
      %v1016 = vperm.slane %v642, 0
      %v1017 = vperm.slane %v642, 1
      %v1018 = vperm.slane %v643, 0
      %v1019 = vperm.slane %v643, 1
      %v1020 = vperm.slane %v644, 0
      %v1021 = vperm.slane %v644, 1
      %v1022 = vperm.slane %v645, 0
      %v1023 = vperm.slane %v645, 1
      %v1024 = vperm.slane %v646, 0
      %v1025 = vperm.slane %v646, 1
      %v1026 = vperm.slane %v647, 0
      %v1027 = vperm.slane %v647, 1
      %v1028 = vperm.slane %v648, 0
      %v1029 = vperm.slane %v648, 1
      %v1030 = vperm.slane %v649, 0
      %v1031 = vperm.slane %v649, 1
      %v1032 = vperm.slane %v650, 0
      %v1033 = vperm.slane %v650, 1
      %v1034 = vperm.slane %v651, 0
      %v1035 = vperm.slane %v651, 1
      %v1292 = vadd.f32 %v780, %v311
      %v1293 = vadd.f32 %v781, %v312
      %v1294 = vadd.f32 %v782, %v311
      %v1295 = vadd.f32 %v783, %v312
      %v1296 = vadd.f32 %v784, %v311
      %v1297 = vadd.f32 %v785, %v312
      %v1298 = vadd.f32 %v786, %v311
      %v1299 = vadd.f32 %v787, %v312
      %v1300 = vadd.f32 %v788, %v311
      %v1301 = vadd.f32 %v789, %v312
      %v1302 = vadd.f32 %v790, %v311
      %v1303 = vadd.f32 %v791, %v312
      %v1304 = vadd.f32 %v792, %v311
      %v1305 = vadd.f32 %v793, %v312
      %v1306 = vadd.f32 %v794, %v311
      %v1307 = vadd.f32 %v795, %v312
      %v1308 = vadd.f32 %v796, %v311
      %v1309 = vadd.f32 %v797, %v312
      %v1310 = vadd.f32 %v798, %v311
      %v1311 = vadd.f32 %v799, %v312
      %v1312 = vadd.f32 %v800, %v311
      %v1313 = vadd.f32 %v801, %v312
      %v1314 = vadd.f32 %v802, %v311
      %v1315 = vadd.f32 %v803, %v312
      %v1316 = vadd.f32 %v804, %v311
      %v1317 = vadd.f32 %v805, %v312
      %v1318 = vadd.f32 %v806, %v311
      %v1319 = vadd.f32 %v807, %v312
      %v1320 = vadd.f32 %v808, %v311
      %v1321 = vadd.f32 %v809, %v312
      %v1322 = vadd.f32 %v810, %v311
      %v1323 = vadd.f32 %v811, %v312
      %v1324 = vadd.f32 %v812, %v311
      %v1325 = vadd.f32 %v813, %v312
      %v1326 = vadd.f32 %v814, %v311
      %v1327 = vadd.f32 %v815, %v312
      %v1328 = vadd.f32 %v816, %v311
      %v1329 = vadd.f32 %v817, %v312
      %v1330 = vadd.f32 %v818, %v311
      %v1331 = vadd.f32 %v819, %v312
      %v1332 = vadd.f32 %v820, %v311
      %v1333 = vadd.f32 %v821, %v312
      %v1334 = vadd.f32 %v822, %v311
      %v1335 = vadd.f32 %v823, %v312
      %v1336 = vadd.f32 %v824, %v311
      %v1337 = vadd.f32 %v825, %v312
      %v1338 = vadd.f32 %v826, %v311
      %v1339 = vadd.f32 %v827, %v312
      %v1340 = vadd.f32 %v828, %v311
      %v1341 = vadd.f32 %v829, %v312
      %v1342 = vadd.f32 %v830, %v311
      %v1343 = vadd.f32 %v831, %v312
      %v1344 = vadd.f32 %v832, %v311
      %v1345 = vadd.f32 %v833, %v312
      %v1346 = vadd.f32 %v834, %v311
      %v1347 = vadd.f32 %v835, %v312
      %v1348 = vadd.f32 %v836, %v311
      %v1349 = vadd.f32 %v837, %v312
      %v1350 = vadd.f32 %v838, %v311
      %v1351 = vadd.f32 %v839, %v312
      %v1352 = vadd.f32 %v840, %v311
      %v1353 = vadd.f32 %v841, %v312
      %v1354 = vadd.f32 %v842, %v311
      %v1355 = vadd.f32 %v843, %v312
      %v1356 = vadd.f32 %v844, %v311
      %v1357 = vadd.f32 %v845, %v312
      %v1358 = vadd.f32 %v846, %v311
      %v1359 = vadd.f32 %v847, %v312
      %v1360 = vadd.f32 %v848, %v311
      %v1361 = vadd.f32 %v849, %v312
      %v1362 = vadd.f32 %v850, %v311
      %v1363 = vadd.f32 %v851, %v312
      %v1364 = vadd.f32 %v852, %v311
      %v1365 = vadd.f32 %v853, %v312
      %v1366 = vadd.f32 %v854, %v311
      %v1367 = vadd.f32 %v855, %v312
      %v1368 = vadd.f32 %v856, %v311
      %v1369 = vadd.f32 %v857, %v312
      %v1370 = vadd.f32 %v858, %v311
      %v1371 = vadd.f32 %v859, %v312
      %v1372 = vadd.f32 %v860, %v311
      %v1373 = vadd.f32 %v861, %v312
      %v1374 = vadd.f32 %v862, %v311
      %v1375 = vadd.f32 %v863, %v312
      %v1376 = vadd.f32 %v864, %v311
      %v1377 = vadd.f32 %v865, %v312
      %v1378 = vadd.f32 %v866, %v311
      %v1379 = vadd.f32 %v867, %v312
      %v1380 = vadd.f32 %v868, %v311
      %v1381 = vadd.f32 %v869, %v312
      %v1382 = vadd.f32 %v870, %v311
      %v1383 = vadd.f32 %v871, %v312
      %v1384 = vadd.f32 %v872, %v311
      %v1385 = vadd.f32 %v873, %v312
      %v1386 = vadd.f32 %v874, %v311
      %v1387 = vadd.f32 %v875, %v312
      %v1388 = vadd.f32 %v876, %v311
      %v1389 = vadd.f32 %v877, %v312
      %v1390 = vadd.f32 %v878, %v311
      %v1391 = vadd.f32 %v879, %v312
      %v1392 = vadd.f32 %v880, %v311
      %v1393 = vadd.f32 %v881, %v312
      %v1394 = vadd.f32 %v882, %v311
      %v1395 = vadd.f32 %v883, %v312
      %v1396 = vadd.f32 %v884, %v311
      %v1397 = vadd.f32 %v885, %v312
      %v1398 = vadd.f32 %v886, %v311
      %v1399 = vadd.f32 %v887, %v312
      %v1400 = vadd.f32 %v888, %v311
      %v1401 = vadd.f32 %v889, %v312
      %v1402 = vadd.f32 %v890, %v311
      %v1403 = vadd.f32 %v891, %v312
      %v1404 = vadd.f32 %v892, %v311
      %v1405 = vadd.f32 %v893, %v312
      %v1406 = vadd.f32 %v894, %v311
      %v1407 = vadd.f32 %v895, %v312
      %v1408 = vadd.f32 %v896, %v311
      %v1409 = vadd.f32 %v897, %v312
      %v1410 = vadd.f32 %v898, %v311
      %v1411 = vadd.f32 %v899, %v312
      %v1412 = vadd.f32 %v900, %v311
      %v1413 = vadd.f32 %v901, %v312
      %v1414 = vadd.f32 %v902, %v311
      %v1415 = vadd.f32 %v903, %v312
      %v1416 = vadd.f32 %v904, %v311
      %v1417 = vadd.f32 %v905, %v312
      %v1418 = vadd.f32 %v906, %v311
      %v1419 = vadd.f32 %v907, %v312
      %v1420 = vadd.f32 %v908, %v311
      %v1421 = vadd.f32 %v909, %v312
      %v1422 = vadd.f32 %v910, %v311
      %v1423 = vadd.f32 %v911, %v312
      %v1424 = vadd.f32 %v912, %v311
      %v1425 = vadd.f32 %v913, %v312
      %v1426 = vadd.f32 %v914, %v311
      %v1427 = vadd.f32 %v915, %v312
      %v1428 = vadd.f32 %v916, %v311
      %v1429 = vadd.f32 %v917, %v312
      %v1430 = vadd.f32 %v918, %v311
      %v1431 = vadd.f32 %v919, %v312
      %v1432 = vadd.f32 %v920, %v311
      %v1433 = vadd.f32 %v921, %v312
      %v1434 = vadd.f32 %v922, %v311
      %v1435 = vadd.f32 %v923, %v312
      %v1436 = vadd.f32 %v924, %v311
      %v1437 = vadd.f32 %v925, %v312
      %v1438 = vadd.f32 %v926, %v311
      %v1439 = vadd.f32 %v927, %v312
      %v1440 = vadd.f32 %v928, %v311
      %v1441 = vadd.f32 %v929, %v312
      %v1442 = vadd.f32 %v930, %v311
      %v1443 = vadd.f32 %v931, %v312
      %v1444 = vadd.f32 %v932, %v311
      %v1445 = vadd.f32 %v933, %v312
      %v1446 = vadd.f32 %v934, %v311
      %v1447 = vadd.f32 %v935, %v312
      %v1448 = vadd.f32 %v936, %v311
      %v1449 = vadd.f32 %v937, %v312
      %v1450 = vadd.f32 %v938, %v311
      %v1451 = vadd.f32 %v939, %v312
      %v1452 = vadd.f32 %v940, %v311
      %v1453 = vadd.f32 %v941, %v312
      %v1454 = vadd.f32 %v942, %v311
      %v1455 = vadd.f32 %v943, %v312
      %v1456 = vadd.f32 %v944, %v311
      %v1457 = vadd.f32 %v945, %v312
      %v1458 = vadd.f32 %v946, %v311
      %v1459 = vadd.f32 %v947, %v312
      %v1460 = vadd.f32 %v948, %v311
      %v1461 = vadd.f32 %v949, %v312
      %v1462 = vadd.f32 %v950, %v311
      %v1463 = vadd.f32 %v951, %v312
      %v1464 = vadd.f32 %v952, %v311
      %v1465 = vadd.f32 %v953, %v312
      %v1466 = vadd.f32 %v954, %v311
      %v1467 = vadd.f32 %v955, %v312
      %v1468 = vadd.f32 %v956, %v311
      %v1469 = vadd.f32 %v957, %v312
      %v1470 = vadd.f32 %v958, %v311
      %v1471 = vadd.f32 %v959, %v312
      %v1472 = vadd.f32 %v960, %v311
      %v1473 = vadd.f32 %v961, %v312
      %v1474 = vadd.f32 %v962, %v311
      %v1475 = vadd.f32 %v963, %v312
      %v1476 = vadd.f32 %v964, %v311
      %v1477 = vadd.f32 %v965, %v312
      %v1478 = vadd.f32 %v966, %v311
      %v1479 = vadd.f32 %v967, %v312
      %v1480 = vadd.f32 %v968, %v311
      %v1481 = vadd.f32 %v969, %v312
      %v1482 = vadd.f32 %v970, %v311
      %v1483 = vadd.f32 %v971, %v312
      %v1484 = vadd.f32 %v972, %v311
      %v1485 = vadd.f32 %v973, %v312
      %v1486 = vadd.f32 %v974, %v311
      %v1487 = vadd.f32 %v975, %v312
      %v1488 = vadd.f32 %v976, %v311
      %v1489 = vadd.f32 %v977, %v312
      %v1490 = vadd.f32 %v978, %v311
      %v1491 = vadd.f32 %v979, %v312
      %v1492 = vadd.f32 %v980, %v311
      %v1493 = vadd.f32 %v981, %v312
      %v1494 = vadd.f32 %v982, %v311
      %v1495 = vadd.f32 %v983, %v312
      %v1496 = vadd.f32 %v984, %v311
      %v1497 = vadd.f32 %v985, %v312
      %v1498 = vadd.f32 %v986, %v311
      %v1499 = vadd.f32 %v987, %v312
      %v1500 = vadd.f32 %v988, %v311
      %v1501 = vadd.f32 %v989, %v312
      %v1502 = vadd.f32 %v990, %v311
      %v1503 = vadd.f32 %v991, %v312
      %v1504 = vadd.f32 %v992, %v311
      %v1505 = vadd.f32 %v993, %v312
      %v1506 = vadd.f32 %v994, %v311
      %v1507 = vadd.f32 %v995, %v312
      %v1508 = vadd.f32 %v996, %v311
      %v1509 = vadd.f32 %v997, %v312
      %v1510 = vadd.f32 %v998, %v311
      %v1511 = vadd.f32 %v999, %v312
      %v1512 = vadd.f32 %v1000, %v311
      %v1513 = vadd.f32 %v1001, %v312
      %v1514 = vadd.f32 %v1002, %v311
      %v1515 = vadd.f32 %v1003, %v312
      %v1516 = vadd.f32 %v1004, %v311
      %v1517 = vadd.f32 %v1005, %v312
      %v1518 = vadd.f32 %v1006, %v311
      %v1519 = vadd.f32 %v1007, %v312
      %v1520 = vadd.f32 %v1008, %v311
      %v1521 = vadd.f32 %v1009, %v312
      %v1522 = vadd.f32 %v1010, %v311
      %v1523 = vadd.f32 %v1011, %v312
      %v1524 = vadd.f32 %v1012, %v311
      %v1525 = vadd.f32 %v1013, %v312
      %v1526 = vadd.f32 %v1014, %v311
      %v1527 = vadd.f32 %v1015, %v312
      %v1528 = vadd.f32 %v1016, %v311
      %v1529 = vadd.f32 %v1017, %v312
      %v1530 = vadd.f32 %v1018, %v311
      %v1531 = vadd.f32 %v1019, %v312
      %v1532 = vadd.f32 %v1020, %v311
      %v1533 = vadd.f32 %v1021, %v312
      %v1534 = vadd.f32 %v1022, %v311
      %v1535 = vadd.f32 %v1023, %v312
      %v1536 = vadd.f32 %v1024, %v311
      %v1537 = vadd.f32 %v1025, %v312
      %v1538 = vadd.f32 %v1026, %v311
      %v1539 = vadd.f32 %v1027, %v312
      %v1540 = vadd.f32 %v1028, %v311
      %v1541 = vadd.f32 %v1029, %v312
      %v1542 = vadd.f32 %v1030, %v311
      %v1543 = vadd.f32 %v1031, %v312
      %v1544 = vadd.f32 %v1032, %v311
      %v1545 = vadd.f32 %v1033, %v312
      %v1546 = vadd.f32 %v1034, %v311
      %v1547 = vadd.f32 %v1035, %v312
      %v1548 = vmax.f32 %v1292, 0.0
      %v1549 = vmax.f32 %v1293, 0.0
      %v1550 = vmax.f32 %v1294, 0.0
      %v1551 = vmax.f32 %v1295, 0.0
      %v1552 = vmax.f32 %v1296, 0.0
      %v1553 = vmax.f32 %v1297, 0.0
      %v1554 = vmax.f32 %v1298, 0.0
      %v1555 = vmax.f32 %v1299, 0.0
      %v1556 = vmax.f32 %v1300, 0.0
      %v1557 = vmax.f32 %v1301, 0.0
      %v1558 = vmax.f32 %v1302, 0.0
      %v1559 = vmax.f32 %v1303, 0.0
      %v1560 = vmax.f32 %v1304, 0.0
      %v1561 = vmax.f32 %v1305, 0.0
      %v1562 = vmax.f32 %v1306, 0.0
      %v1563 = vmax.f32 %v1307, 0.0
      %v1564 = vmax.f32 %v1308, 0.0
      %v1565 = vmax.f32 %v1309, 0.0
      %v1566 = vmax.f32 %v1310, 0.0
      %v1567 = vmax.f32 %v1311, 0.0
      %v1568 = vmax.f32 %v1312, 0.0
      %v1569 = vmax.f32 %v1313, 0.0
      %v1570 = vmax.f32 %v1314, 0.0
      %v1571 = vmax.f32 %v1315, 0.0
      %v1572 = vmax.f32 %v1316, 0.0
      %v1573 = vmax.f32 %v1317, 0.0
      %v1574 = vmax.f32 %v1318, 0.0
      %v1575 = vmax.f32 %v1319, 0.0
      %v1576 = vmax.f32 %v1320, 0.0
      %v1577 = vmax.f32 %v1321, 0.0
      %v1578 = vmax.f32 %v1322, 0.0
      %v1579 = vmax.f32 %v1323, 0.0
      %v1580 = vmax.f32 %v1324, 0.0
      %v1581 = vmax.f32 %v1325, 0.0
      %v1582 = vmax.f32 %v1326, 0.0
      %v1583 = vmax.f32 %v1327, 0.0
      %v1584 = vmax.f32 %v1328, 0.0
      %v1585 = vmax.f32 %v1329, 0.0
      %v1586 = vmax.f32 %v1330, 0.0
      %v1587 = vmax.f32 %v1331, 0.0
      %v1588 = vmax.f32 %v1332, 0.0
      %v1589 = vmax.f32 %v1333, 0.0
      %v1590 = vmax.f32 %v1334, 0.0
      %v1591 = vmax.f32 %v1335, 0.0
      %v1592 = vmax.f32 %v1336, 0.0
      %v1593 = vmax.f32 %v1337, 0.0
      %v1594 = vmax.f32 %v1338, 0.0
      %v1595 = vmax.f32 %v1339, 0.0
      %v1596 = vmax.f32 %v1340, 0.0
      %v1597 = vmax.f32 %v1341, 0.0
      %v1598 = vmax.f32 %v1342, 0.0
      %v1599 = vmax.f32 %v1343, 0.0
      %v1600 = vmax.f32 %v1344, 0.0
      %v1601 = vmax.f32 %v1345, 0.0
      %v1602 = vmax.f32 %v1346, 0.0
      %v1603 = vmax.f32 %v1347, 0.0
      %v1604 = vmax.f32 %v1348, 0.0
      %v1605 = vmax.f32 %v1349, 0.0
      %v1606 = vmax.f32 %v1350, 0.0
      %v1607 = vmax.f32 %v1351, 0.0
      %v1608 = vmax.f32 %v1352, 0.0
      %v1609 = vmax.f32 %v1353, 0.0
      %v1610 = vmax.f32 %v1354, 0.0
      %v1611 = vmax.f32 %v1355, 0.0
      %v1612 = vmax.f32 %v1356, 0.0
      %v1613 = vmax.f32 %v1357, 0.0
      %v1614 = vmax.f32 %v1358, 0.0
      %v1615 = vmax.f32 %v1359, 0.0
      %v1616 = vmax.f32 %v1360, 0.0
      %v1617 = vmax.f32 %v1361, 0.0
      %v1618 = vmax.f32 %v1362, 0.0
      %v1619 = vmax.f32 %v1363, 0.0
      %v1620 = vmax.f32 %v1364, 0.0
      %v1621 = vmax.f32 %v1365, 0.0
      %v1622 = vmax.f32 %v1366, 0.0
      %v1623 = vmax.f32 %v1367, 0.0
      %v1624 = vmax.f32 %v1368, 0.0
      %v1625 = vmax.f32 %v1369, 0.0
      %v1626 = vmax.f32 %v1370, 0.0
      %v1627 = vmax.f32 %v1371, 0.0
      %v1628 = vmax.f32 %v1372, 0.0
      %v1629 = vmax.f32 %v1373, 0.0
      %v1630 = vmax.f32 %v1374, 0.0
      %v1631 = vmax.f32 %v1375, 0.0
      %v1632 = vmax.f32 %v1376, 0.0
      %v1633 = vmax.f32 %v1377, 0.0
      %v1634 = vmax.f32 %v1378, 0.0
      %v1635 = vmax.f32 %v1379, 0.0
      %v1636 = vmax.f32 %v1380, 0.0
      %v1637 = vmax.f32 %v1381, 0.0
      %v1638 = vmax.f32 %v1382, 0.0
      %v1639 = vmax.f32 %v1383, 0.0
      %v1640 = vmax.f32 %v1384, 0.0
      %v1641 = vmax.f32 %v1385, 0.0
      %v1642 = vmax.f32 %v1386, 0.0
      %v1643 = vmax.f32 %v1387, 0.0
      %v1644 = vmax.f32 %v1388, 0.0
      %v1645 = vmax.f32 %v1389, 0.0
      %v1646 = vmax.f32 %v1390, 0.0
      %v1647 = vmax.f32 %v1391, 0.0
      %v1648 = vmax.f32 %v1392, 0.0
      %v1649 = vmax.f32 %v1393, 0.0
      %v1650 = vmax.f32 %v1394, 0.0
      %v1651 = vmax.f32 %v1395, 0.0
      %v1652 = vmax.f32 %v1396, 0.0
      %v1653 = vmax.f32 %v1397, 0.0
      %v1654 = vmax.f32 %v1398, 0.0
      %v1655 = vmax.f32 %v1399, 0.0
      %v1656 = vmax.f32 %v1400, 0.0
      %v1657 = vmax.f32 %v1401, 0.0
      %v1658 = vmax.f32 %v1402, 0.0
      %v1659 = vmax.f32 %v1403, 0.0
      %v1660 = vmax.f32 %v1404, 0.0
      %v1661 = vmax.f32 %v1405, 0.0
      %v1662 = vmax.f32 %v1406, 0.0
      %v1663 = vmax.f32 %v1407, 0.0
      %v1664 = vmax.f32 %v1408, 0.0
      %v1665 = vmax.f32 %v1409, 0.0
      %v1666 = vmax.f32 %v1410, 0.0
      %v1667 = vmax.f32 %v1411, 0.0
      %v1668 = vmax.f32 %v1412, 0.0
      %v1669 = vmax.f32 %v1413, 0.0
      %v1670 = vmax.f32 %v1414, 0.0
      %v1671 = vmax.f32 %v1415, 0.0
      %v1672 = vmax.f32 %v1416, 0.0
      %v1673 = vmax.f32 %v1417, 0.0
      %v1674 = vmax.f32 %v1418, 0.0
      %v1675 = vmax.f32 %v1419, 0.0
      %v1676 = vmax.f32 %v1420, 0.0
      %v1677 = vmax.f32 %v1421, 0.0
      %v1678 = vmax.f32 %v1422, 0.0
      %v1679 = vmax.f32 %v1423, 0.0
      %v1680 = vmax.f32 %v1424, 0.0
      %v1681 = vmax.f32 %v1425, 0.0
      %v1682 = vmax.f32 %v1426, 0.0
      %v1683 = vmax.f32 %v1427, 0.0
      %v1684 = vmax.f32 %v1428, 0.0
      %v1685 = vmax.f32 %v1429, 0.0
      %v1686 = vmax.f32 %v1430, 0.0
      %v1687 = vmax.f32 %v1431, 0.0
      %v1688 = vmax.f32 %v1432, 0.0
      %v1689 = vmax.f32 %v1433, 0.0
      %v1690 = vmax.f32 %v1434, 0.0
      %v1691 = vmax.f32 %v1435, 0.0
      %v1692 = vmax.f32 %v1436, 0.0
      %v1693 = vmax.f32 %v1437, 0.0
      %v1694 = vmax.f32 %v1438, 0.0
      %v1695 = vmax.f32 %v1439, 0.0
      %v1696 = vmax.f32 %v1440, 0.0
      %v1697 = vmax.f32 %v1441, 0.0
      %v1698 = vmax.f32 %v1442, 0.0
      %v1699 = vmax.f32 %v1443, 0.0
      %v1700 = vmax.f32 %v1444, 0.0
      %v1701 = vmax.f32 %v1445, 0.0
      %v1702 = vmax.f32 %v1446, 0.0
      %v1703 = vmax.f32 %v1447, 0.0
      %v1704 = vmax.f32 %v1448, 0.0
      %v1705 = vmax.f32 %v1449, 0.0
      %v1706 = vmax.f32 %v1450, 0.0
      %v1707 = vmax.f32 %v1451, 0.0
      %v1708 = vmax.f32 %v1452, 0.0
      %v1709 = vmax.f32 %v1453, 0.0
      %v1710 = vmax.f32 %v1454, 0.0
      %v1711 = vmax.f32 %v1455, 0.0
      %v1712 = vmax.f32 %v1456, 0.0
      %v1713 = vmax.f32 %v1457, 0.0
      %v1714 = vmax.f32 %v1458, 0.0
      %v1715 = vmax.f32 %v1459, 0.0
      %v1716 = vmax.f32 %v1460, 0.0
      %v1717 = vmax.f32 %v1461, 0.0
      %v1718 = vmax.f32 %v1462, 0.0
      %v1719 = vmax.f32 %v1463, 0.0
      %v1720 = vmax.f32 %v1464, 0.0
      %v1721 = vmax.f32 %v1465, 0.0
      %v1722 = vmax.f32 %v1466, 0.0
      %v1723 = vmax.f32 %v1467, 0.0
      %v1724 = vmax.f32 %v1468, 0.0
      %v1725 = vmax.f32 %v1469, 0.0
      %v1726 = vmax.f32 %v1470, 0.0
      %v1727 = vmax.f32 %v1471, 0.0
      %v1728 = vmax.f32 %v1472, 0.0
      %v1729 = vmax.f32 %v1473, 0.0
      %v1730 = vmax.f32 %v1474, 0.0
      %v1731 = vmax.f32 %v1475, 0.0
      %v1732 = vmax.f32 %v1476, 0.0
      %v1733 = vmax.f32 %v1477, 0.0
      %v1734 = vmax.f32 %v1478, 0.0
      %v1735 = vmax.f32 %v1479, 0.0
      %v1736 = vmax.f32 %v1480, 0.0
      %v1737 = vmax.f32 %v1481, 0.0
      %v1738 = vmax.f32 %v1482, 0.0
      %v1739 = vmax.f32 %v1483, 0.0
      %v1740 = vmax.f32 %v1484, 0.0
      %v1741 = vmax.f32 %v1485, 0.0
      %v1742 = vmax.f32 %v1486, 0.0
      %v1743 = vmax.f32 %v1487, 0.0
      %v1744 = vmax.f32 %v1488, 0.0
      %v1745 = vmax.f32 %v1489, 0.0
      %v1746 = vmax.f32 %v1490, 0.0
      %v1747 = vmax.f32 %v1491, 0.0
      %v1748 = vmax.f32 %v1492, 0.0
      %v1749 = vmax.f32 %v1493, 0.0
      %v1750 = vmax.f32 %v1494, 0.0
      %v1751 = vmax.f32 %v1495, 0.0
      %v1752 = vmax.f32 %v1496, 0.0
      %v1753 = vmax.f32 %v1497, 0.0
      %v1754 = vmax.f32 %v1498, 0.0
      %v1755 = vmax.f32 %v1499, 0.0
      %v1756 = vmax.f32 %v1500, 0.0
      %v1757 = vmax.f32 %v1501, 0.0
      %v1758 = vmax.f32 %v1502, 0.0
      %v1759 = vmax.f32 %v1503, 0.0
      %v1760 = vmax.f32 %v1504, 0.0
      %v1761 = vmax.f32 %v1505, 0.0
      %v1762 = vmax.f32 %v1506, 0.0
      %v1763 = vmax.f32 %v1507, 0.0
      %v1764 = vmax.f32 %v1508, 0.0
      %v1765 = vmax.f32 %v1509, 0.0
      %v1766 = vmax.f32 %v1510, 0.0
      %v1767 = vmax.f32 %v1511, 0.0
      %v1768 = vmax.f32 %v1512, 0.0
      %v1769 = vmax.f32 %v1513, 0.0
      %v1770 = vmax.f32 %v1514, 0.0
      %v1771 = vmax.f32 %v1515, 0.0
      %v1772 = vmax.f32 %v1516, 0.0
      %v1773 = vmax.f32 %v1517, 0.0
      %v1774 = vmax.f32 %v1518, 0.0
      %v1775 = vmax.f32 %v1519, 0.0
      %v1776 = vmax.f32 %v1520, 0.0
      %v1777 = vmax.f32 %v1521, 0.0
      %v1778 = vmax.f32 %v1522, 0.0
      %v1779 = vmax.f32 %v1523, 0.0
      %v1780 = vmax.f32 %v1524, 0.0
      %v1781 = vmax.f32 %v1525, 0.0
      %v1782 = vmax.f32 %v1526, 0.0
      %v1783 = vmax.f32 %v1527, 0.0
      %v1784 = vmax.f32 %v1528, 0.0
      %v1785 = vmax.f32 %v1529, 0.0
      %v1786 = vmax.f32 %v1530, 0.0
      %v1787 = vmax.f32 %v1531, 0.0
      %v1788 = vmax.f32 %v1532, 0.0
      %v1789 = vmax.f32 %v1533, 0.0
      %v1790 = vmax.f32 %v1534, 0.0
      %v1791 = vmax.f32 %v1535, 0.0
      %v1792 = vmax.f32 %v1536, 0.0
      %v1793 = vmax.f32 %v1537, 0.0
      %v1794 = vmax.f32 %v1538, 0.0
      %v1795 = vmax.f32 %v1539, 0.0
      %v1796 = vmax.f32 %v1540, 0.0
      %v1797 = vmax.f32 %v1541, 0.0
      %v1798 = vmax.f32 %v1542, 0.0
      %v1799 = vmax.f32 %v1543, 0.0
      %v1800 = vmax.f32 %v1544, 0.0
      %v1801 = vmax.f32 %v1545, 0.0
      %v1802 = vmax.f32 %v1546, 0.0
      %v1803 = vmax.f32 %v1547, 0.0
      %v1804 = vpack.c.bf16 %v1550, %v1548
      %v1805 = vpack.c.bf16 %v1551, %v1549
      %v1806 = vpack.c.bf16 %v1554, %v1552
      %v1807 = vpack.c.bf16 %v1555, %v1553
      %v1808 = vpack.c.bf16 %v1558, %v1556
      %v1809 = vpack.c.bf16 %v1559, %v1557
      %v1810 = vpack.c.bf16 %v1562, %v1560
      %v1811 = vpack.c.bf16 %v1563, %v1561
      %v1812 = vpack.c.bf16 %v1566, %v1564
      %v1813 = vpack.c.bf16 %v1567, %v1565
      %v1814 = vpack.c.bf16 %v1570, %v1568
      %v1815 = vpack.c.bf16 %v1571, %v1569
      %v1816 = vpack.c.bf16 %v1574, %v1572
      %v1817 = vpack.c.bf16 %v1575, %v1573
      %v1818 = vpack.c.bf16 %v1578, %v1576
      %v1819 = vpack.c.bf16 %v1579, %v1577
      %v1820 = vpack.c.bf16 %v1582, %v1580
      %v1821 = vpack.c.bf16 %v1583, %v1581
      %v1822 = vpack.c.bf16 %v1586, %v1584
      %v1823 = vpack.c.bf16 %v1587, %v1585
      %v1824 = vpack.c.bf16 %v1590, %v1588
      %v1825 = vpack.c.bf16 %v1591, %v1589
      %v1826 = vpack.c.bf16 %v1594, %v1592
      %v1827 = vpack.c.bf16 %v1595, %v1593
      %v1828 = vpack.c.bf16 %v1598, %v1596
      %v1829 = vpack.c.bf16 %v1599, %v1597
      %v1830 = vpack.c.bf16 %v1602, %v1600
      %v1831 = vpack.c.bf16 %v1603, %v1601
      %v1832 = vpack.c.bf16 %v1606, %v1604
      %v1833 = vpack.c.bf16 %v1607, %v1605
      %v1834 = vpack.c.bf16 %v1610, %v1608
      %v1835 = vpack.c.bf16 %v1611, %v1609
      %v1836 = vpack.c.bf16 %v1614, %v1612
      %v1837 = vpack.c.bf16 %v1615, %v1613
      %v1838 = vpack.c.bf16 %v1618, %v1616
      %v1839 = vpack.c.bf16 %v1619, %v1617
      %v1840 = vpack.c.bf16 %v1622, %v1620
      %v1841 = vpack.c.bf16 %v1623, %v1621
      %v1842 = vpack.c.bf16 %v1626, %v1624
      %v1843 = vpack.c.bf16 %v1627, %v1625
      %v1844 = vpack.c.bf16 %v1630, %v1628
      %v1845 = vpack.c.bf16 %v1631, %v1629
      %v1846 = vpack.c.bf16 %v1634, %v1632
      %v1847 = vpack.c.bf16 %v1635, %v1633
      %v1848 = vpack.c.bf16 %v1638, %v1636
      %v1849 = vpack.c.bf16 %v1639, %v1637
      %v1850 = vpack.c.bf16 %v1642, %v1640
      %v1851 = vpack.c.bf16 %v1643, %v1641
      %v1852 = vpack.c.bf16 %v1646, %v1644
      %v1853 = vpack.c.bf16 %v1647, %v1645
      %v1854 = vpack.c.bf16 %v1650, %v1648
      %v1855 = vpack.c.bf16 %v1651, %v1649
      %v1856 = vpack.c.bf16 %v1654, %v1652
      %v1857 = vpack.c.bf16 %v1655, %v1653
      %v1858 = vpack.c.bf16 %v1658, %v1656
      %v1859 = vpack.c.bf16 %v1659, %v1657
      %v1860 = vpack.c.bf16 %v1662, %v1660
      %v1861 = vpack.c.bf16 %v1663, %v1661
      %v1862 = vpack.c.bf16 %v1666, %v1664
      %v1863 = vpack.c.bf16 %v1667, %v1665
      %v1864 = vpack.c.bf16 %v1670, %v1668
      %v1865 = vpack.c.bf16 %v1671, %v1669
      %v1866 = vpack.c.bf16 %v1674, %v1672
      %v1867 = vpack.c.bf16 %v1675, %v1673
      %v1868 = vpack.c.bf16 %v1678, %v1676
      %v1869 = vpack.c.bf16 %v1679, %v1677
      %v1870 = vpack.c.bf16 %v1682, %v1680
      %v1871 = vpack.c.bf16 %v1683, %v1681
      %v1872 = vpack.c.bf16 %v1686, %v1684
      %v1873 = vpack.c.bf16 %v1687, %v1685
      %v1874 = vpack.c.bf16 %v1690, %v1688
      %v1875 = vpack.c.bf16 %v1691, %v1689
      %v1876 = vpack.c.bf16 %v1694, %v1692
      %v1877 = vpack.c.bf16 %v1695, %v1693
      %v1878 = vpack.c.bf16 %v1698, %v1696
      %v1879 = vpack.c.bf16 %v1699, %v1697
      %v1880 = vpack.c.bf16 %v1702, %v1700
      %v1881 = vpack.c.bf16 %v1703, %v1701
      %v1882 = vpack.c.bf16 %v1706, %v1704
      %v1883 = vpack.c.bf16 %v1707, %v1705
      %v1884 = vpack.c.bf16 %v1710, %v1708
      %v1885 = vpack.c.bf16 %v1711, %v1709
      %v1886 = vpack.c.bf16 %v1714, %v1712
      %v1887 = vpack.c.bf16 %v1715, %v1713
      %v1888 = vpack.c.bf16 %v1718, %v1716
      %v1889 = vpack.c.bf16 %v1719, %v1717
      %v1890 = vpack.c.bf16 %v1722, %v1720
      %v1891 = vpack.c.bf16 %v1723, %v1721
      %v1892 = vpack.c.bf16 %v1726, %v1724
      %v1893 = vpack.c.bf16 %v1727, %v1725
      %v1894 = vpack.c.bf16 %v1730, %v1728
      %v1895 = vpack.c.bf16 %v1731, %v1729
      %v1896 = vpack.c.bf16 %v1734, %v1732
      %v1897 = vpack.c.bf16 %v1735, %v1733
      %v1898 = vpack.c.bf16 %v1738, %v1736
      %v1899 = vpack.c.bf16 %v1739, %v1737
      %v1900 = vpack.c.bf16 %v1742, %v1740
      %v1901 = vpack.c.bf16 %v1743, %v1741
      %v1902 = vpack.c.bf16 %v1746, %v1744
      %v1903 = vpack.c.bf16 %v1747, %v1745
      %v1904 = vpack.c.bf16 %v1750, %v1748
      %v1905 = vpack.c.bf16 %v1751, %v1749
      %v1906 = vpack.c.bf16 %v1754, %v1752
      %v1907 = vpack.c.bf16 %v1755, %v1753
      %v1908 = vpack.c.bf16 %v1758, %v1756
      %v1909 = vpack.c.bf16 %v1759, %v1757
      %v1910 = vpack.c.bf16 %v1762, %v1760
      %v1911 = vpack.c.bf16 %v1763, %v1761
      %v1912 = vpack.c.bf16 %v1766, %v1764
      %v1913 = vpack.c.bf16 %v1767, %v1765
      %v1914 = vpack.c.bf16 %v1770, %v1768
      %v1915 = vpack.c.bf16 %v1771, %v1769
      %v1916 = vpack.c.bf16 %v1774, %v1772
      %v1917 = vpack.c.bf16 %v1775, %v1773
      %v1918 = vpack.c.bf16 %v1778, %v1776
      %v1919 = vpack.c.bf16 %v1779, %v1777
      %v1920 = vpack.c.bf16 %v1782, %v1780
      %v1921 = vpack.c.bf16 %v1783, %v1781
      %v1922 = vpack.c.bf16 %v1786, %v1784
      %v1923 = vpack.c.bf16 %v1787, %v1785
      %v1924 = vpack.c.bf16 %v1790, %v1788
      %v1925 = vpack.c.bf16 %v1791, %v1789
      %v1926 = vpack.c.bf16 %v1794, %v1792
      %v1927 = vpack.c.bf16 %v1795, %v1793
      %v1928 = vpack.c.bf16 %v1798, %v1796
      %v1929 = vpack.c.bf16 %v1799, %v1797
      %v1930 = vpack.c.bf16 %v1802, %v1800
      %v1931 = vpack.c.bf16 %v1803, %v1801
      %v1932 = vld [vmem:[%s3] sm:$0xf]
      %v1933 = vld [vmem:[%s3 + $0x4] sm:$0xf]
      %v1934 = vld [vmem:[%s3 + $0x8] sm:$0xf]
      %v1935 = vld [vmem:[%s3 + $0xc] sm:$0xf]
      %v1936 = vld [vmem:[%s3 + $0x10] sm:$0xf]
      %v1937 = vld [vmem:[%s3 + $0x14] sm:$0xf]
      %v1938 = vld [vmem:[%s3 + $0x18] sm:$0xf]
      %v1939 = vld [vmem:[%s3 + $0x1c] sm:$0xf]
      %v1940 = vld [vmem:[%s3 + $0x20] sm:$0xf]
      %v1941 = vld [vmem:[%s3 + $0x24] sm:$0xf]
      %v1942 = vld [vmem:[%s3 + $0x28] sm:$0xf]
      %v1943 = vld [vmem:[%s3 + $0x2c] sm:$0xf]
      %v1944 = vld [vmem:[%s3 + $0x30] sm:$0xf]
      %v1945 = vld [vmem:[%s3 + $0x34] sm:$0xf]
      %v1946 = vld [vmem:[%s3 + $0x38] sm:$0xf]
      %v1947 = vld [vmem:[%s3 + $0x3c] sm:$0xf]
      %v1948 = vld [vmem:[%s3 + $0x40] sm:$0xf]
      %v1949 = vld [vmem:[%s3 + $0x44] sm:$0xf]
      %v1950 = vld [vmem:[%s3 + $0x48] sm:$0xf]
      %v1951 = vld [vmem:[%s3 + $0x4c] sm:$0xf]
      %v1952 = vld [vmem:[%s3 + $0x50] sm:$0xf]
      %v1953 = vld [vmem:[%s3 + $0x54] sm:$0xf]
      %v1954 = vld [vmem:[%s3 + $0x58] sm:$0xf]
      %v1955 = vld [vmem:[%s3 + $0x5c] sm:$0xf]
      %v1956 = vld [vmem:[%s3 + $0x60] sm:$0xf]
      %v1957 = vld [vmem:[%s3 + $0x64] sm:$0xf]
      %v1958 = vld [vmem:[%s3 + $0x68] sm:$0xf]
      %v1959 = vld [vmem:[%s3 + $0x6c] sm:$0xf]
      %v1960 = vld [vmem:[%s3 + $0x70] sm:$0xf]
      %v1961 = vld [vmem:[%s3 + $0x74] sm:$0xf]
      %v1962 = vld [vmem:[%s3 + $0x78] sm:$0xf]
      %v1963 = vld [vmem:[%s3 + $0x7c] sm:$0xf]
      %v1996 = vunpack.c.l.b16 %v1932
      %v1997 = vunpack.c.l.b16 %v1933
      %v1998 = vunpack.c.l.b16 %v1934
      %v1999 = vunpack.c.l.b16 %v1935
      %v2000 = vunpack.c.l.b16 %v1936
      %v2001 = vunpack.c.l.b16 %v1937
      %v2002 = vunpack.c.l.b16 %v1938
      %v2003 = vunpack.c.l.b16 %v1939
      %v2004 = vunpack.c.l.b16 %v1940
      %v2005 = vunpack.c.l.b16 %v1941
      %v2006 = vunpack.c.l.b16 %v1942
      %v2007 = vunpack.c.l.b16 %v1943
      %v2008 = vunpack.c.l.b16 %v1944
      %v2009 = vunpack.c.l.b16 %v1945
      %v2010 = vunpack.c.l.b16 %v1946
      %v2011 = vunpack.c.l.b16 %v1947
      %v2012 = vunpack.c.l.b16 %v1948
      %v2013 = vunpack.c.l.b16 %v1949
      %v2014 = vunpack.c.l.b16 %v1950
      %v2015 = vunpack.c.l.b16 %v1951
      %v2016 = vunpack.c.l.b16 %v1952
      %v2017 = vunpack.c.l.b16 %v1953
      %v2018 = vunpack.c.l.b16 %v1954
      %v2019 = vunpack.c.l.b16 %v1955
      %v2020 = vunpack.c.l.b16 %v1956
      %v2021 = vunpack.c.l.b16 %v1957
      %v2022 = vunpack.c.l.b16 %v1958
      %v2023 = vunpack.c.l.b16 %v1959
      %v2024 = vunpack.c.l.b16 %v1960
      %v2025 = vunpack.c.l.b16 %v1961
      %v2026 = vunpack.c.l.b16 %v1962
      %v2027 = vunpack.c.l.b16 %v1963
      %v2028 = vpack.c.b16 %v1997, %v1996
      %v2029 = vpack.c.b16 %v1999, %v1998
      %v2030 = vpack.c.b16 %v2001, %v2000
      %v2031 = vpack.c.b16 %v2003, %v2002
      %v2032 = vpack.c.b16 %v2005, %v2004
      %v2033 = vpack.c.b16 %v2007, %v2006
      %v2034 = vpack.c.b16 %v2009, %v2008
      %v2035 = vpack.c.b16 %v2011, %v2010
      %v2036 = vpack.c.b16 %v2013, %v2012
      %v2037 = vpack.c.b16 %v2015, %v2014
      %v2038 = vpack.c.b16 %v2017, %v2016
      %v2039 = vpack.c.b16 %v2019, %v2018
      %v2040 = vpack.c.b16 %v2021, %v2020
      %v2041 = vpack.c.b16 %v2023, %v2022
      %v2042 = vpack.c.b16 %v2025, %v2024
      %v2043 = vpack.c.b16 %v2027, %v2026
      %2060 = vmatpush.bf16.msra.mxu0 %v2035
      %2061 = vmatpush.bf16.msra.mxu0 %v2034
      %2062 = vmatpush.bf16.msra.mxu0 %v2033
      %2063 = vmatpush.bf16.msra.mxu0 %v2032
      %2064 = vmatpush.bf16.msra.mxu0 %v2031
      %2065 = vmatpush.bf16.msra.mxu0 %v2030
      %2066 = vmatpush.bf16.msra.mxu0 %v2029
      %2067 = vmatpush.bf16.msra.mxu0 %v2028
      %2068 = vmatmul.bf16.gmra.mxu0 %v1804
      %v2069 = vpop.f32.mrf.mxu0
      %v2070 = vadd.f32 %v335, %v2069
      %v2071 = vpop.f32.mrf.mxu0
      %v2072 = vadd.f32 %v335, %v2071
      %2073 = vmatmul.bf16.gmra.mxu0 %v1806
      %v2074 = vpop.f32.mrf.mxu0
      %v2075 = vadd.f32 %v335, %v2074
      %v2076 = vpop.f32.mrf.mxu0
      %v2077 = vadd.f32 %v335, %v2076
      %2078 = vmatmul.bf16.gmra.mxu0 %v1808
      %v2079 = vpop.f32.mrf.mxu0
      %v2080 = vadd.f32 %v335, %v2079
      %v2081 = vpop.f32.mrf.mxu0
      %v2082 = vadd.f32 %v335, %v2081
      %2083 = vmatmul.bf16.gmra.mxu0 %v1810
      %v2084 = vpop.f32.mrf.mxu0
      %v2085 = vadd.f32 %v335, %v2084
      %v2086 = vpop.f32.mrf.mxu0
      %v2087 = vadd.f32 %v335, %v2086
      %2088 = vmatmul.bf16.gmra.mxu0 %v1812
      %v2089 = vpop.f32.mrf.mxu0
      %v2090 = vadd.f32 %v335, %v2089
      %v2091 = vpop.f32.mrf.mxu0
      %v2092 = vadd.f32 %v335, %v2091
      %2093 = vmatmul.bf16.gmra.mxu0 %v1814
      %v2094 = vpop.f32.mrf.mxu0
      %v2095 = vadd.f32 %v335, %v2094
      %v2096 = vpop.f32.mrf.mxu0
      %v2097 = vadd.f32 %v335, %v2096
      %2098 = vmatmul.bf16.gmra.mxu0 %v1816
      %v2099 = vpop.f32.mrf.mxu0
      %v2100 = vadd.f32 %v335, %v2099
      %v2101 = vpop.f32.mrf.mxu0
      %v2102 = vadd.f32 %v335, %v2101
      %2103 = vmatmul.bf16.gmra.mxu0 %v1818
      %v2104 = vpop.f32.mrf.mxu0
      %v2105 = vadd.f32 %v335, %v2104
      %v2106 = vpop.f32.mrf.mxu0
      %v2107 = vadd.f32 %v335, %v2106
      %2108 = vmatmul.bf16.gmra.mxu0 %v1820
      %v2109 = vpop.f32.mrf.mxu0
      %v2110 = vadd.f32 %v335, %v2109
      %v2111 = vpop.f32.mrf.mxu0
      %v2112 = vadd.f32 %v335, %v2111
      %2113 = vmatmul.bf16.gmra.mxu0 %v1822
      %v2114 = vpop.f32.mrf.mxu0
      %v2115 = vadd.f32 %v335, %v2114
      %v2116 = vpop.f32.mrf.mxu0
      %v2117 = vadd.f32 %v335, %v2116
      %2118 = vmatmul.bf16.gmra.mxu0 %v1824
      %v2119 = vpop.f32.mrf.mxu0
      %v2120 = vadd.f32 %v335, %v2119
      %v2121 = vpop.f32.mrf.mxu0
      %v2122 = vadd.f32 %v335, %v2121
      %2123 = vmatmul.bf16.gmra.mxu0 %v1826
      %v2124 = vpop.f32.mrf.mxu0
      %v2125 = vadd.f32 %v335, %v2124
      %v2126 = vpop.f32.mrf.mxu0
      %v2127 = vadd.f32 %v335, %v2126
      %2128 = vmatmul.bf16.gmra.mxu0 %v1828
      %v2129 = vpop.f32.mrf.mxu0
      %v2130 = vadd.f32 %v335, %v2129
      %v2131 = vpop.f32.mrf.mxu0
      %v2132 = vadd.f32 %v335, %v2131
      %2133 = vmatmul.bf16.gmra.mxu0 %v1830
      %v2134 = vpop.f32.mrf.mxu0
      %v2135 = vadd.f32 %v335, %v2134
      %v2136 = vpop.f32.mrf.mxu0
      %v2137 = vadd.f32 %v335, %v2136
      %2138 = vmatmul.bf16.gmra.mxu0 %v1832
      %v2139 = vpop.f32.mrf.mxu0
      %v2140 = vadd.f32 %v335, %v2139
      %v2141 = vpop.f32.mrf.mxu0
      %v2142 = vadd.f32 %v335, %v2141
      %2143 = vmatmul.bf16.gmra.mxu0 %v1834
      %v2144 = vpop.f32.mrf.mxu0
      %v2145 = vadd.f32 %v335, %v2144
      %v2146 = vpop.f32.mrf.mxu0
      %v2147 = vadd.f32 %v335, %v2146
      %2148 = vmatmul.bf16.gmra.mxu0 %v1836
      %v2149 = vpop.f32.mrf.mxu0
      %v2150 = vadd.f32 %v335, %v2149
      %v2151 = vpop.f32.mrf.mxu0
      %v2152 = vadd.f32 %v335, %v2151
      %2153 = vmatmul.bf16.gmra.mxu0 %v1838
      %v2154 = vpop.f32.mrf.mxu0
      %v2155 = vadd.f32 %v335, %v2154
      %v2156 = vpop.f32.mrf.mxu0
      %v2157 = vadd.f32 %v335, %v2156
      %2158 = vmatmul.bf16.gmra.mxu0 %v1840
      %v2159 = vpop.f32.mrf.mxu0
      %v2160 = vadd.f32 %v335, %v2159
      %v2161 = vpop.f32.mrf.mxu0
      %v2162 = vadd.f32 %v335, %v2161
      %2163 = vmatmul.bf16.gmra.mxu0 %v1842
      %v2164 = vpop.f32.mrf.mxu0
      %v2165 = vadd.f32 %v335, %v2164
      %v2166 = vpop.f32.mrf.mxu0
      %v2167 = vadd.f32 %v335, %v2166
      %2168 = vmatmul.bf16.gmra.mxu0 %v1844
      %v2169 = vpop.f32.mrf.mxu0
      %v2170 = vadd.f32 %v335, %v2169
      %v2171 = vpop.f32.mrf.mxu0
      %v2172 = vadd.f32 %v335, %v2171
      %2173 = vmatmul.bf16.gmra.mxu0 %v1846
      %v2174 = vpop.f32.mrf.mxu0
      %v2175 = vadd.f32 %v335, %v2174
      %v2176 = vpop.f32.mrf.mxu0
      %v2177 = vadd.f32 %v335, %v2176
      %2178 = vmatmul.bf16.gmra.mxu0 %v1848
      %v2179 = vpop.f32.mrf.mxu0
      %v2180 = vadd.f32 %v335, %v2179
      %v2181 = vpop.f32.mrf.mxu0
      %v2182 = vadd.f32 %v335, %v2181
      %2183 = vmatmul.bf16.gmra.mxu0 %v1850
      %v2184 = vpop.f32.mrf.mxu0
      %v2185 = vadd.f32 %v335, %v2184
      %v2186 = vpop.f32.mrf.mxu0
      %v2187 = vadd.f32 %v335, %v2186
      %2188 = vmatmul.bf16.gmra.mxu0 %v1852
      %v2189 = vpop.f32.mrf.mxu0
      %v2190 = vadd.f32 %v335, %v2189
      %v2191 = vpop.f32.mrf.mxu0
      %v2192 = vadd.f32 %v335, %v2191
      %2193 = vmatmul.bf16.gmra.mxu0 %v1854
      %v2194 = vpop.f32.mrf.mxu0
      %v2195 = vadd.f32 %v335, %v2194
      %v2196 = vpop.f32.mrf.mxu0
      %v2197 = vadd.f32 %v335, %v2196
      %2198 = vmatmul.bf16.gmra.mxu0 %v1856
      %v2199 = vpop.f32.mrf.mxu0
      %v2200 = vadd.f32 %v335, %v2199
      %v2201 = vpop.f32.mrf.mxu0
      %v2202 = vadd.f32 %v335, %v2201
      %2203 = vmatmul.bf16.gmra.mxu0 %v1858
      %v2204 = vpop.f32.mrf.mxu0
      %v2205 = vadd.f32 %v335, %v2204
      %v2206 = vpop.f32.mrf.mxu0
      %v2207 = vadd.f32 %v335, %v2206
      %2208 = vmatmul.bf16.gmra.mxu0 %v1860
      %v2209 = vpop.f32.mrf.mxu0
      %v2210 = vadd.f32 %v335, %v2209
      %v2211 = vpop.f32.mrf.mxu0
      %v2212 = vadd.f32 %v335, %v2211
      %2213 = vmatmul.bf16.gmra.mxu0 %v1862
      %v2214 = vpop.f32.mrf.mxu0
      %v2215 = vadd.f32 %v335, %v2214
      %v2216 = vpop.f32.mrf.mxu0
      %v2217 = vadd.f32 %v335, %v2216
      %2218 = vmatmul.bf16.gmra.mxu0 %v1864
      %v2219 = vpop.f32.mrf.mxu0
      %v2220 = vadd.f32 %v335, %v2219
      %v2221 = vpop.f32.mrf.mxu0
      %v2222 = vadd.f32 %v335, %v2221
      %2223 = vmatmul.bf16.gmra.mxu0 %v1866
      %v2224 = vpop.f32.mrf.mxu0
      %v2225 = vadd.f32 %v335, %v2224
      %v2226 = vpop.f32.mrf.mxu0
      %v2227 = vadd.f32 %v335, %v2226
      %2228 = vmatmul.bf16.gmra.mxu0 %v1868
      %v2229 = vpop.f32.mrf.mxu0
      %v2230 = vadd.f32 %v335, %v2229
      %v2231 = vpop.f32.mrf.mxu0
      %v2232 = vadd.f32 %v335, %v2231
      %2233 = vmatmul.bf16.gmra.mxu0 %v1870
      %v2234 = vpop.f32.mrf.mxu0
      %v2235 = vadd.f32 %v335, %v2234
      %v2236 = vpop.f32.mrf.mxu0
      %v2237 = vadd.f32 %v335, %v2236
      %2238 = vmatmul.bf16.gmra.mxu0 %v1872
      %v2239 = vpop.f32.mrf.mxu0
      %v2240 = vadd.f32 %v335, %v2239
      %v2241 = vpop.f32.mrf.mxu0
      %v2242 = vadd.f32 %v335, %v2241
      %2243 = vmatmul.bf16.gmra.mxu0 %v1874
      %v2244 = vpop.f32.mrf.mxu0
      %v2245 = vadd.f32 %v335, %v2244
      %v2246 = vpop.f32.mrf.mxu0
      %v2247 = vadd.f32 %v335, %v2246
      %2248 = vmatmul.bf16.gmra.mxu0 %v1876
      %v2249 = vpop.f32.mrf.mxu0
      %v2250 = vadd.f32 %v335, %v2249
      %v2251 = vpop.f32.mrf.mxu0
      %v2252 = vadd.f32 %v335, %v2251
      %2253 = vmatmul.bf16.gmra.mxu0 %v1878
      %v2254 = vpop.f32.mrf.mxu0
      %v2255 = vadd.f32 %v335, %v2254
      %v2256 = vpop.f32.mrf.mxu0
      %v2257 = vadd.f32 %v335, %v2256
      %2258 = vmatmul.bf16.gmra.mxu0 %v1880
      %v2259 = vpop.f32.mrf.mxu0
      %v2260 = vadd.f32 %v335, %v2259
      %v2261 = vpop.f32.mrf.mxu0
      %v2262 = vadd.f32 %v335, %v2261
      %2263 = vmatmul.bf16.gmra.mxu0 %v1882
      %v2264 = vpop.f32.mrf.mxu0
      %v2265 = vadd.f32 %v335, %v2264
      %v2266 = vpop.f32.mrf.mxu0
      %v2267 = vadd.f32 %v335, %v2266
      %2268 = vmatmul.bf16.gmra.mxu0 %v1884
      %v2269 = vpop.f32.mrf.mxu0
      %v2270 = vadd.f32 %v335, %v2269
      %v2271 = vpop.f32.mrf.mxu0
      %v2272 = vadd.f32 %v335, %v2271
      %2273 = vmatmul.bf16.gmra.mxu0 %v1886
      %v2274 = vpop.f32.mrf.mxu0
      %v2275 = vadd.f32 %v335, %v2274
      %v2276 = vpop.f32.mrf.mxu0
      %v2277 = vadd.f32 %v335, %v2276
      %2278 = vmatmul.bf16.gmra.mxu0 %v1888
      %v2279 = vpop.f32.mrf.mxu0
      %v2280 = vadd.f32 %v335, %v2279
      %v2281 = vpop.f32.mrf.mxu0
      %v2282 = vadd.f32 %v335, %v2281
      %2283 = vmatmul.bf16.gmra.mxu0 %v1890
      %v2284 = vpop.f32.mrf.mxu0
      %v2285 = vadd.f32 %v335, %v2284
      %v2286 = vpop.f32.mrf.mxu0
      %v2287 = vadd.f32 %v335, %v2286
      %2288 = vmatmul.bf16.gmra.mxu0 %v1892
      %v2289 = vpop.f32.mrf.mxu0
      %v2290 = vadd.f32 %v335, %v2289
      %v2291 = vpop.f32.mrf.mxu0
      %v2292 = vadd.f32 %v335, %v2291
      %2293 = vmatmul.bf16.gmra.mxu0 %v1894
      %v2294 = vpop.f32.mrf.mxu0
      %v2295 = vadd.f32 %v335, %v2294
      %v2296 = vpop.f32.mrf.mxu0
      %v2297 = vadd.f32 %v335, %v2296
      %2298 = vmatmul.bf16.gmra.mxu0 %v1896
      %v2299 = vpop.f32.mrf.mxu0
      %v2300 = vadd.f32 %v335, %v2299
      %v2301 = vpop.f32.mrf.mxu0
      %v2302 = vadd.f32 %v335, %v2301
      %2303 = vmatmul.bf16.gmra.mxu0 %v1898
      %v2304 = vpop.f32.mrf.mxu0
      %v2305 = vadd.f32 %v335, %v2304
      %v2306 = vpop.f32.mrf.mxu0
      %v2307 = vadd.f32 %v335, %v2306
      %2308 = vmatmul.bf16.gmra.mxu0 %v1900
      %v2309 = vpop.f32.mrf.mxu0
      %v2310 = vadd.f32 %v335, %v2309
      %v2311 = vpop.f32.mrf.mxu0
      %v2312 = vadd.f32 %v335, %v2311
      %2313 = vmatmul.bf16.gmra.mxu0 %v1902
      %v2314 = vpop.f32.mrf.mxu0
      %v2315 = vadd.f32 %v335, %v2314
      %v2316 = vpop.f32.mrf.mxu0
      %v2317 = vadd.f32 %v335, %v2316
      %2318 = vmatmul.bf16.gmra.mxu0 %v1904
      %v2319 = vpop.f32.mrf.mxu0
      %v2320 = vadd.f32 %v335, %v2319
      %v2321 = vpop.f32.mrf.mxu0
      %v2322 = vadd.f32 %v335, %v2321
      %2323 = vmatmul.bf16.gmra.mxu0 %v1906
      %v2324 = vpop.f32.mrf.mxu0
      %v2325 = vadd.f32 %v335, %v2324
      %v2326 = vpop.f32.mrf.mxu0
      %v2327 = vadd.f32 %v335, %v2326
      %2328 = vmatmul.bf16.gmra.mxu0 %v1908
      %v2329 = vpop.f32.mrf.mxu0
      %v2330 = vadd.f32 %v335, %v2329
      %v2331 = vpop.f32.mrf.mxu0
      %v2332 = vadd.f32 %v335, %v2331
      %2333 = vmatmul.bf16.gmra.mxu0 %v1910
      %v2334 = vpop.f32.mrf.mxu0
      %v2335 = vadd.f32 %v335, %v2334
      %v2336 = vpop.f32.mrf.mxu0
      %v2337 = vadd.f32 %v335, %v2336
      %2338 = vmatmul.bf16.gmra.mxu0 %v1912
      %v2339 = vpop.f32.mrf.mxu0
      %v2340 = vadd.f32 %v335, %v2339
      %v2341 = vpop.f32.mrf.mxu0
      %v2342 = vadd.f32 %v335, %v2341
      %2343 = vmatmul.bf16.gmra.mxu0 %v1914
      %v2344 = vpop.f32.mrf.mxu0
      %v2345 = vadd.f32 %v335, %v2344
      %v2346 = vpop.f32.mrf.mxu0
      %v2347 = vadd.f32 %v335, %v2346
      %2348 = vmatmul.bf16.gmra.mxu0 %v1916
      %v2349 = vpop.f32.mrf.mxu0
      %v2350 = vadd.f32 %v335, %v2349
      %v2351 = vpop.f32.mrf.mxu0
      %v2352 = vadd.f32 %v335, %v2351
      %2353 = vmatmul.bf16.gmra.mxu0 %v1918
      %v2354 = vpop.f32.mrf.mxu0
      %v2355 = vadd.f32 %v335, %v2354
      %v2356 = vpop.f32.mrf.mxu0
      %v2357 = vadd.f32 %v335, %v2356
      %2358 = vmatmul.bf16.gmra.mxu0 %v1920
      %v2359 = vpop.f32.mrf.mxu0
      %v2360 = vadd.f32 %v335, %v2359
      %v2361 = vpop.f32.mrf.mxu0
      %v2362 = vadd.f32 %v335, %v2361
      %2363 = vmatmul.bf16.gmra.mxu0 %v1922
      %v2364 = vpop.f32.mrf.mxu0
      %v2365 = vadd.f32 %v335, %v2364
      %v2366 = vpop.f32.mrf.mxu0
      %v2367 = vadd.f32 %v335, %v2366
      %2368 = vmatmul.bf16.gmra.mxu0 %v1924
      %v2369 = vpop.f32.mrf.mxu0
      %v2370 = vadd.f32 %v335, %v2369
      %v2371 = vpop.f32.mrf.mxu0
      %v2372 = vadd.f32 %v335, %v2371
      %2373 = vmatmul.bf16.gmra.mxu0 %v1926
      %v2374 = vpop.f32.mrf.mxu0
      %v2375 = vadd.f32 %v335, %v2374
      %v2376 = vpop.f32.mrf.mxu0
      %v2377 = vadd.f32 %v335, %v2376
      %2378 = vmatmul.bf16.gmra.mxu0 %v1928
      %v2379 = vpop.f32.mrf.mxu0
      %v2380 = vadd.f32 %v335, %v2379
      %v2381 = vpop.f32.mrf.mxu0
      %v2382 = vadd.f32 %v335, %v2381
      %2383 = vmatmul.bf16.gmra.mxu0 %v1930
      %v2384 = vpop.f32.mrf.mxu0
      %v2385 = vadd.f32 %v335, %v2384
      %v2386 = vpop.f32.mrf.mxu0
      %v2387 = vadd.f32 %v335, %v2386
      %2388 = vdwg.mxu0
      %2389 = vmatpush.bf16.msra.mxu0 %v2043
      %2390 = vmatpush.bf16.msra.mxu0 %v2042
      %2391 = vmatpush.bf16.msra.mxu0 %v2041
      %2392 = vmatpush.bf16.msra.mxu0 %v2040
      %2393 = vmatpush.bf16.msra.mxu0 %v2039
      %2394 = vmatpush.bf16.msra.mxu0 %v2038
      %2395 = vmatpush.bf16.msra.mxu0 %v2037
      %2396 = vmatpush.bf16.msra.mxu0 %v2036
      %2397 = vmatmul.bf16.gmra.mxu0 %v1805
      %v2398 = vpop.f32.mrf.mxu0
      %v2399 = vadd.f32 %v2070, %v2398
      %v2400 = vpop.f32.mrf.mxu0
      %v2401 = vadd.f32 %v2072, %v2400
      %2402 = vmatmul.bf16.gmra.mxu0 %v1807
      %v2403 = vpop.f32.mrf.mxu0
      %v2404 = vadd.f32 %v2075, %v2403
      %v2405 = vpop.f32.mrf.mxu0
      %v2406 = vadd.f32 %v2077, %v2405
      %2407 = vmatmul.bf16.gmra.mxu0 %v1809
      %v2408 = vpop.f32.mrf.mxu0
      %v2409 = vadd.f32 %v2080, %v2408
      %v2410 = vpop.f32.mrf.mxu0
      %v2411 = vadd.f32 %v2082, %v2410
      %2412 = vmatmul.bf16.gmra.mxu0 %v1811
      %v2413 = vpop.f32.mrf.mxu0
      %v2414 = vadd.f32 %v2085, %v2413
      %v2415 = vpop.f32.mrf.mxu0
      %v2416 = vadd.f32 %v2087, %v2415
      %2417 = vmatmul.bf16.gmra.mxu0 %v1813
      %v2418 = vpop.f32.mrf.mxu0
      %v2419 = vadd.f32 %v2090, %v2418
      %v2420 = vpop.f32.mrf.mxu0
      %v2421 = vadd.f32 %v2092, %v2420
      %2422 = vmatmul.bf16.gmra.mxu0 %v1815
      %v2423 = vpop.f32.mrf.mxu0
      %v2424 = vadd.f32 %v2095, %v2423
      %v2425 = vpop.f32.mrf.mxu0
      %v2426 = vadd.f32 %v2097, %v2425
      %2427 = vmatmul.bf16.gmra.mxu0 %v1817
      %v2428 = vpop.f32.mrf.mxu0
      %v2429 = vadd.f32 %v2100, %v2428
      %v2430 = vpop.f32.mrf.mxu0
      %v2431 = vadd.f32 %v2102, %v2430
      %2432 = vmatmul.bf16.gmra.mxu0 %v1819
      %v2433 = vpop.f32.mrf.mxu0
      %v2434 = vadd.f32 %v2105, %v2433
      %v2435 = vpop.f32.mrf.mxu0
      %v2436 = vadd.f32 %v2107, %v2435
      %2437 = vmatmul.bf16.gmra.mxu0 %v1821
      %v2438 = vpop.f32.mrf.mxu0
      %v2439 = vadd.f32 %v2110, %v2438
      %v2440 = vpop.f32.mrf.mxu0
      %v2441 = vadd.f32 %v2112, %v2440
      %2442 = vmatmul.bf16.gmra.mxu0 %v1823
      %v2443 = vpop.f32.mrf.mxu0
      %v2444 = vadd.f32 %v2115, %v2443
      %v2445 = vpop.f32.mrf.mxu0
      %v2446 = vadd.f32 %v2117, %v2445
      %2447 = vmatmul.bf16.gmra.mxu0 %v1825
      %v2448 = vpop.f32.mrf.mxu0
      %v2449 = vadd.f32 %v2120, %v2448
      %v2450 = vpop.f32.mrf.mxu0
      %v2451 = vadd.f32 %v2122, %v2450
      %2452 = vmatmul.bf16.gmra.mxu0 %v1827
      %v2453 = vpop.f32.mrf.mxu0
      %v2454 = vadd.f32 %v2125, %v2453
      %v2455 = vpop.f32.mrf.mxu0
      %v2456 = vadd.f32 %v2127, %v2455
      %2457 = vmatmul.bf16.gmra.mxu0 %v1829
      %v2458 = vpop.f32.mrf.mxu0
      %v2459 = vadd.f32 %v2130, %v2458
      %v2460 = vpop.f32.mrf.mxu0
      %v2461 = vadd.f32 %v2132, %v2460
      %2462 = vmatmul.bf16.gmra.mxu0 %v1831
      %v2463 = vpop.f32.mrf.mxu0
      %v2464 = vadd.f32 %v2135, %v2463
      %v2465 = vpop.f32.mrf.mxu0
      %v2466 = vadd.f32 %v2137, %v2465
      %2467 = vmatmul.bf16.gmra.mxu0 %v1833
      %v2468 = vpop.f32.mrf.mxu0
      %v2469 = vadd.f32 %v2140, %v2468
      %v2470 = vpop.f32.mrf.mxu0
      %v2471 = vadd.f32 %v2142, %v2470
      %2472 = vmatmul.bf16.gmra.mxu0 %v1835
      %v2473 = vpop.f32.mrf.mxu0
      %v2474 = vadd.f32 %v2145, %v2473
      %v2475 = vpop.f32.mrf.mxu0
      %v2476 = vadd.f32 %v2147, %v2475
      %2477 = vmatmul.bf16.gmra.mxu0 %v1837
      %v2478 = vpop.f32.mrf.mxu0
      %v2479 = vadd.f32 %v2150, %v2478
      %v2480 = vpop.f32.mrf.mxu0
      %v2481 = vadd.f32 %v2152, %v2480
      %2482 = vmatmul.bf16.gmra.mxu0 %v1839
      %v2483 = vpop.f32.mrf.mxu0
      %v2484 = vadd.f32 %v2155, %v2483
      %v2485 = vpop.f32.mrf.mxu0
      %v2486 = vadd.f32 %v2157, %v2485
      %2487 = vmatmul.bf16.gmra.mxu0 %v1841
      %v2488 = vpop.f32.mrf.mxu0
      %v2489 = vadd.f32 %v2160, %v2488
      %v2490 = vpop.f32.mrf.mxu0
      %v2491 = vadd.f32 %v2162, %v2490
      %2492 = vmatmul.bf16.gmra.mxu0 %v1843
      %v2493 = vpop.f32.mrf.mxu0
      %v2494 = vadd.f32 %v2165, %v2493
      %v2495 = vpop.f32.mrf.mxu0
      %v2496 = vadd.f32 %v2167, %v2495
      %2497 = vmatmul.bf16.gmra.mxu0 %v1845
      %v2498 = vpop.f32.mrf.mxu0
      %v2499 = vadd.f32 %v2170, %v2498
      %v2500 = vpop.f32.mrf.mxu0
      %v2501 = vadd.f32 %v2172, %v2500
      %2502 = vmatmul.bf16.gmra.mxu0 %v1847
      %v2503 = vpop.f32.mrf.mxu0
      %v2504 = vadd.f32 %v2175, %v2503
      %v2505 = vpop.f32.mrf.mxu0
      %v2506 = vadd.f32 %v2177, %v2505
      %2507 = vmatmul.bf16.gmra.mxu0 %v1849
      %v2508 = vpop.f32.mrf.mxu0
      %v2509 = vadd.f32 %v2180, %v2508
      %v2510 = vpop.f32.mrf.mxu0
      %v2511 = vadd.f32 %v2182, %v2510
      %2512 = vmatmul.bf16.gmra.mxu0 %v1851
      %v2513 = vpop.f32.mrf.mxu0
      %v2514 = vadd.f32 %v2185, %v2513
      %v2515 = vpop.f32.mrf.mxu0
      %v2516 = vadd.f32 %v2187, %v2515
      %2517 = vmatmul.bf16.gmra.mxu0 %v1853
      %v2518 = vpop.f32.mrf.mxu0
      %v2519 = vadd.f32 %v2190, %v2518
      %v2520 = vpop.f32.mrf.mxu0
      %v2521 = vadd.f32 %v2192, %v2520
      %2522 = vmatmul.bf16.gmra.mxu0 %v1855
      %v2523 = vpop.f32.mrf.mxu0
      %v2524 = vadd.f32 %v2195, %v2523
      %v2525 = vpop.f32.mrf.mxu0
      %v2526 = vadd.f32 %v2197, %v2525
      %2527 = vmatmul.bf16.gmra.mxu0 %v1857
      %v2528 = vpop.f32.mrf.mxu0
      %v2529 = vadd.f32 %v2200, %v2528
      %v2530 = vpop.f32.mrf.mxu0
      %v2531 = vadd.f32 %v2202, %v2530
      %2532 = vmatmul.bf16.gmra.mxu0 %v1859
      %v2533 = vpop.f32.mrf.mxu0
      %v2534 = vadd.f32 %v2205, %v2533
      %v2535 = vpop.f32.mrf.mxu0
      %v2536 = vadd.f32 %v2207, %v2535
      %2537 = vmatmul.bf16.gmra.mxu0 %v1861
      %v2538 = vpop.f32.mrf.mxu0
      %v2539 = vadd.f32 %v2210, %v2538
      %v2540 = vpop.f32.mrf.mxu0
      %v2541 = vadd.f32 %v2212, %v2540
      %2542 = vmatmul.bf16.gmra.mxu0 %v1863
      %v2543 = vpop.f32.mrf.mxu0
      %v2544 = vadd.f32 %v2215, %v2543
      %v2545 = vpop.f32.mrf.mxu0
      %v2546 = vadd.f32 %v2217, %v2545
      %2547 = vmatmul.bf16.gmra.mxu0 %v1865
      %v2548 = vpop.f32.mrf.mxu0
      %v2549 = vadd.f32 %v2220, %v2548
      %v2550 = vpop.f32.mrf.mxu0
      %v2551 = vadd.f32 %v2222, %v2550
      %2552 = vmatmul.bf16.gmra.mxu0 %v1867
      %v2553 = vpop.f32.mrf.mxu0
      %v2554 = vadd.f32 %v2225, %v2553
      %v2555 = vpop.f32.mrf.mxu0
      %v2556 = vadd.f32 %v2227, %v2555
      %2557 = vmatmul.bf16.gmra.mxu0 %v1869
      %v2558 = vpop.f32.mrf.mxu0
      %v2559 = vadd.f32 %v2230, %v2558
      %v2560 = vpop.f32.mrf.mxu0
      %v2561 = vadd.f32 %v2232, %v2560
      %2562 = vmatmul.bf16.gmra.mxu0 %v1871
      %v2563 = vpop.f32.mrf.mxu0
      %v2564 = vadd.f32 %v2235, %v2563
      %v2565 = vpop.f32.mrf.mxu0
      %v2566 = vadd.f32 %v2237, %v2565
      %2567 = vmatmul.bf16.gmra.mxu0 %v1873
      %v2568 = vpop.f32.mrf.mxu0
      %v2569 = vadd.f32 %v2240, %v2568
      %v2570 = vpop.f32.mrf.mxu0
      %v2571 = vadd.f32 %v2242, %v2570
      %2572 = vmatmul.bf16.gmra.mxu0 %v1875
      %v2573 = vpop.f32.mrf.mxu0
      %v2574 = vadd.f32 %v2245, %v2573
      %v2575 = vpop.f32.mrf.mxu0
      %v2576 = vadd.f32 %v2247, %v2575
      %2577 = vmatmul.bf16.gmra.mxu0 %v1877
      %v2578 = vpop.f32.mrf.mxu0
      %v2579 = vadd.f32 %v2250, %v2578
      %v2580 = vpop.f32.mrf.mxu0
      %v2581 = vadd.f32 %v2252, %v2580
      %2582 = vmatmul.bf16.gmra.mxu0 %v1879
      %v2583 = vpop.f32.mrf.mxu0
      %v2584 = vadd.f32 %v2255, %v2583
      %v2585 = vpop.f32.mrf.mxu0
      %v2586 = vadd.f32 %v2257, %v2585
      %2587 = vmatmul.bf16.gmra.mxu0 %v1881
      %v2588 = vpop.f32.mrf.mxu0
      %v2589 = vadd.f32 %v2260, %v2588
      %v2590 = vpop.f32.mrf.mxu0
      %v2591 = vadd.f32 %v2262, %v2590
      %2592 = vmatmul.bf16.gmra.mxu0 %v1883
      %v2593 = vpop.f32.mrf.mxu0
      %v2594 = vadd.f32 %v2265, %v2593
      %v2595 = vpop.f32.mrf.mxu0
      %v2596 = vadd.f32 %v2267, %v2595
      %2597 = vmatmul.bf16.gmra.mxu0 %v1885
      %v2598 = vpop.f32.mrf.mxu0
      %v2599 = vadd.f32 %v2270, %v2598
      %v2600 = vpop.f32.mrf.mxu0
      %v2601 = vadd.f32 %v2272, %v2600
      %2602 = vmatmul.bf16.gmra.mxu0 %v1887
      %v2603 = vpop.f32.mrf.mxu0
      %v2604 = vadd.f32 %v2275, %v2603
      %v2605 = vpop.f32.mrf.mxu0
      %v2606 = vadd.f32 %v2277, %v2605
      %2607 = vmatmul.bf16.gmra.mxu0 %v1889
      %v2608 = vpop.f32.mrf.mxu0
      %v2609 = vadd.f32 %v2280, %v2608
      %v2610 = vpop.f32.mrf.mxu0
      %v2611 = vadd.f32 %v2282, %v2610
      %2612 = vmatmul.bf16.gmra.mxu0 %v1891
      %v2613 = vpop.f32.mrf.mxu0
      %v2614 = vadd.f32 %v2285, %v2613
      %v2615 = vpop.f32.mrf.mxu0
      %v2616 = vadd.f32 %v2287, %v2615
      %2617 = vmatmul.bf16.gmra.mxu0 %v1893
      %v2618 = vpop.f32.mrf.mxu0
      %v2619 = vadd.f32 %v2290, %v2618
      %v2620 = vpop.f32.mrf.mxu0
      %v2621 = vadd.f32 %v2292, %v2620
      %2622 = vmatmul.bf16.gmra.mxu0 %v1895
      %v2623 = vpop.f32.mrf.mxu0
      %v2624 = vadd.f32 %v2295, %v2623
      %v2625 = vpop.f32.mrf.mxu0
      %v2626 = vadd.f32 %v2297, %v2625
      %2627 = vmatmul.bf16.gmra.mxu0 %v1897
      %v2628 = vpop.f32.mrf.mxu0
      %v2629 = vadd.f32 %v2300, %v2628
      %v2630 = vpop.f32.mrf.mxu0
      %v2631 = vadd.f32 %v2302, %v2630
      %2632 = vmatmul.bf16.gmra.mxu0 %v1899
      %v2633 = vpop.f32.mrf.mxu0
      %v2634 = vadd.f32 %v2305, %v2633
      %v2635 = vpop.f32.mrf.mxu0
      %v2636 = vadd.f32 %v2307, %v2635
      %2637 = vmatmul.bf16.gmra.mxu0 %v1901
      %v2638 = vpop.f32.mrf.mxu0
      %v2639 = vadd.f32 %v2310, %v2638
      %v2640 = vpop.f32.mrf.mxu0
      %v2641 = vadd.f32 %v2312, %v2640
      %2642 = vmatmul.bf16.gmra.mxu0 %v1903
      %v2643 = vpop.f32.mrf.mxu0
      %v2644 = vadd.f32 %v2315, %v2643
      %v2645 = vpop.f32.mrf.mxu0
      %v2646 = vadd.f32 %v2317, %v2645
      %2647 = vmatmul.bf16.gmra.mxu0 %v1905
      %v2648 = vpop.f32.mrf.mxu0
      %v2649 = vadd.f32 %v2320, %v2648
      %v2650 = vpop.f32.mrf.mxu0
      %v2651 = vadd.f32 %v2322, %v2650
      %2652 = vmatmul.bf16.gmra.mxu0 %v1907
      %v2653 = vpop.f32.mrf.mxu0
      %v2654 = vadd.f32 %v2325, %v2653
      %v2655 = vpop.f32.mrf.mxu0
      %v2656 = vadd.f32 %v2327, %v2655
      %2657 = vmatmul.bf16.gmra.mxu0 %v1909
      %v2658 = vpop.f32.mrf.mxu0
      %v2659 = vadd.f32 %v2330, %v2658
      %v2660 = vpop.f32.mrf.mxu0
      %v2661 = vadd.f32 %v2332, %v2660
      %2662 = vmatmul.bf16.gmra.mxu0 %v1911
      %v2663 = vpop.f32.mrf.mxu0
      %v2664 = vadd.f32 %v2335, %v2663
      %v2665 = vpop.f32.mrf.mxu0
      %v2666 = vadd.f32 %v2337, %v2665
      %2667 = vmatmul.bf16.gmra.mxu0 %v1913
      %v2668 = vpop.f32.mrf.mxu0
      %v2669 = vadd.f32 %v2340, %v2668
      %v2670 = vpop.f32.mrf.mxu0
      %v2671 = vadd.f32 %v2342, %v2670
      %2672 = vmatmul.bf16.gmra.mxu0 %v1915
      %v2673 = vpop.f32.mrf.mxu0
      %v2674 = vadd.f32 %v2345, %v2673
      %v2675 = vpop.f32.mrf.mxu0
      %v2676 = vadd.f32 %v2347, %v2675
      %2677 = vmatmul.bf16.gmra.mxu0 %v1917
      %v2678 = vpop.f32.mrf.mxu0
      %v2679 = vadd.f32 %v2350, %v2678
      %v2680 = vpop.f32.mrf.mxu0
      %v2681 = vadd.f32 %v2352, %v2680
      %2682 = vmatmul.bf16.gmra.mxu0 %v1919
      %v2683 = vpop.f32.mrf.mxu0
      %v2684 = vadd.f32 %v2355, %v2683
      %v2685 = vpop.f32.mrf.mxu0
      %v2686 = vadd.f32 %v2357, %v2685
      %2687 = vmatmul.bf16.gmra.mxu0 %v1921
      %v2688 = vpop.f32.mrf.mxu0
      %v2689 = vadd.f32 %v2360, %v2688
      %v2690 = vpop.f32.mrf.mxu0
      %v2691 = vadd.f32 %v2362, %v2690
      %2692 = vmatmul.bf16.gmra.mxu0 %v1923
      %v2693 = vpop.f32.mrf.mxu0
      %v2694 = vadd.f32 %v2365, %v2693
      %v2695 = vpop.f32.mrf.mxu0
      %v2696 = vadd.f32 %v2367, %v2695
      %2697 = vmatmul.bf16.gmra.mxu0 %v1925
      %v2698 = vpop.f32.mrf.mxu0
      %v2699 = vadd.f32 %v2370, %v2698
      %v2700 = vpop.f32.mrf.mxu0
      %v2701 = vadd.f32 %v2372, %v2700
      %2702 = vmatmul.bf16.gmra.mxu0 %v1927
      %v2703 = vpop.f32.mrf.mxu0
      %v2704 = vadd.f32 %v2375, %v2703
      %v2705 = vpop.f32.mrf.mxu0
      %v2706 = vadd.f32 %v2377, %v2705
      %2707 = vmatmul.bf16.gmra.mxu0 %v1929
      %v2708 = vpop.f32.mrf.mxu0
      %v2709 = vadd.f32 %v2380, %v2708
      %v2710 = vpop.f32.mrf.mxu0
      %v2711 = vadd.f32 %v2382, %v2710
      %2712 = vmatmul.bf16.gmra.mxu0 %v1931
      %v2713 = vpop.f32.mrf.mxu0
      %v2714 = vadd.f32 %v2385, %v2713
      %v2715 = vpop.f32.mrf.mxu0
      %v2716 = vadd.f32 %v2387, %v2715
      %2717 = vdwg.mxu0
      %v2718 = vmax.f32 %v2399, 0.0
      %v2719 = vmax.f32 %v2401, 0.0
      %v2720 = vmax.f32 %v2404, 0.0
      %v2721 = vmax.f32 %v2406, 0.0
      %v2722 = vmax.f32 %v2409, 0.0
      %v2723 = vmax.f32 %v2411, 0.0
      %v2724 = vmax.f32 %v2414, 0.0
      %v2725 = vmax.f32 %v2416, 0.0
      %v2726 = vmax.f32 %v2419, 0.0
      %v2727 = vmax.f32 %v2421, 0.0
      %v2728 = vmax.f32 %v2424, 0.0
      %v2729 = vmax.f32 %v2426, 0.0
      %v2730 = vmax.f32 %v2429, 0.0
      %v2731 = vmax.f32 %v2431, 0.0
      %v2732 = vmax.f32 %v2434, 0.0
      %v2733 = vmax.f32 %v2436, 0.0
      %v2734 = vmax.f32 %v2439, 0.0
      %v2735 = vmax.f32 %v2441, 0.0
      %v2736 = vmax.f32 %v2444, 0.0
      %v2737 = vmax.f32 %v2446, 0.0
      %v2738 = vmax.f32 %v2449, 0.0
      %v2739 = vmax.f32 %v2451, 0.0
      %v2740 = vmax.f32 %v2454, 0.0
      %v2741 = vmax.f32 %v2456, 0.0
      %v2742 = vmax.f32 %v2459, 0.0
      %v2743 = vmax.f32 %v2461, 0.0
      %v2744 = vmax.f32 %v2464, 0.0
      %v2745 = vmax.f32 %v2466, 0.0
      %v2746 = vmax.f32 %v2469, 0.0
      %v2747 = vmax.f32 %v2471, 0.0
      %v2748 = vmax.f32 %v2474, 0.0
      %v2749 = vmax.f32 %v2476, 0.0
      %v2750 = vmax.f32 %v2479, 0.0
      %v2751 = vmax.f32 %v2481, 0.0
      %v2752 = vmax.f32 %v2484, 0.0
      %v2753 = vmax.f32 %v2486, 0.0
      %v2754 = vmax.f32 %v2489, 0.0
      %v2755 = vmax.f32 %v2491, 0.0
      %v2756 = vmax.f32 %v2494, 0.0
      %v2757 = vmax.f32 %v2496, 0.0
      %v2758 = vmax.f32 %v2499, 0.0
      %v2759 = vmax.f32 %v2501, 0.0
      %v2760 = vmax.f32 %v2504, 0.0
      %v2761 = vmax.f32 %v2506, 0.0
      %v2762 = vmax.f32 %v2509, 0.0
      %v2763 = vmax.f32 %v2511, 0.0
      %v2764 = vmax.f32 %v2514, 0.0
      %v2765 = vmax.f32 %v2516, 0.0
      %v2766 = vmax.f32 %v2519, 0.0
      %v2767 = vmax.f32 %v2521, 0.0
      %v2768 = vmax.f32 %v2524, 0.0
      %v2769 = vmax.f32 %v2526, 0.0
      %v2770 = vmax.f32 %v2529, 0.0
      %v2771 = vmax.f32 %v2531, 0.0
      %v2772 = vmax.f32 %v2534, 0.0
      %v2773 = vmax.f32 %v2536, 0.0
      %v2774 = vmax.f32 %v2539, 0.0
      %v2775 = vmax.f32 %v2541, 0.0
      %v2776 = vmax.f32 %v2544, 0.0
      %v2777 = vmax.f32 %v2546, 0.0
      %v2778 = vmax.f32 %v2549, 0.0
      %v2779 = vmax.f32 %v2551, 0.0
      %v2780 = vmax.f32 %v2554, 0.0
      %v2781 = vmax.f32 %v2556, 0.0
      %v2782 = vmax.f32 %v2559, 0.0
      %v2783 = vmax.f32 %v2561, 0.0
      %v2784 = vmax.f32 %v2564, 0.0
      %v2785 = vmax.f32 %v2566, 0.0
      %v2786 = vmax.f32 %v2569, 0.0
      %v2787 = vmax.f32 %v2571, 0.0
      %v2788 = vmax.f32 %v2574, 0.0
      %v2789 = vmax.f32 %v2576, 0.0
      %v2790 = vmax.f32 %v2579, 0.0
      %v2791 = vmax.f32 %v2581, 0.0
      %v2792 = vmax.f32 %v2584, 0.0
      %v2793 = vmax.f32 %v2586, 0.0
      %v2794 = vmax.f32 %v2589, 0.0
      %v2795 = vmax.f32 %v2591, 0.0
      %v2796 = vmax.f32 %v2594, 0.0
      %v2797 = vmax.f32 %v2596, 0.0
      %v2798 = vmax.f32 %v2599, 0.0
      %v2799 = vmax.f32 %v2601, 0.0
      %v2800 = vmax.f32 %v2604, 0.0
      %v2801 = vmax.f32 %v2606, 0.0
      %v2802 = vmax.f32 %v2609, 0.0
      %v2803 = vmax.f32 %v2611, 0.0
      %v2804 = vmax.f32 %v2614, 0.0
      %v2805 = vmax.f32 %v2616, 0.0
      %v2806 = vmax.f32 %v2619, 0.0
      %v2807 = vmax.f32 %v2621, 0.0
      %v2808 = vmax.f32 %v2624, 0.0
      %v2809 = vmax.f32 %v2626, 0.0
      %v2810 = vmax.f32 %v2629, 0.0
      %v2811 = vmax.f32 %v2631, 0.0
      %v2812 = vmax.f32 %v2634, 0.0
      %v2813 = vmax.f32 %v2636, 0.0
      %v2814 = vmax.f32 %v2639, 0.0
      %v2815 = vmax.f32 %v2641, 0.0
      %v2816 = vmax.f32 %v2644, 0.0
      %v2817 = vmax.f32 %v2646, 0.0
      %v2818 = vmax.f32 %v2649, 0.0
      %v2819 = vmax.f32 %v2651, 0.0
      %v2820 = vmax.f32 %v2654, 0.0
      %v2821 = vmax.f32 %v2656, 0.0
      %v2822 = vmax.f32 %v2659, 0.0
      %v2823 = vmax.f32 %v2661, 0.0
      %v2824 = vmax.f32 %v2664, 0.0
      %v2825 = vmax.f32 %v2666, 0.0
      %v2826 = vmax.f32 %v2669, 0.0
      %v2827 = vmax.f32 %v2671, 0.0
      %v2828 = vmax.f32 %v2674, 0.0
      %v2829 = vmax.f32 %v2676, 0.0
      %v2830 = vmax.f32 %v2679, 0.0
      %v2831 = vmax.f32 %v2681, 0.0
      %v2832 = vmax.f32 %v2684, 0.0
      %v2833 = vmax.f32 %v2686, 0.0
      %v2834 = vmax.f32 %v2689, 0.0
      %v2835 = vmax.f32 %v2691, 0.0
      %v2836 = vmax.f32 %v2694, 0.0
      %v2837 = vmax.f32 %v2696, 0.0
      %v2838 = vmax.f32 %v2699, 0.0
      %v2839 = vmax.f32 %v2701, 0.0
      %v2840 = vmax.f32 %v2704, 0.0
      %v2841 = vmax.f32 %v2706, 0.0
      %v2842 = vmax.f32 %v2709, 0.0
      %v2843 = vmax.f32 %v2711, 0.0
      %v2844 = vmax.f32 %v2714, 0.0
      %v2845 = vmax.f32 %v2716, 0.0
      %v2846 = vpack.c.bf16 %v2719, %v2718
      %v2847 = vpack.c.bf16 %v2721, %v2720
      %v2848 = vpack.c.bf16 %v2723, %v2722
      %v2849 = vpack.c.bf16 %v2725, %v2724
      %v2850 = vpack.c.bf16 %v2727, %v2726
      %v2851 = vpack.c.bf16 %v2729, %v2728
      %v2852 = vpack.c.bf16 %v2731, %v2730
      %v2853 = vpack.c.bf16 %v2733, %v2732
      %v2854 = vpack.c.bf16 %v2735, %v2734
      %v2855 = vpack.c.bf16 %v2737, %v2736
      %v2856 = vpack.c.bf16 %v2739, %v2738
      %v2857 = vpack.c.bf16 %v2741, %v2740
      %v2858 = vpack.c.bf16 %v2743, %v2742
      %v2859 = vpack.c.bf16 %v2745, %v2744
      %v2860 = vpack.c.bf16 %v2747, %v2746
      %v2861 = vpack.c.bf16 %v2749, %v2748
      %v2862 = vpack.c.bf16 %v2751, %v2750
      %v2863 = vpack.c.bf16 %v2753, %v2752
      %v2864 = vpack.c.bf16 %v2755, %v2754
      %v2865 = vpack.c.bf16 %v2757, %v2756
      %v2866 = vpack.c.bf16 %v2759, %v2758
      %v2867 = vpack.c.bf16 %v2761, %v2760
      %v2868 = vpack.c.bf16 %v2763, %v2762
      %v2869 = vpack.c.bf16 %v2765, %v2764
      %v2870 = vpack.c.bf16 %v2767, %v2766
      %v2871 = vpack.c.bf16 %v2769, %v2768
      %v2872 = vpack.c.bf16 %v2771, %v2770
      %v2873 = vpack.c.bf16 %v2773, %v2772
      %v2874 = vpack.c.bf16 %v2775, %v2774
      %v2875 = vpack.c.bf16 %v2777, %v2776
      %v2876 = vpack.c.bf16 %v2779, %v2778
      %v2877 = vpack.c.bf16 %v2781, %v2780
      %v2878 = vpack.c.bf16 %v2783, %v2782
      %v2879 = vpack.c.bf16 %v2785, %v2784
      %v2880 = vpack.c.bf16 %v2787, %v2786
      %v2881 = vpack.c.bf16 %v2789, %v2788
      %v2882 = vpack.c.bf16 %v2791, %v2790
      %v2883 = vpack.c.bf16 %v2793, %v2792
      %v2884 = vpack.c.bf16 %v2795, %v2794
      %v2885 = vpack.c.bf16 %v2797, %v2796
      %v2886 = vpack.c.bf16 %v2799, %v2798
      %v2887 = vpack.c.bf16 %v2801, %v2800
      %v2888 = vpack.c.bf16 %v2803, %v2802
      %v2889 = vpack.c.bf16 %v2805, %v2804
      %v2890 = vpack.c.bf16 %v2807, %v2806
      %v2891 = vpack.c.bf16 %v2809, %v2808
      %v2892 = vpack.c.bf16 %v2811, %v2810
      %v2893 = vpack.c.bf16 %v2813, %v2812
      %v2894 = vpack.c.bf16 %v2815, %v2814
      %v2895 = vpack.c.bf16 %v2817, %v2816
      %v2896 = vpack.c.bf16 %v2819, %v2818
      %v2897 = vpack.c.bf16 %v2821, %v2820
      %v2898 = vpack.c.bf16 %v2823, %v2822
      %v2899 = vpack.c.bf16 %v2825, %v2824
      %v2900 = vpack.c.bf16 %v2827, %v2826
      %v2901 = vpack.c.bf16 %v2829, %v2828
      %v2902 = vpack.c.bf16 %v2831, %v2830
      %v2903 = vpack.c.bf16 %v2833, %v2832
      %v2904 = vpack.c.bf16 %v2835, %v2834
      %v2905 = vpack.c.bf16 %v2837, %v2836
      %v2906 = vpack.c.bf16 %v2839, %v2838
      %v2907 = vpack.c.bf16 %v2841, %v2840
      %v2908 = vpack.c.bf16 %v2843, %v2842
      %v2909 = vpack.c.bf16 %v2845, %v2844
      %v2910 = vld [vmem:[%s4] sm:$0xf]
      %v2911 = vld [vmem:[%s4 + $0x4] sm:$0xf]
      %v2912 = vld [vmem:[%s4 + $0x8] sm:$0xf]
      %v2913 = vld [vmem:[%s4 + $0xc] sm:$0xf]
      %v2914 = vld [vmem:[%s4 + $0x10] sm:$0xf]
      %v2915 = vld [vmem:[%s4 + $0x14] sm:$0xf]
      %v2916 = vld [vmem:[%s4 + $0x18] sm:$0xf]
      %v2917 = vld [vmem:[%s4 + $0x1c] sm:$0xf]
      %v2918 = vld [vmem:[%s4 + $0x20] sm:$0xf]
      %v2919 = vld [vmem:[%s4 + $0x24] sm:$0xf]
      %v2920 = vld [vmem:[%s4 + $0x28] sm:$0xf]
      %v2921 = vld [vmem:[%s4 + $0x2c] sm:$0xf]
      %v2922 = vld [vmem:[%s4 + $0x30] sm:$0xf]
      %v2923 = vld [vmem:[%s4 + $0x34] sm:$0xf]
      %v2924 = vld [vmem:[%s4 + $0x38] sm:$0xf]
      %v2925 = vld [vmem:[%s4 + $0x3c] sm:$0xf]
      %v2942 = vunpack.c.l.b16 %v2910
      %v2943 = vunpack.c.l.b16 %v2911
      %v2944 = vunpack.c.l.b16 %v2912
      %v2945 = vunpack.c.l.b16 %v2913
      %v2946 = vunpack.c.l.b16 %v2914
      %v2947 = vunpack.c.l.b16 %v2915
      %v2948 = vunpack.c.l.b16 %v2916
      %v2949 = vunpack.c.l.b16 %v2917
      %v2950 = vunpack.c.l.b16 %v2918
      %v2951 = vunpack.c.l.b16 %v2919
      %v2952 = vunpack.c.l.b16 %v2920
      %v2953 = vunpack.c.l.b16 %v2921
      %v2954 = vunpack.c.l.b16 %v2922
      %v2955 = vunpack.c.l.b16 %v2923
      %v2956 = vunpack.c.l.b16 %v2924
      %v2957 = vunpack.c.l.b16 %v2925
      %v2958 = vpack.c.b16 %v2943, %v2942
      %v2959 = vpack.c.b16 %v2945, %v2944
      %v2960 = vpack.c.b16 %v2947, %v2946
      %v2961 = vpack.c.b16 %v2949, %v2948
      %v2962 = vpack.c.b16 %v2951, %v2950
      %v2963 = vpack.c.b16 %v2953, %v2952
      %v2964 = vpack.c.b16 %v2955, %v2954
      %v2965 = vpack.c.b16 %v2957, %v2956
      %2974 = vmatpush.bf16.msra.mxu0 %v2965
      %2975 = vmatpush.bf16.msra.mxu0 %v2964
      %2976 = vmatpush.bf16.msra.mxu0 %v2963
      %2977 = vmatpush.bf16.msra.mxu0 %v2962
      %2978 = vmatpush.bf16.msra.mxu0 %v2961
      %2979 = vmatpush.bf16.msra.mxu0 %v2960
      %2980 = vmatpush.bf16.msra.mxu0 %v2959
      %2981 = vmatpush.bf16.msra.mxu0 %v2958
      %2982 = vmatmul.bf16.gmra.mxu0 %v2846
      %v2983 = vpop.f32.mrf.mxu0
      %v2984 = vadd.f32 %v337, %v2983
      %v2985 = vpop.f32.mrf.mxu0
      %v2986 = vadd.f32 %v337, %v2985
      %2987 = vmatmul.bf16.gmra.mxu0 %v2847
      %v2988 = vpop.f32.mrf.mxu0
      %v2989 = vadd.f32 %v337, %v2988
      %v2990 = vpop.f32.mrf.mxu0
      %v2991 = vadd.f32 %v337, %v2990
      %2992 = vmatmul.bf16.gmra.mxu0 %v2848
      %v2993 = vpop.f32.mrf.mxu0
      %v2994 = vadd.f32 %v337, %v2993
      %v2995 = vpop.f32.mrf.mxu0
      %v2996 = vadd.f32 %v337, %v2995
      %2997 = vmatmul.bf16.gmra.mxu0 %v2849
      %v2998 = vpop.f32.mrf.mxu0
      %v2999 = vadd.f32 %v337, %v2998
      %v3000 = vpop.f32.mrf.mxu0
      %v3001 = vadd.f32 %v337, %v3000
      %3002 = vmatmul.bf16.gmra.mxu0 %v2850
      %v3003 = vpop.f32.mrf.mxu0
      %v3004 = vadd.f32 %v337, %v3003
      %v3005 = vpop.f32.mrf.mxu0
      %v3006 = vadd.f32 %v337, %v3005
      %3007 = vmatmul.bf16.gmra.mxu0 %v2851
      %v3008 = vpop.f32.mrf.mxu0
      %v3009 = vadd.f32 %v337, %v3008
      %v3010 = vpop.f32.mrf.mxu0
      %v3011 = vadd.f32 %v337, %v3010
      %3012 = vmatmul.bf16.gmra.mxu0 %v2852
      %v3013 = vpop.f32.mrf.mxu0
      %v3014 = vadd.f32 %v337, %v3013
      %v3015 = vpop.f32.mrf.mxu0
      %v3016 = vadd.f32 %v337, %v3015
      %3017 = vmatmul.bf16.gmra.mxu0 %v2853
      %v3018 = vpop.f32.mrf.mxu0
      %v3019 = vadd.f32 %v337, %v3018
      %v3020 = vpop.f32.mrf.mxu0
      %v3021 = vadd.f32 %v337, %v3020
      %3022 = vmatmul.bf16.gmra.mxu0 %v2854
      %v3023 = vpop.f32.mrf.mxu0
      %v3024 = vadd.f32 %v337, %v3023
      %v3025 = vpop.f32.mrf.mxu0
      %v3026 = vadd.f32 %v337, %v3025
      %3027 = vmatmul.bf16.gmra.mxu0 %v2855
      %v3028 = vpop.f32.mrf.mxu0
      %v3029 = vadd.f32 %v337, %v3028
      %v3030 = vpop.f32.mrf.mxu0
      %v3031 = vadd.f32 %v337, %v3030
      %3032 = vmatmul.bf16.gmra.mxu0 %v2856
      %v3033 = vpop.f32.mrf.mxu0
      %v3034 = vadd.f32 %v337, %v3033
      %v3035 = vpop.f32.mrf.mxu0
      %v3036 = vadd.f32 %v337, %v3035
      %3037 = vmatmul.bf16.gmra.mxu0 %v2857
      %v3038 = vpop.f32.mrf.mxu0
      %v3039 = vadd.f32 %v337, %v3038
      %v3040 = vpop.f32.mrf.mxu0
      %v3041 = vadd.f32 %v337, %v3040
      %3042 = vmatmul.bf16.gmra.mxu0 %v2858
      %v3043 = vpop.f32.mrf.mxu0
      %v3044 = vadd.f32 %v337, %v3043
      %v3045 = vpop.f32.mrf.mxu0
      %v3046 = vadd.f32 %v337, %v3045
      %3047 = vmatmul.bf16.gmra.mxu0 %v2859
      %v3048 = vpop.f32.mrf.mxu0
      %v3049 = vadd.f32 %v337, %v3048
      %v3050 = vpop.f32.mrf.mxu0
      %v3051 = vadd.f32 %v337, %v3050
      %3052 = vmatmul.bf16.gmra.mxu0 %v2860
      %v3053 = vpop.f32.mrf.mxu0
      %v3054 = vadd.f32 %v337, %v3053
      %v3055 = vpop.f32.mrf.mxu0
      %v3056 = vadd.f32 %v337, %v3055
      %3057 = vmatmul.bf16.gmra.mxu0 %v2861
      %v3058 = vpop.f32.mrf.mxu0
      %v3059 = vadd.f32 %v337, %v3058
      %v3060 = vpop.f32.mrf.mxu0
      %v3061 = vadd.f32 %v337, %v3060
      %3062 = vmatmul.bf16.gmra.mxu0 %v2862
      %v3063 = vpop.f32.mrf.mxu0
      %v3064 = vadd.f32 %v337, %v3063
      %v3065 = vpop.f32.mrf.mxu0
      %v3066 = vadd.f32 %v337, %v3065
      %3067 = vmatmul.bf16.gmra.mxu0 %v2863
      %v3068 = vpop.f32.mrf.mxu0
      %v3069 = vadd.f32 %v337, %v3068
      %v3070 = vpop.f32.mrf.mxu0
      %v3071 = vadd.f32 %v337, %v3070
      %3072 = vmatmul.bf16.gmra.mxu0 %v2864
      %v3073 = vpop.f32.mrf.mxu0
      %v3074 = vadd.f32 %v337, %v3073
      %v3075 = vpop.f32.mrf.mxu0
      %v3076 = vadd.f32 %v337, %v3075
      %3077 = vmatmul.bf16.gmra.mxu0 %v2865
      %v3078 = vpop.f32.mrf.mxu0
      %v3079 = vadd.f32 %v337, %v3078
      %v3080 = vpop.f32.mrf.mxu0
      %v3081 = vadd.f32 %v337, %v3080
      %3082 = vmatmul.bf16.gmra.mxu0 %v2866
      %v3083 = vpop.f32.mrf.mxu0
      %v3084 = vadd.f32 %v337, %v3083
      %v3085 = vpop.f32.mrf.mxu0
      %v3086 = vadd.f32 %v337, %v3085
      %3087 = vmatmul.bf16.gmra.mxu0 %v2867
      %v3088 = vpop.f32.mrf.mxu0
      %v3089 = vadd.f32 %v337, %v3088
      %v3090 = vpop.f32.mrf.mxu0
      %v3091 = vadd.f32 %v337, %v3090
      %3092 = vmatmul.bf16.gmra.mxu0 %v2868
      %v3093 = vpop.f32.mrf.mxu0
      %v3094 = vadd.f32 %v337, %v3093
      %v3095 = vpop.f32.mrf.mxu0
      %v3096 = vadd.f32 %v337, %v3095
      %3097 = vmatmul.bf16.gmra.mxu0 %v2869
      %v3098 = vpop.f32.mrf.mxu0
      %v3099 = vadd.f32 %v337, %v3098
      %v3100 = vpop.f32.mrf.mxu0
      %v3101 = vadd.f32 %v337, %v3100
      %3102 = vmatmul.bf16.gmra.mxu0 %v2870
      %v3103 = vpop.f32.mrf.mxu0
      %v3104 = vadd.f32 %v337, %v3103
      %v3105 = vpop.f32.mrf.mxu0
      %v3106 = vadd.f32 %v337, %v3105
      %3107 = vmatmul.bf16.gmra.mxu0 %v2871
      %v3108 = vpop.f32.mrf.mxu0
      %v3109 = vadd.f32 %v337, %v3108
      %v3110 = vpop.f32.mrf.mxu0
      %v3111 = vadd.f32 %v337, %v3110
      %3112 = vmatmul.bf16.gmra.mxu0 %v2872
      %v3113 = vpop.f32.mrf.mxu0
      %v3114 = vadd.f32 %v337, %v3113
      %v3115 = vpop.f32.mrf.mxu0
      %v3116 = vadd.f32 %v337, %v3115
      %3117 = vmatmul.bf16.gmra.mxu0 %v2873
      %v3118 = vpop.f32.mrf.mxu0
      %v3119 = vadd.f32 %v337, %v3118
      %v3120 = vpop.f32.mrf.mxu0
      %v3121 = vadd.f32 %v337, %v3120
      %3122 = vmatmul.bf16.gmra.mxu0 %v2874
      %v3123 = vpop.f32.mrf.mxu0
      %v3124 = vadd.f32 %v337, %v3123
      %v3125 = vpop.f32.mrf.mxu0
      %v3126 = vadd.f32 %v337, %v3125
      %3127 = vmatmul.bf16.gmra.mxu0 %v2875
      %v3128 = vpop.f32.mrf.mxu0
      %v3129 = vadd.f32 %v337, %v3128
      %v3130 = vpop.f32.mrf.mxu0
      %v3131 = vadd.f32 %v337, %v3130
      %3132 = vmatmul.bf16.gmra.mxu0 %v2876
      %v3133 = vpop.f32.mrf.mxu0
      %v3134 = vadd.f32 %v337, %v3133
      %v3135 = vpop.f32.mrf.mxu0
      %v3136 = vadd.f32 %v337, %v3135
      %3137 = vmatmul.bf16.gmra.mxu0 %v2877
      %v3138 = vpop.f32.mrf.mxu0
      %v3139 = vadd.f32 %v337, %v3138
      %v3140 = vpop.f32.mrf.mxu0
      %v3141 = vadd.f32 %v337, %v3140
      %3142 = vmatmul.bf16.gmra.mxu0 %v2878
      %v3143 = vpop.f32.mrf.mxu0
      %v3144 = vadd.f32 %v337, %v3143
      %v3145 = vpop.f32.mrf.mxu0
      %v3146 = vadd.f32 %v337, %v3145
      %3147 = vmatmul.bf16.gmra.mxu0 %v2879
      %v3148 = vpop.f32.mrf.mxu0
      %v3149 = vadd.f32 %v337, %v3148
      %v3150 = vpop.f32.mrf.mxu0
      %v3151 = vadd.f32 %v337, %v3150
      %3152 = vmatmul.bf16.gmra.mxu0 %v2880
      %v3153 = vpop.f32.mrf.mxu0
      %v3154 = vadd.f32 %v337, %v3153
      %v3155 = vpop.f32.mrf.mxu0
      %v3156 = vadd.f32 %v337, %v3155
      %3157 = vmatmul.bf16.gmra.mxu0 %v2881
      %v3158 = vpop.f32.mrf.mxu0
      %v3159 = vadd.f32 %v337, %v3158
      %v3160 = vpop.f32.mrf.mxu0
      %v3161 = vadd.f32 %v337, %v3160
      %3162 = vmatmul.bf16.gmra.mxu0 %v2882
      %v3163 = vpop.f32.mrf.mxu0
      %v3164 = vadd.f32 %v337, %v3163
      %v3165 = vpop.f32.mrf.mxu0
      %v3166 = vadd.f32 %v337, %v3165
      %3167 = vmatmul.bf16.gmra.mxu0 %v2883
      %v3168 = vpop.f32.mrf.mxu0
      %v3169 = vadd.f32 %v337, %v3168
      %v3170 = vpop.f32.mrf.mxu0
      %v3171 = vadd.f32 %v337, %v3170
      %3172 = vmatmul.bf16.gmra.mxu0 %v2884
      %v3173 = vpop.f32.mrf.mxu0
      %v3174 = vadd.f32 %v337, %v3173
      %v3175 = vpop.f32.mrf.mxu0
      %v3176 = vadd.f32 %v337, %v3175
      %3177 = vmatmul.bf16.gmra.mxu0 %v2885
      %v3178 = vpop.f32.mrf.mxu0
      %v3179 = vadd.f32 %v337, %v3178
      %v3180 = vpop.f32.mrf.mxu0
      %v3181 = vadd.f32 %v337, %v3180
      %3182 = vmatmul.bf16.gmra.mxu0 %v2886
      %v3183 = vpop.f32.mrf.mxu0
      %v3184 = vadd.f32 %v337, %v3183
      %v3185 = vpop.f32.mrf.mxu0
      %v3186 = vadd.f32 %v337, %v3185
      %3187 = vmatmul.bf16.gmra.mxu0 %v2887
      %v3188 = vpop.f32.mrf.mxu0
      %v3189 = vadd.f32 %v337, %v3188
      %v3190 = vpop.f32.mrf.mxu0
      %v3191 = vadd.f32 %v337, %v3190
      %3192 = vmatmul.bf16.gmra.mxu0 %v2888
      %v3193 = vpop.f32.mrf.mxu0
      %v3194 = vadd.f32 %v337, %v3193
      %v3195 = vpop.f32.mrf.mxu0
      %v3196 = vadd.f32 %v337, %v3195
      %3197 = vmatmul.bf16.gmra.mxu0 %v2889
      %v3198 = vpop.f32.mrf.mxu0
      %v3199 = vadd.f32 %v337, %v3198
      %v3200 = vpop.f32.mrf.mxu0
      %v3201 = vadd.f32 %v337, %v3200
      %3202 = vmatmul.bf16.gmra.mxu0 %v2890
      %v3203 = vpop.f32.mrf.mxu0
      %v3204 = vadd.f32 %v337, %v3203
      %v3205 = vpop.f32.mrf.mxu0
      %v3206 = vadd.f32 %v337, %v3205
      %3207 = vmatmul.bf16.gmra.mxu0 %v2891
      %v3208 = vpop.f32.mrf.mxu0
      %v3209 = vadd.f32 %v337, %v3208
      %v3210 = vpop.f32.mrf.mxu0
      %v3211 = vadd.f32 %v337, %v3210
      %3212 = vmatmul.bf16.gmra.mxu0 %v2892
      %v3213 = vpop.f32.mrf.mxu0
      %v3214 = vadd.f32 %v337, %v3213
      %v3215 = vpop.f32.mrf.mxu0
      %v3216 = vadd.f32 %v337, %v3215
      %3217 = vmatmul.bf16.gmra.mxu0 %v2893
      %v3218 = vpop.f32.mrf.mxu0
      %v3219 = vadd.f32 %v337, %v3218
      %v3220 = vpop.f32.mrf.mxu0
      %v3221 = vadd.f32 %v337, %v3220
      %3222 = vmatmul.bf16.gmra.mxu0 %v2894
      %v3223 = vpop.f32.mrf.mxu0
      %v3224 = vadd.f32 %v337, %v3223
      %v3225 = vpop.f32.mrf.mxu0
      %v3226 = vadd.f32 %v337, %v3225
      %3227 = vmatmul.bf16.gmra.mxu0 %v2895
      %v3228 = vpop.f32.mrf.mxu0
      %v3229 = vadd.f32 %v337, %v3228
      %v3230 = vpop.f32.mrf.mxu0
      %v3231 = vadd.f32 %v337, %v3230
      %3232 = vmatmul.bf16.gmra.mxu0 %v2896
      %v3233 = vpop.f32.mrf.mxu0
      %v3234 = vadd.f32 %v337, %v3233
      %v3235 = vpop.f32.mrf.mxu0
      %v3236 = vadd.f32 %v337, %v3235
      %3237 = vmatmul.bf16.gmra.mxu0 %v2897
      %v3238 = vpop.f32.mrf.mxu0
      %v3239 = vadd.f32 %v337, %v3238
      %v3240 = vpop.f32.mrf.mxu0
      %v3241 = vadd.f32 %v337, %v3240
      %3242 = vmatmul.bf16.gmra.mxu0 %v2898
      %v3243 = vpop.f32.mrf.mxu0
      %v3244 = vadd.f32 %v337, %v3243
      %v3245 = vpop.f32.mrf.mxu0
      %v3246 = vadd.f32 %v337, %v3245
      %3247 = vmatmul.bf16.gmra.mxu0 %v2899
      %v3248 = vpop.f32.mrf.mxu0
      %v3249 = vadd.f32 %v337, %v3248
      %v3250 = vpop.f32.mrf.mxu0
      %v3251 = vadd.f32 %v337, %v3250
      %3252 = vmatmul.bf16.gmra.mxu0 %v2900
      %v3253 = vpop.f32.mrf.mxu0
      %v3254 = vadd.f32 %v337, %v3253
      %v3255 = vpop.f32.mrf.mxu0
      %v3256 = vadd.f32 %v337, %v3255
      %3257 = vmatmul.bf16.gmra.mxu0 %v2901
      %v3258 = vpop.f32.mrf.mxu0
      %v3259 = vadd.f32 %v337, %v3258
      %v3260 = vpop.f32.mrf.mxu0
      %v3261 = vadd.f32 %v337, %v3260
      %3262 = vmatmul.bf16.gmra.mxu0 %v2902
      %v3263 = vpop.f32.mrf.mxu0
      %v3264 = vadd.f32 %v337, %v3263
      %v3265 = vpop.f32.mrf.mxu0
      %v3266 = vadd.f32 %v337, %v3265
      %3267 = vmatmul.bf16.gmra.mxu0 %v2903
      %v3268 = vpop.f32.mrf.mxu0
      %v3269 = vadd.f32 %v337, %v3268
      %v3270 = vpop.f32.mrf.mxu0
      %v3271 = vadd.f32 %v337, %v3270
      %3272 = vmatmul.bf16.gmra.mxu0 %v2904
      %v3273 = vpop.f32.mrf.mxu0
      %v3274 = vadd.f32 %v337, %v3273
      %v3275 = vpop.f32.mrf.mxu0
      %v3276 = vadd.f32 %v337, %v3275
      %3277 = vmatmul.bf16.gmra.mxu0 %v2905
      %v3278 = vpop.f32.mrf.mxu0
      %v3279 = vadd.f32 %v337, %v3278
      %v3280 = vpop.f32.mrf.mxu0
      %v3281 = vadd.f32 %v337, %v3280
      %3282 = vmatmul.bf16.gmra.mxu0 %v2906
      %v3283 = vpop.f32.mrf.mxu0
      %v3284 = vadd.f32 %v337, %v3283
      %v3285 = vpop.f32.mrf.mxu0
      %v3286 = vadd.f32 %v337, %v3285
      %3287 = vmatmul.bf16.gmra.mxu0 %v2907
      %v3288 = vpop.f32.mrf.mxu0
      %v3289 = vadd.f32 %v337, %v3288
      %v3290 = vpop.f32.mrf.mxu0
      %v3291 = vadd.f32 %v337, %v3290
      %3292 = vmatmul.bf16.gmra.mxu0 %v2908
      %v3293 = vpop.f32.mrf.mxu0
      %v3294 = vadd.f32 %v337, %v3293
      %v3295 = vpop.f32.mrf.mxu0
      %v3296 = vadd.f32 %v337, %v3295
      %3297 = vmatmul.bf16.gmra.mxu0 %v2909
      %v3298 = vpop.f32.mrf.mxu0
      %v3299 = vadd.f32 %v337, %v3298
      %v3300 = vpop.f32.mrf.mxu0
      %v3301 = vadd.f32 %v337, %v3300
      %3302 = vdwg.mxu0
      %v3303 = vmax.f32 %v2984, 0.0
      %v3304 = vmax.f32 %v2986, 0.0
      %v3305 = vmax.f32 %v2989, 0.0
      %v3306 = vmax.f32 %v2991, 0.0
      %v3307 = vmax.f32 %v2994, 0.0
      %v3308 = vmax.f32 %v2996, 0.0
      %v3309 = vmax.f32 %v2999, 0.0
      %v3310 = vmax.f32 %v3001, 0.0
      %v3311 = vmax.f32 %v3004, 0.0
      %v3312 = vmax.f32 %v3006, 0.0
      %v3313 = vmax.f32 %v3009, 0.0
      %v3314 = vmax.f32 %v3011, 0.0
      %v3315 = vmax.f32 %v3014, 0.0
      %v3316 = vmax.f32 %v3016, 0.0
      %v3317 = vmax.f32 %v3019, 0.0
      %v3318 = vmax.f32 %v3021, 0.0
      %v3319 = vmax.f32 %v3024, 0.0
      %v3320 = vmax.f32 %v3026, 0.0
      %v3321 = vmax.f32 %v3029, 0.0
      %v3322 = vmax.f32 %v3031, 0.0
      %v3323 = vmax.f32 %v3034, 0.0
      %v3324 = vmax.f32 %v3036, 0.0
      %v3325 = vmax.f32 %v3039, 0.0
      %v3326 = vmax.f32 %v3041, 0.0
      %v3327 = vmax.f32 %v3044, 0.0
      %v3328 = vmax.f32 %v3046, 0.0
      %v3329 = vmax.f32 %v3049, 0.0
      %v3330 = vmax.f32 %v3051, 0.0
      %v3331 = vmax.f32 %v3054, 0.0
      %v3332 = vmax.f32 %v3056, 0.0
      %v3333 = vmax.f32 %v3059, 0.0
      %v3334 = vmax.f32 %v3061, 0.0
      %v3335 = vmax.f32 %v3064, 0.0
      %v3336 = vmax.f32 %v3066, 0.0
      %v3337 = vmax.f32 %v3069, 0.0
      %v3338 = vmax.f32 %v3071, 0.0
      %v3339 = vmax.f32 %v3074, 0.0
      %v3340 = vmax.f32 %v3076, 0.0
      %v3341 = vmax.f32 %v3079, 0.0
      %v3342 = vmax.f32 %v3081, 0.0
      %v3343 = vmax.f32 %v3084, 0.0
      %v3344 = vmax.f32 %v3086, 0.0
      %v3345 = vmax.f32 %v3089, 0.0
      %v3346 = vmax.f32 %v3091, 0.0
      %v3347 = vmax.f32 %v3094, 0.0
      %v3348 = vmax.f32 %v3096, 0.0
      %v3349 = vmax.f32 %v3099, 0.0
      %v3350 = vmax.f32 %v3101, 0.0
      %v3351 = vmax.f32 %v3104, 0.0
      %v3352 = vmax.f32 %v3106, 0.0
      %v3353 = vmax.f32 %v3109, 0.0
      %v3354 = vmax.f32 %v3111, 0.0
      %v3355 = vmax.f32 %v3114, 0.0
      %v3356 = vmax.f32 %v3116, 0.0
      %v3357 = vmax.f32 %v3119, 0.0
      %v3358 = vmax.f32 %v3121, 0.0
      %v3359 = vmax.f32 %v3124, 0.0
      %v3360 = vmax.f32 %v3126, 0.0
      %v3361 = vmax.f32 %v3129, 0.0
      %v3362 = vmax.f32 %v3131, 0.0
      %v3363 = vmax.f32 %v3134, 0.0
      %v3364 = vmax.f32 %v3136, 0.0
      %v3365 = vmax.f32 %v3139, 0.0
      %v3366 = vmax.f32 %v3141, 0.0
      %v3367 = vmax.f32 %v3144, 0.0
      %v3368 = vmax.f32 %v3146, 0.0
      %v3369 = vmax.f32 %v3149, 0.0
      %v3370 = vmax.f32 %v3151, 0.0
      %v3371 = vmax.f32 %v3154, 0.0
      %v3372 = vmax.f32 %v3156, 0.0
      %v3373 = vmax.f32 %v3159, 0.0
      %v3374 = vmax.f32 %v3161, 0.0
      %v3375 = vmax.f32 %v3164, 0.0
      %v3376 = vmax.f32 %v3166, 0.0
      %v3377 = vmax.f32 %v3169, 0.0
      %v3378 = vmax.f32 %v3171, 0.0
      %v3379 = vmax.f32 %v3174, 0.0
      %v3380 = vmax.f32 %v3176, 0.0
      %v3381 = vmax.f32 %v3179, 0.0
      %v3382 = vmax.f32 %v3181, 0.0
      %v3383 = vmax.f32 %v3184, 0.0
      %v3384 = vmax.f32 %v3186, 0.0
      %v3385 = vmax.f32 %v3189, 0.0
      %v3386 = vmax.f32 %v3191, 0.0
      %v3387 = vmax.f32 %v3194, 0.0
      %v3388 = vmax.f32 %v3196, 0.0
      %v3389 = vmax.f32 %v3199, 0.0
      %v3390 = vmax.f32 %v3201, 0.0
      %v3391 = vmax.f32 %v3204, 0.0
      %v3392 = vmax.f32 %v3206, 0.0
      %v3393 = vmax.f32 %v3209, 0.0
      %v3394 = vmax.f32 %v3211, 0.0
      %v3395 = vmax.f32 %v3214, 0.0
      %v3396 = vmax.f32 %v3216, 0.0
      %v3397 = vmax.f32 %v3219, 0.0
      %v3398 = vmax.f32 %v3221, 0.0
      %v3399 = vmax.f32 %v3224, 0.0
      %v3400 = vmax.f32 %v3226, 0.0
      %v3401 = vmax.f32 %v3229, 0.0
      %v3402 = vmax.f32 %v3231, 0.0
      %v3403 = vmax.f32 %v3234, 0.0
      %v3404 = vmax.f32 %v3236, 0.0
      %v3405 = vmax.f32 %v3239, 0.0
      %v3406 = vmax.f32 %v3241, 0.0
      %v3407 = vmax.f32 %v3244, 0.0
      %v3408 = vmax.f32 %v3246, 0.0
      %v3409 = vmax.f32 %v3249, 0.0
      %v3410 = vmax.f32 %v3251, 0.0
      %v3411 = vmax.f32 %v3254, 0.0
      %v3412 = vmax.f32 %v3256, 0.0
      %v3413 = vmax.f32 %v3259, 0.0
      %v3414 = vmax.f32 %v3261, 0.0
      %v3415 = vmax.f32 %v3264, 0.0
      %v3416 = vmax.f32 %v3266, 0.0
      %v3417 = vmax.f32 %v3269, 0.0
      %v3418 = vmax.f32 %v3271, 0.0
      %v3419 = vmax.f32 %v3274, 0.0
      %v3420 = vmax.f32 %v3276, 0.0
      %v3421 = vmax.f32 %v3279, 0.0
      %v3422 = vmax.f32 %v3281, 0.0
      %v3423 = vmax.f32 %v3284, 0.0
      %v3424 = vmax.f32 %v3286, 0.0
      %v3425 = vmax.f32 %v3289, 0.0
      %v3426 = vmax.f32 %v3291, 0.0
      %v3427 = vmax.f32 %v3294, 0.0
      %v3428 = vmax.f32 %v3296, 0.0
      %v3429 = vmax.f32 %v3299, 0.0
      %v3430 = vmax.f32 %v3301, 0.0
      %vm3431 = vcmask 523264
      %v3433 = vsel %vm3431, %v3303, 0
      %v3436 = vsel %vm3431, %v3304, 0
      %v3439 = vsel %vm3431, %v3305, 0
      %v3442 = vsel %vm3431, %v3306, 0
      %v3445 = vsel %vm3431, %v3307, 0
      %v3448 = vsel %vm3431, %v3308, 0
      %v3451 = vsel %vm3431, %v3309, 0
      %v3454 = vsel %vm3431, %v3310, 0
      %v3457 = vsel %vm3431, %v3311, 0
      %v3460 = vsel %vm3431, %v3312, 0
      %v3463 = vsel %vm3431, %v3313, 0
      %v3466 = vsel %vm3431, %v3314, 0
      %v3469 = vsel %vm3431, %v3315, 0
      %v3472 = vsel %vm3431, %v3316, 0
      %v3475 = vsel %vm3431, %v3317, 0
      %v3478 = vsel %vm3431, %v3318, 0
      %v3481 = vsel %vm3431, %v3319, 0
      %v3484 = vsel %vm3431, %v3320, 0
      %v3487 = vsel %vm3431, %v3321, 0
      %v3490 = vsel %vm3431, %v3322, 0
      %v3493 = vsel %vm3431, %v3323, 0
      %v3496 = vsel %vm3431, %v3324, 0
      %v3499 = vsel %vm3431, %v3325, 0
      %v3502 = vsel %vm3431, %v3326, 0
      %v3505 = vsel %vm3431, %v3327, 0
      %v3508 = vsel %vm3431, %v3328, 0
      %v3511 = vsel %vm3431, %v3329, 0
      %v3514 = vsel %vm3431, %v3330, 0
      %v3517 = vsel %vm3431, %v3331, 0
      %v3520 = vsel %vm3431, %v3332, 0
      %v3523 = vsel %vm3431, %v3333, 0
      %v3526 = vsel %vm3431, %v3334, 0
      %v3529 = vsel %vm3431, %v3335, 0
      %v3532 = vsel %vm3431, %v3336, 0
      %v3535 = vsel %vm3431, %v3337, 0
      %v3538 = vsel %vm3431, %v3338, 0
      %v3541 = vsel %vm3431, %v3339, 0
      %v3544 = vsel %vm3431, %v3340, 0
      %v3547 = vsel %vm3431, %v3341, 0
      %v3550 = vsel %vm3431, %v3342, 0
      %v3553 = vsel %vm3431, %v3343, 0
      %v3556 = vsel %vm3431, %v3344, 0
      %v3559 = vsel %vm3431, %v3345, 0
      %v3562 = vsel %vm3431, %v3346, 0
      %v3565 = vsel %vm3431, %v3347, 0
      %v3568 = vsel %vm3431, %v3348, 0
      %v3571 = vsel %vm3431, %v3349, 0
      %v3574 = vsel %vm3431, %v3350, 0
      %v3577 = vsel %vm3431, %v3351, 0
      %v3580 = vsel %vm3431, %v3352, 0
      %v3583 = vsel %vm3431, %v3353, 0
      %v3586 = vsel %vm3431, %v3354, 0
      %v3589 = vsel %vm3431, %v3355, 0
      %v3592 = vsel %vm3431, %v3356, 0
      %v3595 = vsel %vm3431, %v3357, 0
      %v3598 = vsel %vm3431, %v3358, 0
      %v3601 = vsel %vm3431, %v3359, 0
      %v3604 = vsel %vm3431, %v3360, 0
      %v3607 = vsel %vm3431, %v3361, 0
      %v3610 = vsel %vm3431, %v3362, 0
      %v3613 = vsel %vm3431, %v3363, 0
      %v3616 = vsel %vm3431, %v3364, 0
      %v3619 = vsel %vm3431, %v3365, 0
      %v3622 = vsel %vm3431, %v3366, 0
      %v3625 = vsel %vm3431, %v3367, 0
      %v3628 = vsel %vm3431, %v3368, 0
      %v3631 = vsel %vm3431, %v3369, 0
      %v3634 = vsel %vm3431, %v3370, 0
      %v3637 = vsel %vm3431, %v3371, 0
      %v3640 = vsel %vm3431, %v3372, 0
      %v3643 = vsel %vm3431, %v3373, 0
      %v3646 = vsel %vm3431, %v3374, 0
      %v3649 = vsel %vm3431, %v3375, 0
      %v3652 = vsel %vm3431, %v3376, 0
      %v3655 = vsel %vm3431, %v3377, 0
      %v3658 = vsel %vm3431, %v3378, 0
      %v3661 = vsel %vm3431, %v3379, 0
      %v3664 = vsel %vm3431, %v3380, 0
      %v3667 = vsel %vm3431, %v3381, 0
      %v3670 = vsel %vm3431, %v3382, 0
      %v3673 = vsel %vm3431, %v3383, 0
      %v3676 = vsel %vm3431, %v3384, 0
      %v3679 = vsel %vm3431, %v3385, 0
      %v3682 = vsel %vm3431, %v3386, 0
      %v3685 = vsel %vm3431, %v3387, 0
      %v3688 = vsel %vm3431, %v3388, 0
      %v3691 = vsel %vm3431, %v3389, 0
      %v3694 = vsel %vm3431, %v3390, 0
      %v3697 = vsel %vm3431, %v3391, 0
      %v3700 = vsel %vm3431, %v3392, 0
      %v3703 = vsel %vm3431, %v3393, 0
      %v3706 = vsel %vm3431, %v3394, 0
      %v3709 = vsel %vm3431, %v3395, 0
      %v3712 = vsel %vm3431, %v3396, 0
      %v3715 = vsel %vm3431, %v3397, 0
      %v3718 = vsel %vm3431, %v3398, 0
      %v3721 = vsel %vm3431, %v3399, 0
      %v3724 = vsel %vm3431, %v3400, 0
      %v3727 = vsel %vm3431, %v3401, 0
      %v3730 = vsel %vm3431, %v3402, 0
      %v3733 = vsel %vm3431, %v3403, 0
      %v3736 = vsel %vm3431, %v3404, 0
      %v3739 = vsel %vm3431, %v3405, 0
      %v3742 = vsel %vm3431, %v3406, 0
      %v3745 = vsel %vm3431, %v3407, 0
      %v3748 = vsel %vm3431, %v3408, 0
      %v3751 = vsel %vm3431, %v3409, 0
      %v3754 = vsel %vm3431, %v3410, 0
      %v3757 = vsel %vm3431, %v3411, 0
      %v3760 = vsel %vm3431, %v3412, 0
      %v3763 = vsel %vm3431, %v3413, 0
      %v3766 = vsel %vm3431, %v3414, 0
      %v3769 = vsel %vm3431, %v3415, 0
      %v3772 = vsel %vm3431, %v3416, 0
      %v3775 = vsel %vm3431, %v3417, 0
      %v3778 = vsel %vm3431, %v3418, 0
      %v3781 = vsel %vm3431, %v3419, 0
      %v3784 = vsel %vm3431, %v3420, 0
      %v3787 = vsel %vm3431, %v3421, 0
      %v3790 = vsel %vm3431, %v3422, 0
      %v3793 = vsel %vm3431, %v3423, 0
      %v3796 = vsel %vm3431, %v3424, 0
      %v3799 = vsel %vm3431, %v3425, 0
      %v3802 = vsel %vm3431, %v3426, 0
      %v3805 = vsel %vm3431, %v3427, 0
      %v3808 = vsel %vm3431, %v3428, 0
      %v3811 = vsel %vm3431, %v3429, 0
      %v3814 = vsel %vm3431, %v3430, 0
      %3816 = vmatpush.msra.mxu0 0.0
      %3817 = vmatpush.msra.mxu0 0.0
      %3818 = vmatpush.msra.mxu0 0.0
      %3819 = vmatpush.msra.mxu0 0.0
      %3820 = vmatpush.msra.mxu0 0.0
      %3821 = vmatpush.msra.mxu0 0.0
      %3822 = vmatpush.msra.mxu0 0.0
      %3823 = vmatpush.msra.mxu0 0.0
      %3824 = vmatpush.msra.mxu0 %v324
      %3825 = vmatpush.msra.mxu0 %v323
      %3826 = vmatpush.msra.mxu0 %v322
      %3827 = vmatpush.msra.mxu0 %v321
      %3828 = vmatpush.msra.mxu0 %v320
      %3829 = vmatpush.msra.mxu0 %v319
      %3830 = vmatpush.msra.mxu0 %v318
      %3831 = vmatpush.msra.mxu0 %v317
      %3832 = vmatmul.f32.gmra.mxu0 %v3433
      %v3833 = vpop.f32.mrf.mxu0
      %v3834 = vadd.f32 %v339, %v3833
      %3835 = vmatmul.f32.gmra.mxu0 %v3436
      %v3836 = vpop.f32.mrf.mxu0
      %v3837 = vadd.f32 %v339, %v3836
      %3838 = vmatmul.f32.gmra.mxu0 %v3439
      %v3839 = vpop.f32.mrf.mxu0
      %v3840 = vadd.f32 %v339, %v3839
      %3841 = vmatmul.f32.gmra.mxu0 %v3442
      %v3842 = vpop.f32.mrf.mxu0
      %v3843 = vadd.f32 %v339, %v3842
      %3844 = vmatmul.f32.gmra.mxu0 %v3445
      %v3845 = vpop.f32.mrf.mxu0
      %v3846 = vadd.f32 %v339, %v3845
      %3847 = vmatmul.f32.gmra.mxu0 %v3448
      %v3848 = vpop.f32.mrf.mxu0
      %v3849 = vadd.f32 %v339, %v3848
      %3850 = vmatmul.f32.gmra.mxu0 %v3451
      %v3851 = vpop.f32.mrf.mxu0
      %v3852 = vadd.f32 %v339, %v3851
      %3853 = vmatmul.f32.gmra.mxu0 %v3454
      %v3854 = vpop.f32.mrf.mxu0
      %v3855 = vadd.f32 %v339, %v3854
      %3856 = vmatmul.f32.gmra.mxu0 %v3457
      %v3857 = vpop.f32.mrf.mxu0
      %v3858 = vadd.f32 %v339, %v3857
      %3859 = vmatmul.f32.gmra.mxu0 %v3460
      %v3860 = vpop.f32.mrf.mxu0
      %v3861 = vadd.f32 %v339, %v3860
      %3862 = vmatmul.f32.gmra.mxu0 %v3463
      %v3863 = vpop.f32.mrf.mxu0
      %v3864 = vadd.f32 %v339, %v3863
      %3865 = vmatmul.f32.gmra.mxu0 %v3466
      %v3866 = vpop.f32.mrf.mxu0
      %v3867 = vadd.f32 %v339, %v3866
      %3868 = vmatmul.f32.gmra.mxu0 %v3469
      %v3869 = vpop.f32.mrf.mxu0
      %v3870 = vadd.f32 %v339, %v3869
      %3871 = vmatmul.f32.gmra.mxu0 %v3472
      %v3872 = vpop.f32.mrf.mxu0
      %v3873 = vadd.f32 %v339, %v3872
      %3874 = vmatmul.f32.gmra.mxu0 %v3475
      %v3875 = vpop.f32.mrf.mxu0
      %v3876 = vadd.f32 %v339, %v3875
      %3877 = vmatmul.f32.gmra.mxu0 %v3478
      %v3878 = vpop.f32.mrf.mxu0
      %v3879 = vadd.f32 %v339, %v3878
      %3880 = vmatmul.f32.gmra.mxu0 %v3481
      %v3881 = vpop.f32.mrf.mxu0
      %v3882 = vadd.f32 %v339, %v3881
      %3883 = vmatmul.f32.gmra.mxu0 %v3484
      %v3884 = vpop.f32.mrf.mxu0
      %v3885 = vadd.f32 %v339, %v3884
      %3886 = vmatmul.f32.gmra.mxu0 %v3487
      %v3887 = vpop.f32.mrf.mxu0
      %v3888 = vadd.f32 %v339, %v3887
      %3889 = vmatmul.f32.gmra.mxu0 %v3490
      %v3890 = vpop.f32.mrf.mxu0
      %v3891 = vadd.f32 %v339, %v3890
      %3892 = vmatmul.f32.gmra.mxu0 %v3493
      %v3893 = vpop.f32.mrf.mxu0
      %v3894 = vadd.f32 %v339, %v3893
      %3895 = vmatmul.f32.gmra.mxu0 %v3496
      %v3896 = vpop.f32.mrf.mxu0
      %v3897 = vadd.f32 %v339, %v3896
      %3898 = vmatmul.f32.gmra.mxu0 %v3499
      %v3899 = vpop.f32.mrf.mxu0
      %v3900 = vadd.f32 %v339, %v3899
      %3901 = vmatmul.f32.gmra.mxu0 %v3502
      %v3902 = vpop.f32.mrf.mxu0
      %v3903 = vadd.f32 %v339, %v3902
      %3904 = vmatmul.f32.gmra.mxu0 %v3505
      %v3905 = vpop.f32.mrf.mxu0
      %v3906 = vadd.f32 %v339, %v3905
      %3907 = vmatmul.f32.gmra.mxu0 %v3508
      %v3908 = vpop.f32.mrf.mxu0
      %v3909 = vadd.f32 %v339, %v3908
      %3910 = vmatmul.f32.gmra.mxu0 %v3511
      %v3911 = vpop.f32.mrf.mxu0
      %v3912 = vadd.f32 %v339, %v3911
      %3913 = vmatmul.f32.gmra.mxu0 %v3514
      %v3914 = vpop.f32.mrf.mxu0
      %v3915 = vadd.f32 %v339, %v3914
      %3916 = vmatmul.f32.gmra.mxu0 %v3517
      %v3917 = vpop.f32.mrf.mxu0
      %v3918 = vadd.f32 %v339, %v3917
      %3919 = vmatmul.f32.gmra.mxu0 %v3520
      %v3920 = vpop.f32.mrf.mxu0
      %v3921 = vadd.f32 %v339, %v3920
      %3922 = vmatmul.f32.gmra.mxu0 %v3523
      %v3923 = vpop.f32.mrf.mxu0
      %v3924 = vadd.f32 %v339, %v3923
      %3925 = vmatmul.f32.gmra.mxu0 %v3526
      %v3926 = vpop.f32.mrf.mxu0
      %v3927 = vadd.f32 %v339, %v3926
      %3928 = vmatmul.f32.gmra.mxu0 %v3529
      %v3929 = vpop.f32.mrf.mxu0
      %v3930 = vadd.f32 %v339, %v3929
      %3931 = vmatmul.f32.gmra.mxu0 %v3532
      %v3932 = vpop.f32.mrf.mxu0
      %v3933 = vadd.f32 %v339, %v3932
      %3934 = vmatmul.f32.gmra.mxu0 %v3535
      %v3935 = vpop.f32.mrf.mxu0
      %v3936 = vadd.f32 %v339, %v3935
      %3937 = vmatmul.f32.gmra.mxu0 %v3538
      %v3938 = vpop.f32.mrf.mxu0
      %v3939 = vadd.f32 %v339, %v3938
      %3940 = vmatmul.f32.gmra.mxu0 %v3541
      %v3941 = vpop.f32.mrf.mxu0
      %v3942 = vadd.f32 %v339, %v3941
      %3943 = vmatmul.f32.gmra.mxu0 %v3544
      %v3944 = vpop.f32.mrf.mxu0
      %v3945 = vadd.f32 %v339, %v3944
      %3946 = vmatmul.f32.gmra.mxu0 %v3547
      %v3947 = vpop.f32.mrf.mxu0
      %v3948 = vadd.f32 %v339, %v3947
      %3949 = vmatmul.f32.gmra.mxu0 %v3550
      %v3950 = vpop.f32.mrf.mxu0
      %v3951 = vadd.f32 %v339, %v3950
      %3952 = vmatmul.f32.gmra.mxu0 %v3553
      %v3953 = vpop.f32.mrf.mxu0
      %v3954 = vadd.f32 %v339, %v3953
      %3955 = vmatmul.f32.gmra.mxu0 %v3556
      %v3956 = vpop.f32.mrf.mxu0
      %v3957 = vadd.f32 %v339, %v3956
      %3958 = vmatmul.f32.gmra.mxu0 %v3559
      %v3959 = vpop.f32.mrf.mxu0
      %v3960 = vadd.f32 %v339, %v3959
      %3961 = vmatmul.f32.gmra.mxu0 %v3562
      %v3962 = vpop.f32.mrf.mxu0
      %v3963 = vadd.f32 %v339, %v3962
      %3964 = vmatmul.f32.gmra.mxu0 %v3565
      %v3965 = vpop.f32.mrf.mxu0
      %v3966 = vadd.f32 %v339, %v3965
      %3967 = vmatmul.f32.gmra.mxu0 %v3568
      %v3968 = vpop.f32.mrf.mxu0
      %v3969 = vadd.f32 %v339, %v3968
      %3970 = vmatmul.f32.gmra.mxu0 %v3571
      %v3971 = vpop.f32.mrf.mxu0
      %v3972 = vadd.f32 %v339, %v3971
      %3973 = vmatmul.f32.gmra.mxu0 %v3574
      %v3974 = vpop.f32.mrf.mxu0
      %v3975 = vadd.f32 %v339, %v3974
      %3976 = vmatmul.f32.gmra.mxu0 %v3577
      %v3977 = vpop.f32.mrf.mxu0
      %v3978 = vadd.f32 %v339, %v3977
      %3979 = vmatmul.f32.gmra.mxu0 %v3580
      %v3980 = vpop.f32.mrf.mxu0
      %v3981 = vadd.f32 %v339, %v3980
      %3982 = vmatmul.f32.gmra.mxu0 %v3583
      %v3983 = vpop.f32.mrf.mxu0
      %v3984 = vadd.f32 %v339, %v3983
      %3985 = vmatmul.f32.gmra.mxu0 %v3586
      %v3986 = vpop.f32.mrf.mxu0
      %v3987 = vadd.f32 %v339, %v3986
      %3988 = vmatmul.f32.gmra.mxu0 %v3589
      %v3989 = vpop.f32.mrf.mxu0
      %v3990 = vadd.f32 %v339, %v3989
      %3991 = vmatmul.f32.gmra.mxu0 %v3592
      %v3992 = vpop.f32.mrf.mxu0
      %v3993 = vadd.f32 %v339, %v3992
      %3994 = vmatmul.f32.gmra.mxu0 %v3595
      %v3995 = vpop.f32.mrf.mxu0
      %v3996 = vadd.f32 %v339, %v3995
      %3997 = vmatmul.f32.gmra.mxu0 %v3598
      %v3998 = vpop.f32.mrf.mxu0
      %v3999 = vadd.f32 %v339, %v3998
      %4000 = vmatmul.f32.gmra.mxu0 %v3601
      %v4001 = vpop.f32.mrf.mxu0
      %v4002 = vadd.f32 %v339, %v4001
      %4003 = vmatmul.f32.gmra.mxu0 %v3604
      %v4004 = vpop.f32.mrf.mxu0
      %v4005 = vadd.f32 %v339, %v4004
      %4006 = vmatmul.f32.gmra.mxu0 %v3607
      %v4007 = vpop.f32.mrf.mxu0
      %v4008 = vadd.f32 %v339, %v4007
      %4009 = vmatmul.f32.gmra.mxu0 %v3610
      %v4010 = vpop.f32.mrf.mxu0
      %v4011 = vadd.f32 %v339, %v4010
      %4012 = vmatmul.f32.gmra.mxu0 %v3613
      %v4013 = vpop.f32.mrf.mxu0
      %v4014 = vadd.f32 %v339, %v4013
      %4015 = vmatmul.f32.gmra.mxu0 %v3616
      %v4016 = vpop.f32.mrf.mxu0
      %v4017 = vadd.f32 %v339, %v4016
      %4018 = vmatmul.f32.gmra.mxu0 %v3619
      %v4019 = vpop.f32.mrf.mxu0
      %v4020 = vadd.f32 %v339, %v4019
      %4021 = vmatmul.f32.gmra.mxu0 %v3622
      %v4022 = vpop.f32.mrf.mxu0
      %v4023 = vadd.f32 %v339, %v4022
      %4024 = vmatmul.f32.gmra.mxu0 %v3625
      %v4025 = vpop.f32.mrf.mxu0
      %v4026 = vadd.f32 %v339, %v4025
      %4027 = vmatmul.f32.gmra.mxu0 %v3628
      %v4028 = vpop.f32.mrf.mxu0
      %v4029 = vadd.f32 %v339, %v4028
      %4030 = vmatmul.f32.gmra.mxu0 %v3631
      %v4031 = vpop.f32.mrf.mxu0
      %v4032 = vadd.f32 %v339, %v4031
      %4033 = vmatmul.f32.gmra.mxu0 %v3634
      %v4034 = vpop.f32.mrf.mxu0
      %v4035 = vadd.f32 %v339, %v4034
      %4036 = vmatmul.f32.gmra.mxu0 %v3637
      %v4037 = vpop.f32.mrf.mxu0
      %v4038 = vadd.f32 %v339, %v4037
      %4039 = vmatmul.f32.gmra.mxu0 %v3640
      %v4040 = vpop.f32.mrf.mxu0
      %v4041 = vadd.f32 %v339, %v4040
      %4042 = vmatmul.f32.gmra.mxu0 %v3643
      %v4043 = vpop.f32.mrf.mxu0
      %v4044 = vadd.f32 %v339, %v4043
      %4045 = vmatmul.f32.gmra.mxu0 %v3646
      %v4046 = vpop.f32.mrf.mxu0
      %v4047 = vadd.f32 %v339, %v4046
      %4048 = vmatmul.f32.gmra.mxu0 %v3649
      %v4049 = vpop.f32.mrf.mxu0
      %v4050 = vadd.f32 %v339, %v4049
      %4051 = vmatmul.f32.gmra.mxu0 %v3652
      %v4052 = vpop.f32.mrf.mxu0
      %v4053 = vadd.f32 %v339, %v4052
      %4054 = vmatmul.f32.gmra.mxu0 %v3655
      %v4055 = vpop.f32.mrf.mxu0
      %v4056 = vadd.f32 %v339, %v4055
      %4057 = vmatmul.f32.gmra.mxu0 %v3658
      %v4058 = vpop.f32.mrf.mxu0
      %v4059 = vadd.f32 %v339, %v4058
      %4060 = vmatmul.f32.gmra.mxu0 %v3661
      %v4061 = vpop.f32.mrf.mxu0
      %v4062 = vadd.f32 %v339, %v4061
      %4063 = vmatmul.f32.gmra.mxu0 %v3664
      %v4064 = vpop.f32.mrf.mxu0
      %v4065 = vadd.f32 %v339, %v4064
      %4066 = vmatmul.f32.gmra.mxu0 %v3667
      %v4067 = vpop.f32.mrf.mxu0
      %v4068 = vadd.f32 %v339, %v4067
      %4069 = vmatmul.f32.gmra.mxu0 %v3670
      %v4070 = vpop.f32.mrf.mxu0
      %v4071 = vadd.f32 %v339, %v4070
      %4072 = vmatmul.f32.gmra.mxu0 %v3673
      %v4073 = vpop.f32.mrf.mxu0
      %v4074 = vadd.f32 %v339, %v4073
      %4075 = vmatmul.f32.gmra.mxu0 %v3676
      %v4076 = vpop.f32.mrf.mxu0
      %v4077 = vadd.f32 %v339, %v4076
      %4078 = vmatmul.f32.gmra.mxu0 %v3679
      %v4079 = vpop.f32.mrf.mxu0
      %v4080 = vadd.f32 %v339, %v4079
      %4081 = vmatmul.f32.gmra.mxu0 %v3682
      %v4082 = vpop.f32.mrf.mxu0
      %v4083 = vadd.f32 %v339, %v4082
      %4084 = vmatmul.f32.gmra.mxu0 %v3685
      %v4085 = vpop.f32.mrf.mxu0
      %v4086 = vadd.f32 %v339, %v4085
      %4087 = vmatmul.f32.gmra.mxu0 %v3688
      %v4088 = vpop.f32.mrf.mxu0
      %v4089 = vadd.f32 %v339, %v4088
      %4090 = vmatmul.f32.gmra.mxu0 %v3691
      %v4091 = vpop.f32.mrf.mxu0
      %v4092 = vadd.f32 %v339, %v4091
      %4093 = vmatmul.f32.gmra.mxu0 %v3694
      %v4094 = vpop.f32.mrf.mxu0
      %v4095 = vadd.f32 %v339, %v4094
      %4096 = vmatmul.f32.gmra.mxu0 %v3697
      %v4097 = vpop.f32.mrf.mxu0
      %v4098 = vadd.f32 %v339, %v4097
      %4099 = vmatmul.f32.gmra.mxu0 %v3700
      %v4100 = vpop.f32.mrf.mxu0
      %v4101 = vadd.f32 %v339, %v4100
      %4102 = vmatmul.f32.gmra.mxu0 %v3703
      %v4103 = vpop.f32.mrf.mxu0
      %v4104 = vadd.f32 %v339, %v4103
      %4105 = vmatmul.f32.gmra.mxu0 %v3706
      %v4106 = vpop.f32.mrf.mxu0
      %v4107 = vadd.f32 %v339, %v4106
      %4108 = vmatmul.f32.gmra.mxu0 %v3709
      %v4109 = vpop.f32.mrf.mxu0
      %v4110 = vadd.f32 %v339, %v4109
      %4111 = vmatmul.f32.gmra.mxu0 %v3712
      %v4112 = vpop.f32.mrf.mxu0
      %v4113 = vadd.f32 %v339, %v4112
      %4114 = vmatmul.f32.gmra.mxu0 %v3715
      %v4115 = vpop.f32.mrf.mxu0
      %v4116 = vadd.f32 %v339, %v4115
      %4117 = vmatmul.f32.gmra.mxu0 %v3718
      %v4118 = vpop.f32.mrf.mxu0
      %v4119 = vadd.f32 %v339, %v4118
      %4120 = vmatmul.f32.gmra.mxu0 %v3721
      %v4121 = vpop.f32.mrf.mxu0
      %v4122 = vadd.f32 %v339, %v4121
      %4123 = vmatmul.f32.gmra.mxu0 %v3724
      %v4124 = vpop.f32.mrf.mxu0
      %v4125 = vadd.f32 %v339, %v4124
      %4126 = vmatmul.f32.gmra.mxu0 %v3727
      %v4127 = vpop.f32.mrf.mxu0
      %v4128 = vadd.f32 %v339, %v4127
      %4129 = vmatmul.f32.gmra.mxu0 %v3730
      %v4130 = vpop.f32.mrf.mxu0
      %v4131 = vadd.f32 %v339, %v4130
      %4132 = vmatmul.f32.gmra.mxu0 %v3733
      %v4133 = vpop.f32.mrf.mxu0
      %v4134 = vadd.f32 %v339, %v4133
      %4135 = vmatmul.f32.gmra.mxu0 %v3736
      %v4136 = vpop.f32.mrf.mxu0
      %v4137 = vadd.f32 %v339, %v4136
      %4138 = vmatmul.f32.gmra.mxu0 %v3739
      %v4139 = vpop.f32.mrf.mxu0
      %v4140 = vadd.f32 %v339, %v4139
      %4141 = vmatmul.f32.gmra.mxu0 %v3742
      %v4142 = vpop.f32.mrf.mxu0
      %v4143 = vadd.f32 %v339, %v4142
      %4144 = vmatmul.f32.gmra.mxu0 %v3745
      %v4145 = vpop.f32.mrf.mxu0
      %v4146 = vadd.f32 %v339, %v4145
      %4147 = vmatmul.f32.gmra.mxu0 %v3748
      %v4148 = vpop.f32.mrf.mxu0
      %v4149 = vadd.f32 %v339, %v4148
      %4150 = vmatmul.f32.gmra.mxu0 %v3751
      %v4151 = vpop.f32.mrf.mxu0
      %v4152 = vadd.f32 %v339, %v4151
      %4153 = vmatmul.f32.gmra.mxu0 %v3754
      %v4154 = vpop.f32.mrf.mxu0
      %v4155 = vadd.f32 %v339, %v4154
      %4156 = vmatmul.f32.gmra.mxu0 %v3757
      %v4157 = vpop.f32.mrf.mxu0
      %v4158 = vadd.f32 %v339, %v4157
      %4159 = vmatmul.f32.gmra.mxu0 %v3760
      %v4160 = vpop.f32.mrf.mxu0
      %v4161 = vadd.f32 %v339, %v4160
      %4162 = vmatmul.f32.gmra.mxu0 %v3763
      %v4163 = vpop.f32.mrf.mxu0
      %v4164 = vadd.f32 %v339, %v4163
      %4165 = vmatmul.f32.gmra.mxu0 %v3766
      %v4166 = vpop.f32.mrf.mxu0
      %v4167 = vadd.f32 %v339, %v4166
      %4168 = vmatmul.f32.gmra.mxu0 %v3769
      %v4169 = vpop.f32.mrf.mxu0
      %v4170 = vadd.f32 %v339, %v4169
      %4171 = vmatmul.f32.gmra.mxu0 %v3772
      %v4172 = vpop.f32.mrf.mxu0
      %v4173 = vadd.f32 %v339, %v4172
      %4174 = vmatmul.f32.gmra.mxu0 %v3775
      %v4175 = vpop.f32.mrf.mxu0
      %v4176 = vadd.f32 %v339, %v4175
      %4177 = vmatmul.f32.gmra.mxu0 %v3778
      %v4178 = vpop.f32.mrf.mxu0
      %v4179 = vadd.f32 %v339, %v4178
      %4180 = vmatmul.f32.gmra.mxu0 %v3781
      %v4181 = vpop.f32.mrf.mxu0
      %v4182 = vadd.f32 %v339, %v4181
      %4183 = vmatmul.f32.gmra.mxu0 %v3784
      %v4184 = vpop.f32.mrf.mxu0
      %v4185 = vadd.f32 %v339, %v4184
      %4186 = vmatmul.f32.gmra.mxu0 %v3787
      %v4187 = vpop.f32.mrf.mxu0
      %v4188 = vadd.f32 %v339, %v4187
      %4189 = vmatmul.f32.gmra.mxu0 %v3790
      %v4190 = vpop.f32.mrf.mxu0
      %v4191 = vadd.f32 %v339, %v4190
      %4192 = vmatmul.f32.gmra.mxu0 %v3793
      %v4193 = vpop.f32.mrf.mxu0
      %v4194 = vadd.f32 %v339, %v4193
      %4195 = vmatmul.f32.gmra.mxu0 %v3796
      %v4196 = vpop.f32.mrf.mxu0
      %v4197 = vadd.f32 %v339, %v4196
      %4198 = vmatmul.f32.gmra.mxu0 %v3799
      %v4199 = vpop.f32.mrf.mxu0
      %v4200 = vadd.f32 %v339, %v4199
      %4201 = vmatmul.f32.gmra.mxu0 %v3802
      %v4202 = vpop.f32.mrf.mxu0
      %v4203 = vadd.f32 %v339, %v4202
      %4204 = vmatmul.f32.gmra.mxu0 %v3805
      %v4205 = vpop.f32.mrf.mxu0
      %v4206 = vadd.f32 %v339, %v4205
      %4207 = vmatmul.f32.gmra.mxu0 %v3808
      %v4208 = vpop.f32.mrf.mxu0
      %v4209 = vadd.f32 %v339, %v4208
      %4210 = vmatmul.f32.gmra.mxu0 %v3811
      %v4211 = vpop.f32.mrf.mxu0
      %v4212 = vadd.f32 %v339, %v4211
      %4213 = vmatmul.f32.gmra.mxu0 %v3814
      %v4214 = vpop.f32.mrf.mxu0
      %v4215 = vadd.f32 %v339, %v4214
      %4216 = vdwg.mxu0
      %4217 = vmatpush.msra.mxu0 0.0
      %4218 = vmatpush.msra.mxu0 0.0
      %4219 = vmatpush.msra.mxu0 0.0
      %4220 = vmatpush.msra.mxu0 0.0
      %4221 = vmatpush.msra.mxu0 0.0
      %4222 = vmatpush.msra.mxu0 0.0
      %4223 = vmatpush.msra.mxu0 0.0
      %4224 = vmatpush.msra.mxu0 0.0
      %4225 = vmatpush.msra.mxu0 0.0
      %4226 = vmatpush.msra.mxu0 0.0
      %4227 = vmatpush.msra.mxu0 0.0
      %4228 = vmatpush.msra.mxu0 0.0
      %4229 = vmatpush.msra.mxu0 0.0
      %4230 = vmatpush.msra.mxu0 0.0
      %4231 = vmatpush.msra.mxu0 0.0
      %4232 = vmatpush.msra.mxu0 %v315
      %4233 = vmatmul.f32.gmra.mxu0 %v368
      %v4234 = vpop.f32.mrf.mxu0
      %v4235 = vadd.f32 0.0, %v4234
      %4236 = vmatmul.f32.gmra.mxu0 %v371
      %v4237 = vpop.f32.mrf.mxu0
      %v4238 = vadd.f32 0.0, %v4237
      %4239 = vdwg.mxu0
      %v4242 = vrot.slane %v4235, 1
      %v4243 = vrot.slane %v4235, 2
      %v4244 = vrot.slane %v4235, 3
      %v4245 = vrot.slane %v4235, 4
      %v4246 = vrot.slane %v4235, 5
      %v4247 = vrot.slane %v4235, 6
      %v4248 = vrot.slane %v4235, 7
      %v4249 = vrot.slane %v4238, 1
      %v4250 = vrot.slane %v4238, 2
      %v4251 = vrot.slane %v4238, 3
      %v4252 = vrot.slane %v4238, 4
      %v4253 = vrot.slane %v4238, 5
      %v4254 = vrot.slane %v4238, 6
      %v4255 = vrot.slane %v4238, 7
      %v4256 = vperm.slane %v316, 0
      %v4257 = vmul.f32 %v422, %v4256
      %v4258 = vadd.f32 %v4257, %v336
      %v4259 = vperm.slane %v4235, 0
      %v4260 = vperm.slane %v4242, 0
      %v4261 = vperm.slane %v4243, 0
      %v4262 = vperm.slane %v4244, 0
      %v4263 = vperm.slane %v4245, 0
      %v4264 = vperm.slane %v4246, 0
      %v4265 = vperm.slane %v4247, 0
      %v4266 = vperm.slane %v4248, 0
      %v4267 = vperm.slane %v4238, 0
      %v4268 = vperm.slane %v4249, 0
      %v4269 = vperm.slane %v4250, 0
      %v4270 = vperm.slane %v4251, 0
      %v4271 = vperm.slane %v4252, 0
      %v4272 = vperm.slane %v4253, 0
      %v4273 = vperm.slane %v4254, 0
      %v4274 = vperm.slane %v4255, 0
      %v4291 = vadd.f32 %v4259, %v4258
      %v4292 = vadd.f32 %v4260, %v4258
      %v4293 = vadd.f32 %v4261, %v4258
      %v4294 = vadd.f32 %v4262, %v4258
      %v4295 = vadd.f32 %v4263, %v4258
      %v4296 = vadd.f32 %v4264, %v4258
      %v4297 = vadd.f32 %v4265, %v4258
      %v4298 = vadd.f32 %v4266, %v4258
      %v4299 = vadd.f32 %v4267, %v4258
      %v4300 = vadd.f32 %v4268, %v4258
      %v4301 = vadd.f32 %v4269, %v4258
      %v4302 = vadd.f32 %v4270, %v4258
      %v4303 = vadd.f32 %v4271, %v4258
      %v4304 = vadd.f32 %v4272, %v4258
      %v4305 = vadd.f32 %v4273, %v4258
      %v4306 = vadd.f32 %v4274, %v4258
      %v4307 = vmax.f32 %v4291, 0.0
      %v4308 = vmax.f32 %v4292, 0.0
      %v4309 = vmax.f32 %v4293, 0.0
      %v4310 = vmax.f32 %v4294, 0.0
      %v4311 = vmax.f32 %v4295, 0.0
      %v4312 = vmax.f32 %v4296, 0.0
      %v4313 = vmax.f32 %v4297, 0.0
      %v4314 = vmax.f32 %v4298, 0.0
      %v4315 = vmax.f32 %v4299, 0.0
      %v4316 = vmax.f32 %v4300, 0.0
      %v4317 = vmax.f32 %v4301, 0.0
      %v4318 = vmax.f32 %v4302, 0.0
      %v4319 = vmax.f32 %v4303, 0.0
      %v4320 = vmax.f32 %v4304, 0.0
      %v4321 = vmax.f32 %v4305, 0.0
      %v4322 = vmax.f32 %v4306, 0.0
      %v4323 = vpack.c.bf16 %v4308, %v4307
      %v4324 = vpack.c.bf16 %v4310, %v4309
      %v4325 = vpack.c.bf16 %v4312, %v4311
      %v4326 = vpack.c.bf16 %v4314, %v4313
      %v4327 = vpack.c.bf16 %v4316, %v4315
      %v4328 = vpack.c.bf16 %v4318, %v4317
      %v4329 = vpack.c.bf16 %v4320, %v4319
      %v4330 = vpack.c.bf16 %v4322, %v4321
      %s4331 = scalar_lea.vmem %s4, 64
      %v4332 = vld [vmem:[%s4331] sm:$0xf]
      %v4333 = vld [vmem:[%s4331 + $0x4] sm:$0xf]
      %v4334 = vld [vmem:[%s4331 + $0x8] sm:$0xf]
      %v4335 = vld [vmem:[%s4331 + $0xc] sm:$0xf]
      %v4336 = vld [vmem:[%s4331 + $0x10] sm:$0xf]
      %v4337 = vld [vmem:[%s4331 + $0x14] sm:$0xf]
      %v4338 = vld [vmem:[%s4331 + $0x18] sm:$0xf]
      %v4339 = vld [vmem:[%s4331 + $0x1c] sm:$0xf]
      %v4340 = vld [vmem:[%s4331 + $0x20] sm:$0xf]
      %v4341 = vld [vmem:[%s4331 + $0x24] sm:$0xf]
      %v4342 = vld [vmem:[%s4331 + $0x28] sm:$0xf]
      %v4343 = vld [vmem:[%s4331 + $0x2c] sm:$0xf]
      %v4344 = vld [vmem:[%s4331 + $0x30] sm:$0xf]
      %v4345 = vld [vmem:[%s4331 + $0x34] sm:$0xf]
      %v4346 = vld [vmem:[%s4331 + $0x38] sm:$0xf]
      %v4347 = vld [vmem:[%s4331 + $0x3c] sm:$0xf]
      %v4364 = vunpack.c.l.b16 %v4332
      %v4365 = vunpack.c.l.b16 %v4333
      %v4366 = vunpack.c.l.b16 %v4334
      %v4367 = vunpack.c.l.b16 %v4335
      %v4368 = vunpack.c.l.b16 %v4336
      %v4369 = vunpack.c.l.b16 %v4337
      %v4370 = vunpack.c.l.b16 %v4338
      %v4371 = vunpack.c.l.b16 %v4339
      %v4372 = vunpack.c.l.b16 %v4340
      %v4373 = vunpack.c.l.b16 %v4341
      %v4374 = vunpack.c.l.b16 %v4342
      %v4375 = vunpack.c.l.b16 %v4343
      %v4376 = vunpack.c.l.b16 %v4344
      %v4377 = vunpack.c.l.b16 %v4345
      %v4378 = vunpack.c.l.b16 %v4346
      %v4379 = vunpack.c.l.b16 %v4347
      %v4380 = vpack.c.b16 %v4365, %v4364
      %v4381 = vpack.c.b16 %v4367, %v4366
      %v4382 = vpack.c.b16 %v4369, %v4368
      %v4383 = vpack.c.b16 %v4371, %v4370
      %v4384 = vpack.c.b16 %v4373, %v4372
      %v4385 = vpack.c.b16 %v4375, %v4374
      %v4386 = vpack.c.b16 %v4377, %v4376
      %v4387 = vpack.c.b16 %v4379, %v4378
      %4396 = vmatpush.bf16.msra.mxu0 %v4387
      %4397 = vmatpush.bf16.msra.mxu0 %v4386
      %4398 = vmatpush.bf16.msra.mxu0 %v4385
      %4399 = vmatpush.bf16.msra.mxu0 %v4384
      %4400 = vmatpush.bf16.msra.mxu0 %v4383
      %4401 = vmatpush.bf16.msra.mxu0 %v4382
      %4402 = vmatpush.bf16.msra.mxu0 %v4381
      %4403 = vmatpush.bf16.msra.mxu0 %v4380
      %4404 = vmatmul.bf16.gmra.mxu0 %v4323
      %v4405 = vpop.f32.mrf.mxu0
      %v4406 = vadd.f32 %v338, %v4405
      %v4407 = vpop.f32.mrf.mxu0
      %v4408 = vadd.f32 %v338, %v4407
      %4409 = vmatmul.bf16.gmra.mxu0 %v4324
      %v4410 = vpop.f32.mrf.mxu0
      %v4411 = vadd.f32 %v338, %v4410
      %v4412 = vpop.f32.mrf.mxu0
      %v4413 = vadd.f32 %v338, %v4412
      %4414 = vmatmul.bf16.gmra.mxu0 %v4325
      %v4415 = vpop.f32.mrf.mxu0
      %v4416 = vadd.f32 %v338, %v4415
      %v4417 = vpop.f32.mrf.mxu0
      %v4418 = vadd.f32 %v338, %v4417
      %4419 = vmatmul.bf16.gmra.mxu0 %v4326
      %v4420 = vpop.f32.mrf.mxu0
      %v4421 = vadd.f32 %v338, %v4420
      %v4422 = vpop.f32.mrf.mxu0
      %v4423 = vadd.f32 %v338, %v4422
      %4424 = vmatmul.bf16.gmra.mxu0 %v4327
      %v4425 = vpop.f32.mrf.mxu0
      %v4426 = vadd.f32 %v338, %v4425
      %v4427 = vpop.f32.mrf.mxu0
      %v4428 = vadd.f32 %v338, %v4427
      %4429 = vmatmul.bf16.gmra.mxu0 %v4328
      %v4430 = vpop.f32.mrf.mxu0
      %v4431 = vadd.f32 %v338, %v4430
      %v4432 = vpop.f32.mrf.mxu0
      %v4433 = vadd.f32 %v338, %v4432
      %4434 = vmatmul.bf16.gmra.mxu0 %v4329
      %v4435 = vpop.f32.mrf.mxu0
      %v4436 = vadd.f32 %v338, %v4435
      %v4437 = vpop.f32.mrf.mxu0
      %v4438 = vadd.f32 %v338, %v4437
      %4439 = vmatmul.bf16.gmra.mxu0 %v4330
      %v4440 = vpop.f32.mrf.mxu0
      %v4441 = vadd.f32 %v338, %v4440
      %v4442 = vpop.f32.mrf.mxu0
      %v4443 = vadd.f32 %v338, %v4442
      %4444 = vdwg.mxu0
      %v4445 = vmax.f32 %v4406, 0.0
      %v4446 = vmax.f32 %v4408, 0.0
      %v4447 = vmax.f32 %v4411, 0.0
      %v4448 = vmax.f32 %v4413, 0.0
      %v4449 = vmax.f32 %v4416, 0.0
      %v4450 = vmax.f32 %v4418, 0.0
      %v4451 = vmax.f32 %v4421, 0.0
      %v4452 = vmax.f32 %v4423, 0.0
      %v4453 = vmax.f32 %v4426, 0.0
      %v4454 = vmax.f32 %v4428, 0.0
      %v4455 = vmax.f32 %v4431, 0.0
      %v4456 = vmax.f32 %v4433, 0.0
      %v4457 = vmax.f32 %v4436, 0.0
      %v4458 = vmax.f32 %v4438, 0.0
      %v4459 = vmax.f32 %v4441, 0.0
      %v4460 = vmax.f32 %v4443, 0.0
      %v4462 = vsel %vm3431, %v4445, 0
      %v4465 = vsel %vm3431, %v4446, 0
      %v4468 = vsel %vm3431, %v4447, 0
      %v4471 = vsel %vm3431, %v4448, 0
      %v4474 = vsel %vm3431, %v4449, 0
      %v4477 = vsel %vm3431, %v4450, 0
      %v4480 = vsel %vm3431, %v4451, 0
      %v4483 = vsel %vm3431, %v4452, 0
      %v4486 = vsel %vm3431, %v4453, 0
      %v4489 = vsel %vm3431, %v4454, 0
      %v4492 = vsel %vm3431, %v4455, 0
      %v4495 = vsel %vm3431, %v4456, 0
      %v4498 = vsel %vm3431, %v4457, 0
      %v4501 = vsel %vm3431, %v4458, 0
      %v4504 = vsel %vm3431, %v4459, 0
      %v4507 = vsel %vm3431, %v4460, 0
      %4509 = vmatpush.msra.mxu0 0.0
      %4510 = vmatpush.msra.mxu0 0.0
      %4511 = vmatpush.msra.mxu0 0.0
      %4512 = vmatpush.msra.mxu0 0.0
      %4513 = vmatpush.msra.mxu0 0.0
      %4514 = vmatpush.msra.mxu0 0.0
      %4515 = vmatpush.msra.mxu0 0.0
      %4516 = vmatpush.msra.mxu0 0.0
      %4517 = vmatpush.msra.mxu0 %v332
      %4518 = vmatpush.msra.mxu0 %v331
      %4519 = vmatpush.msra.mxu0 %v330
      %4520 = vmatpush.msra.mxu0 %v329
      %4521 = vmatpush.msra.mxu0 %v328
      %4522 = vmatpush.msra.mxu0 %v327
      %4523 = vmatpush.msra.mxu0 %v326
      %4524 = vmatpush.msra.mxu0 %v325
      %4525 = vmatmul.f32.gmra.mxu0 %v4462
      %v4526 = vpop.f32.mrf.mxu0
      %v4527 = vadd.f32 %v340, %v4526
      %4528 = vmatmul.f32.gmra.mxu0 %v4465
      %v4529 = vpop.f32.mrf.mxu0
      %v4530 = vadd.f32 %v340, %v4529
      %4531 = vmatmul.f32.gmra.mxu0 %v4468
      %v4532 = vpop.f32.mrf.mxu0
      %v4533 = vadd.f32 %v340, %v4532
      %4534 = vmatmul.f32.gmra.mxu0 %v4471
      %v4535 = vpop.f32.mrf.mxu0
      %v4536 = vadd.f32 %v340, %v4535
      %4537 = vmatmul.f32.gmra.mxu0 %v4474
      %v4538 = vpop.f32.mrf.mxu0
      %v4539 = vadd.f32 %v340, %v4538
      %4540 = vmatmul.f32.gmra.mxu0 %v4477
      %v4541 = vpop.f32.mrf.mxu0
      %v4542 = vadd.f32 %v340, %v4541
      %4543 = vmatmul.f32.gmra.mxu0 %v4480
      %v4544 = vpop.f32.mrf.mxu0
      %v4545 = vadd.f32 %v340, %v4544
      %4546 = vmatmul.f32.gmra.mxu0 %v4483
      %v4547 = vpop.f32.mrf.mxu0
      %v4548 = vadd.f32 %v340, %v4547
      %4549 = vmatmul.f32.gmra.mxu0 %v4486
      %v4550 = vpop.f32.mrf.mxu0
      %v4551 = vadd.f32 %v340, %v4550
      %4552 = vmatmul.f32.gmra.mxu0 %v4489
      %v4553 = vpop.f32.mrf.mxu0
      %v4554 = vadd.f32 %v340, %v4553
      %4555 = vmatmul.f32.gmra.mxu0 %v4492
      %v4556 = vpop.f32.mrf.mxu0
      %v4557 = vadd.f32 %v340, %v4556
      %4558 = vmatmul.f32.gmra.mxu0 %v4495
      %v4559 = vpop.f32.mrf.mxu0
      %v4560 = vadd.f32 %v340, %v4559
      %4561 = vmatmul.f32.gmra.mxu0 %v4498
      %v4562 = vpop.f32.mrf.mxu0
      %v4563 = vadd.f32 %v340, %v4562
      %4564 = vmatmul.f32.gmra.mxu0 %v4501
      %v4565 = vpop.f32.mrf.mxu0
      %v4566 = vadd.f32 %v340, %v4565
      %4567 = vmatmul.f32.gmra.mxu0 %v4504
      %v4568 = vpop.f32.mrf.mxu0
      %v4569 = vadd.f32 %v340, %v4568
      %4570 = vmatmul.f32.gmra.mxu0 %v4507
      %v4571 = vpop.f32.mrf.mxu0
      %v4572 = vadd.f32 %v340, %v4571
      %4573 = vdwg.mxu0
      %v4574 = vtanh.pop %v4527
      %v4575 = vtanh.pop %v4530
      %v4576 = vtanh.pop %v4533
      %v4577 = vtanh.pop %v4536
      %v4578 = vtanh.pop %v4539
      %v4579 = vtanh.pop %v4542
      %v4580 = vtanh.pop %v4545
      %v4581 = vtanh.pop %v4548
      %v4582 = vtanh.pop %v4551
      %v4583 = vtanh.pop %v4554
      %v4584 = vtanh.pop %v4557
      %v4585 = vtanh.pop %v4560
      %v4586 = vtanh.pop %v4563
      %v4587 = vtanh.pop %v4566
      %v4588 = vtanh.pop %v4569
      %v4589 = vtanh.pop %v4572
      %v4606 = vrot.slane %v4574, 1
      %v4607 = vrot.slane %v4574, 2
      %v4608 = vrot.slane %v4574, 3
      %v4609 = vrot.slane %v4574, 4
      %v4610 = vrot.slane %v4574, 5
      %v4611 = vrot.slane %v4574, 6
      %v4612 = vrot.slane %v4574, 7
      %v4613 = vrot.slane %v4575, 1
      %v4614 = vrot.slane %v4575, 2
      %v4615 = vrot.slane %v4575, 3
      %v4616 = vrot.slane %v4575, 4
      %v4617 = vrot.slane %v4575, 5
      %v4618 = vrot.slane %v4575, 6
      %v4619 = vrot.slane %v4575, 7
      %v4620 = vrot.slane %v4576, 1
      %v4621 = vrot.slane %v4576, 2
      %v4622 = vrot.slane %v4576, 3
      %v4623 = vrot.slane %v4576, 4
      %v4624 = vrot.slane %v4576, 5
      %v4625 = vrot.slane %v4576, 6
      %v4626 = vrot.slane %v4576, 7
      %v4627 = vrot.slane %v4577, 1
      %v4628 = vrot.slane %v4577, 2
      %v4629 = vrot.slane %v4577, 3
      %v4630 = vrot.slane %v4577, 4
      %v4631 = vrot.slane %v4577, 5
      %v4632 = vrot.slane %v4577, 6
      %v4633 = vrot.slane %v4577, 7
      %v4634 = vrot.slane %v4578, 1
      %v4635 = vrot.slane %v4578, 2
      %v4636 = vrot.slane %v4578, 3
      %v4637 = vrot.slane %v4578, 4
      %v4638 = vrot.slane %v4578, 5
      %v4639 = vrot.slane %v4578, 6
      %v4640 = vrot.slane %v4578, 7
      %v4641 = vrot.slane %v4579, 1
      %v4642 = vrot.slane %v4579, 2
      %v4643 = vrot.slane %v4579, 3
      %v4644 = vrot.slane %v4579, 4
      %v4645 = vrot.slane %v4579, 5
      %v4646 = vrot.slane %v4579, 6
      %v4647 = vrot.slane %v4579, 7
      %v4648 = vrot.slane %v4580, 1
      %v4649 = vrot.slane %v4580, 2
      %v4650 = vrot.slane %v4580, 3
      %v4651 = vrot.slane %v4580, 4
      %v4652 = vrot.slane %v4580, 5
      %v4653 = vrot.slane %v4580, 6
      %v4654 = vrot.slane %v4580, 7
      %v4655 = vrot.slane %v4581, 1
      %v4656 = vrot.slane %v4581, 2
      %v4657 = vrot.slane %v4581, 3
      %v4658 = vrot.slane %v4581, 4
      %v4659 = vrot.slane %v4581, 5
      %v4660 = vrot.slane %v4581, 6
      %v4661 = vrot.slane %v4581, 7
      %v4662 = vrot.slane %v4582, 1
      %v4663 = vrot.slane %v4582, 2
      %v4664 = vrot.slane %v4582, 3
      %v4665 = vrot.slane %v4582, 4
      %v4666 = vrot.slane %v4582, 5
      %v4667 = vrot.slane %v4582, 6
      %v4668 = vrot.slane %v4582, 7
      %v4669 = vrot.slane %v4583, 1
      %v4670 = vrot.slane %v4583, 2
      %v4671 = vrot.slane %v4583, 3
      %v4672 = vrot.slane %v4583, 4
      %v4673 = vrot.slane %v4583, 5
      %v4674 = vrot.slane %v4583, 6
      %v4675 = vrot.slane %v4583, 7
      %v4676 = vrot.slane %v4584, 1
      %v4677 = vrot.slane %v4584, 2
      %v4678 = vrot.slane %v4584, 3
      %v4679 = vrot.slane %v4584, 4
      %v4680 = vrot.slane %v4584, 5
      %v4681 = vrot.slane %v4584, 6
      %v4682 = vrot.slane %v4584, 7
      %v4683 = vrot.slane %v4585, 1
      %v4684 = vrot.slane %v4585, 2
      %v4685 = vrot.slane %v4585, 3
      %v4686 = vrot.slane %v4585, 4
      %v4687 = vrot.slane %v4585, 5
      %v4688 = vrot.slane %v4585, 6
      %v4689 = vrot.slane %v4585, 7
      %v4690 = vrot.slane %v4586, 1
      %v4691 = vrot.slane %v4586, 2
      %v4692 = vrot.slane %v4586, 3
      %v4693 = vrot.slane %v4586, 4
      %v4694 = vrot.slane %v4586, 5
      %v4695 = vrot.slane %v4586, 6
      %v4696 = vrot.slane %v4586, 7
      %v4697 = vrot.slane %v4587, 1
      %v4698 = vrot.slane %v4587, 2
      %v4699 = vrot.slane %v4587, 3
      %v4700 = vrot.slane %v4587, 4
      %v4701 = vrot.slane %v4587, 5
      %v4702 = vrot.slane %v4587, 6
      %v4703 = vrot.slane %v4587, 7
      %v4704 = vrot.slane %v4588, 1
      %v4705 = vrot.slane %v4588, 2
      %v4706 = vrot.slane %v4588, 3
      %v4707 = vrot.slane %v4588, 4
      %v4708 = vrot.slane %v4588, 5
      %v4709 = vrot.slane %v4588, 6
      %v4710 = vrot.slane %v4588, 7
      %v4711 = vrot.slane %v4589, 1
      %v4712 = vrot.slane %v4589, 2
      %v4713 = vrot.slane %v4589, 3
      %v4714 = vrot.slane %v4589, 4
      %v4715 = vrot.slane %v4589, 5
      %v4716 = vrot.slane %v4589, 6
      %v4717 = vrot.slane %v4589, 7
      %v4830 = vmul.f32 %v4574, 0.2
      %v4831 = vmul.f32 %v4606, 0.2
      %v4832 = vmul.f32 %v4607, 0.2
      %v4833 = vmul.f32 %v4608, 0.2
      %v4834 = vmul.f32 %v4609, 0.2
      %v4835 = vmul.f32 %v4610, 0.2
      %v4836 = vmul.f32 %v4611, 0.2
      %v4837 = vmul.f32 %v4612, 0.2
      %v4838 = vmul.f32 %v4575, 0.2
      %v4839 = vmul.f32 %v4613, 0.2
      %v4840 = vmul.f32 %v4614, 0.2
      %v4841 = vmul.f32 %v4615, 0.2
      %v4842 = vmul.f32 %v4616, 0.2
      %v4843 = vmul.f32 %v4617, 0.2
      %v4844 = vmul.f32 %v4618, 0.2
      %v4845 = vmul.f32 %v4619, 0.2
      %v4846 = vmul.f32 %v4576, 0.2
      %v4847 = vmul.f32 %v4620, 0.2
      %v4848 = vmul.f32 %v4621, 0.2
      %v4849 = vmul.f32 %v4622, 0.2
      %v4850 = vmul.f32 %v4623, 0.2
      %v4851 = vmul.f32 %v4624, 0.2
      %v4852 = vmul.f32 %v4625, 0.2
      %v4853 = vmul.f32 %v4626, 0.2
      %v4854 = vmul.f32 %v4577, 0.2
      %v4855 = vmul.f32 %v4627, 0.2
      %v4856 = vmul.f32 %v4628, 0.2
      %v4857 = vmul.f32 %v4629, 0.2
      %v4858 = vmul.f32 %v4630, 0.2
      %v4859 = vmul.f32 %v4631, 0.2
      %v4860 = vmul.f32 %v4632, 0.2
      %v4861 = vmul.f32 %v4633, 0.2
      %v4862 = vmul.f32 %v4578, 0.2
      %v4863 = vmul.f32 %v4634, 0.2
      %v4864 = vmul.f32 %v4635, 0.2
      %v4865 = vmul.f32 %v4636, 0.2
      %v4866 = vmul.f32 %v4637, 0.2
      %v4867 = vmul.f32 %v4638, 0.2
      %v4868 = vmul.f32 %v4639, 0.2
      %v4869 = vmul.f32 %v4640, 0.2
      %v4870 = vmul.f32 %v4579, 0.2
      %v4871 = vmul.f32 %v4641, 0.2
      %v4872 = vmul.f32 %v4642, 0.2
      %v4873 = vmul.f32 %v4643, 0.2
      %v4874 = vmul.f32 %v4644, 0.2
      %v4875 = vmul.f32 %v4645, 0.2
      %v4876 = vmul.f32 %v4646, 0.2
      %v4877 = vmul.f32 %v4647, 0.2
      %v4878 = vmul.f32 %v4580, 0.2
      %v4879 = vmul.f32 %v4648, 0.2
      %v4880 = vmul.f32 %v4649, 0.2
      %v4881 = vmul.f32 %v4650, 0.2
      %v4882 = vmul.f32 %v4651, 0.2
      %v4883 = vmul.f32 %v4652, 0.2
      %v4884 = vmul.f32 %v4653, 0.2
      %v4885 = vmul.f32 %v4654, 0.2
      %v4886 = vmul.f32 %v4581, 0.2
      %v4887 = vmul.f32 %v4655, 0.2
      %v4888 = vmul.f32 %v4656, 0.2
      %v4889 = vmul.f32 %v4657, 0.2
      %v4890 = vmul.f32 %v4658, 0.2
      %v4891 = vmul.f32 %v4659, 0.2
      %v4892 = vmul.f32 %v4660, 0.2
      %v4893 = vmul.f32 %v4661, 0.2
      %v4894 = vmul.f32 %v4582, 0.2
      %v4895 = vmul.f32 %v4662, 0.2
      %v4896 = vmul.f32 %v4663, 0.2
      %v4897 = vmul.f32 %v4664, 0.2
      %v4898 = vmul.f32 %v4665, 0.2
      %v4899 = vmul.f32 %v4666, 0.2
      %v4900 = vmul.f32 %v4667, 0.2
      %v4901 = vmul.f32 %v4668, 0.2
      %v4902 = vmul.f32 %v4583, 0.2
      %v4903 = vmul.f32 %v4669, 0.2
      %v4904 = vmul.f32 %v4670, 0.2
      %v4905 = vmul.f32 %v4671, 0.2
      %v4906 = vmul.f32 %v4672, 0.2
      %v4907 = vmul.f32 %v4673, 0.2
      %v4908 = vmul.f32 %v4674, 0.2
      %v4909 = vmul.f32 %v4675, 0.2
      %v4910 = vmul.f32 %v4584, 0.2
      %v4911 = vmul.f32 %v4676, 0.2
      %v4912 = vmul.f32 %v4677, 0.2
      %v4913 = vmul.f32 %v4678, 0.2
      %v4914 = vmul.f32 %v4679, 0.2
      %v4915 = vmul.f32 %v4680, 0.2
      %v4916 = vmul.f32 %v4681, 0.2
      %v4917 = vmul.f32 %v4682, 0.2
      %v4918 = vmul.f32 %v4585, 0.2
      %v4919 = vmul.f32 %v4683, 0.2
      %v4920 = vmul.f32 %v4684, 0.2
      %v4921 = vmul.f32 %v4685, 0.2
      %v4922 = vmul.f32 %v4686, 0.2
      %v4923 = vmul.f32 %v4687, 0.2
      %v4924 = vmul.f32 %v4688, 0.2
      %v4925 = vmul.f32 %v4689, 0.2
      %v4926 = vmul.f32 %v4586, 0.2
      %v4927 = vmul.f32 %v4690, 0.2
      %v4928 = vmul.f32 %v4691, 0.2
      %v4929 = vmul.f32 %v4692, 0.2
      %v4930 = vmul.f32 %v4693, 0.2
      %v4931 = vmul.f32 %v4694, 0.2
      %v4932 = vmul.f32 %v4695, 0.2
      %v4933 = vmul.f32 %v4696, 0.2
      %v4934 = vmul.f32 %v4587, 0.2
      %v4935 = vmul.f32 %v4697, 0.2
      %v4936 = vmul.f32 %v4698, 0.2
      %v4937 = vmul.f32 %v4699, 0.2
      %v4938 = vmul.f32 %v4700, 0.2
      %v4939 = vmul.f32 %v4701, 0.2
      %v4940 = vmul.f32 %v4702, 0.2
      %v4941 = vmul.f32 %v4703, 0.2
      %v4942 = vmul.f32 %v4588, 0.2
      %v4943 = vmul.f32 %v4704, 0.2
      %v4944 = vmul.f32 %v4705, 0.2
      %v4945 = vmul.f32 %v4706, 0.2
      %v4946 = vmul.f32 %v4707, 0.2
      %v4947 = vmul.f32 %v4708, 0.2
      %v4948 = vmul.f32 %v4709, 0.2
      %v4949 = vmul.f32 %v4710, 0.2
      %v4950 = vmul.f32 %v4589, 0.2
      %v4951 = vmul.f32 %v4711, 0.2
      %v4952 = vmul.f32 %v4712, 0.2
      %v4953 = vmul.f32 %v4713, 0.2
      %v4954 = vmul.f32 %v4714, 0.2
      %v4955 = vmul.f32 %v4715, 0.2
      %v4956 = vmul.f32 %v4716, 0.2
      %v4957 = vmul.f32 %v4717, 0.2
      %v5086 = vperm.slane %v4830, 0
      %v5087 = vperm.slane %v4831, 0
      %v5088 = vperm.slane %v4832, 0
      %v5089 = vperm.slane %v4833, 0
      %v5090 = vperm.slane %v4834, 0
      %v5091 = vperm.slane %v4835, 0
      %v5092 = vperm.slane %v4836, 0
      %v5093 = vperm.slane %v4837, 0
      %v5094 = vperm.slane %v4838, 0
      %v5095 = vperm.slane %v4839, 0
      %v5096 = vperm.slane %v4840, 0
      %v5097 = vperm.slane %v4841, 0
      %v5098 = vperm.slane %v4842, 0
      %v5099 = vperm.slane %v4843, 0
      %v5100 = vperm.slane %v4844, 0
      %v5101 = vperm.slane %v4845, 0
      %v5102 = vperm.slane %v4846, 0
      %v5103 = vperm.slane %v4847, 0
      %v5104 = vperm.slane %v4848, 0
      %v5105 = vperm.slane %v4849, 0
      %v5106 = vperm.slane %v4850, 0
      %v5107 = vperm.slane %v4851, 0
      %v5108 = vperm.slane %v4852, 0
      %v5109 = vperm.slane %v4853, 0
      %v5110 = vperm.slane %v4854, 0
      %v5111 = vperm.slane %v4855, 0
      %v5112 = vperm.slane %v4856, 0
      %v5113 = vperm.slane %v4857, 0
      %v5114 = vperm.slane %v4858, 0
      %v5115 = vperm.slane %v4859, 0
      %v5116 = vperm.slane %v4860, 0
      %v5117 = vperm.slane %v4861, 0
      %v5118 = vperm.slane %v4862, 0
      %v5119 = vperm.slane %v4863, 0
      %v5120 = vperm.slane %v4864, 0
      %v5121 = vperm.slane %v4865, 0
      %v5122 = vperm.slane %v4866, 0
      %v5123 = vperm.slane %v4867, 0
      %v5124 = vperm.slane %v4868, 0
      %v5125 = vperm.slane %v4869, 0
      %v5126 = vperm.slane %v4870, 0
      %v5127 = vperm.slane %v4871, 0
      %v5128 = vperm.slane %v4872, 0
      %v5129 = vperm.slane %v4873, 0
      %v5130 = vperm.slane %v4874, 0
      %v5131 = vperm.slane %v4875, 0
      %v5132 = vperm.slane %v4876, 0
      %v5133 = vperm.slane %v4877, 0
      %v5134 = vperm.slane %v4878, 0
      %v5135 = vperm.slane %v4879, 0
      %v5136 = vperm.slane %v4880, 0
      %v5137 = vperm.slane %v4881, 0
      %v5138 = vperm.slane %v4882, 0
      %v5139 = vperm.slane %v4883, 0
      %v5140 = vperm.slane %v4884, 0
      %v5141 = vperm.slane %v4885, 0
      %v5142 = vperm.slane %v4886, 0
      %v5143 = vperm.slane %v4887, 0
      %v5144 = vperm.slane %v4888, 0
      %v5145 = vperm.slane %v4889, 0
      %v5146 = vperm.slane %v4890, 0
      %v5147 = vperm.slane %v4891, 0
      %v5148 = vperm.slane %v4892, 0
      %v5149 = vperm.slane %v4893, 0
      %v5150 = vperm.slane %v4894, 0
      %v5151 = vperm.slane %v4895, 0
      %v5152 = vperm.slane %v4896, 0
      %v5153 = vperm.slane %v4897, 0
      %v5154 = vperm.slane %v4898, 0
      %v5155 = vperm.slane %v4899, 0
      %v5156 = vperm.slane %v4900, 0
      %v5157 = vperm.slane %v4901, 0
      %v5158 = vperm.slane %v4902, 0
      %v5159 = vperm.slane %v4903, 0
      %v5160 = vperm.slane %v4904, 0
      %v5161 = vperm.slane %v4905, 0
      %v5162 = vperm.slane %v4906, 0
      %v5163 = vperm.slane %v4907, 0
      %v5164 = vperm.slane %v4908, 0
      %v5165 = vperm.slane %v4909, 0
      %v5166 = vperm.slane %v4910, 0
      %v5167 = vperm.slane %v4911, 0
      %v5168 = vperm.slane %v4912, 0
      %v5169 = vperm.slane %v4913, 0
      %v5170 = vperm.slane %v4914, 0
      %v5171 = vperm.slane %v4915, 0
      %v5172 = vperm.slane %v4916, 0
      %v5173 = vperm.slane %v4917, 0
      %v5174 = vperm.slane %v4918, 0
      %v5175 = vperm.slane %v4919, 0
      %v5176 = vperm.slane %v4920, 0
      %v5177 = vperm.slane %v4921, 0
      %v5178 = vperm.slane %v4922, 0
      %v5179 = vperm.slane %v4923, 0
      %v5180 = vperm.slane %v4924, 0
      %v5181 = vperm.slane %v4925, 0
      %v5182 = vperm.slane %v4926, 0
      %v5183 = vperm.slane %v4927, 0
      %v5184 = vperm.slane %v4928, 0
      %v5185 = vperm.slane %v4929, 0
      %v5186 = vperm.slane %v4930, 0
      %v5187 = vperm.slane %v4931, 0
      %v5188 = vperm.slane %v4932, 0
      %v5189 = vperm.slane %v4933, 0
      %v5190 = vperm.slane %v4934, 0
      %v5191 = vperm.slane %v4935, 0
      %v5192 = vperm.slane %v4936, 0
      %v5193 = vperm.slane %v4937, 0
      %v5194 = vperm.slane %v4938, 0
      %v5195 = vperm.slane %v4939, 0
      %v5196 = vperm.slane %v4940, 0
      %v5197 = vperm.slane %v4941, 0
      %v5198 = vperm.slane %v4942, 0
      %v5199 = vperm.slane %v4943, 0
      %v5200 = vperm.slane %v4944, 0
      %v5201 = vperm.slane %v4945, 0
      %v5202 = vperm.slane %v4946, 0
      %v5203 = vperm.slane %v4947, 0
      %v5204 = vperm.slane %v4948, 0
      %v5205 = vperm.slane %v4949, 0
      %v5206 = vperm.slane %v4950, 0
      %v5207 = vperm.slane %v4951, 0
      %v5208 = vperm.slane %v4952, 0
      %v5209 = vperm.slane %v4953, 0
      %v5210 = vperm.slane %v4954, 0
      %v5211 = vperm.slane %v4955, 0
      %v5212 = vperm.slane %v4956, 0
      %v5213 = vperm.slane %v4957, 0
      %v5342 = vadd.f32 %v3834, %v5086
      %v5343 = vadd.f32 %v3837, %v5087
      %v5344 = vadd.f32 %v3840, %v5088
      %v5345 = vadd.f32 %v3843, %v5089
      %v5346 = vadd.f32 %v3846, %v5090
      %v5347 = vadd.f32 %v3849, %v5091
      %v5348 = vadd.f32 %v3852, %v5092
      %v5349 = vadd.f32 %v3855, %v5093
      %v5350 = vadd.f32 %v3858, %v5094
      %v5351 = vadd.f32 %v3861, %v5095
      %v5352 = vadd.f32 %v3864, %v5096
      %v5353 = vadd.f32 %v3867, %v5097
      %v5354 = vadd.f32 %v3870, %v5098
      %v5355 = vadd.f32 %v3873, %v5099
      %v5356 = vadd.f32 %v3876, %v5100
      %v5357 = vadd.f32 %v3879, %v5101
      %v5358 = vadd.f32 %v3882, %v5102
      %v5359 = vadd.f32 %v3885, %v5103
      %v5360 = vadd.f32 %v3888, %v5104
      %v5361 = vadd.f32 %v3891, %v5105
      %v5362 = vadd.f32 %v3894, %v5106
      %v5363 = vadd.f32 %v3897, %v5107
      %v5364 = vadd.f32 %v3900, %v5108
      %v5365 = vadd.f32 %v3903, %v5109
      %v5366 = vadd.f32 %v3906, %v5110
      %v5367 = vadd.f32 %v3909, %v5111
      %v5368 = vadd.f32 %v3912, %v5112
      %v5369 = vadd.f32 %v3915, %v5113
      %v5370 = vadd.f32 %v3918, %v5114
      %v5371 = vadd.f32 %v3921, %v5115
      %v5372 = vadd.f32 %v3924, %v5116
      %v5373 = vadd.f32 %v3927, %v5117
      %v5374 = vadd.f32 %v3930, %v5118
      %v5375 = vadd.f32 %v3933, %v5119
      %v5376 = vadd.f32 %v3936, %v5120
      %v5377 = vadd.f32 %v3939, %v5121
      %v5378 = vadd.f32 %v3942, %v5122
      %v5379 = vadd.f32 %v3945, %v5123
      %v5380 = vadd.f32 %v3948, %v5124
      %v5381 = vadd.f32 %v3951, %v5125
      %v5382 = vadd.f32 %v3954, %v5126
      %v5383 = vadd.f32 %v3957, %v5127
      %v5384 = vadd.f32 %v3960, %v5128
      %v5385 = vadd.f32 %v3963, %v5129
      %v5386 = vadd.f32 %v3966, %v5130
      %v5387 = vadd.f32 %v3969, %v5131
      %v5388 = vadd.f32 %v3972, %v5132
      %v5389 = vadd.f32 %v3975, %v5133
      %v5390 = vadd.f32 %v3978, %v5134
      %v5391 = vadd.f32 %v3981, %v5135
      %v5392 = vadd.f32 %v3984, %v5136
      %v5393 = vadd.f32 %v3987, %v5137
      %v5394 = vadd.f32 %v3990, %v5138
      %v5395 = vadd.f32 %v3993, %v5139
      %v5396 = vadd.f32 %v3996, %v5140
      %v5397 = vadd.f32 %v3999, %v5141
      %v5398 = vadd.f32 %v4002, %v5142
      %v5399 = vadd.f32 %v4005, %v5143
      %v5400 = vadd.f32 %v4008, %v5144
      %v5401 = vadd.f32 %v4011, %v5145
      %v5402 = vadd.f32 %v4014, %v5146
      %v5403 = vadd.f32 %v4017, %v5147
      %v5404 = vadd.f32 %v4020, %v5148
      %v5405 = vadd.f32 %v4023, %v5149
      %v5406 = vadd.f32 %v4026, %v5150
      %v5407 = vadd.f32 %v4029, %v5151
      %v5408 = vadd.f32 %v4032, %v5152
      %v5409 = vadd.f32 %v4035, %v5153
      %v5410 = vadd.f32 %v4038, %v5154
      %v5411 = vadd.f32 %v4041, %v5155
      %v5412 = vadd.f32 %v4044, %v5156
      %v5413 = vadd.f32 %v4047, %v5157
      %v5414 = vadd.f32 %v4050, %v5158
      %v5415 = vadd.f32 %v4053, %v5159
      %v5416 = vadd.f32 %v4056, %v5160
      %v5417 = vadd.f32 %v4059, %v5161
      %v5418 = vadd.f32 %v4062, %v5162
      %v5419 = vadd.f32 %v4065, %v5163
      %v5420 = vadd.f32 %v4068, %v5164
      %v5421 = vadd.f32 %v4071, %v5165
      %v5422 = vadd.f32 %v4074, %v5166
      %v5423 = vadd.f32 %v4077, %v5167
      %v5424 = vadd.f32 %v4080, %v5168
      %v5425 = vadd.f32 %v4083, %v5169
      %v5426 = vadd.f32 %v4086, %v5170
      %v5427 = vadd.f32 %v4089, %v5171
      %v5428 = vadd.f32 %v4092, %v5172
      %v5429 = vadd.f32 %v4095, %v5173
      %v5430 = vadd.f32 %v4098, %v5174
      %v5431 = vadd.f32 %v4101, %v5175
      %v5432 = vadd.f32 %v4104, %v5176
      %v5433 = vadd.f32 %v4107, %v5177
      %v5434 = vadd.f32 %v4110, %v5178
      %v5435 = vadd.f32 %v4113, %v5179
      %v5436 = vadd.f32 %v4116, %v5180
      %v5437 = vadd.f32 %v4119, %v5181
      %v5438 = vadd.f32 %v4122, %v5182
      %v5439 = vadd.f32 %v4125, %v5183
      %v5440 = vadd.f32 %v4128, %v5184
      %v5441 = vadd.f32 %v4131, %v5185
      %v5442 = vadd.f32 %v4134, %v5186
      %v5443 = vadd.f32 %v4137, %v5187
      %v5444 = vadd.f32 %v4140, %v5188
      %v5445 = vadd.f32 %v4143, %v5189
      %v5446 = vadd.f32 %v4146, %v5190
      %v5447 = vadd.f32 %v4149, %v5191
      %v5448 = vadd.f32 %v4152, %v5192
      %v5449 = vadd.f32 %v4155, %v5193
      %v5450 = vadd.f32 %v4158, %v5194
      %v5451 = vadd.f32 %v4161, %v5195
      %v5452 = vadd.f32 %v4164, %v5196
      %v5453 = vadd.f32 %v4167, %v5197
      %v5454 = vadd.f32 %v4170, %v5198
      %v5455 = vadd.f32 %v4173, %v5199
      %v5456 = vadd.f32 %v4176, %v5200
      %v5457 = vadd.f32 %v4179, %v5201
      %v5458 = vadd.f32 %v4182, %v5202
      %v5459 = vadd.f32 %v4185, %v5203
      %v5460 = vadd.f32 %v4188, %v5204
      %v5461 = vadd.f32 %v4191, %v5205
      %v5462 = vadd.f32 %v4194, %v5206
      %v5463 = vadd.f32 %v4197, %v5207
      %v5464 = vadd.f32 %v4200, %v5208
      %v5465 = vadd.f32 %v4203, %v5209
      %v5466 = vadd.f32 %v4206, %v5210
      %v5467 = vadd.f32 %v4209, %v5211
      %v5468 = vadd.f32 %v4212, %v5212
      %v5469 = vadd.f32 %v4215, %v5213
      %v5470 = vadd.f32 %v5342, %v333
      %v5471 = vadd.f32 %v5343, %v333
      %v5472 = vadd.f32 %v5344, %v333
      %v5473 = vadd.f32 %v5345, %v333
      %v5474 = vadd.f32 %v5346, %v333
      %v5475 = vadd.f32 %v5347, %v333
      %v5476 = vadd.f32 %v5348, %v333
      %v5477 = vadd.f32 %v5349, %v333
      %v5478 = vadd.f32 %v5350, %v333
      %v5479 = vadd.f32 %v5351, %v333
      %v5480 = vadd.f32 %v5352, %v333
      %v5481 = vadd.f32 %v5353, %v333
      %v5482 = vadd.f32 %v5354, %v333
      %v5483 = vadd.f32 %v5355, %v333
      %v5484 = vadd.f32 %v5356, %v333
      %v5485 = vadd.f32 %v5357, %v333
      %v5486 = vadd.f32 %v5358, %v333
      %v5487 = vadd.f32 %v5359, %v333
      %v5488 = vadd.f32 %v5360, %v333
      %v5489 = vadd.f32 %v5361, %v333
      %v5490 = vadd.f32 %v5362, %v333
      %v5491 = vadd.f32 %v5363, %v333
      %v5492 = vadd.f32 %v5364, %v333
      %v5493 = vadd.f32 %v5365, %v333
      %v5494 = vadd.f32 %v5366, %v333
      %v5495 = vadd.f32 %v5367, %v333
      %v5496 = vadd.f32 %v5368, %v333
      %v5497 = vadd.f32 %v5369, %v333
      %v5498 = vadd.f32 %v5370, %v333
      %v5499 = vadd.f32 %v5371, %v333
      %v5500 = vadd.f32 %v5372, %v333
      %v5501 = vadd.f32 %v5373, %v333
      %v5502 = vadd.f32 %v5374, %v333
      %v5503 = vadd.f32 %v5375, %v333
      %v5504 = vadd.f32 %v5376, %v333
      %v5505 = vadd.f32 %v5377, %v333
      %v5506 = vadd.f32 %v5378, %v333
      %v5507 = vadd.f32 %v5379, %v333
      %v5508 = vadd.f32 %v5380, %v333
      %v5509 = vadd.f32 %v5381, %v333
      %v5510 = vadd.f32 %v5382, %v333
      %v5511 = vadd.f32 %v5383, %v333
      %v5512 = vadd.f32 %v5384, %v333
      %v5513 = vadd.f32 %v5385, %v333
      %v5514 = vadd.f32 %v5386, %v333
      %v5515 = vadd.f32 %v5387, %v333
      %v5516 = vadd.f32 %v5388, %v333
      %v5517 = vadd.f32 %v5389, %v333
      %v5518 = vadd.f32 %v5390, %v333
      %v5519 = vadd.f32 %v5391, %v333
      %v5520 = vadd.f32 %v5392, %v333
      %v5521 = vadd.f32 %v5393, %v333
      %v5522 = vadd.f32 %v5394, %v333
      %v5523 = vadd.f32 %v5395, %v333
      %v5524 = vadd.f32 %v5396, %v333
      %v5525 = vadd.f32 %v5397, %v333
      %v5526 = vadd.f32 %v5398, %v333
      %v5527 = vadd.f32 %v5399, %v333
      %v5528 = vadd.f32 %v5400, %v333
      %v5529 = vadd.f32 %v5401, %v333
      %v5530 = vadd.f32 %v5402, %v333
      %v5531 = vadd.f32 %v5403, %v333
      %v5532 = vadd.f32 %v5404, %v333
      %v5533 = vadd.f32 %v5405, %v333
      %v5534 = vadd.f32 %v5406, %v333
      %v5535 = vadd.f32 %v5407, %v333
      %v5536 = vadd.f32 %v5408, %v333
      %v5537 = vadd.f32 %v5409, %v333
      %v5538 = vadd.f32 %v5410, %v333
      %v5539 = vadd.f32 %v5411, %v333
      %v5540 = vadd.f32 %v5412, %v333
      %v5541 = vadd.f32 %v5413, %v333
      %v5542 = vadd.f32 %v5414, %v333
      %v5543 = vadd.f32 %v5415, %v333
      %v5544 = vadd.f32 %v5416, %v333
      %v5545 = vadd.f32 %v5417, %v333
      %v5546 = vadd.f32 %v5418, %v333
      %v5547 = vadd.f32 %v5419, %v333
      %v5548 = vadd.f32 %v5420, %v333
      %v5549 = vadd.f32 %v5421, %v333
      %v5550 = vadd.f32 %v5422, %v333
      %v5551 = vadd.f32 %v5423, %v333
      %v5552 = vadd.f32 %v5424, %v333
      %v5553 = vadd.f32 %v5425, %v333
      %v5554 = vadd.f32 %v5426, %v333
      %v5555 = vadd.f32 %v5427, %v333
      %v5556 = vadd.f32 %v5428, %v333
      %v5557 = vadd.f32 %v5429, %v333
      %v5558 = vadd.f32 %v5430, %v333
      %v5559 = vadd.f32 %v5431, %v333
      %v5560 = vadd.f32 %v5432, %v333
      %v5561 = vadd.f32 %v5433, %v333
      %v5562 = vadd.f32 %v5434, %v333
      %v5563 = vadd.f32 %v5435, %v333
      %v5564 = vadd.f32 %v5436, %v333
      %v5565 = vadd.f32 %v5437, %v333
      %v5566 = vadd.f32 %v5438, %v333
      %v5567 = vadd.f32 %v5439, %v333
      %v5568 = vadd.f32 %v5440, %v333
      %v5569 = vadd.f32 %v5441, %v333
      %v5570 = vadd.f32 %v5442, %v333
      %v5571 = vadd.f32 %v5443, %v333
      %v5572 = vadd.f32 %v5444, %v333
      %v5573 = vadd.f32 %v5445, %v333
      %v5574 = vadd.f32 %v5446, %v333
      %v5575 = vadd.f32 %v5447, %v333
      %v5576 = vadd.f32 %v5448, %v333
      %v5577 = vadd.f32 %v5449, %v333
      %v5578 = vadd.f32 %v5450, %v333
      %v5579 = vadd.f32 %v5451, %v333
      %v5580 = vadd.f32 %v5452, %v333
      %v5581 = vadd.f32 %v5453, %v333
      %v5582 = vadd.f32 %v5454, %v333
      %v5583 = vadd.f32 %v5455, %v333
      %v5584 = vadd.f32 %v5456, %v333
      %v5585 = vadd.f32 %v5457, %v333
      %v5586 = vadd.f32 %v5458, %v333
      %v5587 = vadd.f32 %v5459, %v333
      %v5588 = vadd.f32 %v5460, %v333
      %v5589 = vadd.f32 %v5461, %v333
      %v5590 = vadd.f32 %v5462, %v333
      %v5591 = vadd.f32 %v5463, %v333
      %v5592 = vadd.f32 %v5464, %v333
      %v5593 = vadd.f32 %v5465, %v333
      %v5594 = vadd.f32 %v5466, %v333
      %v5595 = vadd.f32 %v5467, %v333
      %v5596 = vadd.f32 %v5468, %v333
      %v5597 = vadd.f32 %v5469, %v333
      %v5598 = vlaneseq
      %v5599 = vand.u32 %v5598, 127
      %v5600 = vsel %vm366, %v5470, -inf
      %5601 = vmax.xlane.f32.xlu0 %v5600
      %v5602 = vpop.xlane.xlu0 %5601
      %v5603 = vsel %vm366, %v5471, -inf
      %5604 = vmax.xlane.f32.xlu0 %v5603
      %v5605 = vpop.xlane.xlu0 %5604
      %v5606 = vsel %vm366, %v5472, -inf
      %5607 = vmax.xlane.f32.xlu0 %v5606
      %v5608 = vpop.xlane.xlu0 %5607
      %v5609 = vsel %vm366, %v5473, -inf
      %5610 = vmax.xlane.f32.xlu0 %v5609
      %v5611 = vpop.xlane.xlu0 %5610
      %v5612 = vsel %vm366, %v5474, -inf
      %5613 = vmax.xlane.f32.xlu0 %v5612
      %v5614 = vpop.xlane.xlu0 %5613
      %v5615 = vsel %vm366, %v5475, -inf
      %5616 = vmax.xlane.f32.xlu0 %v5615
      %v5617 = vpop.xlane.xlu0 %5616
      %v5618 = vsel %vm366, %v5476, -inf
      %5619 = vmax.xlane.f32.xlu0 %v5618
      %v5620 = vpop.xlane.xlu0 %5619
      %v5621 = vsel %vm366, %v5477, -inf
      %5622 = vmax.xlane.f32.xlu0 %v5621
      %v5623 = vpop.xlane.xlu0 %5622
      %v5624 = vsel %vm366, %v5478, -inf
      %5625 = vmax.xlane.f32.xlu0 %v5624
      %v5626 = vpop.xlane.xlu0 %5625
      %v5627 = vsel %vm366, %v5479, -inf
      %5628 = vmax.xlane.f32.xlu0 %v5627
      %v5629 = vpop.xlane.xlu0 %5628
      %v5630 = vsel %vm366, %v5480, -inf
      %5631 = vmax.xlane.f32.xlu0 %v5630
      %v5632 = vpop.xlane.xlu0 %5631
      %v5633 = vsel %vm366, %v5481, -inf
      %5634 = vmax.xlane.f32.xlu0 %v5633
      %v5635 = vpop.xlane.xlu0 %5634
      %v5636 = vsel %vm366, %v5482, -inf
      %5637 = vmax.xlane.f32.xlu0 %v5636
      %v5638 = vpop.xlane.xlu0 %5637
      %v5639 = vsel %vm366, %v5483, -inf
      %5640 = vmax.xlane.f32.xlu0 %v5639
      %v5641 = vpop.xlane.xlu0 %5640
      %v5642 = vsel %vm366, %v5484, -inf
      %5643 = vmax.xlane.f32.xlu0 %v5642
      %v5644 = vpop.xlane.xlu0 %5643
      %v5645 = vsel %vm366, %v5485, -inf
      %5646 = vmax.xlane.f32.xlu0 %v5645
      %v5647 = vpop.xlane.xlu0 %5646
      %v5648 = vsel %vm366, %v5486, -inf
      %5649 = vmax.xlane.f32.xlu0 %v5648
      %v5650 = vpop.xlane.xlu0 %5649
      %v5651 = vsel %vm366, %v5487, -inf
      %5652 = vmax.xlane.f32.xlu0 %v5651
      %v5653 = vpop.xlane.xlu0 %5652
      %v5654 = vsel %vm366, %v5488, -inf
      %5655 = vmax.xlane.f32.xlu0 %v5654
      %v5656 = vpop.xlane.xlu0 %5655
      %v5657 = vsel %vm366, %v5489, -inf
      %5658 = vmax.xlane.f32.xlu0 %v5657
      %v5659 = vpop.xlane.xlu0 %5658
      %v5660 = vsel %vm366, %v5490, -inf
      %5661 = vmax.xlane.f32.xlu0 %v5660
      %v5662 = vpop.xlane.xlu0 %5661
      %v5663 = vsel %vm366, %v5491, -inf
      %5664 = vmax.xlane.f32.xlu0 %v5663
      %v5665 = vpop.xlane.xlu0 %5664
      %v5666 = vsel %vm366, %v5492, -inf
      %5667 = vmax.xlane.f32.xlu0 %v5666
      %v5668 = vpop.xlane.xlu0 %5667
      %v5669 = vsel %vm366, %v5493, -inf
      %5670 = vmax.xlane.f32.xlu0 %v5669
      %v5671 = vpop.xlane.xlu0 %5670
      %v5672 = vsel %vm366, %v5494, -inf
      %5673 = vmax.xlane.f32.xlu0 %v5672
      %v5674 = vpop.xlane.xlu0 %5673
      %v5675 = vsel %vm366, %v5495, -inf
      %5676 = vmax.xlane.f32.xlu0 %v5675
      %v5677 = vpop.xlane.xlu0 %5676
      %v5678 = vsel %vm366, %v5496, -inf
      %5679 = vmax.xlane.f32.xlu0 %v5678
      %v5680 = vpop.xlane.xlu0 %5679
      %v5681 = vsel %vm366, %v5497, -inf
      %5682 = vmax.xlane.f32.xlu0 %v5681
      %v5683 = vpop.xlane.xlu0 %5682
      %v5684 = vsel %vm366, %v5498, -inf
      %5685 = vmax.xlane.f32.xlu0 %v5684
      %v5686 = vpop.xlane.xlu0 %5685
      %v5687 = vsel %vm366, %v5499, -inf
      %5688 = vmax.xlane.f32.xlu0 %v5687
      %v5689 = vpop.xlane.xlu0 %5688
      %v5690 = vsel %vm366, %v5500, -inf
      %5691 = vmax.xlane.f32.xlu0 %v5690
      %v5692 = vpop.xlane.xlu0 %5691
      %v5693 = vsel %vm366, %v5501, -inf
      %5694 = vmax.xlane.f32.xlu0 %v5693
      %v5695 = vpop.xlane.xlu0 %5694
      %v5696 = vsel %vm366, %v5502, -inf
      %5697 = vmax.xlane.f32.xlu0 %v5696
      %v5698 = vpop.xlane.xlu0 %5697
      %v5699 = vsel %vm366, %v5503, -inf
      %5700 = vmax.xlane.f32.xlu0 %v5699
      %v5701 = vpop.xlane.xlu0 %5700
      %v5702 = vsel %vm366, %v5504, -inf
      %5703 = vmax.xlane.f32.xlu0 %v5702
      %v5704 = vpop.xlane.xlu0 %5703
      %v5705 = vsel %vm366, %v5505, -inf
      %5706 = vmax.xlane.f32.xlu0 %v5705
      %v5707 = vpop.xlane.xlu0 %5706
      %v5708 = vsel %vm366, %v5506, -inf
      %5709 = vmax.xlane.f32.xlu0 %v5708
      %v5710 = vpop.xlane.xlu0 %5709
      %v5711 = vsel %vm366, %v5507, -inf
      %5712 = vmax.xlane.f32.xlu0 %v5711
      %v5713 = vpop.xlane.xlu0 %5712
      %v5714 = vsel %vm366, %v5508, -inf
      %5715 = vmax.xlane.f32.xlu0 %v5714
      %v5716 = vpop.xlane.xlu0 %5715
      %v5717 = vsel %vm366, %v5509, -inf
      %5718 = vmax.xlane.f32.xlu0 %v5717
      %v5719 = vpop.xlane.xlu0 %5718
      %v5720 = vsel %vm366, %v5510, -inf
      %5721 = vmax.xlane.f32.xlu0 %v5720
      %v5722 = vpop.xlane.xlu0 %5721
      %v5723 = vsel %vm366, %v5511, -inf
      %5724 = vmax.xlane.f32.xlu0 %v5723
      %v5725 = vpop.xlane.xlu0 %5724
      %v5726 = vsel %vm366, %v5512, -inf
      %5727 = vmax.xlane.f32.xlu0 %v5726
      %v5728 = vpop.xlane.xlu0 %5727
      %v5729 = vsel %vm366, %v5513, -inf
      %5730 = vmax.xlane.f32.xlu0 %v5729
      %v5731 = vpop.xlane.xlu0 %5730
      %v5732 = vsel %vm366, %v5514, -inf
      %5733 = vmax.xlane.f32.xlu0 %v5732
      %v5734 = vpop.xlane.xlu0 %5733
      %v5735 = vsel %vm366, %v5515, -inf
      %5736 = vmax.xlane.f32.xlu0 %v5735
      %v5737 = vpop.xlane.xlu0 %5736
      %v5738 = vsel %vm366, %v5516, -inf
      %5739 = vmax.xlane.f32.xlu0 %v5738
      %v5740 = vpop.xlane.xlu0 %5739
      %v5741 = vsel %vm366, %v5517, -inf
      %5742 = vmax.xlane.f32.xlu0 %v5741
      %v5743 = vpop.xlane.xlu0 %5742
      %v5744 = vsel %vm366, %v5518, -inf
      %5745 = vmax.xlane.f32.xlu0 %v5744
      %v5746 = vpop.xlane.xlu0 %5745
      %v5747 = vsel %vm366, %v5519, -inf
      %5748 = vmax.xlane.f32.xlu0 %v5747
      %v5749 = vpop.xlane.xlu0 %5748
      %v5750 = vsel %vm366, %v5520, -inf
      %5751 = vmax.xlane.f32.xlu0 %v5750
      %v5752 = vpop.xlane.xlu0 %5751
      %v5753 = vsel %vm366, %v5521, -inf
      %5754 = vmax.xlane.f32.xlu0 %v5753
      %v5755 = vpop.xlane.xlu0 %5754
      %v5756 = vsel %vm366, %v5522, -inf
      %5757 = vmax.xlane.f32.xlu0 %v5756
      %v5758 = vpop.xlane.xlu0 %5757
      %v5759 = vsel %vm366, %v5523, -inf
      %5760 = vmax.xlane.f32.xlu0 %v5759
      %v5761 = vpop.xlane.xlu0 %5760
      %v5762 = vsel %vm366, %v5524, -inf
      %5763 = vmax.xlane.f32.xlu0 %v5762
      %v5764 = vpop.xlane.xlu0 %5763
      %v5765 = vsel %vm366, %v5525, -inf
      %5766 = vmax.xlane.f32.xlu0 %v5765
      %v5767 = vpop.xlane.xlu0 %5766
      %v5768 = vsel %vm366, %v5526, -inf
      %5769 = vmax.xlane.f32.xlu0 %v5768
      %v5770 = vpop.xlane.xlu0 %5769
      %v5771 = vsel %vm366, %v5527, -inf
      %5772 = vmax.xlane.f32.xlu0 %v5771
      %v5773 = vpop.xlane.xlu0 %5772
      %v5774 = vsel %vm366, %v5528, -inf
      %5775 = vmax.xlane.f32.xlu0 %v5774
      %v5776 = vpop.xlane.xlu0 %5775
      %v5777 = vsel %vm366, %v5529, -inf
      %5778 = vmax.xlane.f32.xlu0 %v5777
      %v5779 = vpop.xlane.xlu0 %5778
      %v5780 = vsel %vm366, %v5530, -inf
      %5781 = vmax.xlane.f32.xlu0 %v5780
      %v5782 = vpop.xlane.xlu0 %5781
      %v5783 = vsel %vm366, %v5531, -inf
      %5784 = vmax.xlane.f32.xlu0 %v5783
      %v5785 = vpop.xlane.xlu0 %5784
      %v5786 = vsel %vm366, %v5532, -inf
      %5787 = vmax.xlane.f32.xlu0 %v5786
      %v5788 = vpop.xlane.xlu0 %5787
      %v5789 = vsel %vm366, %v5533, -inf
      %5790 = vmax.xlane.f32.xlu0 %v5789
      %v5791 = vpop.xlane.xlu0 %5790
      %v5792 = vsel %vm366, %v5534, -inf
      %5793 = vmax.xlane.f32.xlu0 %v5792
      %v5794 = vpop.xlane.xlu0 %5793
      %v5795 = vsel %vm366, %v5535, -inf
      %5796 = vmax.xlane.f32.xlu0 %v5795
      %v5797 = vpop.xlane.xlu0 %5796
      %v5798 = vsel %vm366, %v5536, -inf
      %5799 = vmax.xlane.f32.xlu0 %v5798
      %v5800 = vpop.xlane.xlu0 %5799
      %v5801 = vsel %vm366, %v5537, -inf
      %5802 = vmax.xlane.f32.xlu0 %v5801
      %v5803 = vpop.xlane.xlu0 %5802
      %v5804 = vsel %vm366, %v5538, -inf
      %5805 = vmax.xlane.f32.xlu0 %v5804
      %v5806 = vpop.xlane.xlu0 %5805
      %v5807 = vsel %vm366, %v5539, -inf
      %5808 = vmax.xlane.f32.xlu0 %v5807
      %v5809 = vpop.xlane.xlu0 %5808
      %v5810 = vsel %vm366, %v5540, -inf
      %5811 = vmax.xlane.f32.xlu0 %v5810
      %v5812 = vpop.xlane.xlu0 %5811
      %v5813 = vsel %vm366, %v5541, -inf
      %5814 = vmax.xlane.f32.xlu0 %v5813
      %v5815 = vpop.xlane.xlu0 %5814
      %v5816 = vsel %vm366, %v5542, -inf
      %5817 = vmax.xlane.f32.xlu0 %v5816
      %v5818 = vpop.xlane.xlu0 %5817
      %v5819 = vsel %vm366, %v5543, -inf
      %5820 = vmax.xlane.f32.xlu0 %v5819
      %v5821 = vpop.xlane.xlu0 %5820
      %v5822 = vsel %vm366, %v5544, -inf
      %5823 = vmax.xlane.f32.xlu0 %v5822
      %v5824 = vpop.xlane.xlu0 %5823
      %v5825 = vsel %vm366, %v5545, -inf
      %5826 = vmax.xlane.f32.xlu0 %v5825
      %v5827 = vpop.xlane.xlu0 %5826
      %v5828 = vsel %vm366, %v5546, -inf
      %5829 = vmax.xlane.f32.xlu0 %v5828
      %v5830 = vpop.xlane.xlu0 %5829
      %v5831 = vsel %vm366, %v5547, -inf
      %5832 = vmax.xlane.f32.xlu0 %v5831
      %v5833 = vpop.xlane.xlu0 %5832
      %v5834 = vsel %vm366, %v5548, -inf
      %5835 = vmax.xlane.f32.xlu0 %v5834
      %v5836 = vpop.xlane.xlu0 %5835
      %v5837 = vsel %vm366, %v5549, -inf
      %5838 = vmax.xlane.f32.xlu0 %v5837
      %v5839 = vpop.xlane.xlu0 %5838
      %v5840 = vsel %vm366, %v5550, -inf
      %5841 = vmax.xlane.f32.xlu0 %v5840
      %v5842 = vpop.xlane.xlu0 %5841
      %v5843 = vsel %vm366, %v5551, -inf
      %5844 = vmax.xlane.f32.xlu0 %v5843
      %v5845 = vpop.xlane.xlu0 %5844
      %v5846 = vsel %vm366, %v5552, -inf
      %5847 = vmax.xlane.f32.xlu0 %v5846
      %v5848 = vpop.xlane.xlu0 %5847
      %v5849 = vsel %vm366, %v5553, -inf
      %5850 = vmax.xlane.f32.xlu0 %v5849
      %v5851 = vpop.xlane.xlu0 %5850
      %v5852 = vsel %vm366, %v5554, -inf
      %5853 = vmax.xlane.f32.xlu0 %v5852
      %v5854 = vpop.xlane.xlu0 %5853
      %v5855 = vsel %vm366, %v5555, -inf
      %5856 = vmax.xlane.f32.xlu0 %v5855
      %v5857 = vpop.xlane.xlu0 %5856
      %v5858 = vsel %vm366, %v5556, -inf
      %5859 = vmax.xlane.f32.xlu0 %v5858
      %v5860 = vpop.xlane.xlu0 %5859
      %v5861 = vsel %vm366, %v5557, -inf
      %5862 = vmax.xlane.f32.xlu0 %v5861
      %v5863 = vpop.xlane.xlu0 %5862
      %v5864 = vsel %vm366, %v5558, -inf
      %5865 = vmax.xlane.f32.xlu0 %v5864
      %v5866 = vpop.xlane.xlu0 %5865
      %v5867 = vsel %vm366, %v5559, -inf
      %5868 = vmax.xlane.f32.xlu0 %v5867
      %v5869 = vpop.xlane.xlu0 %5868
      %v5870 = vsel %vm366, %v5560, -inf
      %5871 = vmax.xlane.f32.xlu0 %v5870
      %v5872 = vpop.xlane.xlu0 %5871
      %v5873 = vsel %vm366, %v5561, -inf
      %5874 = vmax.xlane.f32.xlu0 %v5873
      %v5875 = vpop.xlane.xlu0 %5874
      %v5876 = vsel %vm366, %v5562, -inf
      %5877 = vmax.xlane.f32.xlu0 %v5876
      %v5878 = vpop.xlane.xlu0 %5877
      %v5879 = vsel %vm366, %v5563, -inf
      %5880 = vmax.xlane.f32.xlu0 %v5879
      %v5881 = vpop.xlane.xlu0 %5880
      %v5882 = vsel %vm366, %v5564, -inf
      %5883 = vmax.xlane.f32.xlu0 %v5882
      %v5884 = vpop.xlane.xlu0 %5883
      %v5885 = vsel %vm366, %v5565, -inf
      %5886 = vmax.xlane.f32.xlu0 %v5885
      %v5887 = vpop.xlane.xlu0 %5886
      %v5888 = vsel %vm366, %v5566, -inf
      %5889 = vmax.xlane.f32.xlu0 %v5888
      %v5890 = vpop.xlane.xlu0 %5889
      %v5891 = vsel %vm366, %v5567, -inf
      %5892 = vmax.xlane.f32.xlu0 %v5891
      %v5893 = vpop.xlane.xlu0 %5892
      %v5894 = vsel %vm366, %v5568, -inf
      %5895 = vmax.xlane.f32.xlu0 %v5894
      %v5896 = vpop.xlane.xlu0 %5895
      %v5897 = vsel %vm366, %v5569, -inf
      %5898 = vmax.xlane.f32.xlu0 %v5897
      %v5899 = vpop.xlane.xlu0 %5898
      %v5900 = vsel %vm366, %v5570, -inf
      %5901 = vmax.xlane.f32.xlu0 %v5900
      %v5902 = vpop.xlane.xlu0 %5901
      %v5903 = vsel %vm366, %v5571, -inf
      %5904 = vmax.xlane.f32.xlu0 %v5903
      %v5905 = vpop.xlane.xlu0 %5904
      %v5906 = vsel %vm366, %v5572, -inf
      %5907 = vmax.xlane.f32.xlu0 %v5906
      %v5908 = vpop.xlane.xlu0 %5907
      %v5909 = vsel %vm366, %v5573, -inf
      %5910 = vmax.xlane.f32.xlu0 %v5909
      %v5911 = vpop.xlane.xlu0 %5910
      %v5912 = vsel %vm366, %v5574, -inf
      %5913 = vmax.xlane.f32.xlu0 %v5912
      %v5914 = vpop.xlane.xlu0 %5913
      %v5915 = vsel %vm366, %v5575, -inf
      %5916 = vmax.xlane.f32.xlu0 %v5915
      %v5917 = vpop.xlane.xlu0 %5916
      %v5918 = vsel %vm366, %v5576, -inf
      %5919 = vmax.xlane.f32.xlu0 %v5918
      %v5920 = vpop.xlane.xlu0 %5919
      %v5921 = vsel %vm366, %v5577, -inf
      %5922 = vmax.xlane.f32.xlu0 %v5921
      %v5923 = vpop.xlane.xlu0 %5922
      %v5924 = vsel %vm366, %v5578, -inf
      %5925 = vmax.xlane.f32.xlu0 %v5924
      %v5926 = vpop.xlane.xlu0 %5925
      %v5927 = vsel %vm366, %v5579, -inf
      %5928 = vmax.xlane.f32.xlu0 %v5927
      %v5929 = vpop.xlane.xlu0 %5928
      %v5930 = vsel %vm366, %v5580, -inf
      %5931 = vmax.xlane.f32.xlu0 %v5930
      %v5932 = vpop.xlane.xlu0 %5931
      %v5933 = vsel %vm366, %v5581, -inf
      %5934 = vmax.xlane.f32.xlu0 %v5933
      %v5935 = vpop.xlane.xlu0 %5934
      %v5936 = vsel %vm366, %v5582, -inf
      %5937 = vmax.xlane.f32.xlu0 %v5936
      %v5938 = vpop.xlane.xlu0 %5937
      %v5939 = vsel %vm366, %v5583, -inf
      %5940 = vmax.xlane.f32.xlu0 %v5939
      %v5941 = vpop.xlane.xlu0 %5940
      %v5942 = vsel %vm366, %v5584, -inf
      %5943 = vmax.xlane.f32.xlu0 %v5942
      %v5944 = vpop.xlane.xlu0 %5943
      %v5945 = vsel %vm366, %v5585, -inf
      %5946 = vmax.xlane.f32.xlu0 %v5945
      %v5947 = vpop.xlane.xlu0 %5946
      %v5948 = vsel %vm366, %v5586, -inf
      %5949 = vmax.xlane.f32.xlu0 %v5948
      %v5950 = vpop.xlane.xlu0 %5949
      %v5951 = vsel %vm366, %v5587, -inf
      %5952 = vmax.xlane.f32.xlu0 %v5951
      %v5953 = vpop.xlane.xlu0 %5952
      %v5954 = vsel %vm366, %v5588, -inf
      %5955 = vmax.xlane.f32.xlu0 %v5954
      %v5956 = vpop.xlane.xlu0 %5955
      %v5957 = vsel %vm366, %v5589, -inf
      %5958 = vmax.xlane.f32.xlu0 %v5957
      %v5959 = vpop.xlane.xlu0 %5958
      %v5960 = vsel %vm366, %v5590, -inf
      %5961 = vmax.xlane.f32.xlu0 %v5960
      %v5962 = vpop.xlane.xlu0 %5961
      %v5963 = vsel %vm366, %v5591, -inf
      %5964 = vmax.xlane.f32.xlu0 %v5963
      %v5965 = vpop.xlane.xlu0 %5964
      %v5966 = vsel %vm366, %v5592, -inf
      %5967 = vmax.xlane.f32.xlu0 %v5966
      %v5968 = vpop.xlane.xlu0 %5967
      %v5969 = vsel %vm366, %v5593, -inf
      %5970 = vmax.xlane.f32.xlu0 %v5969
      %v5971 = vpop.xlane.xlu0 %5970
      %v5972 = vsel %vm366, %v5594, -inf
      %5973 = vmax.xlane.f32.xlu0 %v5972
      %v5974 = vpop.xlane.xlu0 %5973
      %v5975 = vsel %vm366, %v5595, -inf
      %5976 = vmax.xlane.f32.xlu0 %v5975
      %v5977 = vpop.xlane.xlu0 %5976
      %v5978 = vsel %vm366, %v5596, -inf
      %5979 = vmax.xlane.f32.xlu0 %v5978
      %v5980 = vpop.xlane.xlu0 %5979
      %v5981 = vsel %vm366, %v5597, -inf
      %5982 = vmax.xlane.f32.xlu0 %v5981
      %v5983 = vpop.xlane.xlu0 %5982
      %vm5984 = vcmp.ge.f32.partialorder %v5470, %v5602
      %vm5985 = vcmp.ge.f32.partialorder %v5471, %v5605
      %vm5986 = vcmp.ge.f32.partialorder %v5472, %v5608
      %vm5987 = vcmp.ge.f32.partialorder %v5473, %v5611
      %vm5988 = vcmp.ge.f32.partialorder %v5474, %v5614
      %vm5989 = vcmp.ge.f32.partialorder %v5475, %v5617
      %vm5990 = vcmp.ge.f32.partialorder %v5476, %v5620
      %vm5991 = vcmp.ge.f32.partialorder %v5477, %v5623
      %vm5992 = vcmp.ge.f32.partialorder %v5478, %v5626
      %vm5993 = vcmp.ge.f32.partialorder %v5479, %v5629
      %vm5994 = vcmp.ge.f32.partialorder %v5480, %v5632
      %vm5995 = vcmp.ge.f32.partialorder %v5481, %v5635
      %vm5996 = vcmp.ge.f32.partialorder %v5482, %v5638
      %vm5997 = vcmp.ge.f32.partialorder %v5483, %v5641
      %vm5998 = vcmp.ge.f32.partialorder %v5484, %v5644
      %vm5999 = vcmp.ge.f32.partialorder %v5485, %v5647
      %vm6000 = vcmp.ge.f32.partialorder %v5486, %v5650
      %vm6001 = vcmp.ge.f32.partialorder %v5487, %v5653
      %vm6002 = vcmp.ge.f32.partialorder %v5488, %v5656
      %vm6003 = vcmp.ge.f32.partialorder %v5489, %v5659
      %vm6004 = vcmp.ge.f32.partialorder %v5490, %v5662
      %vm6005 = vcmp.ge.f32.partialorder %v5491, %v5665
      %vm6006 = vcmp.ge.f32.partialorder %v5492, %v5668
      %vm6007 = vcmp.ge.f32.partialorder %v5493, %v5671
      %vm6008 = vcmp.ge.f32.partialorder %v5494, %v5674
      %vm6009 = vcmp.ge.f32.partialorder %v5495, %v5677
      %vm6010 = vcmp.ge.f32.partialorder %v5496, %v5680
      %vm6011 = vcmp.ge.f32.partialorder %v5497, %v5683
      %vm6012 = vcmp.ge.f32.partialorder %v5498, %v5686
      %vm6013 = vcmp.ge.f32.partialorder %v5499, %v5689
      %vm6014 = vcmp.ge.f32.partialorder %v5500, %v5692
      %vm6015 = vcmp.ge.f32.partialorder %v5501, %v5695
      %vm6016 = vcmp.ge.f32.partialorder %v5502, %v5698
      %vm6017 = vcmp.ge.f32.partialorder %v5503, %v5701
      %vm6018 = vcmp.ge.f32.partialorder %v5504, %v5704
      %vm6019 = vcmp.ge.f32.partialorder %v5505, %v5707
      %vm6020 = vcmp.ge.f32.partialorder %v5506, %v5710
      %vm6021 = vcmp.ge.f32.partialorder %v5507, %v5713
      %vm6022 = vcmp.ge.f32.partialorder %v5508, %v5716
      %vm6023 = vcmp.ge.f32.partialorder %v5509, %v5719
      %vm6024 = vcmp.ge.f32.partialorder %v5510, %v5722
      %vm6025 = vcmp.ge.f32.partialorder %v5511, %v5725
      %vm6026 = vcmp.ge.f32.partialorder %v5512, %v5728
      %vm6027 = vcmp.ge.f32.partialorder %v5513, %v5731
      %vm6028 = vcmp.ge.f32.partialorder %v5514, %v5734
      %vm6029 = vcmp.ge.f32.partialorder %v5515, %v5737
      %vm6030 = vcmp.ge.f32.partialorder %v5516, %v5740
      %vm6031 = vcmp.ge.f32.partialorder %v5517, %v5743
      %vm6032 = vcmp.ge.f32.partialorder %v5518, %v5746
      %vm6033 = vcmp.ge.f32.partialorder %v5519, %v5749
      %vm6034 = vcmp.ge.f32.partialorder %v5520, %v5752
      %vm6035 = vcmp.ge.f32.partialorder %v5521, %v5755
      %vm6036 = vcmp.ge.f32.partialorder %v5522, %v5758
      %vm6037 = vcmp.ge.f32.partialorder %v5523, %v5761
      %vm6038 = vcmp.ge.f32.partialorder %v5524, %v5764
      %vm6039 = vcmp.ge.f32.partialorder %v5525, %v5767
      %vm6040 = vcmp.ge.f32.partialorder %v5526, %v5770
      %vm6041 = vcmp.ge.f32.partialorder %v5527, %v5773
      %vm6042 = vcmp.ge.f32.partialorder %v5528, %v5776
      %vm6043 = vcmp.ge.f32.partialorder %v5529, %v5779
      %vm6044 = vcmp.ge.f32.partialorder %v5530, %v5782
      %vm6045 = vcmp.ge.f32.partialorder %v5531, %v5785
      %vm6046 = vcmp.ge.f32.partialorder %v5532, %v5788
      %vm6047 = vcmp.ge.f32.partialorder %v5533, %v5791
      %vm6048 = vcmp.ge.f32.partialorder %v5534, %v5794
      %vm6049 = vcmp.ge.f32.partialorder %v5535, %v5797
      %vm6050 = vcmp.ge.f32.partialorder %v5536, %v5800
      %vm6051 = vcmp.ge.f32.partialorder %v5537, %v5803
      %vm6052 = vcmp.ge.f32.partialorder %v5538, %v5806
      %vm6053 = vcmp.ge.f32.partialorder %v5539, %v5809
      %vm6054 = vcmp.ge.f32.partialorder %v5540, %v5812
      %vm6055 = vcmp.ge.f32.partialorder %v5541, %v5815
      %vm6056 = vcmp.ge.f32.partialorder %v5542, %v5818
      %vm6057 = vcmp.ge.f32.partialorder %v5543, %v5821
      %vm6058 = vcmp.ge.f32.partialorder %v5544, %v5824
      %vm6059 = vcmp.ge.f32.partialorder %v5545, %v5827
      %vm6060 = vcmp.ge.f32.partialorder %v5546, %v5830
      %vm6061 = vcmp.ge.f32.partialorder %v5547, %v5833
      %vm6062 = vcmp.ge.f32.partialorder %v5548, %v5836
      %vm6063 = vcmp.ge.f32.partialorder %v5549, %v5839
      %vm6064 = vcmp.ge.f32.partialorder %v5550, %v5842
      %vm6065 = vcmp.ge.f32.partialorder %v5551, %v5845
      %vm6066 = vcmp.ge.f32.partialorder %v5552, %v5848
      %vm6067 = vcmp.ge.f32.partialorder %v5553, %v5851
      %vm6068 = vcmp.ge.f32.partialorder %v5554, %v5854
      %vm6069 = vcmp.ge.f32.partialorder %v5555, %v5857
      %vm6070 = vcmp.ge.f32.partialorder %v5556, %v5860
      %vm6071 = vcmp.ge.f32.partialorder %v5557, %v5863
      %vm6072 = vcmp.ge.f32.partialorder %v5558, %v5866
      %vm6073 = vcmp.ge.f32.partialorder %v5559, %v5869
      %vm6074 = vcmp.ge.f32.partialorder %v5560, %v5872
      %vm6075 = vcmp.ge.f32.partialorder %v5561, %v5875
      %vm6076 = vcmp.ge.f32.partialorder %v5562, %v5878
      %vm6077 = vcmp.ge.f32.partialorder %v5563, %v5881
      %vm6078 = vcmp.ge.f32.partialorder %v5564, %v5884
      %vm6079 = vcmp.ge.f32.partialorder %v5565, %v5887
      %vm6080 = vcmp.ge.f32.partialorder %v5566, %v5890
      %vm6081 = vcmp.ge.f32.partialorder %v5567, %v5893
      %vm6082 = vcmp.ge.f32.partialorder %v5568, %v5896
      %vm6083 = vcmp.ge.f32.partialorder %v5569, %v5899
      %vm6084 = vcmp.ge.f32.partialorder %v5570, %v5902
      %vm6085 = vcmp.ge.f32.partialorder %v5571, %v5905
      %vm6086 = vcmp.ge.f32.partialorder %v5572, %v5908
      %vm6087 = vcmp.ge.f32.partialorder %v5573, %v5911
      %vm6088 = vcmp.ge.f32.partialorder %v5574, %v5914
      %vm6089 = vcmp.ge.f32.partialorder %v5575, %v5917
      %vm6090 = vcmp.ge.f32.partialorder %v5576, %v5920
      %vm6091 = vcmp.ge.f32.partialorder %v5577, %v5923
      %vm6092 = vcmp.ge.f32.partialorder %v5578, %v5926
      %vm6093 = vcmp.ge.f32.partialorder %v5579, %v5929
      %vm6094 = vcmp.ge.f32.partialorder %v5580, %v5932
      %vm6095 = vcmp.ge.f32.partialorder %v5581, %v5935
      %vm6096 = vcmp.ge.f32.partialorder %v5582, %v5938
      %vm6097 = vcmp.ge.f32.partialorder %v5583, %v5941
      %vm6098 = vcmp.ge.f32.partialorder %v5584, %v5944
      %vm6099 = vcmp.ge.f32.partialorder %v5585, %v5947
      %vm6100 = vcmp.ge.f32.partialorder %v5586, %v5950
      %vm6101 = vcmp.ge.f32.partialorder %v5587, %v5953
      %vm6102 = vcmp.ge.f32.partialorder %v5588, %v5956
      %vm6103 = vcmp.ge.f32.partialorder %v5589, %v5959
      %vm6104 = vcmp.ge.f32.partialorder %v5590, %v5962
      %vm6105 = vcmp.ge.f32.partialorder %v5591, %v5965
      %vm6106 = vcmp.ge.f32.partialorder %v5592, %v5968
      %vm6107 = vcmp.ge.f32.partialorder %v5593, %v5971
      %vm6108 = vcmp.ge.f32.partialorder %v5594, %v5974
      %vm6109 = vcmp.ge.f32.partialorder %v5595, %v5977
      %vm6110 = vcmp.ge.f32.partialorder %v5596, %v5980
      %vm6111 = vcmp.ge.f32.partialorder %v5597, %v5983
      %v6112 = vsel %vm5984, %v5599, 8
      %v6113 = vsel %vm5985, %v5599, 8
      %v6114 = vsel %vm5986, %v5599, 8
      %v6115 = vsel %vm5987, %v5599, 8
      %v6116 = vsel %vm5988, %v5599, 8
      %v6117 = vsel %vm5989, %v5599, 8
      %v6118 = vsel %vm5990, %v5599, 8
      %v6119 = vsel %vm5991, %v5599, 8
      %v6120 = vsel %vm5992, %v5599, 8
      %v6121 = vsel %vm5993, %v5599, 8
      %v6122 = vsel %vm5994, %v5599, 8
      %v6123 = vsel %vm5995, %v5599, 8
      %v6124 = vsel %vm5996, %v5599, 8
      %v6125 = vsel %vm5997, %v5599, 8
      %v6126 = vsel %vm5998, %v5599, 8
      %v6127 = vsel %vm5999, %v5599, 8
      %v6128 = vsel %vm6000, %v5599, 8
      %v6129 = vsel %vm6001, %v5599, 8
      %v6130 = vsel %vm6002, %v5599, 8
      %v6131 = vsel %vm6003, %v5599, 8
      %v6132 = vsel %vm6004, %v5599, 8
      %v6133 = vsel %vm6005, %v5599, 8
      %v6134 = vsel %vm6006, %v5599, 8
      %v6135 = vsel %vm6007, %v5599, 8
      %v6136 = vsel %vm6008, %v5599, 8
      %v6137 = vsel %vm6009, %v5599, 8
      %v6138 = vsel %vm6010, %v5599, 8
      %v6139 = vsel %vm6011, %v5599, 8
      %v6140 = vsel %vm6012, %v5599, 8
      %v6141 = vsel %vm6013, %v5599, 8
      %v6142 = vsel %vm6014, %v5599, 8
      %v6143 = vsel %vm6015, %v5599, 8
      %v6144 = vsel %vm6016, %v5599, 8
      %v6145 = vsel %vm6017, %v5599, 8
      %v6146 = vsel %vm6018, %v5599, 8
      %v6147 = vsel %vm6019, %v5599, 8
      %v6148 = vsel %vm6020, %v5599, 8
      %v6149 = vsel %vm6021, %v5599, 8
      %v6150 = vsel %vm6022, %v5599, 8
      %v6151 = vsel %vm6023, %v5599, 8
      %v6152 = vsel %vm6024, %v5599, 8
      %v6153 = vsel %vm6025, %v5599, 8
      %v6154 = vsel %vm6026, %v5599, 8
      %v6155 = vsel %vm6027, %v5599, 8
      %v6156 = vsel %vm6028, %v5599, 8
      %v6157 = vsel %vm6029, %v5599, 8
      %v6158 = vsel %vm6030, %v5599, 8
      %v6159 = vsel %vm6031, %v5599, 8
      %v6160 = vsel %vm6032, %v5599, 8
      %v6161 = vsel %vm6033, %v5599, 8
      %v6162 = vsel %vm6034, %v5599, 8
      %v6163 = vsel %vm6035, %v5599, 8
      %v6164 = vsel %vm6036, %v5599, 8
      %v6165 = vsel %vm6037, %v5599, 8
      %v6166 = vsel %vm6038, %v5599, 8
      %v6167 = vsel %vm6039, %v5599, 8
      %v6168 = vsel %vm6040, %v5599, 8
      %v6169 = vsel %vm6041, %v5599, 8
      %v6170 = vsel %vm6042, %v5599, 8
      %v6171 = vsel %vm6043, %v5599, 8
      %v6172 = vsel %vm6044, %v5599, 8
      %v6173 = vsel %vm6045, %v5599, 8
      %v6174 = vsel %vm6046, %v5599, 8
      %v6175 = vsel %vm6047, %v5599, 8
      %v6176 = vsel %vm6048, %v5599, 8
      %v6177 = vsel %vm6049, %v5599, 8
      %v6178 = vsel %vm6050, %v5599, 8
      %v6179 = vsel %vm6051, %v5599, 8
      %v6180 = vsel %vm6052, %v5599, 8
      %v6181 = vsel %vm6053, %v5599, 8
      %v6182 = vsel %vm6054, %v5599, 8
      %v6183 = vsel %vm6055, %v5599, 8
      %v6184 = vsel %vm6056, %v5599, 8
      %v6185 = vsel %vm6057, %v5599, 8
      %v6186 = vsel %vm6058, %v5599, 8
      %v6187 = vsel %vm6059, %v5599, 8
      %v6188 = vsel %vm6060, %v5599, 8
      %v6189 = vsel %vm6061, %v5599, 8
      %v6190 = vsel %vm6062, %v5599, 8
      %v6191 = vsel %vm6063, %v5599, 8
      %v6192 = vsel %vm6064, %v5599, 8
      %v6193 = vsel %vm6065, %v5599, 8
      %v6194 = vsel %vm6066, %v5599, 8
      %v6195 = vsel %vm6067, %v5599, 8
      %v6196 = vsel %vm6068, %v5599, 8
      %v6197 = vsel %vm6069, %v5599, 8
      %v6198 = vsel %vm6070, %v5599, 8
      %v6199 = vsel %vm6071, %v5599, 8
      %v6200 = vsel %vm6072, %v5599, 8
      %v6201 = vsel %vm6073, %v5599, 8
      %v6202 = vsel %vm6074, %v5599, 8
      %v6203 = vsel %vm6075, %v5599, 8
      %v6204 = vsel %vm6076, %v5599, 8
      %v6205 = vsel %vm6077, %v5599, 8
      %v6206 = vsel %vm6078, %v5599, 8
      %v6207 = vsel %vm6079, %v5599, 8
      %v6208 = vsel %vm6080, %v5599, 8
      %v6209 = vsel %vm6081, %v5599, 8
      %v6210 = vsel %vm6082, %v5599, 8
      %v6211 = vsel %vm6083, %v5599, 8
      %v6212 = vsel %vm6084, %v5599, 8
      %v6213 = vsel %vm6085, %v5599, 8
      %v6214 = vsel %vm6086, %v5599, 8
      %v6215 = vsel %vm6087, %v5599, 8
      %v6216 = vsel %vm6088, %v5599, 8
      %v6217 = vsel %vm6089, %v5599, 8
      %v6218 = vsel %vm6090, %v5599, 8
      %v6219 = vsel %vm6091, %v5599, 8
      %v6220 = vsel %vm6092, %v5599, 8
      %v6221 = vsel %vm6093, %v5599, 8
      %v6222 = vsel %vm6094, %v5599, 8
      %v6223 = vsel %vm6095, %v5599, 8
      %v6224 = vsel %vm6096, %v5599, 8
      %v6225 = vsel %vm6097, %v5599, 8
      %v6226 = vsel %vm6098, %v5599, 8
      %v6227 = vsel %vm6099, %v5599, 8
      %v6228 = vsel %vm6100, %v5599, 8
      %v6229 = vsel %vm6101, %v5599, 8
      %v6230 = vsel %vm6102, %v5599, 8
      %v6231 = vsel %vm6103, %v5599, 8
      %v6232 = vsel %vm6104, %v5599, 8
      %v6233 = vsel %vm6105, %v5599, 8
      %v6234 = vsel %vm6106, %v5599, 8
      %v6235 = vsel %vm6107, %v5599, 8
      %v6236 = vsel %vm6108, %v5599, 8
      %v6237 = vsel %vm6109, %v5599, 8
      %v6238 = vsel %vm6110, %v5599, 8
      %v6239 = vsel %vm6111, %v5599, 8
      %v6240 = vsel %vm366, %v6112, 2147483647
      %v6241 = vand.u32 %v6240, 65535
      %v6242 = vshra.s32 %v6240, 16
      %v6243 = vcvt.s32.f32 %v6241
      %v6244 = vcvt.s32.f32 %v6242
      %6245 = vmin.xlane.f32.xlu0 %v6244
      %v6246 = vpop.xlane.xlu0 %6245
      %vm6247 = vcmp.eq.f32.partialorder %v6244, %v6246
      %v6248 = vsel %vm6247, %v6243, inf
      %6249 = vmin.xlane.f32.xlu0 %v6248
      %v6250 = vpop.xlane.xlu0 %6249
      %v6251 = vcvt.f32.s32 %v6250
      %v6252 = vcvt.f32.s32 %v6246
      %v6253 = vshll.u32 %v6252, 16
      %v6254 = vadd.s32 %v6253, %v6251
      %v6255 = vsel %vm366, %v6113, 2147483647
      %v6256 = vand.u32 %v6255, 65535
      %v6257 = vshra.s32 %v6255, 16
      %v6258 = vcvt.s32.f32 %v6256
      %v6259 = vcvt.s32.f32 %v6257
      %6260 = vmin.xlane.f32.xlu0 %v6259
      %v6261 = vpop.xlane.xlu0 %6260
      %vm6262 = vcmp.eq.f32.partialorder %v6259, %v6261
      %v6263 = vsel %vm6262, %v6258, inf
      %6264 = vmin.xlane.f32.xlu0 %v6263
      %v6265 = vpop.xlane.xlu0 %6264
      %v6266 = vcvt.f32.s32 %v6265
      %v6267 = vcvt.f32.s32 %v6261
      %v6268 = vshll.u32 %v6267, 16
      %v6269 = vadd.s32 %v6268, %v6266
      %v6270 = vsel %vm366, %v6114, 2147483647
      %v6271 = vand.u32 %v6270, 65535
      %v6272 = vshra.s32 %v6270, 16
      %v6273 = vcvt.s32.f32 %v6271
      %v6274 = vcvt.s32.f32 %v6272
      %6275 = vmin.xlane.f32.xlu0 %v6274
      %v6276 = vpop.xlane.xlu0 %6275
      %vm6277 = vcmp.eq.f32.partialorder %v6274, %v6276
      %v6278 = vsel %vm6277, %v6273, inf
      %6279 = vmin.xlane.f32.xlu0 %v6278
      %v6280 = vpop.xlane.xlu0 %6279
      %v6281 = vcvt.f32.s32 %v6280
      %v6282 = vcvt.f32.s32 %v6276
      %v6283 = vshll.u32 %v6282, 16
      %v6284 = vadd.s32 %v6283, %v6281
      %v6285 = vsel %vm366, %v6115, 2147483647
      %v6286 = vand.u32 %v6285, 65535
      %v6287 = vshra.s32 %v6285, 16
      %v6288 = vcvt.s32.f32 %v6286
      %v6289 = vcvt.s32.f32 %v6287
      %6290 = vmin.xlane.f32.xlu0 %v6289
      %v6291 = vpop.xlane.xlu0 %6290
      %vm6292 = vcmp.eq.f32.partialorder %v6289, %v6291
      %v6293 = vsel %vm6292, %v6288, inf
      %6294 = vmin.xlane.f32.xlu0 %v6293
      %v6295 = vpop.xlane.xlu0 %6294
      %v6296 = vcvt.f32.s32 %v6295
      %v6297 = vcvt.f32.s32 %v6291
      %v6298 = vshll.u32 %v6297, 16
      %v6299 = vadd.s32 %v6298, %v6296
      %v6300 = vsel %vm366, %v6116, 2147483647
      %v6301 = vand.u32 %v6300, 65535
      %v6302 = vshra.s32 %v6300, 16
      %v6303 = vcvt.s32.f32 %v6301
      %v6304 = vcvt.s32.f32 %v6302
      %6305 = vmin.xlane.f32.xlu0 %v6304
      %v6306 = vpop.xlane.xlu0 %6305
      %vm6307 = vcmp.eq.f32.partialorder %v6304, %v6306
      %v6308 = vsel %vm6307, %v6303, inf
      %6309 = vmin.xlane.f32.xlu0 %v6308
      %v6310 = vpop.xlane.xlu0 %6309
      %v6311 = vcvt.f32.s32 %v6310
      %v6312 = vcvt.f32.s32 %v6306
      %v6313 = vshll.u32 %v6312, 16
      %v6314 = vadd.s32 %v6313, %v6311
      %v6315 = vsel %vm366, %v6117, 2147483647
      %v6316 = vand.u32 %v6315, 65535
      %v6317 = vshra.s32 %v6315, 16
      %v6318 = vcvt.s32.f32 %v6316
      %v6319 = vcvt.s32.f32 %v6317
      %6320 = vmin.xlane.f32.xlu0 %v6319
      %v6321 = vpop.xlane.xlu0 %6320
      %vm6322 = vcmp.eq.f32.partialorder %v6319, %v6321
      %v6323 = vsel %vm6322, %v6318, inf
      %6324 = vmin.xlane.f32.xlu0 %v6323
      %v6325 = vpop.xlane.xlu0 %6324
      %v6326 = vcvt.f32.s32 %v6325
      %v6327 = vcvt.f32.s32 %v6321
      %v6328 = vshll.u32 %v6327, 16
      %v6329 = vadd.s32 %v6328, %v6326
      %v6330 = vsel %vm366, %v6118, 2147483647
      %v6331 = vand.u32 %v6330, 65535
      %v6332 = vshra.s32 %v6330, 16
      %v6333 = vcvt.s32.f32 %v6331
      %v6334 = vcvt.s32.f32 %v6332
      %6335 = vmin.xlane.f32.xlu0 %v6334
      %v6336 = vpop.xlane.xlu0 %6335
      %vm6337 = vcmp.eq.f32.partialorder %v6334, %v6336
      %v6338 = vsel %vm6337, %v6333, inf
      %6339 = vmin.xlane.f32.xlu0 %v6338
      %v6340 = vpop.xlane.xlu0 %6339
      %v6341 = vcvt.f32.s32 %v6340
      %v6342 = vcvt.f32.s32 %v6336
      %v6343 = vshll.u32 %v6342, 16
      %v6344 = vadd.s32 %v6343, %v6341
      %v6345 = vsel %vm366, %v6119, 2147483647
      %v6346 = vand.u32 %v6345, 65535
      %v6347 = vshra.s32 %v6345, 16
      %v6348 = vcvt.s32.f32 %v6346
      %v6349 = vcvt.s32.f32 %v6347
      %6350 = vmin.xlane.f32.xlu0 %v6349
      %v6351 = vpop.xlane.xlu0 %6350
      %vm6352 = vcmp.eq.f32.partialorder %v6349, %v6351
      %v6353 = vsel %vm6352, %v6348, inf
      %6354 = vmin.xlane.f32.xlu0 %v6353
      %v6355 = vpop.xlane.xlu0 %6354
      %v6356 = vcvt.f32.s32 %v6355
      %v6357 = vcvt.f32.s32 %v6351
      %v6358 = vshll.u32 %v6357, 16
      %v6359 = vadd.s32 %v6358, %v6356
      %v6360 = vsel %vm366, %v6120, 2147483647
      %v6361 = vand.u32 %v6360, 65535
      %v6362 = vshra.s32 %v6360, 16
      %v6363 = vcvt.s32.f32 %v6361
      %v6364 = vcvt.s32.f32 %v6362
      %6365 = vmin.xlane.f32.xlu0 %v6364
      %v6366 = vpop.xlane.xlu0 %6365
      %vm6367 = vcmp.eq.f32.partialorder %v6364, %v6366
      %v6368 = vsel %vm6367, %v6363, inf
      %6369 = vmin.xlane.f32.xlu0 %v6368
      %v6370 = vpop.xlane.xlu0 %6369
      %v6371 = vcvt.f32.s32 %v6370
      %v6372 = vcvt.f32.s32 %v6366
      %v6373 = vshll.u32 %v6372, 16
      %v6374 = vadd.s32 %v6373, %v6371
      %v6375 = vsel %vm366, %v6121, 2147483647
      %v6376 = vand.u32 %v6375, 65535
      %v6377 = vshra.s32 %v6375, 16
      %v6378 = vcvt.s32.f32 %v6376
      %v6379 = vcvt.s32.f32 %v6377
      %6380 = vmin.xlane.f32.xlu0 %v6379
      %v6381 = vpop.xlane.xlu0 %6380
      %vm6382 = vcmp.eq.f32.partialorder %v6379, %v6381
      %v6383 = vsel %vm6382, %v6378, inf
      %6384 = vmin.xlane.f32.xlu0 %v6383
      %v6385 = vpop.xlane.xlu0 %6384
      %v6386 = vcvt.f32.s32 %v6385
      %v6387 = vcvt.f32.s32 %v6381
      %v6388 = vshll.u32 %v6387, 16
      %v6389 = vadd.s32 %v6388, %v6386
      %v6390 = vsel %vm366, %v6122, 2147483647
      %v6391 = vand.u32 %v6390, 65535
      %v6392 = vshra.s32 %v6390, 16
      %v6393 = vcvt.s32.f32 %v6391
      %v6394 = vcvt.s32.f32 %v6392
      %6395 = vmin.xlane.f32.xlu0 %v6394
      %v6396 = vpop.xlane.xlu0 %6395
      %vm6397 = vcmp.eq.f32.partialorder %v6394, %v6396
      %v6398 = vsel %vm6397, %v6393, inf
      %6399 = vmin.xlane.f32.xlu0 %v6398
      %v6400 = vpop.xlane.xlu0 %6399
      %v6401 = vcvt.f32.s32 %v6400
      %v6402 = vcvt.f32.s32 %v6396
      %v6403 = vshll.u32 %v6402, 16
      %v6404 = vadd.s32 %v6403, %v6401
      %v6405 = vsel %vm366, %v6123, 2147483647
      %v6406 = vand.u32 %v6405, 65535
      %v6407 = vshra.s32 %v6405, 16
      %v6408 = vcvt.s32.f32 %v6406
      %v6409 = vcvt.s32.f32 %v6407
      %6410 = vmin.xlane.f32.xlu0 %v6409
      %v6411 = vpop.xlane.xlu0 %6410
      %vm6412 = vcmp.eq.f32.partialorder %v6409, %v6411
      %v6413 = vsel %vm6412, %v6408, inf
      %6414 = vmin.xlane.f32.xlu0 %v6413
      %v6415 = vpop.xlane.xlu0 %6414
      %v6416 = vcvt.f32.s32 %v6415
      %v6417 = vcvt.f32.s32 %v6411
      %v6418 = vshll.u32 %v6417, 16
      %v6419 = vadd.s32 %v6418, %v6416
      %v6420 = vsel %vm366, %v6124, 2147483647
      %v6421 = vand.u32 %v6420, 65535
      %v6422 = vshra.s32 %v6420, 16
      %v6423 = vcvt.s32.f32 %v6421
      %v6424 = vcvt.s32.f32 %v6422
      %6425 = vmin.xlane.f32.xlu0 %v6424
      %v6426 = vpop.xlane.xlu0 %6425
      %vm6427 = vcmp.eq.f32.partialorder %v6424, %v6426
      %v6428 = vsel %vm6427, %v6423, inf
      %6429 = vmin.xlane.f32.xlu0 %v6428
      %v6430 = vpop.xlane.xlu0 %6429
      %v6431 = vcvt.f32.s32 %v6430
      %v6432 = vcvt.f32.s32 %v6426
      %v6433 = vshll.u32 %v6432, 16
      %v6434 = vadd.s32 %v6433, %v6431
      %v6435 = vsel %vm366, %v6125, 2147483647
      %v6436 = vand.u32 %v6435, 65535
      %v6437 = vshra.s32 %v6435, 16
      %v6438 = vcvt.s32.f32 %v6436
      %v6439 = vcvt.s32.f32 %v6437
      %6440 = vmin.xlane.f32.xlu0 %v6439
      %v6441 = vpop.xlane.xlu0 %6440
      %vm6442 = vcmp.eq.f32.partialorder %v6439, %v6441
      %v6443 = vsel %vm6442, %v6438, inf
      %6444 = vmin.xlane.f32.xlu0 %v6443
      %v6445 = vpop.xlane.xlu0 %6444
      %v6446 = vcvt.f32.s32 %v6445
      %v6447 = vcvt.f32.s32 %v6441
      %v6448 = vshll.u32 %v6447, 16
      %v6449 = vadd.s32 %v6448, %v6446
      %v6450 = vsel %vm366, %v6126, 2147483647
      %v6451 = vand.u32 %v6450, 65535
      %v6452 = vshra.s32 %v6450, 16
      %v6453 = vcvt.s32.f32 %v6451
      %v6454 = vcvt.s32.f32 %v6452
      %6455 = vmin.xlane.f32.xlu0 %v6454
      %v6456 = vpop.xlane.xlu0 %6455
      %vm6457 = vcmp.eq.f32.partialorder %v6454, %v6456
      %v6458 = vsel %vm6457, %v6453, inf
      %6459 = vmin.xlane.f32.xlu0 %v6458
      %v6460 = vpop.xlane.xlu0 %6459
      %v6461 = vcvt.f32.s32 %v6460
      %v6462 = vcvt.f32.s32 %v6456
      %v6463 = vshll.u32 %v6462, 16
      %v6464 = vadd.s32 %v6463, %v6461
      %v6465 = vsel %vm366, %v6127, 2147483647
      %v6466 = vand.u32 %v6465, 65535
      %v6467 = vshra.s32 %v6465, 16
      %v6468 = vcvt.s32.f32 %v6466
      %v6469 = vcvt.s32.f32 %v6467
      %6470 = vmin.xlane.f32.xlu0 %v6469
      %v6471 = vpop.xlane.xlu0 %6470
      %vm6472 = vcmp.eq.f32.partialorder %v6469, %v6471
      %v6473 = vsel %vm6472, %v6468, inf
      %6474 = vmin.xlane.f32.xlu0 %v6473
      %v6475 = vpop.xlane.xlu0 %6474
      %v6476 = vcvt.f32.s32 %v6475
      %v6477 = vcvt.f32.s32 %v6471
      %v6478 = vshll.u32 %v6477, 16
      %v6479 = vadd.s32 %v6478, %v6476
      %v6480 = vsel %vm366, %v6128, 2147483647
      %v6481 = vand.u32 %v6480, 65535
      %v6482 = vshra.s32 %v6480, 16
      %v6483 = vcvt.s32.f32 %v6481
      %v6484 = vcvt.s32.f32 %v6482
      %6485 = vmin.xlane.f32.xlu0 %v6484
      %v6486 = vpop.xlane.xlu0 %6485
      %vm6487 = vcmp.eq.f32.partialorder %v6484, %v6486
      %v6488 = vsel %vm6487, %v6483, inf
      %6489 = vmin.xlane.f32.xlu0 %v6488
      %v6490 = vpop.xlane.xlu0 %6489
      %v6491 = vcvt.f32.s32 %v6490
      %v6492 = vcvt.f32.s32 %v6486
      %v6493 = vshll.u32 %v6492, 16
      %v6494 = vadd.s32 %v6493, %v6491
      %v6495 = vsel %vm366, %v6129, 2147483647
      %v6496 = vand.u32 %v6495, 65535
      %v6497 = vshra.s32 %v6495, 16
      %v6498 = vcvt.s32.f32 %v6496
      %v6499 = vcvt.s32.f32 %v6497
      %6500 = vmin.xlane.f32.xlu0 %v6499
      %v6501 = vpop.xlane.xlu0 %6500
      %vm6502 = vcmp.eq.f32.partialorder %v6499, %v6501
      %v6503 = vsel %vm6502, %v6498, inf
      %6504 = vmin.xlane.f32.xlu0 %v6503
      %v6505 = vpop.xlane.xlu0 %6504
      %v6506 = vcvt.f32.s32 %v6505
      %v6507 = vcvt.f32.s32 %v6501
      %v6508 = vshll.u32 %v6507, 16
      %v6509 = vadd.s32 %v6508, %v6506
      %v6510 = vsel %vm366, %v6130, 2147483647
      %v6511 = vand.u32 %v6510, 65535
      %v6512 = vshra.s32 %v6510, 16
      %v6513 = vcvt.s32.f32 %v6511
      %v6514 = vcvt.s32.f32 %v6512
      %6515 = vmin.xlane.f32.xlu0 %v6514
      %v6516 = vpop.xlane.xlu0 %6515
      %vm6517 = vcmp.eq.f32.partialorder %v6514, %v6516
      %v6518 = vsel %vm6517, %v6513, inf
      %6519 = vmin.xlane.f32.xlu0 %v6518
      %v6520 = vpop.xlane.xlu0 %6519
      %v6521 = vcvt.f32.s32 %v6520
      %v6522 = vcvt.f32.s32 %v6516
      %v6523 = vshll.u32 %v6522, 16
      %v6524 = vadd.s32 %v6523, %v6521
      %v6525 = vsel %vm366, %v6131, 2147483647
      %v6526 = vand.u32 %v6525, 65535
      %v6527 = vshra.s32 %v6525, 16
      %v6528 = vcvt.s32.f32 %v6526
      %v6529 = vcvt.s32.f32 %v6527
      %6530 = vmin.xlane.f32.xlu0 %v6529
      %v6531 = vpop.xlane.xlu0 %6530
      %vm6532 = vcmp.eq.f32.partialorder %v6529, %v6531
      %v6533 = vsel %vm6532, %v6528, inf
      %6534 = vmin.xlane.f32.xlu0 %v6533
      %v6535 = vpop.xlane.xlu0 %6534
      %v6536 = vcvt.f32.s32 %v6535
      %v6537 = vcvt.f32.s32 %v6531
      %v6538 = vshll.u32 %v6537, 16
      %v6539 = vadd.s32 %v6538, %v6536
      %v6540 = vsel %vm366, %v6132, 2147483647
      %v6541 = vand.u32 %v6540, 65535
      %v6542 = vshra.s32 %v6540, 16
      %v6543 = vcvt.s32.f32 %v6541
      %v6544 = vcvt.s32.f32 %v6542
      %6545 = vmin.xlane.f32.xlu0 %v6544
      %v6546 = vpop.xlane.xlu0 %6545
      %vm6547 = vcmp.eq.f32.partialorder %v6544, %v6546
      %v6548 = vsel %vm6547, %v6543, inf
      %6549 = vmin.xlane.f32.xlu0 %v6548
      %v6550 = vpop.xlane.xlu0 %6549
      %v6551 = vcvt.f32.s32 %v6550
      %v6552 = vcvt.f32.s32 %v6546
      %v6553 = vshll.u32 %v6552, 16
      %v6554 = vadd.s32 %v6553, %v6551
      %v6555 = vsel %vm366, %v6133, 2147483647
      %v6556 = vand.u32 %v6555, 65535
      %v6557 = vshra.s32 %v6555, 16
      %v6558 = vcvt.s32.f32 %v6556
      %v6559 = vcvt.s32.f32 %v6557
      %6560 = vmin.xlane.f32.xlu0 %v6559
      %v6561 = vpop.xlane.xlu0 %6560
      %vm6562 = vcmp.eq.f32.partialorder %v6559, %v6561
      %v6563 = vsel %vm6562, %v6558, inf
      %6564 = vmin.xlane.f32.xlu0 %v6563
      %v6565 = vpop.xlane.xlu0 %6564
      %v6566 = vcvt.f32.s32 %v6565
      %v6567 = vcvt.f32.s32 %v6561
      %v6568 = vshll.u32 %v6567, 16
      %v6569 = vadd.s32 %v6568, %v6566
      %v6570 = vsel %vm366, %v6134, 2147483647
      %v6571 = vand.u32 %v6570, 65535
      %v6572 = vshra.s32 %v6570, 16
      %v6573 = vcvt.s32.f32 %v6571
      %v6574 = vcvt.s32.f32 %v6572
      %6575 = vmin.xlane.f32.xlu0 %v6574
      %v6576 = vpop.xlane.xlu0 %6575
      %vm6577 = vcmp.eq.f32.partialorder %v6574, %v6576
      %v6578 = vsel %vm6577, %v6573, inf
      %6579 = vmin.xlane.f32.xlu0 %v6578
      %v6580 = vpop.xlane.xlu0 %6579
      %v6581 = vcvt.f32.s32 %v6580
      %v6582 = vcvt.f32.s32 %v6576
      %v6583 = vshll.u32 %v6582, 16
      %v6584 = vadd.s32 %v6583, %v6581
      %v6585 = vsel %vm366, %v6135, 2147483647
      %v6586 = vand.u32 %v6585, 65535
      %v6587 = vshra.s32 %v6585, 16
      %v6588 = vcvt.s32.f32 %v6586
      %v6589 = vcvt.s32.f32 %v6587
      %6590 = vmin.xlane.f32.xlu0 %v6589
      %v6591 = vpop.xlane.xlu0 %6590
      %vm6592 = vcmp.eq.f32.partialorder %v6589, %v6591
      %v6593 = vsel %vm6592, %v6588, inf
      %6594 = vmin.xlane.f32.xlu0 %v6593
      %v6595 = vpop.xlane.xlu0 %6594
      %v6596 = vcvt.f32.s32 %v6595
      %v6597 = vcvt.f32.s32 %v6591
      %v6598 = vshll.u32 %v6597, 16
      %v6599 = vadd.s32 %v6598, %v6596
      %v6600 = vsel %vm366, %v6136, 2147483647
      %v6601 = vand.u32 %v6600, 65535
      %v6602 = vshra.s32 %v6600, 16
      %v6603 = vcvt.s32.f32 %v6601
      %v6604 = vcvt.s32.f32 %v6602
      %6605 = vmin.xlane.f32.xlu0 %v6604
      %v6606 = vpop.xlane.xlu0 %6605
      %vm6607 = vcmp.eq.f32.partialorder %v6604, %v6606
      %v6608 = vsel %vm6607, %v6603, inf
      %6609 = vmin.xlane.f32.xlu0 %v6608
      %v6610 = vpop.xlane.xlu0 %6609
      %v6611 = vcvt.f32.s32 %v6610
      %v6612 = vcvt.f32.s32 %v6606
      %v6613 = vshll.u32 %v6612, 16
      %v6614 = vadd.s32 %v6613, %v6611
      %v6615 = vsel %vm366, %v6137, 2147483647
      %v6616 = vand.u32 %v6615, 65535
      %v6617 = vshra.s32 %v6615, 16
      %v6618 = vcvt.s32.f32 %v6616
      %v6619 = vcvt.s32.f32 %v6617
      %6620 = vmin.xlane.f32.xlu0 %v6619
      %v6621 = vpop.xlane.xlu0 %6620
      %vm6622 = vcmp.eq.f32.partialorder %v6619, %v6621
      %v6623 = vsel %vm6622, %v6618, inf
      %6624 = vmin.xlane.f32.xlu0 %v6623
      %v6625 = vpop.xlane.xlu0 %6624
      %v6626 = vcvt.f32.s32 %v6625
      %v6627 = vcvt.f32.s32 %v6621
      %v6628 = vshll.u32 %v6627, 16
      %v6629 = vadd.s32 %v6628, %v6626
      %v6630 = vsel %vm366, %v6138, 2147483647
      %v6631 = vand.u32 %v6630, 65535
      %v6632 = vshra.s32 %v6630, 16
      %v6633 = vcvt.s32.f32 %v6631
      %v6634 = vcvt.s32.f32 %v6632
      %6635 = vmin.xlane.f32.xlu0 %v6634
      %v6636 = vpop.xlane.xlu0 %6635
      %vm6637 = vcmp.eq.f32.partialorder %v6634, %v6636
      %v6638 = vsel %vm6637, %v6633, inf
      %6639 = vmin.xlane.f32.xlu0 %v6638
      %v6640 = vpop.xlane.xlu0 %6639
      %v6641 = vcvt.f32.s32 %v6640
      %v6642 = vcvt.f32.s32 %v6636
      %v6643 = vshll.u32 %v6642, 16
      %v6644 = vadd.s32 %v6643, %v6641
      %v6645 = vsel %vm366, %v6139, 2147483647
      %v6646 = vand.u32 %v6645, 65535
      %v6647 = vshra.s32 %v6645, 16
      %v6648 = vcvt.s32.f32 %v6646
      %v6649 = vcvt.s32.f32 %v6647
      %6650 = vmin.xlane.f32.xlu0 %v6649
      %v6651 = vpop.xlane.xlu0 %6650
      %vm6652 = vcmp.eq.f32.partialorder %v6649, %v6651
      %v6653 = vsel %vm6652, %v6648, inf
      %6654 = vmin.xlane.f32.xlu0 %v6653
      %v6655 = vpop.xlane.xlu0 %6654
      %v6656 = vcvt.f32.s32 %v6655
      %v6657 = vcvt.f32.s32 %v6651
      %v6658 = vshll.u32 %v6657, 16
      %v6659 = vadd.s32 %v6658, %v6656
      %v6660 = vsel %vm366, %v6140, 2147483647
      %v6661 = vand.u32 %v6660, 65535
      %v6662 = vshra.s32 %v6660, 16
      %v6663 = vcvt.s32.f32 %v6661
      %v6664 = vcvt.s32.f32 %v6662
      %6665 = vmin.xlane.f32.xlu0 %v6664
      %v6666 = vpop.xlane.xlu0 %6665
      %vm6667 = vcmp.eq.f32.partialorder %v6664, %v6666
      %v6668 = vsel %vm6667, %v6663, inf
      %6669 = vmin.xlane.f32.xlu0 %v6668
      %v6670 = vpop.xlane.xlu0 %6669
      %v6671 = vcvt.f32.s32 %v6670
      %v6672 = vcvt.f32.s32 %v6666
      %v6673 = vshll.u32 %v6672, 16
      %v6674 = vadd.s32 %v6673, %v6671
      %v6675 = vsel %vm366, %v6141, 2147483647
      %v6676 = vand.u32 %v6675, 65535
      %v6677 = vshra.s32 %v6675, 16
      %v6678 = vcvt.s32.f32 %v6676
      %v6679 = vcvt.s32.f32 %v6677
      %6680 = vmin.xlane.f32.xlu0 %v6679
      %v6681 = vpop.xlane.xlu0 %6680
      %vm6682 = vcmp.eq.f32.partialorder %v6679, %v6681
      %v6683 = vsel %vm6682, %v6678, inf
      %6684 = vmin.xlane.f32.xlu0 %v6683
      %v6685 = vpop.xlane.xlu0 %6684
      %v6686 = vcvt.f32.s32 %v6685
      %v6687 = vcvt.f32.s32 %v6681
      %v6688 = vshll.u32 %v6687, 16
      %v6689 = vadd.s32 %v6688, %v6686
      %v6690 = vsel %vm366, %v6142, 2147483647
      %v6691 = vand.u32 %v6690, 65535
      %v6692 = vshra.s32 %v6690, 16
      %v6693 = vcvt.s32.f32 %v6691
      %v6694 = vcvt.s32.f32 %v6692
      %6695 = vmin.xlane.f32.xlu0 %v6694
      %v6696 = vpop.xlane.xlu0 %6695
      %vm6697 = vcmp.eq.f32.partialorder %v6694, %v6696
      %v6698 = vsel %vm6697, %v6693, inf
      %6699 = vmin.xlane.f32.xlu0 %v6698
      %v6700 = vpop.xlane.xlu0 %6699
      %v6701 = vcvt.f32.s32 %v6700
      %v6702 = vcvt.f32.s32 %v6696
      %v6703 = vshll.u32 %v6702, 16
      %v6704 = vadd.s32 %v6703, %v6701
      %v6705 = vsel %vm366, %v6143, 2147483647
      %v6706 = vand.u32 %v6705, 65535
      %v6707 = vshra.s32 %v6705, 16
      %v6708 = vcvt.s32.f32 %v6706
      %v6709 = vcvt.s32.f32 %v6707
      %6710 = vmin.xlane.f32.xlu0 %v6709
      %v6711 = vpop.xlane.xlu0 %6710
      %vm6712 = vcmp.eq.f32.partialorder %v6709, %v6711
      %v6713 = vsel %vm6712, %v6708, inf
      %6714 = vmin.xlane.f32.xlu0 %v6713
      %v6715 = vpop.xlane.xlu0 %6714
      %v6716 = vcvt.f32.s32 %v6715
      %v6717 = vcvt.f32.s32 %v6711
      %v6718 = vshll.u32 %v6717, 16
      %v6719 = vadd.s32 %v6718, %v6716
      %v6720 = vsel %vm366, %v6144, 2147483647
      %v6721 = vand.u32 %v6720, 65535
      %v6722 = vshra.s32 %v6720, 16
      %v6723 = vcvt.s32.f32 %v6721
      %v6724 = vcvt.s32.f32 %v6722
      %6725 = vmin.xlane.f32.xlu0 %v6724
      %v6726 = vpop.xlane.xlu0 %6725
      %vm6727 = vcmp.eq.f32.partialorder %v6724, %v6726
      %v6728 = vsel %vm6727, %v6723, inf
      %6729 = vmin.xlane.f32.xlu0 %v6728
      %v6730 = vpop.xlane.xlu0 %6729
      %v6731 = vcvt.f32.s32 %v6730
      %v6732 = vcvt.f32.s32 %v6726
      %v6733 = vshll.u32 %v6732, 16
      %v6734 = vadd.s32 %v6733, %v6731
      %v6735 = vsel %vm366, %v6145, 2147483647
      %v6736 = vand.u32 %v6735, 65535
      %v6737 = vshra.s32 %v6735, 16
      %v6738 = vcvt.s32.f32 %v6736
      %v6739 = vcvt.s32.f32 %v6737
      %6740 = vmin.xlane.f32.xlu0 %v6739
      %v6741 = vpop.xlane.xlu0 %6740
      %vm6742 = vcmp.eq.f32.partialorder %v6739, %v6741
      %v6743 = vsel %vm6742, %v6738, inf
      %6744 = vmin.xlane.f32.xlu0 %v6743
      %v6745 = vpop.xlane.xlu0 %6744
      %v6746 = vcvt.f32.s32 %v6745
      %v6747 = vcvt.f32.s32 %v6741
      %v6748 = vshll.u32 %v6747, 16
      %v6749 = vadd.s32 %v6748, %v6746
      %v6750 = vsel %vm366, %v6146, 2147483647
      %v6751 = vand.u32 %v6750, 65535
      %v6752 = vshra.s32 %v6750, 16
      %v6753 = vcvt.s32.f32 %v6751
      %v6754 = vcvt.s32.f32 %v6752
      %6755 = vmin.xlane.f32.xlu0 %v6754
      %v6756 = vpop.xlane.xlu0 %6755
      %vm6757 = vcmp.eq.f32.partialorder %v6754, %v6756
      %v6758 = vsel %vm6757, %v6753, inf
      %6759 = vmin.xlane.f32.xlu0 %v6758
      %v6760 = vpop.xlane.xlu0 %6759
      %v6761 = vcvt.f32.s32 %v6760
      %v6762 = vcvt.f32.s32 %v6756
      %v6763 = vshll.u32 %v6762, 16
      %v6764 = vadd.s32 %v6763, %v6761
      %v6765 = vsel %vm366, %v6147, 2147483647
      %v6766 = vand.u32 %v6765, 65535
      %v6767 = vshra.s32 %v6765, 16
      %v6768 = vcvt.s32.f32 %v6766
      %v6769 = vcvt.s32.f32 %v6767
      %6770 = vmin.xlane.f32.xlu0 %v6769
      %v6771 = vpop.xlane.xlu0 %6770
      %vm6772 = vcmp.eq.f32.partialorder %v6769, %v6771
      %v6773 = vsel %vm6772, %v6768, inf
      %6774 = vmin.xlane.f32.xlu0 %v6773
      %v6775 = vpop.xlane.xlu0 %6774
      %v6776 = vcvt.f32.s32 %v6775
      %v6777 = vcvt.f32.s32 %v6771
      %v6778 = vshll.u32 %v6777, 16
      %v6779 = vadd.s32 %v6778, %v6776
      %v6780 = vsel %vm366, %v6148, 2147483647
      %v6781 = vand.u32 %v6780, 65535
      %v6782 = vshra.s32 %v6780, 16
      %v6783 = vcvt.s32.f32 %v6781
      %v6784 = vcvt.s32.f32 %v6782
      %6785 = vmin.xlane.f32.xlu0 %v6784
      %v6786 = vpop.xlane.xlu0 %6785
      %vm6787 = vcmp.eq.f32.partialorder %v6784, %v6786
      %v6788 = vsel %vm6787, %v6783, inf
      %6789 = vmin.xlane.f32.xlu0 %v6788
      %v6790 = vpop.xlane.xlu0 %6789
      %v6791 = vcvt.f32.s32 %v6790
      %v6792 = vcvt.f32.s32 %v6786
      %v6793 = vshll.u32 %v6792, 16
      %v6794 = vadd.s32 %v6793, %v6791
      %v6795 = vsel %vm366, %v6149, 2147483647
      %v6796 = vand.u32 %v6795, 65535
      %v6797 = vshra.s32 %v6795, 16
      %v6798 = vcvt.s32.f32 %v6796
      %v6799 = vcvt.s32.f32 %v6797
      %6800 = vmin.xlane.f32.xlu0 %v6799
      %v6801 = vpop.xlane.xlu0 %6800
      %vm6802 = vcmp.eq.f32.partialorder %v6799, %v6801
      %v6803 = vsel %vm6802, %v6798, inf
      %6804 = vmin.xlane.f32.xlu0 %v6803
      %v6805 = vpop.xlane.xlu0 %6804
      %v6806 = vcvt.f32.s32 %v6805
      %v6807 = vcvt.f32.s32 %v6801
      %v6808 = vshll.u32 %v6807, 16
      %v6809 = vadd.s32 %v6808, %v6806
      %v6810 = vsel %vm366, %v6150, 2147483647
      %v6811 = vand.u32 %v6810, 65535
      %v6812 = vshra.s32 %v6810, 16
      %v6813 = vcvt.s32.f32 %v6811
      %v6814 = vcvt.s32.f32 %v6812
      %6815 = vmin.xlane.f32.xlu0 %v6814
      %v6816 = vpop.xlane.xlu0 %6815
      %vm6817 = vcmp.eq.f32.partialorder %v6814, %v6816
      %v6818 = vsel %vm6817, %v6813, inf
      %6819 = vmin.xlane.f32.xlu0 %v6818
      %v6820 = vpop.xlane.xlu0 %6819
      %v6821 = vcvt.f32.s32 %v6820
      %v6822 = vcvt.f32.s32 %v6816
      %v6823 = vshll.u32 %v6822, 16
      %v6824 = vadd.s32 %v6823, %v6821
      %v6825 = vsel %vm366, %v6151, 2147483647
      %v6826 = vand.u32 %v6825, 65535
      %v6827 = vshra.s32 %v6825, 16
      %v6828 = vcvt.s32.f32 %v6826
      %v6829 = vcvt.s32.f32 %v6827
      %6830 = vmin.xlane.f32.xlu0 %v6829
      %v6831 = vpop.xlane.xlu0 %6830
      %vm6832 = vcmp.eq.f32.partialorder %v6829, %v6831
      %v6833 = vsel %vm6832, %v6828, inf
      %6834 = vmin.xlane.f32.xlu0 %v6833
      %v6835 = vpop.xlane.xlu0 %6834
      %v6836 = vcvt.f32.s32 %v6835
      %v6837 = vcvt.f32.s32 %v6831
      %v6838 = vshll.u32 %v6837, 16
      %v6839 = vadd.s32 %v6838, %v6836
      %v6840 = vsel %vm366, %v6152, 2147483647
      %v6841 = vand.u32 %v6840, 65535
      %v6842 = vshra.s32 %v6840, 16
      %v6843 = vcvt.s32.f32 %v6841
      %v6844 = vcvt.s32.f32 %v6842
      %6845 = vmin.xlane.f32.xlu0 %v6844
      %v6846 = vpop.xlane.xlu0 %6845
      %vm6847 = vcmp.eq.f32.partialorder %v6844, %v6846
      %v6848 = vsel %vm6847, %v6843, inf
      %6849 = vmin.xlane.f32.xlu0 %v6848
      %v6850 = vpop.xlane.xlu0 %6849
      %v6851 = vcvt.f32.s32 %v6850
      %v6852 = vcvt.f32.s32 %v6846
      %v6853 = vshll.u32 %v6852, 16
      %v6854 = vadd.s32 %v6853, %v6851
      %v6855 = vsel %vm366, %v6153, 2147483647
      %v6856 = vand.u32 %v6855, 65535
      %v6857 = vshra.s32 %v6855, 16
      %v6858 = vcvt.s32.f32 %v6856
      %v6859 = vcvt.s32.f32 %v6857
      %6860 = vmin.xlane.f32.xlu0 %v6859
      %v6861 = vpop.xlane.xlu0 %6860
      %vm6862 = vcmp.eq.f32.partialorder %v6859, %v6861
      %v6863 = vsel %vm6862, %v6858, inf
      %6864 = vmin.xlane.f32.xlu0 %v6863
      %v6865 = vpop.xlane.xlu0 %6864
      %v6866 = vcvt.f32.s32 %v6865
      %v6867 = vcvt.f32.s32 %v6861
      %v6868 = vshll.u32 %v6867, 16
      %v6869 = vadd.s32 %v6868, %v6866
      %v6870 = vsel %vm366, %v6154, 2147483647
      %v6871 = vand.u32 %v6870, 65535
      %v6872 = vshra.s32 %v6870, 16
      %v6873 = vcvt.s32.f32 %v6871
      %v6874 = vcvt.s32.f32 %v6872
      %6875 = vmin.xlane.f32.xlu0 %v6874
      %v6876 = vpop.xlane.xlu0 %6875
      %vm6877 = vcmp.eq.f32.partialorder %v6874, %v6876
      %v6878 = vsel %vm6877, %v6873, inf
      %6879 = vmin.xlane.f32.xlu0 %v6878
      %v6880 = vpop.xlane.xlu0 %6879
      %v6881 = vcvt.f32.s32 %v6880
      %v6882 = vcvt.f32.s32 %v6876
      %v6883 = vshll.u32 %v6882, 16
      %v6884 = vadd.s32 %v6883, %v6881
      %v6885 = vsel %vm366, %v6155, 2147483647
      %v6886 = vand.u32 %v6885, 65535
      %v6887 = vshra.s32 %v6885, 16
      %v6888 = vcvt.s32.f32 %v6886
      %v6889 = vcvt.s32.f32 %v6887
      %6890 = vmin.xlane.f32.xlu0 %v6889
      %v6891 = vpop.xlane.xlu0 %6890
      %vm6892 = vcmp.eq.f32.partialorder %v6889, %v6891
      %v6893 = vsel %vm6892, %v6888, inf
      %6894 = vmin.xlane.f32.xlu0 %v6893
      %v6895 = vpop.xlane.xlu0 %6894
      %v6896 = vcvt.f32.s32 %v6895
      %v6897 = vcvt.f32.s32 %v6891
      %v6898 = vshll.u32 %v6897, 16
      %v6899 = vadd.s32 %v6898, %v6896
      %v6900 = vsel %vm366, %v6156, 2147483647
      %v6901 = vand.u32 %v6900, 65535
      %v6902 = vshra.s32 %v6900, 16
      %v6903 = vcvt.s32.f32 %v6901
      %v6904 = vcvt.s32.f32 %v6902
      %6905 = vmin.xlane.f32.xlu0 %v6904
      %v6906 = vpop.xlane.xlu0 %6905
      %vm6907 = vcmp.eq.f32.partialorder %v6904, %v6906
      %v6908 = vsel %vm6907, %v6903, inf
      %6909 = vmin.xlane.f32.xlu0 %v6908
      %v6910 = vpop.xlane.xlu0 %6909
      %v6911 = vcvt.f32.s32 %v6910
      %v6912 = vcvt.f32.s32 %v6906
      %v6913 = vshll.u32 %v6912, 16
      %v6914 = vadd.s32 %v6913, %v6911
      %v6915 = vsel %vm366, %v6157, 2147483647
      %v6916 = vand.u32 %v6915, 65535
      %v6917 = vshra.s32 %v6915, 16
      %v6918 = vcvt.s32.f32 %v6916
      %v6919 = vcvt.s32.f32 %v6917
      %6920 = vmin.xlane.f32.xlu0 %v6919
      %v6921 = vpop.xlane.xlu0 %6920
      %vm6922 = vcmp.eq.f32.partialorder %v6919, %v6921
      %v6923 = vsel %vm6922, %v6918, inf
      %6924 = vmin.xlane.f32.xlu0 %v6923
      %v6925 = vpop.xlane.xlu0 %6924
      %v6926 = vcvt.f32.s32 %v6925
      %v6927 = vcvt.f32.s32 %v6921
      %v6928 = vshll.u32 %v6927, 16
      %v6929 = vadd.s32 %v6928, %v6926
      %v6930 = vsel %vm366, %v6158, 2147483647
      %v6931 = vand.u32 %v6930, 65535
      %v6932 = vshra.s32 %v6930, 16
      %v6933 = vcvt.s32.f32 %v6931
      %v6934 = vcvt.s32.f32 %v6932
      %6935 = vmin.xlane.f32.xlu0 %v6934
      %v6936 = vpop.xlane.xlu0 %6935
      %vm6937 = vcmp.eq.f32.partialorder %v6934, %v6936
      %v6938 = vsel %vm6937, %v6933, inf
      %6939 = vmin.xlane.f32.xlu0 %v6938
      %v6940 = vpop.xlane.xlu0 %6939
      %v6941 = vcvt.f32.s32 %v6940
      %v6942 = vcvt.f32.s32 %v6936
      %v6943 = vshll.u32 %v6942, 16
      %v6944 = vadd.s32 %v6943, %v6941
      %v6945 = vsel %vm366, %v6159, 2147483647
      %v6946 = vand.u32 %v6945, 65535
      %v6947 = vshra.s32 %v6945, 16
      %v6948 = vcvt.s32.f32 %v6946
      %v6949 = vcvt.s32.f32 %v6947
      %6950 = vmin.xlane.f32.xlu0 %v6949
      %v6951 = vpop.xlane.xlu0 %6950
      %vm6952 = vcmp.eq.f32.partialorder %v6949, %v6951
      %v6953 = vsel %vm6952, %v6948, inf
      %6954 = vmin.xlane.f32.xlu0 %v6953
      %v6955 = vpop.xlane.xlu0 %6954
      %v6956 = vcvt.f32.s32 %v6955
      %v6957 = vcvt.f32.s32 %v6951
      %v6958 = vshll.u32 %v6957, 16
      %v6959 = vadd.s32 %v6958, %v6956
      %v6960 = vsel %vm366, %v6160, 2147483647
      %v6961 = vand.u32 %v6960, 65535
      %v6962 = vshra.s32 %v6960, 16
      %v6963 = vcvt.s32.f32 %v6961
      %v6964 = vcvt.s32.f32 %v6962
      %6965 = vmin.xlane.f32.xlu0 %v6964
      %v6966 = vpop.xlane.xlu0 %6965
      %vm6967 = vcmp.eq.f32.partialorder %v6964, %v6966
      %v6968 = vsel %vm6967, %v6963, inf
      %6969 = vmin.xlane.f32.xlu0 %v6968
      %v6970 = vpop.xlane.xlu0 %6969
      %v6971 = vcvt.f32.s32 %v6970
      %v6972 = vcvt.f32.s32 %v6966
      %v6973 = vshll.u32 %v6972, 16
      %v6974 = vadd.s32 %v6973, %v6971
      %v6975 = vsel %vm366, %v6161, 2147483647
      %v6976 = vand.u32 %v6975, 65535
      %v6977 = vshra.s32 %v6975, 16
      %v6978 = vcvt.s32.f32 %v6976
      %v6979 = vcvt.s32.f32 %v6977
      %6980 = vmin.xlane.f32.xlu0 %v6979
      %v6981 = vpop.xlane.xlu0 %6980
      %vm6982 = vcmp.eq.f32.partialorder %v6979, %v6981
      %v6983 = vsel %vm6982, %v6978, inf
      %6984 = vmin.xlane.f32.xlu0 %v6983
      %v6985 = vpop.xlane.xlu0 %6984
      %v6986 = vcvt.f32.s32 %v6985
      %v6987 = vcvt.f32.s32 %v6981
      %v6988 = vshll.u32 %v6987, 16
      %v6989 = vadd.s32 %v6988, %v6986
      %v6990 = vsel %vm366, %v6162, 2147483647
      %v6991 = vand.u32 %v6990, 65535
      %v6992 = vshra.s32 %v6990, 16
      %v6993 = vcvt.s32.f32 %v6991
      %v6994 = vcvt.s32.f32 %v6992
      %6995 = vmin.xlane.f32.xlu0 %v6994
      %v6996 = vpop.xlane.xlu0 %6995
      %vm6997 = vcmp.eq.f32.partialorder %v6994, %v6996
      %v6998 = vsel %vm6997, %v6993, inf
      %6999 = vmin.xlane.f32.xlu0 %v6998
      %v7000 = vpop.xlane.xlu0 %6999
      %v7001 = vcvt.f32.s32 %v7000
      %v7002 = vcvt.f32.s32 %v6996
      %v7003 = vshll.u32 %v7002, 16
      %v7004 = vadd.s32 %v7003, %v7001
      %v7005 = vsel %vm366, %v6163, 2147483647
      %v7006 = vand.u32 %v7005, 65535
      %v7007 = vshra.s32 %v7005, 16
      %v7008 = vcvt.s32.f32 %v7006
      %v7009 = vcvt.s32.f32 %v7007
      %7010 = vmin.xlane.f32.xlu0 %v7009
      %v7011 = vpop.xlane.xlu0 %7010
      %vm7012 = vcmp.eq.f32.partialorder %v7009, %v7011
      %v7013 = vsel %vm7012, %v7008, inf
      %7014 = vmin.xlane.f32.xlu0 %v7013
      %v7015 = vpop.xlane.xlu0 %7014
      %v7016 = vcvt.f32.s32 %v7015
      %v7017 = vcvt.f32.s32 %v7011
      %v7018 = vshll.u32 %v7017, 16
      %v7019 = vadd.s32 %v7018, %v7016
      %v7020 = vsel %vm366, %v6164, 2147483647
      %v7021 = vand.u32 %v7020, 65535
      %v7022 = vshra.s32 %v7020, 16
      %v7023 = vcvt.s32.f32 %v7021
      %v7024 = vcvt.s32.f32 %v7022
      %7025 = vmin.xlane.f32.xlu0 %v7024
      %v7026 = vpop.xlane.xlu0 %7025
      %vm7027 = vcmp.eq.f32.partialorder %v7024, %v7026
      %v7028 = vsel %vm7027, %v7023, inf
      %7029 = vmin.xlane.f32.xlu0 %v7028
      %v7030 = vpop.xlane.xlu0 %7029
      %v7031 = vcvt.f32.s32 %v7030
      %v7032 = vcvt.f32.s32 %v7026
      %v7033 = vshll.u32 %v7032, 16
      %v7034 = vadd.s32 %v7033, %v7031
      %v7035 = vsel %vm366, %v6165, 2147483647
      %v7036 = vand.u32 %v7035, 65535
      %v7037 = vshra.s32 %v7035, 16
      %v7038 = vcvt.s32.f32 %v7036
      %v7039 = vcvt.s32.f32 %v7037
      %7040 = vmin.xlane.f32.xlu0 %v7039
      %v7041 = vpop.xlane.xlu0 %7040
      %vm7042 = vcmp.eq.f32.partialorder %v7039, %v7041
      %v7043 = vsel %vm7042, %v7038, inf
      %7044 = vmin.xlane.f32.xlu0 %v7043
      %v7045 = vpop.xlane.xlu0 %7044
      %v7046 = vcvt.f32.s32 %v7045
      %v7047 = vcvt.f32.s32 %v7041
      %v7048 = vshll.u32 %v7047, 16
      %v7049 = vadd.s32 %v7048, %v7046
      %v7050 = vsel %vm366, %v6166, 2147483647
      %v7051 = vand.u32 %v7050, 65535
      %v7052 = vshra.s32 %v7050, 16
      %v7053 = vcvt.s32.f32 %v7051
      %v7054 = vcvt.s32.f32 %v7052
      %7055 = vmin.xlane.f32.xlu0 %v7054
      %v7056 = vpop.xlane.xlu0 %7055
      %vm7057 = vcmp.eq.f32.partialorder %v7054, %v7056
      %v7058 = vsel %vm7057, %v7053, inf
      %7059 = vmin.xlane.f32.xlu0 %v7058
      %v7060 = vpop.xlane.xlu0 %7059
      %v7061 = vcvt.f32.s32 %v7060
      %v7062 = vcvt.f32.s32 %v7056
      %v7063 = vshll.u32 %v7062, 16
      %v7064 = vadd.s32 %v7063, %v7061
      %v7065 = vsel %vm366, %v6167, 2147483647
      %v7066 = vand.u32 %v7065, 65535
      %v7067 = vshra.s32 %v7065, 16
      %v7068 = vcvt.s32.f32 %v7066
      %v7069 = vcvt.s32.f32 %v7067
      %7070 = vmin.xlane.f32.xlu0 %v7069
      %v7071 = vpop.xlane.xlu0 %7070
      %vm7072 = vcmp.eq.f32.partialorder %v7069, %v7071
      %v7073 = vsel %vm7072, %v7068, inf
      %7074 = vmin.xlane.f32.xlu0 %v7073
      %v7075 = vpop.xlane.xlu0 %7074
      %v7076 = vcvt.f32.s32 %v7075
      %v7077 = vcvt.f32.s32 %v7071
      %v7078 = vshll.u32 %v7077, 16
      %v7079 = vadd.s32 %v7078, %v7076
      %v7080 = vsel %vm366, %v6168, 2147483647
      %v7081 = vand.u32 %v7080, 65535
      %v7082 = vshra.s32 %v7080, 16
      %v7083 = vcvt.s32.f32 %v7081
      %v7084 = vcvt.s32.f32 %v7082
      %7085 = vmin.xlane.f32.xlu0 %v7084
      %v7086 = vpop.xlane.xlu0 %7085
      %vm7087 = vcmp.eq.f32.partialorder %v7084, %v7086
      %v7088 = vsel %vm7087, %v7083, inf
      %7089 = vmin.xlane.f32.xlu0 %v7088
      %v7090 = vpop.xlane.xlu0 %7089
      %v7091 = vcvt.f32.s32 %v7090
      %v7092 = vcvt.f32.s32 %v7086
      %v7093 = vshll.u32 %v7092, 16
      %v7094 = vadd.s32 %v7093, %v7091
      %v7095 = vsel %vm366, %v6169, 2147483647
      %v7096 = vand.u32 %v7095, 65535
      %v7097 = vshra.s32 %v7095, 16
      %v7098 = vcvt.s32.f32 %v7096
      %v7099 = vcvt.s32.f32 %v7097
      %7100 = vmin.xlane.f32.xlu0 %v7099
      %v7101 = vpop.xlane.xlu0 %7100
      %vm7102 = vcmp.eq.f32.partialorder %v7099, %v7101
      %v7103 = vsel %vm7102, %v7098, inf
      %7104 = vmin.xlane.f32.xlu0 %v7103
      %v7105 = vpop.xlane.xlu0 %7104
      %v7106 = vcvt.f32.s32 %v7105
      %v7107 = vcvt.f32.s32 %v7101
      %v7108 = vshll.u32 %v7107, 16
      %v7109 = vadd.s32 %v7108, %v7106
      %v7110 = vsel %vm366, %v6170, 2147483647
      %v7111 = vand.u32 %v7110, 65535
      %v7112 = vshra.s32 %v7110, 16
      %v7113 = vcvt.s32.f32 %v7111
      %v7114 = vcvt.s32.f32 %v7112
      %7115 = vmin.xlane.f32.xlu0 %v7114
      %v7116 = vpop.xlane.xlu0 %7115
      %vm7117 = vcmp.eq.f32.partialorder %v7114, %v7116
      %v7118 = vsel %vm7117, %v7113, inf
      %7119 = vmin.xlane.f32.xlu0 %v7118
      %v7120 = vpop.xlane.xlu0 %7119
      %v7121 = vcvt.f32.s32 %v7120
      %v7122 = vcvt.f32.s32 %v7116
      %v7123 = vshll.u32 %v7122, 16
      %v7124 = vadd.s32 %v7123, %v7121
      %v7125 = vsel %vm366, %v6171, 2147483647
      %v7126 = vand.u32 %v7125, 65535
      %v7127 = vshra.s32 %v7125, 16
      %v7128 = vcvt.s32.f32 %v7126
      %v7129 = vcvt.s32.f32 %v7127
      %7130 = vmin.xlane.f32.xlu0 %v7129
      %v7131 = vpop.xlane.xlu0 %7130
      %vm7132 = vcmp.eq.f32.partialorder %v7129, %v7131
      %v7133 = vsel %vm7132, %v7128, inf
      %7134 = vmin.xlane.f32.xlu0 %v7133
      %v7135 = vpop.xlane.xlu0 %7134
      %v7136 = vcvt.f32.s32 %v7135
      %v7137 = vcvt.f32.s32 %v7131
      %v7138 = vshll.u32 %v7137, 16
      %v7139 = vadd.s32 %v7138, %v7136
      %v7140 = vsel %vm366, %v6172, 2147483647
      %v7141 = vand.u32 %v7140, 65535
      %v7142 = vshra.s32 %v7140, 16
      %v7143 = vcvt.s32.f32 %v7141
      %v7144 = vcvt.s32.f32 %v7142
      %7145 = vmin.xlane.f32.xlu0 %v7144
      %v7146 = vpop.xlane.xlu0 %7145
      %vm7147 = vcmp.eq.f32.partialorder %v7144, %v7146
      %v7148 = vsel %vm7147, %v7143, inf
      %7149 = vmin.xlane.f32.xlu0 %v7148
      %v7150 = vpop.xlane.xlu0 %7149
      %v7151 = vcvt.f32.s32 %v7150
      %v7152 = vcvt.f32.s32 %v7146
      %v7153 = vshll.u32 %v7152, 16
      %v7154 = vadd.s32 %v7153, %v7151
      %v7155 = vsel %vm366, %v6173, 2147483647
      %v7156 = vand.u32 %v7155, 65535
      %v7157 = vshra.s32 %v7155, 16
      %v7158 = vcvt.s32.f32 %v7156
      %v7159 = vcvt.s32.f32 %v7157
      %7160 = vmin.xlane.f32.xlu0 %v7159
      %v7161 = vpop.xlane.xlu0 %7160
      %vm7162 = vcmp.eq.f32.partialorder %v7159, %v7161
      %v7163 = vsel %vm7162, %v7158, inf
      %7164 = vmin.xlane.f32.xlu0 %v7163
      %v7165 = vpop.xlane.xlu0 %7164
      %v7166 = vcvt.f32.s32 %v7165
      %v7167 = vcvt.f32.s32 %v7161
      %v7168 = vshll.u32 %v7167, 16
      %v7169 = vadd.s32 %v7168, %v7166
      %v7170 = vsel %vm366, %v6174, 2147483647
      %v7171 = vand.u32 %v7170, 65535
      %v7172 = vshra.s32 %v7170, 16
      %v7173 = vcvt.s32.f32 %v7171
      %v7174 = vcvt.s32.f32 %v7172
      %7175 = vmin.xlane.f32.xlu0 %v7174
      %v7176 = vpop.xlane.xlu0 %7175
      %vm7177 = vcmp.eq.f32.partialorder %v7174, %v7176
      %v7178 = vsel %vm7177, %v7173, inf
      %7179 = vmin.xlane.f32.xlu0 %v7178
      %v7180 = vpop.xlane.xlu0 %7179
      %v7181 = vcvt.f32.s32 %v7180
      %v7182 = vcvt.f32.s32 %v7176
      %v7183 = vshll.u32 %v7182, 16
      %v7184 = vadd.s32 %v7183, %v7181
      %v7185 = vsel %vm366, %v6175, 2147483647
      %v7186 = vand.u32 %v7185, 65535
      %v7187 = vshra.s32 %v7185, 16
      %v7188 = vcvt.s32.f32 %v7186
      %v7189 = vcvt.s32.f32 %v7187
      %7190 = vmin.xlane.f32.xlu0 %v7189
      %v7191 = vpop.xlane.xlu0 %7190
      %vm7192 = vcmp.eq.f32.partialorder %v7189, %v7191
      %v7193 = vsel %vm7192, %v7188, inf
      %7194 = vmin.xlane.f32.xlu0 %v7193
      %v7195 = vpop.xlane.xlu0 %7194
      %v7196 = vcvt.f32.s32 %v7195
      %v7197 = vcvt.f32.s32 %v7191
      %v7198 = vshll.u32 %v7197, 16
      %v7199 = vadd.s32 %v7198, %v7196
      %v7200 = vsel %vm366, %v6176, 2147483647
      %v7201 = vand.u32 %v7200, 65535
      %v7202 = vshra.s32 %v7200, 16
      %v7203 = vcvt.s32.f32 %v7201
      %v7204 = vcvt.s32.f32 %v7202
      %7205 = vmin.xlane.f32.xlu0 %v7204
      %v7206 = vpop.xlane.xlu0 %7205
      %vm7207 = vcmp.eq.f32.partialorder %v7204, %v7206
      %v7208 = vsel %vm7207, %v7203, inf
      %7209 = vmin.xlane.f32.xlu0 %v7208
      %v7210 = vpop.xlane.xlu0 %7209
      %v7211 = vcvt.f32.s32 %v7210
      %v7212 = vcvt.f32.s32 %v7206
      %v7213 = vshll.u32 %v7212, 16
      %v7214 = vadd.s32 %v7213, %v7211
      %v7215 = vsel %vm366, %v6177, 2147483647
      %v7216 = vand.u32 %v7215, 65535
      %v7217 = vshra.s32 %v7215, 16
      %v7218 = vcvt.s32.f32 %v7216
      %v7219 = vcvt.s32.f32 %v7217
      %7220 = vmin.xlane.f32.xlu0 %v7219
      %v7221 = vpop.xlane.xlu0 %7220
      %vm7222 = vcmp.eq.f32.partialorder %v7219, %v7221
      %v7223 = vsel %vm7222, %v7218, inf
      %7224 = vmin.xlane.f32.xlu0 %v7223
      %v7225 = vpop.xlane.xlu0 %7224
      %v7226 = vcvt.f32.s32 %v7225
      %v7227 = vcvt.f32.s32 %v7221
      %v7228 = vshll.u32 %v7227, 16
      %v7229 = vadd.s32 %v7228, %v7226
      %v7230 = vsel %vm366, %v6178, 2147483647
      %v7231 = vand.u32 %v7230, 65535
      %v7232 = vshra.s32 %v7230, 16
      %v7233 = vcvt.s32.f32 %v7231
      %v7234 = vcvt.s32.f32 %v7232
      %7235 = vmin.xlane.f32.xlu0 %v7234
      %v7236 = vpop.xlane.xlu0 %7235
      %vm7237 = vcmp.eq.f32.partialorder %v7234, %v7236
      %v7238 = vsel %vm7237, %v7233, inf
      %7239 = vmin.xlane.f32.xlu0 %v7238
      %v7240 = vpop.xlane.xlu0 %7239
      %v7241 = vcvt.f32.s32 %v7240
      %v7242 = vcvt.f32.s32 %v7236
      %v7243 = vshll.u32 %v7242, 16
      %v7244 = vadd.s32 %v7243, %v7241
      %v7245 = vsel %vm366, %v6179, 2147483647
      %v7246 = vand.u32 %v7245, 65535
      %v7247 = vshra.s32 %v7245, 16
      %v7248 = vcvt.s32.f32 %v7246
      %v7249 = vcvt.s32.f32 %v7247
      %7250 = vmin.xlane.f32.xlu0 %v7249
      %v7251 = vpop.xlane.xlu0 %7250
      %vm7252 = vcmp.eq.f32.partialorder %v7249, %v7251
      %v7253 = vsel %vm7252, %v7248, inf
      %7254 = vmin.xlane.f32.xlu0 %v7253
      %v7255 = vpop.xlane.xlu0 %7254
      %v7256 = vcvt.f32.s32 %v7255
      %v7257 = vcvt.f32.s32 %v7251
      %v7258 = vshll.u32 %v7257, 16
      %v7259 = vadd.s32 %v7258, %v7256
      %v7260 = vsel %vm366, %v6180, 2147483647
      %v7261 = vand.u32 %v7260, 65535
      %v7262 = vshra.s32 %v7260, 16
      %v7263 = vcvt.s32.f32 %v7261
      %v7264 = vcvt.s32.f32 %v7262
      %7265 = vmin.xlane.f32.xlu0 %v7264
      %v7266 = vpop.xlane.xlu0 %7265
      %vm7267 = vcmp.eq.f32.partialorder %v7264, %v7266
      %v7268 = vsel %vm7267, %v7263, inf
      %7269 = vmin.xlane.f32.xlu0 %v7268
      %v7270 = vpop.xlane.xlu0 %7269
      %v7271 = vcvt.f32.s32 %v7270
      %v7272 = vcvt.f32.s32 %v7266
      %v7273 = vshll.u32 %v7272, 16
      %v7274 = vadd.s32 %v7273, %v7271
      %v7275 = vsel %vm366, %v6181, 2147483647
      %v7276 = vand.u32 %v7275, 65535
      %v7277 = vshra.s32 %v7275, 16
      %v7278 = vcvt.s32.f32 %v7276
      %v7279 = vcvt.s32.f32 %v7277
      %7280 = vmin.xlane.f32.xlu0 %v7279
      %v7281 = vpop.xlane.xlu0 %7280
      %vm7282 = vcmp.eq.f32.partialorder %v7279, %v7281
      %v7283 = vsel %vm7282, %v7278, inf
      %7284 = vmin.xlane.f32.xlu0 %v7283
      %v7285 = vpop.xlane.xlu0 %7284
      %v7286 = vcvt.f32.s32 %v7285
      %v7287 = vcvt.f32.s32 %v7281
      %v7288 = vshll.u32 %v7287, 16
      %v7289 = vadd.s32 %v7288, %v7286
      %v7290 = vsel %vm366, %v6182, 2147483647
      %v7291 = vand.u32 %v7290, 65535
      %v7292 = vshra.s32 %v7290, 16
      %v7293 = vcvt.s32.f32 %v7291
      %v7294 = vcvt.s32.f32 %v7292
      %7295 = vmin.xlane.f32.xlu0 %v7294
      %v7296 = vpop.xlane.xlu0 %7295
      %vm7297 = vcmp.eq.f32.partialorder %v7294, %v7296
      %v7298 = vsel %vm7297, %v7293, inf
      %7299 = vmin.xlane.f32.xlu0 %v7298
      %v7300 = vpop.xlane.xlu0 %7299
      %v7301 = vcvt.f32.s32 %v7300
      %v7302 = vcvt.f32.s32 %v7296
      %v7303 = vshll.u32 %v7302, 16
      %v7304 = vadd.s32 %v7303, %v7301
      %v7305 = vsel %vm366, %v6183, 2147483647
      %v7306 = vand.u32 %v7305, 65535
      %v7307 = vshra.s32 %v7305, 16
      %v7308 = vcvt.s32.f32 %v7306
      %v7309 = vcvt.s32.f32 %v7307
      %7310 = vmin.xlane.f32.xlu0 %v7309
      %v7311 = vpop.xlane.xlu0 %7310
      %vm7312 = vcmp.eq.f32.partialorder %v7309, %v7311
      %v7313 = vsel %vm7312, %v7308, inf
      %7314 = vmin.xlane.f32.xlu0 %v7313
      %v7315 = vpop.xlane.xlu0 %7314
      %v7316 = vcvt.f32.s32 %v7315
      %v7317 = vcvt.f32.s32 %v7311
      %v7318 = vshll.u32 %v7317, 16
      %v7319 = vadd.s32 %v7318, %v7316
      %v7320 = vsel %vm366, %v6184, 2147483647
      %v7321 = vand.u32 %v7320, 65535
      %v7322 = vshra.s32 %v7320, 16
      %v7323 = vcvt.s32.f32 %v7321
      %v7324 = vcvt.s32.f32 %v7322
      %7325 = vmin.xlane.f32.xlu0 %v7324
      %v7326 = vpop.xlane.xlu0 %7325
      %vm7327 = vcmp.eq.f32.partialorder %v7324, %v7326
      %v7328 = vsel %vm7327, %v7323, inf
      %7329 = vmin.xlane.f32.xlu0 %v7328
      %v7330 = vpop.xlane.xlu0 %7329
      %v7331 = vcvt.f32.s32 %v7330
      %v7332 = vcvt.f32.s32 %v7326
      %v7333 = vshll.u32 %v7332, 16
      %v7334 = vadd.s32 %v7333, %v7331
      %v7335 = vsel %vm366, %v6185, 2147483647
      %v7336 = vand.u32 %v7335, 65535
      %v7337 = vshra.s32 %v7335, 16
      %v7338 = vcvt.s32.f32 %v7336
      %v7339 = vcvt.s32.f32 %v7337
      %7340 = vmin.xlane.f32.xlu0 %v7339
      %v7341 = vpop.xlane.xlu0 %7340
      %vm7342 = vcmp.eq.f32.partialorder %v7339, %v7341
      %v7343 = vsel %vm7342, %v7338, inf
      %7344 = vmin.xlane.f32.xlu0 %v7343
      %v7345 = vpop.xlane.xlu0 %7344
      %v7346 = vcvt.f32.s32 %v7345
      %v7347 = vcvt.f32.s32 %v7341
      %v7348 = vshll.u32 %v7347, 16
      %v7349 = vadd.s32 %v7348, %v7346
      %v7350 = vsel %vm366, %v6186, 2147483647
      %v7351 = vand.u32 %v7350, 65535
      %v7352 = vshra.s32 %v7350, 16
      %v7353 = vcvt.s32.f32 %v7351
      %v7354 = vcvt.s32.f32 %v7352
      %7355 = vmin.xlane.f32.xlu0 %v7354
      %v7356 = vpop.xlane.xlu0 %7355
      %vm7357 = vcmp.eq.f32.partialorder %v7354, %v7356
      %v7358 = vsel %vm7357, %v7353, inf
      %7359 = vmin.xlane.f32.xlu0 %v7358
      %v7360 = vpop.xlane.xlu0 %7359
      %v7361 = vcvt.f32.s32 %v7360
      %v7362 = vcvt.f32.s32 %v7356
      %v7363 = vshll.u32 %v7362, 16
      %v7364 = vadd.s32 %v7363, %v7361
      %v7365 = vsel %vm366, %v6187, 2147483647
      %v7366 = vand.u32 %v7365, 65535
      %v7367 = vshra.s32 %v7365, 16
      %v7368 = vcvt.s32.f32 %v7366
      %v7369 = vcvt.s32.f32 %v7367
      %7370 = vmin.xlane.f32.xlu0 %v7369
      %v7371 = vpop.xlane.xlu0 %7370
      %vm7372 = vcmp.eq.f32.partialorder %v7369, %v7371
      %v7373 = vsel %vm7372, %v7368, inf
      %7374 = vmin.xlane.f32.xlu0 %v7373
      %v7375 = vpop.xlane.xlu0 %7374
      %v7376 = vcvt.f32.s32 %v7375
      %v7377 = vcvt.f32.s32 %v7371
      %v7378 = vshll.u32 %v7377, 16
      %v7379 = vadd.s32 %v7378, %v7376
      %v7380 = vsel %vm366, %v6188, 2147483647
      %v7381 = vand.u32 %v7380, 65535
      %v7382 = vshra.s32 %v7380, 16
      %v7383 = vcvt.s32.f32 %v7381
      %v7384 = vcvt.s32.f32 %v7382
      %7385 = vmin.xlane.f32.xlu0 %v7384
      %v7386 = vpop.xlane.xlu0 %7385
      %vm7387 = vcmp.eq.f32.partialorder %v7384, %v7386
      %v7388 = vsel %vm7387, %v7383, inf
      %7389 = vmin.xlane.f32.xlu0 %v7388
      %v7390 = vpop.xlane.xlu0 %7389
      %v7391 = vcvt.f32.s32 %v7390
      %v7392 = vcvt.f32.s32 %v7386
      %v7393 = vshll.u32 %v7392, 16
      %v7394 = vadd.s32 %v7393, %v7391
      %v7395 = vsel %vm366, %v6189, 2147483647
      %v7396 = vand.u32 %v7395, 65535
      %v7397 = vshra.s32 %v7395, 16
      %v7398 = vcvt.s32.f32 %v7396
      %v7399 = vcvt.s32.f32 %v7397
      %7400 = vmin.xlane.f32.xlu0 %v7399
      %v7401 = vpop.xlane.xlu0 %7400
      %vm7402 = vcmp.eq.f32.partialorder %v7399, %v7401
      %v7403 = vsel %vm7402, %v7398, inf
      %7404 = vmin.xlane.f32.xlu0 %v7403
      %v7405 = vpop.xlane.xlu0 %7404
      %v7406 = vcvt.f32.s32 %v7405
      %v7407 = vcvt.f32.s32 %v7401
      %v7408 = vshll.u32 %v7407, 16
      %v7409 = vadd.s32 %v7408, %v7406
      %v7410 = vsel %vm366, %v6190, 2147483647
      %v7411 = vand.u32 %v7410, 65535
      %v7412 = vshra.s32 %v7410, 16
      %v7413 = vcvt.s32.f32 %v7411
      %v7414 = vcvt.s32.f32 %v7412
      %7415 = vmin.xlane.f32.xlu0 %v7414
      %v7416 = vpop.xlane.xlu0 %7415
      %vm7417 = vcmp.eq.f32.partialorder %v7414, %v7416
      %v7418 = vsel %vm7417, %v7413, inf
      %7419 = vmin.xlane.f32.xlu0 %v7418
      %v7420 = vpop.xlane.xlu0 %7419
      %v7421 = vcvt.f32.s32 %v7420
      %v7422 = vcvt.f32.s32 %v7416
      %v7423 = vshll.u32 %v7422, 16
      %v7424 = vadd.s32 %v7423, %v7421
      %v7425 = vsel %vm366, %v6191, 2147483647
      %v7426 = vand.u32 %v7425, 65535
      %v7427 = vshra.s32 %v7425, 16
      %v7428 = vcvt.s32.f32 %v7426
      %v7429 = vcvt.s32.f32 %v7427
      %7430 = vmin.xlane.f32.xlu0 %v7429
      %v7431 = vpop.xlane.xlu0 %7430
      %vm7432 = vcmp.eq.f32.partialorder %v7429, %v7431
      %v7433 = vsel %vm7432, %v7428, inf
      %7434 = vmin.xlane.f32.xlu0 %v7433
      %v7435 = vpop.xlane.xlu0 %7434
      %v7436 = vcvt.f32.s32 %v7435
      %v7437 = vcvt.f32.s32 %v7431
      %v7438 = vshll.u32 %v7437, 16
      %v7439 = vadd.s32 %v7438, %v7436
      %v7440 = vsel %vm366, %v6192, 2147483647
      %v7441 = vand.u32 %v7440, 65535
      %v7442 = vshra.s32 %v7440, 16
      %v7443 = vcvt.s32.f32 %v7441
      %v7444 = vcvt.s32.f32 %v7442
      %7445 = vmin.xlane.f32.xlu0 %v7444
      %v7446 = vpop.xlane.xlu0 %7445
      %vm7447 = vcmp.eq.f32.partialorder %v7444, %v7446
      %v7448 = vsel %vm7447, %v7443, inf
      %7449 = vmin.xlane.f32.xlu0 %v7448
      %v7450 = vpop.xlane.xlu0 %7449
      %v7451 = vcvt.f32.s32 %v7450
      %v7452 = vcvt.f32.s32 %v7446
      %v7453 = vshll.u32 %v7452, 16
      %v7454 = vadd.s32 %v7453, %v7451
      %v7455 = vsel %vm366, %v6193, 2147483647
      %v7456 = vand.u32 %v7455, 65535
      %v7457 = vshra.s32 %v7455, 16
      %v7458 = vcvt.s32.f32 %v7456
      %v7459 = vcvt.s32.f32 %v7457
      %7460 = vmin.xlane.f32.xlu0 %v7459
      %v7461 = vpop.xlane.xlu0 %7460
      %vm7462 = vcmp.eq.f32.partialorder %v7459, %v7461
      %v7463 = vsel %vm7462, %v7458, inf
      %7464 = vmin.xlane.f32.xlu0 %v7463
      %v7465 = vpop.xlane.xlu0 %7464
      %v7466 = vcvt.f32.s32 %v7465
      %v7467 = vcvt.f32.s32 %v7461
      %v7468 = vshll.u32 %v7467, 16
      %v7469 = vadd.s32 %v7468, %v7466
      %v7470 = vsel %vm366, %v6194, 2147483647
      %v7471 = vand.u32 %v7470, 65535
      %v7472 = vshra.s32 %v7470, 16
      %v7473 = vcvt.s32.f32 %v7471
      %v7474 = vcvt.s32.f32 %v7472
      %7475 = vmin.xlane.f32.xlu0 %v7474
      %v7476 = vpop.xlane.xlu0 %7475
      %vm7477 = vcmp.eq.f32.partialorder %v7474, %v7476
      %v7478 = vsel %vm7477, %v7473, inf
      %7479 = vmin.xlane.f32.xlu0 %v7478
      %v7480 = vpop.xlane.xlu0 %7479
      %v7481 = vcvt.f32.s32 %v7480
      %v7482 = vcvt.f32.s32 %v7476
      %v7483 = vshll.u32 %v7482, 16
      %v7484 = vadd.s32 %v7483, %v7481
      %v7485 = vsel %vm366, %v6195, 2147483647
      %v7486 = vand.u32 %v7485, 65535
      %v7487 = vshra.s32 %v7485, 16
      %v7488 = vcvt.s32.f32 %v7486
      %v7489 = vcvt.s32.f32 %v7487
      %7490 = vmin.xlane.f32.xlu0 %v7489
      %v7491 = vpop.xlane.xlu0 %7490
      %vm7492 = vcmp.eq.f32.partialorder %v7489, %v7491
      %v7493 = vsel %vm7492, %v7488, inf
      %7494 = vmin.xlane.f32.xlu0 %v7493
      %v7495 = vpop.xlane.xlu0 %7494
      %v7496 = vcvt.f32.s32 %v7495
      %v7497 = vcvt.f32.s32 %v7491
      %v7498 = vshll.u32 %v7497, 16
      %v7499 = vadd.s32 %v7498, %v7496
      %v7500 = vsel %vm366, %v6196, 2147483647
      %v7501 = vand.u32 %v7500, 65535
      %v7502 = vshra.s32 %v7500, 16
      %v7503 = vcvt.s32.f32 %v7501
      %v7504 = vcvt.s32.f32 %v7502
      %7505 = vmin.xlane.f32.xlu0 %v7504
      %v7506 = vpop.xlane.xlu0 %7505
      %vm7507 = vcmp.eq.f32.partialorder %v7504, %v7506
      %v7508 = vsel %vm7507, %v7503, inf
      %7509 = vmin.xlane.f32.xlu0 %v7508
      %v7510 = vpop.xlane.xlu0 %7509
      %v7511 = vcvt.f32.s32 %v7510
      %v7512 = vcvt.f32.s32 %v7506
      %v7513 = vshll.u32 %v7512, 16
      %v7514 = vadd.s32 %v7513, %v7511
      %v7515 = vsel %vm366, %v6197, 2147483647
      %v7516 = vand.u32 %v7515, 65535
      %v7517 = vshra.s32 %v7515, 16
      %v7518 = vcvt.s32.f32 %v7516
      %v7519 = vcvt.s32.f32 %v7517
      %7520 = vmin.xlane.f32.xlu0 %v7519
      %v7521 = vpop.xlane.xlu0 %7520
      %vm7522 = vcmp.eq.f32.partialorder %v7519, %v7521
      %v7523 = vsel %vm7522, %v7518, inf
      %7524 = vmin.xlane.f32.xlu0 %v7523
      %v7525 = vpop.xlane.xlu0 %7524
      %v7526 = vcvt.f32.s32 %v7525
      %v7527 = vcvt.f32.s32 %v7521
      %v7528 = vshll.u32 %v7527, 16
      %v7529 = vadd.s32 %v7528, %v7526
      %v7530 = vsel %vm366, %v6198, 2147483647
      %v7531 = vand.u32 %v7530, 65535
      %v7532 = vshra.s32 %v7530, 16
      %v7533 = vcvt.s32.f32 %v7531
      %v7534 = vcvt.s32.f32 %v7532
      %7535 = vmin.xlane.f32.xlu0 %v7534
      %v7536 = vpop.xlane.xlu0 %7535
      %vm7537 = vcmp.eq.f32.partialorder %v7534, %v7536
      %v7538 = vsel %vm7537, %v7533, inf
      %7539 = vmin.xlane.f32.xlu0 %v7538
      %v7540 = vpop.xlane.xlu0 %7539
      %v7541 = vcvt.f32.s32 %v7540
      %v7542 = vcvt.f32.s32 %v7536
      %v7543 = vshll.u32 %v7542, 16
      %v7544 = vadd.s32 %v7543, %v7541
      %v7545 = vsel %vm366, %v6199, 2147483647
      %v7546 = vand.u32 %v7545, 65535
      %v7547 = vshra.s32 %v7545, 16
      %v7548 = vcvt.s32.f32 %v7546
      %v7549 = vcvt.s32.f32 %v7547
      %7550 = vmin.xlane.f32.xlu0 %v7549
      %v7551 = vpop.xlane.xlu0 %7550
      %vm7552 = vcmp.eq.f32.partialorder %v7549, %v7551
      %v7553 = vsel %vm7552, %v7548, inf
      %7554 = vmin.xlane.f32.xlu0 %v7553
      %v7555 = vpop.xlane.xlu0 %7554
      %v7556 = vcvt.f32.s32 %v7555
      %v7557 = vcvt.f32.s32 %v7551
      %v7558 = vshll.u32 %v7557, 16
      %v7559 = vadd.s32 %v7558, %v7556
      %v7560 = vsel %vm366, %v6200, 2147483647
      %v7561 = vand.u32 %v7560, 65535
      %v7562 = vshra.s32 %v7560, 16
      %v7563 = vcvt.s32.f32 %v7561
      %v7564 = vcvt.s32.f32 %v7562
      %7565 = vmin.xlane.f32.xlu0 %v7564
      %v7566 = vpop.xlane.xlu0 %7565
      %vm7567 = vcmp.eq.f32.partialorder %v7564, %v7566
      %v7568 = vsel %vm7567, %v7563, inf
      %7569 = vmin.xlane.f32.xlu0 %v7568
      %v7570 = vpop.xlane.xlu0 %7569
      %v7571 = vcvt.f32.s32 %v7570
      %v7572 = vcvt.f32.s32 %v7566
      %v7573 = vshll.u32 %v7572, 16
      %v7574 = vadd.s32 %v7573, %v7571
      %v7575 = vsel %vm366, %v6201, 2147483647
      %v7576 = vand.u32 %v7575, 65535
      %v7577 = vshra.s32 %v7575, 16
      %v7578 = vcvt.s32.f32 %v7576
      %v7579 = vcvt.s32.f32 %v7577
      %7580 = vmin.xlane.f32.xlu0 %v7579
      %v7581 = vpop.xlane.xlu0 %7580
      %vm7582 = vcmp.eq.f32.partialorder %v7579, %v7581
      %v7583 = vsel %vm7582, %v7578, inf
      %7584 = vmin.xlane.f32.xlu0 %v7583
      %v7585 = vpop.xlane.xlu0 %7584
      %v7586 = vcvt.f32.s32 %v7585
      %v7587 = vcvt.f32.s32 %v7581
      %v7588 = vshll.u32 %v7587, 16
      %v7589 = vadd.s32 %v7588, %v7586
      %v7590 = vsel %vm366, %v6202, 2147483647
      %v7591 = vand.u32 %v7590, 65535
      %v7592 = vshra.s32 %v7590, 16
      %v7593 = vcvt.s32.f32 %v7591
      %v7594 = vcvt.s32.f32 %v7592
      %7595 = vmin.xlane.f32.xlu0 %v7594
      %v7596 = vpop.xlane.xlu0 %7595
      %vm7597 = vcmp.eq.f32.partialorder %v7594, %v7596
      %v7598 = vsel %vm7597, %v7593, inf
      %7599 = vmin.xlane.f32.xlu0 %v7598
      %v7600 = vpop.xlane.xlu0 %7599
      %v7601 = vcvt.f32.s32 %v7600
      %v7602 = vcvt.f32.s32 %v7596
      %v7603 = vshll.u32 %v7602, 16
      %v7604 = vadd.s32 %v7603, %v7601
      %v7605 = vsel %vm366, %v6203, 2147483647
      %v7606 = vand.u32 %v7605, 65535
      %v7607 = vshra.s32 %v7605, 16
      %v7608 = vcvt.s32.f32 %v7606
      %v7609 = vcvt.s32.f32 %v7607
      %7610 = vmin.xlane.f32.xlu0 %v7609
      %v7611 = vpop.xlane.xlu0 %7610
      %vm7612 = vcmp.eq.f32.partialorder %v7609, %v7611
      %v7613 = vsel %vm7612, %v7608, inf
      %7614 = vmin.xlane.f32.xlu0 %v7613
      %v7615 = vpop.xlane.xlu0 %7614
      %v7616 = vcvt.f32.s32 %v7615
      %v7617 = vcvt.f32.s32 %v7611
      %v7618 = vshll.u32 %v7617, 16
      %v7619 = vadd.s32 %v7618, %v7616
      %v7620 = vsel %vm366, %v6204, 2147483647
      %v7621 = vand.u32 %v7620, 65535
      %v7622 = vshra.s32 %v7620, 16
      %v7623 = vcvt.s32.f32 %v7621
      %v7624 = vcvt.s32.f32 %v7622
      %7625 = vmin.xlane.f32.xlu0 %v7624
      %v7626 = vpop.xlane.xlu0 %7625
      %vm7627 = vcmp.eq.f32.partialorder %v7624, %v7626
      %v7628 = vsel %vm7627, %v7623, inf
      %7629 = vmin.xlane.f32.xlu0 %v7628
      %v7630 = vpop.xlane.xlu0 %7629
      %v7631 = vcvt.f32.s32 %v7630
      %v7632 = vcvt.f32.s32 %v7626
      %v7633 = vshll.u32 %v7632, 16
      %v7634 = vadd.s32 %v7633, %v7631
      %v7635 = vsel %vm366, %v6205, 2147483647
      %v7636 = vand.u32 %v7635, 65535
      %v7637 = vshra.s32 %v7635, 16
      %v7638 = vcvt.s32.f32 %v7636
      %v7639 = vcvt.s32.f32 %v7637
      %7640 = vmin.xlane.f32.xlu0 %v7639
      %v7641 = vpop.xlane.xlu0 %7640
      %vm7642 = vcmp.eq.f32.partialorder %v7639, %v7641
      %v7643 = vsel %vm7642, %v7638, inf
      %7644 = vmin.xlane.f32.xlu0 %v7643
      %v7645 = vpop.xlane.xlu0 %7644
      %v7646 = vcvt.f32.s32 %v7645
      %v7647 = vcvt.f32.s32 %v7641
      %v7648 = vshll.u32 %v7647, 16
      %v7649 = vadd.s32 %v7648, %v7646
      %v7650 = vsel %vm366, %v6206, 2147483647
      %v7651 = vand.u32 %v7650, 65535
      %v7652 = vshra.s32 %v7650, 16
      %v7653 = vcvt.s32.f32 %v7651
      %v7654 = vcvt.s32.f32 %v7652
      %7655 = vmin.xlane.f32.xlu0 %v7654
      %v7656 = vpop.xlane.xlu0 %7655
      %vm7657 = vcmp.eq.f32.partialorder %v7654, %v7656
      %v7658 = vsel %vm7657, %v7653, inf
      %7659 = vmin.xlane.f32.xlu0 %v7658
      %v7660 = vpop.xlane.xlu0 %7659
      %v7661 = vcvt.f32.s32 %v7660
      %v7662 = vcvt.f32.s32 %v7656
      %v7663 = vshll.u32 %v7662, 16
      %v7664 = vadd.s32 %v7663, %v7661
      %v7665 = vsel %vm366, %v6207, 2147483647
      %v7666 = vand.u32 %v7665, 65535
      %v7667 = vshra.s32 %v7665, 16
      %v7668 = vcvt.s32.f32 %v7666
      %v7669 = vcvt.s32.f32 %v7667
      %7670 = vmin.xlane.f32.xlu0 %v7669
      %v7671 = vpop.xlane.xlu0 %7670
      %vm7672 = vcmp.eq.f32.partialorder %v7669, %v7671
      %v7673 = vsel %vm7672, %v7668, inf
      %7674 = vmin.xlane.f32.xlu0 %v7673
      %v7675 = vpop.xlane.xlu0 %7674
      %v7676 = vcvt.f32.s32 %v7675
      %v7677 = vcvt.f32.s32 %v7671
      %v7678 = vshll.u32 %v7677, 16
      %v7679 = vadd.s32 %v7678, %v7676
      %v7680 = vsel %vm366, %v6208, 2147483647
      %v7681 = vand.u32 %v7680, 65535
      %v7682 = vshra.s32 %v7680, 16
      %v7683 = vcvt.s32.f32 %v7681
      %v7684 = vcvt.s32.f32 %v7682
      %7685 = vmin.xlane.f32.xlu0 %v7684
      %v7686 = vpop.xlane.xlu0 %7685
      %vm7687 = vcmp.eq.f32.partialorder %v7684, %v7686
      %v7688 = vsel %vm7687, %v7683, inf
      %7689 = vmin.xlane.f32.xlu0 %v7688
      %v7690 = vpop.xlane.xlu0 %7689
      %v7691 = vcvt.f32.s32 %v7690
      %v7692 = vcvt.f32.s32 %v7686
      %v7693 = vshll.u32 %v7692, 16
      %v7694 = vadd.s32 %v7693, %v7691
      %v7695 = vsel %vm366, %v6209, 2147483647
      %v7696 = vand.u32 %v7695, 65535
      %v7697 = vshra.s32 %v7695, 16
      %v7698 = vcvt.s32.f32 %v7696
      %v7699 = vcvt.s32.f32 %v7697
      %7700 = vmin.xlane.f32.xlu0 %v7699
      %v7701 = vpop.xlane.xlu0 %7700
      %vm7702 = vcmp.eq.f32.partialorder %v7699, %v7701
      %v7703 = vsel %vm7702, %v7698, inf
      %7704 = vmin.xlane.f32.xlu0 %v7703
      %v7705 = vpop.xlane.xlu0 %7704
      %v7706 = vcvt.f32.s32 %v7705
      %v7707 = vcvt.f32.s32 %v7701
      %v7708 = vshll.u32 %v7707, 16
      %v7709 = vadd.s32 %v7708, %v7706
      %v7710 = vsel %vm366, %v6210, 2147483647
      %v7711 = vand.u32 %v7710, 65535
      %v7712 = vshra.s32 %v7710, 16
      %v7713 = vcvt.s32.f32 %v7711
      %v7714 = vcvt.s32.f32 %v7712
      %7715 = vmin.xlane.f32.xlu0 %v7714
      %v7716 = vpop.xlane.xlu0 %7715
      %vm7717 = vcmp.eq.f32.partialorder %v7714, %v7716
      %v7718 = vsel %vm7717, %v7713, inf
      %7719 = vmin.xlane.f32.xlu0 %v7718
      %v7720 = vpop.xlane.xlu0 %7719
      %v7721 = vcvt.f32.s32 %v7720
      %v7722 = vcvt.f32.s32 %v7716
      %v7723 = vshll.u32 %v7722, 16
      %v7724 = vadd.s32 %v7723, %v7721
      %v7725 = vsel %vm366, %v6211, 2147483647
      %v7726 = vand.u32 %v7725, 65535
      %v7727 = vshra.s32 %v7725, 16
      %v7728 = vcvt.s32.f32 %v7726
      %v7729 = vcvt.s32.f32 %v7727
      %7730 = vmin.xlane.f32.xlu0 %v7729
      %v7731 = vpop.xlane.xlu0 %7730
      %vm7732 = vcmp.eq.f32.partialorder %v7729, %v7731
      %v7733 = vsel %vm7732, %v7728, inf
      %7734 = vmin.xlane.f32.xlu0 %v7733
      %v7735 = vpop.xlane.xlu0 %7734
      %v7736 = vcvt.f32.s32 %v7735
      %v7737 = vcvt.f32.s32 %v7731
      %v7738 = vshll.u32 %v7737, 16
      %v7739 = vadd.s32 %v7738, %v7736
      %v7740 = vsel %vm366, %v6212, 2147483647
      %v7741 = vand.u32 %v7740, 65535
      %v7742 = vshra.s32 %v7740, 16
      %v7743 = vcvt.s32.f32 %v7741
      %v7744 = vcvt.s32.f32 %v7742
      %7745 = vmin.xlane.f32.xlu0 %v7744
      %v7746 = vpop.xlane.xlu0 %7745
      %vm7747 = vcmp.eq.f32.partialorder %v7744, %v7746
      %v7748 = vsel %vm7747, %v7743, inf
      %7749 = vmin.xlane.f32.xlu0 %v7748
      %v7750 = vpop.xlane.xlu0 %7749
      %v7751 = vcvt.f32.s32 %v7750
      %v7752 = vcvt.f32.s32 %v7746
      %v7753 = vshll.u32 %v7752, 16
      %v7754 = vadd.s32 %v7753, %v7751
      %v7755 = vsel %vm366, %v6213, 2147483647
      %v7756 = vand.u32 %v7755, 65535
      %v7757 = vshra.s32 %v7755, 16
      %v7758 = vcvt.s32.f32 %v7756
      %v7759 = vcvt.s32.f32 %v7757
      %7760 = vmin.xlane.f32.xlu0 %v7759
      %v7761 = vpop.xlane.xlu0 %7760
      %vm7762 = vcmp.eq.f32.partialorder %v7759, %v7761
      %v7763 = vsel %vm7762, %v7758, inf
      %7764 = vmin.xlane.f32.xlu0 %v7763
      %v7765 = vpop.xlane.xlu0 %7764
      %v7766 = vcvt.f32.s32 %v7765
      %v7767 = vcvt.f32.s32 %v7761
      %v7768 = vshll.u32 %v7767, 16
      %v7769 = vadd.s32 %v7768, %v7766
      %v7770 = vsel %vm366, %v6214, 2147483647
      %v7771 = vand.u32 %v7770, 65535
      %v7772 = vshra.s32 %v7770, 16
      %v7773 = vcvt.s32.f32 %v7771
      %v7774 = vcvt.s32.f32 %v7772
      %7775 = vmin.xlane.f32.xlu0 %v7774
      %v7776 = vpop.xlane.xlu0 %7775
      %vm7777 = vcmp.eq.f32.partialorder %v7774, %v7776
      %v7778 = vsel %vm7777, %v7773, inf
      %7779 = vmin.xlane.f32.xlu0 %v7778
      %v7780 = vpop.xlane.xlu0 %7779
      %v7781 = vcvt.f32.s32 %v7780
      %v7782 = vcvt.f32.s32 %v7776
      %v7783 = vshll.u32 %v7782, 16
      %v7784 = vadd.s32 %v7783, %v7781
      %v7785 = vsel %vm366, %v6215, 2147483647
      %v7786 = vand.u32 %v7785, 65535
      %v7787 = vshra.s32 %v7785, 16
      %v7788 = vcvt.s32.f32 %v7786
      %v7789 = vcvt.s32.f32 %v7787
      %7790 = vmin.xlane.f32.xlu0 %v7789
      %v7791 = vpop.xlane.xlu0 %7790
      %vm7792 = vcmp.eq.f32.partialorder %v7789, %v7791
      %v7793 = vsel %vm7792, %v7788, inf
      %7794 = vmin.xlane.f32.xlu0 %v7793
      %v7795 = vpop.xlane.xlu0 %7794
      %v7796 = vcvt.f32.s32 %v7795
      %v7797 = vcvt.f32.s32 %v7791
      %v7798 = vshll.u32 %v7797, 16
      %v7799 = vadd.s32 %v7798, %v7796
      %v7800 = vsel %vm366, %v6216, 2147483647
      %v7801 = vand.u32 %v7800, 65535
      %v7802 = vshra.s32 %v7800, 16
      %v7803 = vcvt.s32.f32 %v7801
      %v7804 = vcvt.s32.f32 %v7802
      %7805 = vmin.xlane.f32.xlu0 %v7804
      %v7806 = vpop.xlane.xlu0 %7805
      %vm7807 = vcmp.eq.f32.partialorder %v7804, %v7806
      %v7808 = vsel %vm7807, %v7803, inf
      %7809 = vmin.xlane.f32.xlu0 %v7808
      %v7810 = vpop.xlane.xlu0 %7809
      %v7811 = vcvt.f32.s32 %v7810
      %v7812 = vcvt.f32.s32 %v7806
      %v7813 = vshll.u32 %v7812, 16
      %v7814 = vadd.s32 %v7813, %v7811
      %v7815 = vsel %vm366, %v6217, 2147483647
      %v7816 = vand.u32 %v7815, 65535
      %v7817 = vshra.s32 %v7815, 16
      %v7818 = vcvt.s32.f32 %v7816
      %v7819 = vcvt.s32.f32 %v7817
      %7820 = vmin.xlane.f32.xlu0 %v7819
      %v7821 = vpop.xlane.xlu0 %7820
      %vm7822 = vcmp.eq.f32.partialorder %v7819, %v7821
      %v7823 = vsel %vm7822, %v7818, inf
      %7824 = vmin.xlane.f32.xlu0 %v7823
      %v7825 = vpop.xlane.xlu0 %7824
      %v7826 = vcvt.f32.s32 %v7825
      %v7827 = vcvt.f32.s32 %v7821
      %v7828 = vshll.u32 %v7827, 16
      %v7829 = vadd.s32 %v7828, %v7826
      %v7830 = vsel %vm366, %v6218, 2147483647
      %v7831 = vand.u32 %v7830, 65535
      %v7832 = vshra.s32 %v7830, 16
      %v7833 = vcvt.s32.f32 %v7831
      %v7834 = vcvt.s32.f32 %v7832
      %7835 = vmin.xlane.f32.xlu0 %v7834
      %v7836 = vpop.xlane.xlu0 %7835
      %vm7837 = vcmp.eq.f32.partialorder %v7834, %v7836
      %v7838 = vsel %vm7837, %v7833, inf
      %7839 = vmin.xlane.f32.xlu0 %v7838
      %v7840 = vpop.xlane.xlu0 %7839
      %v7841 = vcvt.f32.s32 %v7840
      %v7842 = vcvt.f32.s32 %v7836
      %v7843 = vshll.u32 %v7842, 16
      %v7844 = vadd.s32 %v7843, %v7841
      %v7845 = vsel %vm366, %v6219, 2147483647
      %v7846 = vand.u32 %v7845, 65535
      %v7847 = vshra.s32 %v7845, 16
      %v7848 = vcvt.s32.f32 %v7846
      %v7849 = vcvt.s32.f32 %v7847
      %7850 = vmin.xlane.f32.xlu0 %v7849
      %v7851 = vpop.xlane.xlu0 %7850
      %vm7852 = vcmp.eq.f32.partialorder %v7849, %v7851
      %v7853 = vsel %vm7852, %v7848, inf
      %7854 = vmin.xlane.f32.xlu0 %v7853
      %v7855 = vpop.xlane.xlu0 %7854
      %v7856 = vcvt.f32.s32 %v7855
      %v7857 = vcvt.f32.s32 %v7851
      %v7858 = vshll.u32 %v7857, 16
      %v7859 = vadd.s32 %v7858, %v7856
      %v7860 = vsel %vm366, %v6220, 2147483647
      %v7861 = vand.u32 %v7860, 65535
      %v7862 = vshra.s32 %v7860, 16
      %v7863 = vcvt.s32.f32 %v7861
      %v7864 = vcvt.s32.f32 %v7862
      %7865 = vmin.xlane.f32.xlu0 %v7864
      %v7866 = vpop.xlane.xlu0 %7865
      %vm7867 = vcmp.eq.f32.partialorder %v7864, %v7866
      %v7868 = vsel %vm7867, %v7863, inf
      %7869 = vmin.xlane.f32.xlu0 %v7868
      %v7870 = vpop.xlane.xlu0 %7869
      %v7871 = vcvt.f32.s32 %v7870
      %v7872 = vcvt.f32.s32 %v7866
      %v7873 = vshll.u32 %v7872, 16
      %v7874 = vadd.s32 %v7873, %v7871
      %v7875 = vsel %vm366, %v6221, 2147483647
      %v7876 = vand.u32 %v7875, 65535
      %v7877 = vshra.s32 %v7875, 16
      %v7878 = vcvt.s32.f32 %v7876
      %v7879 = vcvt.s32.f32 %v7877
      %7880 = vmin.xlane.f32.xlu0 %v7879
      %v7881 = vpop.xlane.xlu0 %7880
      %vm7882 = vcmp.eq.f32.partialorder %v7879, %v7881
      %v7883 = vsel %vm7882, %v7878, inf
      %7884 = vmin.xlane.f32.xlu0 %v7883
      %v7885 = vpop.xlane.xlu0 %7884
      %v7886 = vcvt.f32.s32 %v7885
      %v7887 = vcvt.f32.s32 %v7881
      %v7888 = vshll.u32 %v7887, 16
      %v7889 = vadd.s32 %v7888, %v7886
      %v7890 = vsel %vm366, %v6222, 2147483647
      %v7891 = vand.u32 %v7890, 65535
      %v7892 = vshra.s32 %v7890, 16
      %v7893 = vcvt.s32.f32 %v7891
      %v7894 = vcvt.s32.f32 %v7892
      %7895 = vmin.xlane.f32.xlu0 %v7894
      %v7896 = vpop.xlane.xlu0 %7895
      %vm7897 = vcmp.eq.f32.partialorder %v7894, %v7896
      %v7898 = vsel %vm7897, %v7893, inf
      %7899 = vmin.xlane.f32.xlu0 %v7898
      %v7900 = vpop.xlane.xlu0 %7899
      %v7901 = vcvt.f32.s32 %v7900
      %v7902 = vcvt.f32.s32 %v7896
      %v7903 = vshll.u32 %v7902, 16
      %v7904 = vadd.s32 %v7903, %v7901
      %v7905 = vsel %vm366, %v6223, 2147483647
      %v7906 = vand.u32 %v7905, 65535
      %v7907 = vshra.s32 %v7905, 16
      %v7908 = vcvt.s32.f32 %v7906
      %v7909 = vcvt.s32.f32 %v7907
      %7910 = vmin.xlane.f32.xlu0 %v7909
      %v7911 = vpop.xlane.xlu0 %7910
      %vm7912 = vcmp.eq.f32.partialorder %v7909, %v7911
      %v7913 = vsel %vm7912, %v7908, inf
      %7914 = vmin.xlane.f32.xlu0 %v7913
      %v7915 = vpop.xlane.xlu0 %7914
      %v7916 = vcvt.f32.s32 %v7915
      %v7917 = vcvt.f32.s32 %v7911
      %v7918 = vshll.u32 %v7917, 16
      %v7919 = vadd.s32 %v7918, %v7916
      %v7920 = vsel %vm366, %v6224, 2147483647
      %v7921 = vand.u32 %v7920, 65535
      %v7922 = vshra.s32 %v7920, 16
      %v7923 = vcvt.s32.f32 %v7921
      %v7924 = vcvt.s32.f32 %v7922
      %7925 = vmin.xlane.f32.xlu0 %v7924
      %v7926 = vpop.xlane.xlu0 %7925
      %vm7927 = vcmp.eq.f32.partialorder %v7924, %v7926
      %v7928 = vsel %vm7927, %v7923, inf
      %7929 = vmin.xlane.f32.xlu0 %v7928
      %v7930 = vpop.xlane.xlu0 %7929
      %v7931 = vcvt.f32.s32 %v7930
      %v7932 = vcvt.f32.s32 %v7926
      %v7933 = vshll.u32 %v7932, 16
      %v7934 = vadd.s32 %v7933, %v7931
      %v7935 = vsel %vm366, %v6225, 2147483647
      %v7936 = vand.u32 %v7935, 65535
      %v7937 = vshra.s32 %v7935, 16
      %v7938 = vcvt.s32.f32 %v7936
      %v7939 = vcvt.s32.f32 %v7937
      %7940 = vmin.xlane.f32.xlu0 %v7939
      %v7941 = vpop.xlane.xlu0 %7940
      %vm7942 = vcmp.eq.f32.partialorder %v7939, %v7941
      %v7943 = vsel %vm7942, %v7938, inf
      %7944 = vmin.xlane.f32.xlu0 %v7943
      %v7945 = vpop.xlane.xlu0 %7944
      %v7946 = vcvt.f32.s32 %v7945
      %v7947 = vcvt.f32.s32 %v7941
      %v7948 = vshll.u32 %v7947, 16
      %v7949 = vadd.s32 %v7948, %v7946
      %v7950 = vsel %vm366, %v6226, 2147483647
      %v7951 = vand.u32 %v7950, 65535
      %v7952 = vshra.s32 %v7950, 16
      %v7953 = vcvt.s32.f32 %v7951
      %v7954 = vcvt.s32.f32 %v7952
      %7955 = vmin.xlane.f32.xlu0 %v7954
      %v7956 = vpop.xlane.xlu0 %7955
      %vm7957 = vcmp.eq.f32.partialorder %v7954, %v7956
      %v7958 = vsel %vm7957, %v7953, inf
      %7959 = vmin.xlane.f32.xlu0 %v7958
      %v7960 = vpop.xlane.xlu0 %7959
      %v7961 = vcvt.f32.s32 %v7960
      %v7962 = vcvt.f32.s32 %v7956
      %v7963 = vshll.u32 %v7962, 16
      %v7964 = vadd.s32 %v7963, %v7961
      %v7965 = vsel %vm366, %v6227, 2147483647
      %v7966 = vand.u32 %v7965, 65535
      %v7967 = vshra.s32 %v7965, 16
      %v7968 = vcvt.s32.f32 %v7966
      %v7969 = vcvt.s32.f32 %v7967
      %7970 = vmin.xlane.f32.xlu0 %v7969
      %v7971 = vpop.xlane.xlu0 %7970
      %vm7972 = vcmp.eq.f32.partialorder %v7969, %v7971
      %v7973 = vsel %vm7972, %v7968, inf
      %7974 = vmin.xlane.f32.xlu0 %v7973
      %v7975 = vpop.xlane.xlu0 %7974
      %v7976 = vcvt.f32.s32 %v7975
      %v7977 = vcvt.f32.s32 %v7971
      %v7978 = vshll.u32 %v7977, 16
      %v7979 = vadd.s32 %v7978, %v7976
      %v7980 = vsel %vm366, %v6228, 2147483647
      %v7981 = vand.u32 %v7980, 65535
      %v7982 = vshra.s32 %v7980, 16
      %v7983 = vcvt.s32.f32 %v7981
      %v7984 = vcvt.s32.f32 %v7982
      %7985 = vmin.xlane.f32.xlu0 %v7984
      %v7986 = vpop.xlane.xlu0 %7985
      %vm7987 = vcmp.eq.f32.partialorder %v7984, %v7986
      %v7988 = vsel %vm7987, %v7983, inf
      %7989 = vmin.xlane.f32.xlu0 %v7988
      %v7990 = vpop.xlane.xlu0 %7989
      %v7991 = vcvt.f32.s32 %v7990
      %v7992 = vcvt.f32.s32 %v7986
      %v7993 = vshll.u32 %v7992, 16
      %v7994 = vadd.s32 %v7993, %v7991
      %v7995 = vsel %vm366, %v6229, 2147483647
      %v7996 = vand.u32 %v7995, 65535
      %v7997 = vshra.s32 %v7995, 16
      %v7998 = vcvt.s32.f32 %v7996
      %v7999 = vcvt.s32.f32 %v7997
      %8000 = vmin.xlane.f32.xlu0 %v7999
      %v8001 = vpop.xlane.xlu0 %8000
      %vm8002 = vcmp.eq.f32.partialorder %v7999, %v8001
      %v8003 = vsel %vm8002, %v7998, inf
      %8004 = vmin.xlane.f32.xlu0 %v8003
      %v8005 = vpop.xlane.xlu0 %8004
      %v8006 = vcvt.f32.s32 %v8005
      %v8007 = vcvt.f32.s32 %v8001
      %v8008 = vshll.u32 %v8007, 16
      %v8009 = vadd.s32 %v8008, %v8006
      %v8010 = vsel %vm366, %v6230, 2147483647
      %v8011 = vand.u32 %v8010, 65535
      %v8012 = vshra.s32 %v8010, 16
      %v8013 = vcvt.s32.f32 %v8011
      %v8014 = vcvt.s32.f32 %v8012
      %8015 = vmin.xlane.f32.xlu0 %v8014
      %v8016 = vpop.xlane.xlu0 %8015
      %vm8017 = vcmp.eq.f32.partialorder %v8014, %v8016
      %v8018 = vsel %vm8017, %v8013, inf
      %8019 = vmin.xlane.f32.xlu0 %v8018
      %v8020 = vpop.xlane.xlu0 %8019
      %v8021 = vcvt.f32.s32 %v8020
      %v8022 = vcvt.f32.s32 %v8016
      %v8023 = vshll.u32 %v8022, 16
      %v8024 = vadd.s32 %v8023, %v8021
      %v8025 = vsel %vm366, %v6231, 2147483647
      %v8026 = vand.u32 %v8025, 65535
      %v8027 = vshra.s32 %v8025, 16
      %v8028 = vcvt.s32.f32 %v8026
      %v8029 = vcvt.s32.f32 %v8027
      %8030 = vmin.xlane.f32.xlu0 %v8029
      %v8031 = vpop.xlane.xlu0 %8030
      %vm8032 = vcmp.eq.f32.partialorder %v8029, %v8031
      %v8033 = vsel %vm8032, %v8028, inf
      %8034 = vmin.xlane.f32.xlu0 %v8033
      %v8035 = vpop.xlane.xlu0 %8034
      %v8036 = vcvt.f32.s32 %v8035
      %v8037 = vcvt.f32.s32 %v8031
      %v8038 = vshll.u32 %v8037, 16
      %v8039 = vadd.s32 %v8038, %v8036
      %v8040 = vsel %vm366, %v6232, 2147483647
      %v8041 = vand.u32 %v8040, 65535
      %v8042 = vshra.s32 %v8040, 16
      %v8043 = vcvt.s32.f32 %v8041
      %v8044 = vcvt.s32.f32 %v8042
      %8045 = vmin.xlane.f32.xlu0 %v8044
      %v8046 = vpop.xlane.xlu0 %8045
      %vm8047 = vcmp.eq.f32.partialorder %v8044, %v8046
      %v8048 = vsel %vm8047, %v8043, inf
      %8049 = vmin.xlane.f32.xlu0 %v8048
      %v8050 = vpop.xlane.xlu0 %8049
      %v8051 = vcvt.f32.s32 %v8050
      %v8052 = vcvt.f32.s32 %v8046
      %v8053 = vshll.u32 %v8052, 16
      %v8054 = vadd.s32 %v8053, %v8051
      %v8055 = vsel %vm366, %v6233, 2147483647
      %v8056 = vand.u32 %v8055, 65535
      %v8057 = vshra.s32 %v8055, 16
      %v8058 = vcvt.s32.f32 %v8056
      %v8059 = vcvt.s32.f32 %v8057
      %8060 = vmin.xlane.f32.xlu0 %v8059
      %v8061 = vpop.xlane.xlu0 %8060
      %vm8062 = vcmp.eq.f32.partialorder %v8059, %v8061
      %v8063 = vsel %vm8062, %v8058, inf
      %8064 = vmin.xlane.f32.xlu0 %v8063
      %v8065 = vpop.xlane.xlu0 %8064
      %v8066 = vcvt.f32.s32 %v8065
      %v8067 = vcvt.f32.s32 %v8061
      %v8068 = vshll.u32 %v8067, 16
      %v8069 = vadd.s32 %v8068, %v8066
      %v8070 = vsel %vm366, %v6234, 2147483647
      %v8071 = vand.u32 %v8070, 65535
      %v8072 = vshra.s32 %v8070, 16
      %v8073 = vcvt.s32.f32 %v8071
      %v8074 = vcvt.s32.f32 %v8072
      %8075 = vmin.xlane.f32.xlu0 %v8074
      %v8076 = vpop.xlane.xlu0 %8075
      %vm8077 = vcmp.eq.f32.partialorder %v8074, %v8076
      %v8078 = vsel %vm8077, %v8073, inf
      %8079 = vmin.xlane.f32.xlu0 %v8078
      %v8080 = vpop.xlane.xlu0 %8079
      %v8081 = vcvt.f32.s32 %v8080
      %v8082 = vcvt.f32.s32 %v8076
      %v8083 = vshll.u32 %v8082, 16
      %v8084 = vadd.s32 %v8083, %v8081
      %v8085 = vsel %vm366, %v6235, 2147483647
      %v8086 = vand.u32 %v8085, 65535
      %v8087 = vshra.s32 %v8085, 16
      %v8088 = vcvt.s32.f32 %v8086
      %v8089 = vcvt.s32.f32 %v8087
      %8090 = vmin.xlane.f32.xlu0 %v8089
      %v8091 = vpop.xlane.xlu0 %8090
      %vm8092 = vcmp.eq.f32.partialorder %v8089, %v8091
      %v8093 = vsel %vm8092, %v8088, inf
      %8094 = vmin.xlane.f32.xlu0 %v8093
      %v8095 = vpop.xlane.xlu0 %8094
      %v8096 = vcvt.f32.s32 %v8095
      %v8097 = vcvt.f32.s32 %v8091
      %v8098 = vshll.u32 %v8097, 16
      %v8099 = vadd.s32 %v8098, %v8096
      %v8100 = vsel %vm366, %v6236, 2147483647
      %v8101 = vand.u32 %v8100, 65535
      %v8102 = vshra.s32 %v8100, 16
      %v8103 = vcvt.s32.f32 %v8101
      %v8104 = vcvt.s32.f32 %v8102
      %8105 = vmin.xlane.f32.xlu0 %v8104
      %v8106 = vpop.xlane.xlu0 %8105
      %vm8107 = vcmp.eq.f32.partialorder %v8104, %v8106
      %v8108 = vsel %vm8107, %v8103, inf
      %8109 = vmin.xlane.f32.xlu0 %v8108
      %v8110 = vpop.xlane.xlu0 %8109
      %v8111 = vcvt.f32.s32 %v8110
      %v8112 = vcvt.f32.s32 %v8106
      %v8113 = vshll.u32 %v8112, 16
      %v8114 = vadd.s32 %v8113, %v8111
      %v8115 = vsel %vm366, %v6237, 2147483647
      %v8116 = vand.u32 %v8115, 65535
      %v8117 = vshra.s32 %v8115, 16
      %v8118 = vcvt.s32.f32 %v8116
      %v8119 = vcvt.s32.f32 %v8117
      %8120 = vmin.xlane.f32.xlu0 %v8119
      %v8121 = vpop.xlane.xlu0 %8120
      %vm8122 = vcmp.eq.f32.partialorder %v8119, %v8121
      %v8123 = vsel %vm8122, %v8118, inf
      %8124 = vmin.xlane.f32.xlu0 %v8123
      %v8125 = vpop.xlane.xlu0 %8124
      %v8126 = vcvt.f32.s32 %v8125
      %v8127 = vcvt.f32.s32 %v8121
      %v8128 = vshll.u32 %v8127, 16
      %v8129 = vadd.s32 %v8128, %v8126
      %v8130 = vsel %vm366, %v6238, 2147483647
      %v8131 = vand.u32 %v8130, 65535
      %v8132 = vshra.s32 %v8130, 16
      %v8133 = vcvt.s32.f32 %v8131
      %v8134 = vcvt.s32.f32 %v8132
      %8135 = vmin.xlane.f32.xlu0 %v8134
      %v8136 = vpop.xlane.xlu0 %8135
      %vm8137 = vcmp.eq.f32.partialorder %v8134, %v8136
      %v8138 = vsel %vm8137, %v8133, inf
      %8139 = vmin.xlane.f32.xlu0 %v8138
      %v8140 = vpop.xlane.xlu0 %8139
      %v8141 = vcvt.f32.s32 %v8140
      %v8142 = vcvt.f32.s32 %v8136
      %v8143 = vshll.u32 %v8142, 16
      %v8144 = vadd.s32 %v8143, %v8141
      %v8145 = vsel %vm366, %v6239, 2147483647
      %v8146 = vand.u32 %v8145, 65535
      %v8147 = vshra.s32 %v8145, 16
      %v8148 = vcvt.s32.f32 %v8146
      %v8149 = vcvt.s32.f32 %v8147
      %8150 = vmin.xlane.f32.xlu0 %v8149
      %v8151 = vpop.xlane.xlu0 %8150
      %vm8152 = vcmp.eq.f32.partialorder %v8149, %v8151
      %v8153 = vsel %vm8152, %v8148, inf
      %8154 = vmin.xlane.f32.xlu0 %v8153
      %v8155 = vpop.xlane.xlu0 %8154
      %v8156 = vcvt.f32.s32 %v8155
      %v8157 = vcvt.f32.s32 %v8151
      %v8158 = vshll.u32 %v8157, 16
      %v8159 = vadd.s32 %v8158, %v8156
      %v8160 = vlaneseq
      %v8161 = vshrl.u32 %v8160, 7
      %vm8162 = vcmp.eq.s32.totalorder %v8161, 0
      %v8163 = vsel %vm8162, 1, 0
      %v8164 = vmul.u32 %v6254, %v8163
      %v8165 = vmul.u32 %v6374, %v8163
      %v8166 = vmul.u32 %v6494, %v8163
      %v8167 = vmul.u32 %v6614, %v8163
      %v8168 = vmul.u32 %v6734, %v8163
      %v8169 = vmul.u32 %v6854, %v8163
      %v8170 = vmul.u32 %v6974, %v8163
      %v8171 = vmul.u32 %v7094, %v8163
      %v8172 = vmul.u32 %v7214, %v8163
      %v8173 = vmul.u32 %v7334, %v8163
      %v8174 = vmul.u32 %v7454, %v8163
      %v8175 = vmul.u32 %v7574, %v8163
      %v8176 = vmul.u32 %v7694, %v8163
      %v8177 = vmul.u32 %v7814, %v8163
      %v8178 = vmul.u32 %v7934, %v8163
      %v8179 = vmul.u32 %v8054, %v8163
      %v8180 = vrot.slane %v8164, 4
      %v8181 = vadd.s32 %v8164, %v8180
      %v8182 = vrot.slane %v8181, 2
      %v8183 = vadd.s32 %v8181, %v8182
      %v8184 = vrot.slane %v8183, 1
      %v8185 = vadd.s32 %v8183, %v8184
      %v8186 = vrot.slane %v8165, 4
      %v8187 = vadd.s32 %v8165, %v8186
      %v8188 = vrot.slane %v8187, 2
      %v8189 = vadd.s32 %v8187, %v8188
      %v8190 = vrot.slane %v8189, 1
      %v8191 = vadd.s32 %v8189, %v8190
      %v8192 = vrot.slane %v8166, 4
      %v8193 = vadd.s32 %v8166, %v8192
      %v8194 = vrot.slane %v8193, 2
      %v8195 = vadd.s32 %v8193, %v8194
      %v8196 = vrot.slane %v8195, 1
      %v8197 = vadd.s32 %v8195, %v8196
      %v8198 = vrot.slane %v8167, 4
      %v8199 = vadd.s32 %v8167, %v8198
      %v8200 = vrot.slane %v8199, 2
      %v8201 = vadd.s32 %v8199, %v8200
      %v8202 = vrot.slane %v8201, 1
      %v8203 = vadd.s32 %v8201, %v8202
      %v8204 = vrot.slane %v8168, 4
      %v8205 = vadd.s32 %v8168, %v8204
      %v8206 = vrot.slane %v8205, 2
      %v8207 = vadd.s32 %v8205, %v8206
      %v8208 = vrot.slane %v8207, 1
      %v8209 = vadd.s32 %v8207, %v8208
      %v8210 = vrot.slane %v8169, 4
      %v8211 = vadd.s32 %v8169, %v8210
      %v8212 = vrot.slane %v8211, 2
      %v8213 = vadd.s32 %v8211, %v8212
      %v8214 = vrot.slane %v8213, 1
      %v8215 = vadd.s32 %v8213, %v8214
      %v8216 = vrot.slane %v8170, 4
      %v8217 = vadd.s32 %v8170, %v8216
      %v8218 = vrot.slane %v8217, 2
      %v8219 = vadd.s32 %v8217, %v8218
      %v8220 = vrot.slane %v8219, 1
      %v8221 = vadd.s32 %v8219, %v8220
      %v8222 = vrot.slane %v8171, 4
      %v8223 = vadd.s32 %v8171, %v8222
      %v8224 = vrot.slane %v8223, 2
      %v8225 = vadd.s32 %v8223, %v8224
      %v8226 = vrot.slane %v8225, 1
      %v8227 = vadd.s32 %v8225, %v8226
      %v8228 = vrot.slane %v8172, 4
      %v8229 = vadd.s32 %v8172, %v8228
      %v8230 = vrot.slane %v8229, 2
      %v8231 = vadd.s32 %v8229, %v8230
      %v8232 = vrot.slane %v8231, 1
      %v8233 = vadd.s32 %v8231, %v8232
      %v8234 = vrot.slane %v8173, 4
      %v8235 = vadd.s32 %v8173, %v8234
      %v8236 = vrot.slane %v8235, 2
      %v8237 = vadd.s32 %v8235, %v8236
      %v8238 = vrot.slane %v8237, 1
      %v8239 = vadd.s32 %v8237, %v8238
      %v8240 = vrot.slane %v8174, 4
      %v8241 = vadd.s32 %v8174, %v8240
      %v8242 = vrot.slane %v8241, 2
      %v8243 = vadd.s32 %v8241, %v8242
      %v8244 = vrot.slane %v8243, 1
      %v8245 = vadd.s32 %v8243, %v8244
      %v8246 = vrot.slane %v8175, 4
      %v8247 = vadd.s32 %v8175, %v8246
      %v8248 = vrot.slane %v8247, 2
      %v8249 = vadd.s32 %v8247, %v8248
      %v8250 = vrot.slane %v8249, 1
      %v8251 = vadd.s32 %v8249, %v8250
      %v8252 = vrot.slane %v8176, 4
      %v8253 = vadd.s32 %v8176, %v8252
      %v8254 = vrot.slane %v8253, 2
      %v8255 = vadd.s32 %v8253, %v8254
      %v8256 = vrot.slane %v8255, 1
      %v8257 = vadd.s32 %v8255, %v8256
      %v8258 = vrot.slane %v8177, 4
      %v8259 = vadd.s32 %v8177, %v8258
      %v8260 = vrot.slane %v8259, 2
      %v8261 = vadd.s32 %v8259, %v8260
      %v8262 = vrot.slane %v8261, 1
      %v8263 = vadd.s32 %v8261, %v8262
      %v8264 = vrot.slane %v8178, 4
      %v8265 = vadd.s32 %v8178, %v8264
      %v8266 = vrot.slane %v8265, 2
      %v8267 = vadd.s32 %v8265, %v8266
      %v8268 = vrot.slane %v8267, 1
      %v8269 = vadd.s32 %v8267, %v8268
      %v8270 = vrot.slane %v8179, 4
      %v8271 = vadd.s32 %v8179, %v8270
      %v8272 = vrot.slane %v8271, 2
      %v8273 = vadd.s32 %v8271, %v8272
      %v8274 = vrot.slane %v8273, 1
      %v8275 = vadd.s32 %v8273, %v8274
      %vm8276 = vcmp.eq.s32.totalorder %v8161, %v8185
      %vm8277 = vcmp.eq.s32.totalorder %v8161, %v8191
      %vm8278 = vcmp.eq.s32.totalorder %v8161, %v8197
      %vm8279 = vcmp.eq.s32.totalorder %v8161, %v8203
      %vm8280 = vcmp.eq.s32.totalorder %v8161, %v8209
      %vm8281 = vcmp.eq.s32.totalorder %v8161, %v8215
      %vm8282 = vcmp.eq.s32.totalorder %v8161, %v8221
      %vm8283 = vcmp.eq.s32.totalorder %v8161, %v8227
      %vm8284 = vcmp.eq.s32.totalorder %v8161, %v8233
      %vm8285 = vcmp.eq.s32.totalorder %v8161, %v8239
      %vm8286 = vcmp.eq.s32.totalorder %v8161, %v8245
      %vm8287 = vcmp.eq.s32.totalorder %v8161, %v8251
      %vm8288 = vcmp.eq.s32.totalorder %v8161, %v8257
      %vm8289 = vcmp.eq.s32.totalorder %v8161, %v8263
      %vm8290 = vcmp.eq.s32.totalorder %v8161, %v8269
      %vm8291 = vcmp.eq.s32.totalorder %v8161, %v8275
      %v8292 = vsel %vm8276, 1, 0
      %v8293 = vsel %vm8277, 1, 0
      %v8294 = vsel %vm8278, 1, 0
      %v8295 = vsel %vm8279, 1, 0
      %v8296 = vsel %vm8280, 1, 0
      %v8297 = vsel %vm8281, 1, 0
      %v8298 = vsel %vm8282, 1, 0
      %v8299 = vsel %vm8283, 1, 0
      %v8300 = vsel %vm8284, 1, 0
      %v8301 = vsel %vm8285, 1, 0
      %v8302 = vsel %vm8286, 1, 0
      %v8303 = vsel %vm8287, 1, 0
      %v8304 = vsel %vm8288, 1, 0
      %v8305 = vsel %vm8289, 1, 0
      %v8306 = vsel %vm8290, 1, 0
      %v8307 = vsel %vm8291, 1, 0
      %v8308 = vmul.u32 %v6269, %v8292
      %v8309 = vmul.u32 %v6389, %v8293
      %v8310 = vmul.u32 %v6509, %v8294
      %v8311 = vmul.u32 %v6629, %v8295
      %v8312 = vmul.u32 %v6749, %v8296
      %v8313 = vmul.u32 %v6869, %v8297
      %v8314 = vmul.u32 %v6989, %v8298
      %v8315 = vmul.u32 %v7109, %v8299
      %v8316 = vmul.u32 %v7229, %v8300
      %v8317 = vmul.u32 %v7349, %v8301
      %v8318 = vmul.u32 %v7469, %v8302
      %v8319 = vmul.u32 %v7589, %v8303
      %v8320 = vmul.u32 %v7709, %v8304
      %v8321 = vmul.u32 %v7829, %v8305
      %v8322 = vmul.u32 %v7949, %v8306
      %v8323 = vmul.u32 %v8069, %v8307
      %v8324 = vrot.slane %v8308, 4
      %v8325 = vadd.s32 %v8308, %v8324
      %v8326 = vrot.slane %v8325, 2
      %v8327 = vadd.s32 %v8325, %v8326
      %v8328 = vrot.slane %v8327, 1
      %v8329 = vadd.s32 %v8327, %v8328
      %v8330 = vrot.slane %v8309, 4
      %v8331 = vadd.s32 %v8309, %v8330
      %v8332 = vrot.slane %v8331, 2
      %v8333 = vadd.s32 %v8331, %v8332
      %v8334 = vrot.slane %v8333, 1
      %v8335 = vadd.s32 %v8333, %v8334
      %v8336 = vrot.slane %v8310, 4
      %v8337 = vadd.s32 %v8310, %v8336
      %v8338 = vrot.slane %v8337, 2
      %v8339 = vadd.s32 %v8337, %v8338
      %v8340 = vrot.slane %v8339, 1
      %v8341 = vadd.s32 %v8339, %v8340
      %v8342 = vrot.slane %v8311, 4
      %v8343 = vadd.s32 %v8311, %v8342
      %v8344 = vrot.slane %v8343, 2
      %v8345 = vadd.s32 %v8343, %v8344
      %v8346 = vrot.slane %v8345, 1
      %v8347 = vadd.s32 %v8345, %v8346
      %v8348 = vrot.slane %v8312, 4
      %v8349 = vadd.s32 %v8312, %v8348
      %v8350 = vrot.slane %v8349, 2
      %v8351 = vadd.s32 %v8349, %v8350
      %v8352 = vrot.slane %v8351, 1
      %v8353 = vadd.s32 %v8351, %v8352
      %v8354 = vrot.slane %v8313, 4
      %v8355 = vadd.s32 %v8313, %v8354
      %v8356 = vrot.slane %v8355, 2
      %v8357 = vadd.s32 %v8355, %v8356
      %v8358 = vrot.slane %v8357, 1
      %v8359 = vadd.s32 %v8357, %v8358
      %v8360 = vrot.slane %v8314, 4
      %v8361 = vadd.s32 %v8314, %v8360
      %v8362 = vrot.slane %v8361, 2
      %v8363 = vadd.s32 %v8361, %v8362
      %v8364 = vrot.slane %v8363, 1
      %v8365 = vadd.s32 %v8363, %v8364
      %v8366 = vrot.slane %v8315, 4
      %v8367 = vadd.s32 %v8315, %v8366
      %v8368 = vrot.slane %v8367, 2
      %v8369 = vadd.s32 %v8367, %v8368
      %v8370 = vrot.slane %v8369, 1
      %v8371 = vadd.s32 %v8369, %v8370
      %v8372 = vrot.slane %v8316, 4
      %v8373 = vadd.s32 %v8316, %v8372
      %v8374 = vrot.slane %v8373, 2
      %v8375 = vadd.s32 %v8373, %v8374
      %v8376 = vrot.slane %v8375, 1
      %v8377 = vadd.s32 %v8375, %v8376
      %v8378 = vrot.slane %v8317, 4
      %v8379 = vadd.s32 %v8317, %v8378
      %v8380 = vrot.slane %v8379, 2
      %v8381 = vadd.s32 %v8379, %v8380
      %v8382 = vrot.slane %v8381, 1
      %v8383 = vadd.s32 %v8381, %v8382
      %v8384 = vrot.slane %v8318, 4
      %v8385 = vadd.s32 %v8318, %v8384
      %v8386 = vrot.slane %v8385, 2
      %v8387 = vadd.s32 %v8385, %v8386
      %v8388 = vrot.slane %v8387, 1
      %v8389 = vadd.s32 %v8387, %v8388
      %v8390 = vrot.slane %v8319, 4
      %v8391 = vadd.s32 %v8319, %v8390
      %v8392 = vrot.slane %v8391, 2
      %v8393 = vadd.s32 %v8391, %v8392
      %v8394 = vrot.slane %v8393, 1
      %v8395 = vadd.s32 %v8393, %v8394
      %v8396 = vrot.slane %v8320, 4
      %v8397 = vadd.s32 %v8320, %v8396
      %v8398 = vrot.slane %v8397, 2
      %v8399 = vadd.s32 %v8397, %v8398
      %v8400 = vrot.slane %v8399, 1
      %v8401 = vadd.s32 %v8399, %v8400
      %v8402 = vrot.slane %v8321, 4
      %v8403 = vadd.s32 %v8321, %v8402
      %v8404 = vrot.slane %v8403, 2
      %v8405 = vadd.s32 %v8403, %v8404
      %v8406 = vrot.slane %v8405, 1
      %v8407 = vadd.s32 %v8405, %v8406
      %v8408 = vrot.slane %v8322, 4
      %v8409 = vadd.s32 %v8322, %v8408
      %v8410 = vrot.slane %v8409, 2
      %v8411 = vadd.s32 %v8409, %v8410
      %v8412 = vrot.slane %v8411, 1
      %v8413 = vadd.s32 %v8411, %v8412
      %v8414 = vrot.slane %v8323, 4
      %v8415 = vadd.s32 %v8323, %v8414
      %v8416 = vrot.slane %v8415, 2
      %v8417 = vadd.s32 %v8415, %v8416
      %v8418 = vrot.slane %v8417, 1
      %v8419 = vadd.s32 %v8417, %v8418
      %vm8420 = vcmp.eq.s32.totalorder %v8161, %v8329
      %vm8421 = vcmp.eq.s32.totalorder %v8161, %v8335
      %vm8422 = vcmp.eq.s32.totalorder %v8161, %v8341
      %vm8423 = vcmp.eq.s32.totalorder %v8161, %v8347
      %vm8424 = vcmp.eq.s32.totalorder %v8161, %v8353
      %vm8425 = vcmp.eq.s32.totalorder %v8161, %v8359
      %vm8426 = vcmp.eq.s32.totalorder %v8161, %v8365
      %vm8427 = vcmp.eq.s32.totalorder %v8161, %v8371
      %vm8428 = vcmp.eq.s32.totalorder %v8161, %v8377
      %vm8429 = vcmp.eq.s32.totalorder %v8161, %v8383
      %vm8430 = vcmp.eq.s32.totalorder %v8161, %v8389
      %vm8431 = vcmp.eq.s32.totalorder %v8161, %v8395
      %vm8432 = vcmp.eq.s32.totalorder %v8161, %v8401
      %vm8433 = vcmp.eq.s32.totalorder %v8161, %v8407
      %vm8434 = vcmp.eq.s32.totalorder %v8161, %v8413
      %vm8435 = vcmp.eq.s32.totalorder %v8161, %v8419
      %v8436 = vsel %vm8420, 1, 0
      %v8437 = vsel %vm8421, 1, 0
      %v8438 = vsel %vm8422, 1, 0
      %v8439 = vsel %vm8423, 1, 0
      %v8440 = vsel %vm8424, 1, 0
      %v8441 = vsel %vm8425, 1, 0
      %v8442 = vsel %vm8426, 1, 0
      %v8443 = vsel %vm8427, 1, 0
      %v8444 = vsel %vm8428, 1, 0
      %v8445 = vsel %vm8429, 1, 0
      %v8446 = vsel %vm8430, 1, 0
      %v8447 = vsel %vm8431, 1, 0
      %v8448 = vsel %vm8432, 1, 0
      %v8449 = vsel %vm8433, 1, 0
      %v8450 = vsel %vm8434, 1, 0
      %v8451 = vsel %vm8435, 1, 0
      %v8452 = vmul.u32 %v6284, %v8436
      %v8453 = vmul.u32 %v6404, %v8437
      %v8454 = vmul.u32 %v6524, %v8438
      %v8455 = vmul.u32 %v6644, %v8439
      %v8456 = vmul.u32 %v6764, %v8440
      %v8457 = vmul.u32 %v6884, %v8441
      %v8458 = vmul.u32 %v7004, %v8442
      %v8459 = vmul.u32 %v7124, %v8443
      %v8460 = vmul.u32 %v7244, %v8444
      %v8461 = vmul.u32 %v7364, %v8445
      %v8462 = vmul.u32 %v7484, %v8446
      %v8463 = vmul.u32 %v7604, %v8447
      %v8464 = vmul.u32 %v7724, %v8448
      %v8465 = vmul.u32 %v7844, %v8449
      %v8466 = vmul.u32 %v7964, %v8450
      %v8467 = vmul.u32 %v8084, %v8451
      %v8468 = vrot.slane %v8452, 4
      %v8469 = vadd.s32 %v8452, %v8468
      %v8470 = vrot.slane %v8469, 2
      %v8471 = vadd.s32 %v8469, %v8470
      %v8472 = vrot.slane %v8471, 1
      %v8473 = vadd.s32 %v8471, %v8472
      %v8474 = vrot.slane %v8453, 4
      %v8475 = vadd.s32 %v8453, %v8474
      %v8476 = vrot.slane %v8475, 2
      %v8477 = vadd.s32 %v8475, %v8476
      %v8478 = vrot.slane %v8477, 1
      %v8479 = vadd.s32 %v8477, %v8478
      %v8480 = vrot.slane %v8454, 4
      %v8481 = vadd.s32 %v8454, %v8480
      %v8482 = vrot.slane %v8481, 2
      %v8483 = vadd.s32 %v8481, %v8482
      %v8484 = vrot.slane %v8483, 1
      %v8485 = vadd.s32 %v8483, %v8484
      %v8486 = vrot.slane %v8455, 4
      %v8487 = vadd.s32 %v8455, %v8486
      %v8488 = vrot.slane %v8487, 2
      %v8489 = vadd.s32 %v8487, %v8488
      %v8490 = vrot.slane %v8489, 1
      %v8491 = vadd.s32 %v8489, %v8490
      %v8492 = vrot.slane %v8456, 4
      %v8493 = vadd.s32 %v8456, %v8492
      %v8494 = vrot.slane %v8493, 2
      %v8495 = vadd.s32 %v8493, %v8494
      %v8496 = vrot.slane %v8495, 1
      %v8497 = vadd.s32 %v8495, %v8496
      %v8498 = vrot.slane %v8457, 4
      %v8499 = vadd.s32 %v8457, %v8498
      %v8500 = vrot.slane %v8499, 2
      %v8501 = vadd.s32 %v8499, %v8500
      %v8502 = vrot.slane %v8501, 1
      %v8503 = vadd.s32 %v8501, %v8502
      %v8504 = vrot.slane %v8458, 4
      %v8505 = vadd.s32 %v8458, %v8504
      %v8506 = vrot.slane %v8505, 2
      %v8507 = vadd.s32 %v8505, %v8506
      %v8508 = vrot.slane %v8507, 1
      %v8509 = vadd.s32 %v8507, %v8508
      %v8510 = vrot.slane %v8459, 4
      %v8511 = vadd.s32 %v8459, %v8510
      %v8512 = vrot.slane %v8511, 2
      %v8513 = vadd.s32 %v8511, %v8512
      %v8514 = vrot.slane %v8513, 1
      %v8515 = vadd.s32 %v8513, %v8514
      %v8516 = vrot.slane %v8460, 4
      %v8517 = vadd.s32 %v8460, %v8516
      %v8518 = vrot.slane %v8517, 2
      %v8519 = vadd.s32 %v8517, %v8518
      %v8520 = vrot.slane %v8519, 1
      %v8521 = vadd.s32 %v8519, %v8520
      %v8522 = vrot.slane %v8461, 4
      %v8523 = vadd.s32 %v8461, %v8522
      %v8524 = vrot.slane %v8523, 2
      %v8525 = vadd.s32 %v8523, %v8524
      %v8526 = vrot.slane %v8525, 1
      %v8527 = vadd.s32 %v8525, %v8526
      %v8528 = vrot.slane %v8462, 4
      %v8529 = vadd.s32 %v8462, %v8528
      %v8530 = vrot.slane %v8529, 2
      %v8531 = vadd.s32 %v8529, %v8530
      %v8532 = vrot.slane %v8531, 1
      %v8533 = vadd.s32 %v8531, %v8532
      %v8534 = vrot.slane %v8463, 4
      %v8535 = vadd.s32 %v8463, %v8534
      %v8536 = vrot.slane %v8535, 2
      %v8537 = vadd.s32 %v8535, %v8536
      %v8538 = vrot.slane %v8537, 1
      %v8539 = vadd.s32 %v8537, %v8538
      %v8540 = vrot.slane %v8464, 4
      %v8541 = vadd.s32 %v8464, %v8540
      %v8542 = vrot.slane %v8541, 2
      %v8543 = vadd.s32 %v8541, %v8542
      %v8544 = vrot.slane %v8543, 1
      %v8545 = vadd.s32 %v8543, %v8544
      %v8546 = vrot.slane %v8465, 4
      %v8547 = vadd.s32 %v8465, %v8546
      %v8548 = vrot.slane %v8547, 2
      %v8549 = vadd.s32 %v8547, %v8548
      %v8550 = vrot.slane %v8549, 1
      %v8551 = vadd.s32 %v8549, %v8550
      %v8552 = vrot.slane %v8466, 4
      %v8553 = vadd.s32 %v8466, %v8552
      %v8554 = vrot.slane %v8553, 2
      %v8555 = vadd.s32 %v8553, %v8554
      %v8556 = vrot.slane %v8555, 1
      %v8557 = vadd.s32 %v8555, %v8556
      %v8558 = vrot.slane %v8467, 4
      %v8559 = vadd.s32 %v8467, %v8558
      %v8560 = vrot.slane %v8559, 2
      %v8561 = vadd.s32 %v8559, %v8560
      %v8562 = vrot.slane %v8561, 1
      %v8563 = vadd.s32 %v8561, %v8562
      %vm8564 = vcmp.eq.s32.totalorder %v8161, %v8473
      %vm8565 = vcmp.eq.s32.totalorder %v8161, %v8479
      %vm8566 = vcmp.eq.s32.totalorder %v8161, %v8485
      %vm8567 = vcmp.eq.s32.totalorder %v8161, %v8491
      %vm8568 = vcmp.eq.s32.totalorder %v8161, %v8497
      %vm8569 = vcmp.eq.s32.totalorder %v8161, %v8503
      %vm8570 = vcmp.eq.s32.totalorder %v8161, %v8509
      %vm8571 = vcmp.eq.s32.totalorder %v8161, %v8515
      %vm8572 = vcmp.eq.s32.totalorder %v8161, %v8521
      %vm8573 = vcmp.eq.s32.totalorder %v8161, %v8527
      %vm8574 = vcmp.eq.s32.totalorder %v8161, %v8533
      %vm8575 = vcmp.eq.s32.totalorder %v8161, %v8539
      %vm8576 = vcmp.eq.s32.totalorder %v8161, %v8545
      %vm8577 = vcmp.eq.s32.totalorder %v8161, %v8551
      %vm8578 = vcmp.eq.s32.totalorder %v8161, %v8557
      %vm8579 = vcmp.eq.s32.totalorder %v8161, %v8563
      %v8580 = vsel %vm8564, 1, 0
      %v8581 = vsel %vm8565, 1, 0
      %v8582 = vsel %vm8566, 1, 0
      %v8583 = vsel %vm8567, 1, 0
      %v8584 = vsel %vm8568, 1, 0
      %v8585 = vsel %vm8569, 1, 0
      %v8586 = vsel %vm8570, 1, 0
      %v8587 = vsel %vm8571, 1, 0
      %v8588 = vsel %vm8572, 1, 0
      %v8589 = vsel %vm8573, 1, 0
      %v8590 = vsel %vm8574, 1, 0
      %v8591 = vsel %vm8575, 1, 0
      %v8592 = vsel %vm8576, 1, 0
      %v8593 = vsel %vm8577, 1, 0
      %v8594 = vsel %vm8578, 1, 0
      %v8595 = vsel %vm8579, 1, 0
      %v8596 = vmul.u32 %v6299, %v8580
      %v8597 = vmul.u32 %v6419, %v8581
      %v8598 = vmul.u32 %v6539, %v8582
      %v8599 = vmul.u32 %v6659, %v8583
      %v8600 = vmul.u32 %v6779, %v8584
      %v8601 = vmul.u32 %v6899, %v8585
      %v8602 = vmul.u32 %v7019, %v8586
      %v8603 = vmul.u32 %v7139, %v8587
      %v8604 = vmul.u32 %v7259, %v8588
      %v8605 = vmul.u32 %v7379, %v8589
      %v8606 = vmul.u32 %v7499, %v8590
      %v8607 = vmul.u32 %v7619, %v8591
      %v8608 = vmul.u32 %v7739, %v8592
      %v8609 = vmul.u32 %v7859, %v8593
      %v8610 = vmul.u32 %v7979, %v8594
      %v8611 = vmul.u32 %v8099, %v8595
      %v8612 = vrot.slane %v8596, 4
      %v8613 = vadd.s32 %v8596, %v8612
      %v8614 = vrot.slane %v8613, 2
      %v8615 = vadd.s32 %v8613, %v8614
      %v8616 = vrot.slane %v8615, 1
      %v8617 = vadd.s32 %v8615, %v8616
      %v8618 = vrot.slane %v8597, 4
      %v8619 = vadd.s32 %v8597, %v8618
      %v8620 = vrot.slane %v8619, 2
      %v8621 = vadd.s32 %v8619, %v8620
      %v8622 = vrot.slane %v8621, 1
      %v8623 = vadd.s32 %v8621, %v8622
      %v8624 = vrot.slane %v8598, 4
      %v8625 = vadd.s32 %v8598, %v8624
      %v8626 = vrot.slane %v8625, 2
      %v8627 = vadd.s32 %v8625, %v8626
      %v8628 = vrot.slane %v8627, 1
      %v8629 = vadd.s32 %v8627, %v8628
      %v8630 = vrot.slane %v8599, 4
      %v8631 = vadd.s32 %v8599, %v8630
      %v8632 = vrot.slane %v8631, 2
      %v8633 = vadd.s32 %v8631, %v8632
      %v8634 = vrot.slane %v8633, 1
      %v8635 = vadd.s32 %v8633, %v8634
      %v8636 = vrot.slane %v8600, 4
      %v8637 = vadd.s32 %v8600, %v8636
      %v8638 = vrot.slane %v8637, 2
      %v8639 = vadd.s32 %v8637, %v8638
      %v8640 = vrot.slane %v8639, 1
      %v8641 = vadd.s32 %v8639, %v8640
      %v8642 = vrot.slane %v8601, 4
      %v8643 = vadd.s32 %v8601, %v8642
      %v8644 = vrot.slane %v8643, 2
      %v8645 = vadd.s32 %v8643, %v8644
      %v8646 = vrot.slane %v8645, 1
      %v8647 = vadd.s32 %v8645, %v8646
      %v8648 = vrot.slane %v8602, 4
      %v8649 = vadd.s32 %v8602, %v8648
      %v8650 = vrot.slane %v8649, 2
      %v8651 = vadd.s32 %v8649, %v8650
      %v8652 = vrot.slane %v8651, 1
      %v8653 = vadd.s32 %v8651, %v8652
      %v8654 = vrot.slane %v8603, 4
      %v8655 = vadd.s32 %v8603, %v8654
      %v8656 = vrot.slane %v8655, 2
      %v8657 = vadd.s32 %v8655, %v8656
      %v8658 = vrot.slane %v8657, 1
      %v8659 = vadd.s32 %v8657, %v8658
      %v8660 = vrot.slane %v8604, 4
      %v8661 = vadd.s32 %v8604, %v8660
      %v8662 = vrot.slane %v8661, 2
      %v8663 = vadd.s32 %v8661, %v8662
      %v8664 = vrot.slane %v8663, 1
      %v8665 = vadd.s32 %v8663, %v8664
      %v8666 = vrot.slane %v8605, 4
      %v8667 = vadd.s32 %v8605, %v8666
      %v8668 = vrot.slane %v8667, 2
      %v8669 = vadd.s32 %v8667, %v8668
      %v8670 = vrot.slane %v8669, 1
      %v8671 = vadd.s32 %v8669, %v8670
      %v8672 = vrot.slane %v8606, 4
      %v8673 = vadd.s32 %v8606, %v8672
      %v8674 = vrot.slane %v8673, 2
      %v8675 = vadd.s32 %v8673, %v8674
      %v8676 = vrot.slane %v8675, 1
      %v8677 = vadd.s32 %v8675, %v8676
      %v8678 = vrot.slane %v8607, 4
      %v8679 = vadd.s32 %v8607, %v8678
      %v8680 = vrot.slane %v8679, 2
      %v8681 = vadd.s32 %v8679, %v8680
      %v8682 = vrot.slane %v8681, 1
      %v8683 = vadd.s32 %v8681, %v8682
      %v8684 = vrot.slane %v8608, 4
      %v8685 = vadd.s32 %v8608, %v8684
      %v8686 = vrot.slane %v8685, 2
      %v8687 = vadd.s32 %v8685, %v8686
      %v8688 = vrot.slane %v8687, 1
      %v8689 = vadd.s32 %v8687, %v8688
      %v8690 = vrot.slane %v8609, 4
      %v8691 = vadd.s32 %v8609, %v8690
      %v8692 = vrot.slane %v8691, 2
      %v8693 = vadd.s32 %v8691, %v8692
      %v8694 = vrot.slane %v8693, 1
      %v8695 = vadd.s32 %v8693, %v8694
      %v8696 = vrot.slane %v8610, 4
      %v8697 = vadd.s32 %v8610, %v8696
      %v8698 = vrot.slane %v8697, 2
      %v8699 = vadd.s32 %v8697, %v8698
      %v8700 = vrot.slane %v8699, 1
      %v8701 = vadd.s32 %v8699, %v8700
      %v8702 = vrot.slane %v8611, 4
      %v8703 = vadd.s32 %v8611, %v8702
      %v8704 = vrot.slane %v8703, 2
      %v8705 = vadd.s32 %v8703, %v8704
      %v8706 = vrot.slane %v8705, 1
      %v8707 = vadd.s32 %v8705, %v8706
      %vm8708 = vcmp.eq.s32.totalorder %v8161, %v8617
      %vm8709 = vcmp.eq.s32.totalorder %v8161, %v8623
      %vm8710 = vcmp.eq.s32.totalorder %v8161, %v8629
      %vm8711 = vcmp.eq.s32.totalorder %v8161, %v8635
      %vm8712 = vcmp.eq.s32.totalorder %v8161, %v8641
      %vm8713 = vcmp.eq.s32.totalorder %v8161, %v8647
      %vm8714 = vcmp.eq.s32.totalorder %v8161, %v8653
      %vm8715 = vcmp.eq.s32.totalorder %v8161, %v8659
      %vm8716 = vcmp.eq.s32.totalorder %v8161, %v8665
      %vm8717 = vcmp.eq.s32.totalorder %v8161, %v8671
      %vm8718 = vcmp.eq.s32.totalorder %v8161, %v8677
      %vm8719 = vcmp.eq.s32.totalorder %v8161, %v8683
      %vm8720 = vcmp.eq.s32.totalorder %v8161, %v8689
      %vm8721 = vcmp.eq.s32.totalorder %v8161, %v8695
      %vm8722 = vcmp.eq.s32.totalorder %v8161, %v8701
      %vm8723 = vcmp.eq.s32.totalorder %v8161, %v8707
      %v8724 = vsel %vm8708, 1, 0
      %v8725 = vsel %vm8709, 1, 0
      %v8726 = vsel %vm8710, 1, 0
      %v8727 = vsel %vm8711, 1, 0
      %v8728 = vsel %vm8712, 1, 0
      %v8729 = vsel %vm8713, 1, 0
      %v8730 = vsel %vm8714, 1, 0
      %v8731 = vsel %vm8715, 1, 0
      %v8732 = vsel %vm8716, 1, 0
      %v8733 = vsel %vm8717, 1, 0
      %v8734 = vsel %vm8718, 1, 0
      %v8735 = vsel %vm8719, 1, 0
      %v8736 = vsel %vm8720, 1, 0
      %v8737 = vsel %vm8721, 1, 0
      %v8738 = vsel %vm8722, 1, 0
      %v8739 = vsel %vm8723, 1, 0
      %v8740 = vmul.u32 %v6314, %v8724
      %v8741 = vmul.u32 %v6434, %v8725
      %v8742 = vmul.u32 %v6554, %v8726
      %v8743 = vmul.u32 %v6674, %v8727
      %v8744 = vmul.u32 %v6794, %v8728
      %v8745 = vmul.u32 %v6914, %v8729
      %v8746 = vmul.u32 %v7034, %v8730
      %v8747 = vmul.u32 %v7154, %v8731
      %v8748 = vmul.u32 %v7274, %v8732
      %v8749 = vmul.u32 %v7394, %v8733
      %v8750 = vmul.u32 %v7514, %v8734
      %v8751 = vmul.u32 %v7634, %v8735
      %v8752 = vmul.u32 %v7754, %v8736
      %v8753 = vmul.u32 %v7874, %v8737
      %v8754 = vmul.u32 %v7994, %v8738
      %v8755 = vmul.u32 %v8114, %v8739
      %v8756 = vrot.slane %v8740, 4
      %v8757 = vadd.s32 %v8740, %v8756
      %v8758 = vrot.slane %v8757, 2
      %v8759 = vadd.s32 %v8757, %v8758
      %v8760 = vrot.slane %v8759, 1
      %v8761 = vadd.s32 %v8759, %v8760
      %v8762 = vrot.slane %v8741, 4
      %v8763 = vadd.s32 %v8741, %v8762
      %v8764 = vrot.slane %v8763, 2
      %v8765 = vadd.s32 %v8763, %v8764
      %v8766 = vrot.slane %v8765, 1
      %v8767 = vadd.s32 %v8765, %v8766
      %v8768 = vrot.slane %v8742, 4
      %v8769 = vadd.s32 %v8742, %v8768
      %v8770 = vrot.slane %v8769, 2
      %v8771 = vadd.s32 %v8769, %v8770
      %v8772 = vrot.slane %v8771, 1
      %v8773 = vadd.s32 %v8771, %v8772
      %v8774 = vrot.slane %v8743, 4
      %v8775 = vadd.s32 %v8743, %v8774
      %v8776 = vrot.slane %v8775, 2
      %v8777 = vadd.s32 %v8775, %v8776
      %v8778 = vrot.slane %v8777, 1
      %v8779 = vadd.s32 %v8777, %v8778
      %v8780 = vrot.slane %v8744, 4
      %v8781 = vadd.s32 %v8744, %v8780
      %v8782 = vrot.slane %v8781, 2
      %v8783 = vadd.s32 %v8781, %v8782
      %v8784 = vrot.slane %v8783, 1
      %v8785 = vadd.s32 %v8783, %v8784
      %v8786 = vrot.slane %v8745, 4
      %v8787 = vadd.s32 %v8745, %v8786
      %v8788 = vrot.slane %v8787, 2
      %v8789 = vadd.s32 %v8787, %v8788
      %v8790 = vrot.slane %v8789, 1
      %v8791 = vadd.s32 %v8789, %v8790
      %v8792 = vrot.slane %v8746, 4
      %v8793 = vadd.s32 %v8746, %v8792
      %v8794 = vrot.slane %v8793, 2
      %v8795 = vadd.s32 %v8793, %v8794
      %v8796 = vrot.slane %v8795, 1
      %v8797 = vadd.s32 %v8795, %v8796
      %v8798 = vrot.slane %v8747, 4
      %v8799 = vadd.s32 %v8747, %v8798
      %v8800 = vrot.slane %v8799, 2
      %v8801 = vadd.s32 %v8799, %v8800
      %v8802 = vrot.slane %v8801, 1
      %v8803 = vadd.s32 %v8801, %v8802
      %v8804 = vrot.slane %v8748, 4
      %v8805 = vadd.s32 %v8748, %v8804
      %v8806 = vrot.slane %v8805, 2
      %v8807 = vadd.s32 %v8805, %v8806
      %v8808 = vrot.slane %v8807, 1
      %v8809 = vadd.s32 %v8807, %v8808
      %v8810 = vrot.slane %v8749, 4
      %v8811 = vadd.s32 %v8749, %v8810
      %v8812 = vrot.slane %v8811, 2
      %v8813 = vadd.s32 %v8811, %v8812
      %v8814 = vrot.slane %v8813, 1
      %v8815 = vadd.s32 %v8813, %v8814
      %v8816 = vrot.slane %v8750, 4
      %v8817 = vadd.s32 %v8750, %v8816
      %v8818 = vrot.slane %v8817, 2
      %v8819 = vadd.s32 %v8817, %v8818
      %v8820 = vrot.slane %v8819, 1
      %v8821 = vadd.s32 %v8819, %v8820
      %v8822 = vrot.slane %v8751, 4
      %v8823 = vadd.s32 %v8751, %v8822
      %v8824 = vrot.slane %v8823, 2
      %v8825 = vadd.s32 %v8823, %v8824
      %v8826 = vrot.slane %v8825, 1
      %v8827 = vadd.s32 %v8825, %v8826
      %v8828 = vrot.slane %v8752, 4
      %v8829 = vadd.s32 %v8752, %v8828
      %v8830 = vrot.slane %v8829, 2
      %v8831 = vadd.s32 %v8829, %v8830
      %v8832 = vrot.slane %v8831, 1
      %v8833 = vadd.s32 %v8831, %v8832
      %v8834 = vrot.slane %v8753, 4
      %v8835 = vadd.s32 %v8753, %v8834
      %v8836 = vrot.slane %v8835, 2
      %v8837 = vadd.s32 %v8835, %v8836
      %v8838 = vrot.slane %v8837, 1
      %v8839 = vadd.s32 %v8837, %v8838
      %v8840 = vrot.slane %v8754, 4
      %v8841 = vadd.s32 %v8754, %v8840
      %v8842 = vrot.slane %v8841, 2
      %v8843 = vadd.s32 %v8841, %v8842
      %v8844 = vrot.slane %v8843, 1
      %v8845 = vadd.s32 %v8843, %v8844
      %v8846 = vrot.slane %v8755, 4
      %v8847 = vadd.s32 %v8755, %v8846
      %v8848 = vrot.slane %v8847, 2
      %v8849 = vadd.s32 %v8847, %v8848
      %v8850 = vrot.slane %v8849, 1
      %v8851 = vadd.s32 %v8849, %v8850
      %vm8852 = vcmp.eq.s32.totalorder %v8161, %v8761
      %vm8853 = vcmp.eq.s32.totalorder %v8161, %v8767
      %vm8854 = vcmp.eq.s32.totalorder %v8161, %v8773
      %vm8855 = vcmp.eq.s32.totalorder %v8161, %v8779
      %vm8856 = vcmp.eq.s32.totalorder %v8161, %v8785
      %vm8857 = vcmp.eq.s32.totalorder %v8161, %v8791
      %vm8858 = vcmp.eq.s32.totalorder %v8161, %v8797
      %vm8859 = vcmp.eq.s32.totalorder %v8161, %v8803
      %vm8860 = vcmp.eq.s32.totalorder %v8161, %v8809
      %vm8861 = vcmp.eq.s32.totalorder %v8161, %v8815
      %vm8862 = vcmp.eq.s32.totalorder %v8161, %v8821
      %vm8863 = vcmp.eq.s32.totalorder %v8161, %v8827
      %vm8864 = vcmp.eq.s32.totalorder %v8161, %v8833
      %vm8865 = vcmp.eq.s32.totalorder %v8161, %v8839
      %vm8866 = vcmp.eq.s32.totalorder %v8161, %v8845
      %vm8867 = vcmp.eq.s32.totalorder %v8161, %v8851
      %v8868 = vsel %vm8852, 1, 0
      %v8869 = vsel %vm8853, 1, 0
      %v8870 = vsel %vm8854, 1, 0
      %v8871 = vsel %vm8855, 1, 0
      %v8872 = vsel %vm8856, 1, 0
      %v8873 = vsel %vm8857, 1, 0
      %v8874 = vsel %vm8858, 1, 0
      %v8875 = vsel %vm8859, 1, 0
      %v8876 = vsel %vm8860, 1, 0
      %v8877 = vsel %vm8861, 1, 0
      %v8878 = vsel %vm8862, 1, 0
      %v8879 = vsel %vm8863, 1, 0
      %v8880 = vsel %vm8864, 1, 0
      %v8881 = vsel %vm8865, 1, 0
      %v8882 = vsel %vm8866, 1, 0
      %v8883 = vsel %vm8867, 1, 0
      %v8884 = vmul.u32 %v6329, %v8868
      %v8885 = vmul.u32 %v6449, %v8869
      %v8886 = vmul.u32 %v6569, %v8870
      %v8887 = vmul.u32 %v6689, %v8871
      %v8888 = vmul.u32 %v6809, %v8872
      %v8889 = vmul.u32 %v6929, %v8873
      %v8890 = vmul.u32 %v7049, %v8874
      %v8891 = vmul.u32 %v7169, %v8875
      %v8892 = vmul.u32 %v7289, %v8876
      %v8893 = vmul.u32 %v7409, %v8877
      %v8894 = vmul.u32 %v7529, %v8878
      %v8895 = vmul.u32 %v7649, %v8879
      %v8896 = vmul.u32 %v7769, %v8880
      %v8897 = vmul.u32 %v7889, %v8881
      %v8898 = vmul.u32 %v8009, %v8882
      %v8899 = vmul.u32 %v8129, %v8883
      %v8900 = vrot.slane %v8884, 4
      %v8901 = vadd.s32 %v8884, %v8900
      %v8902 = vrot.slane %v8901, 2
      %v8903 = vadd.s32 %v8901, %v8902
      %v8904 = vrot.slane %v8903, 1
      %v8905 = vadd.s32 %v8903, %v8904
      %v8906 = vrot.slane %v8885, 4
      %v8907 = vadd.s32 %v8885, %v8906
      %v8908 = vrot.slane %v8907, 2
      %v8909 = vadd.s32 %v8907, %v8908
      %v8910 = vrot.slane %v8909, 1
      %v8911 = vadd.s32 %v8909, %v8910
      %v8912 = vrot.slane %v8886, 4
      %v8913 = vadd.s32 %v8886, %v8912
      %v8914 = vrot.slane %v8913, 2
      %v8915 = vadd.s32 %v8913, %v8914
      %v8916 = vrot.slane %v8915, 1
      %v8917 = vadd.s32 %v8915, %v8916
      %v8918 = vrot.slane %v8887, 4
      %v8919 = vadd.s32 %v8887, %v8918
      %v8920 = vrot.slane %v8919, 2
      %v8921 = vadd.s32 %v8919, %v8920
      %v8922 = vrot.slane %v8921, 1
      %v8923 = vadd.s32 %v8921, %v8922
      %v8924 = vrot.slane %v8888, 4
      %v8925 = vadd.s32 %v8888, %v8924
      %v8926 = vrot.slane %v8925, 2
      %v8927 = vadd.s32 %v8925, %v8926
      %v8928 = vrot.slane %v8927, 1
      %v8929 = vadd.s32 %v8927, %v8928
      %v8930 = vrot.slane %v8889, 4
      %v8931 = vadd.s32 %v8889, %v8930
      %v8932 = vrot.slane %v8931, 2
      %v8933 = vadd.s32 %v8931, %v8932
      %v8934 = vrot.slane %v8933, 1
      %v8935 = vadd.s32 %v8933, %v8934
      %v8936 = vrot.slane %v8890, 4
      %v8937 = vadd.s32 %v8890, %v8936
      %v8938 = vrot.slane %v8937, 2
      %v8939 = vadd.s32 %v8937, %v8938
      %v8940 = vrot.slane %v8939, 1
      %v8941 = vadd.s32 %v8939, %v8940
      %v8942 = vrot.slane %v8891, 4
      %v8943 = vadd.s32 %v8891, %v8942
      %v8944 = vrot.slane %v8943, 2
      %v8945 = vadd.s32 %v8943, %v8944
      %v8946 = vrot.slane %v8945, 1
      %v8947 = vadd.s32 %v8945, %v8946
      %v8948 = vrot.slane %v8892, 4
      %v8949 = vadd.s32 %v8892, %v8948
      %v8950 = vrot.slane %v8949, 2
      %v8951 = vadd.s32 %v8949, %v8950
      %v8952 = vrot.slane %v8951, 1
      %v8953 = vadd.s32 %v8951, %v8952
      %v8954 = vrot.slane %v8893, 4
      %v8955 = vadd.s32 %v8893, %v8954
      %v8956 = vrot.slane %v8955, 2
      %v8957 = vadd.s32 %v8955, %v8956
      %v8958 = vrot.slane %v8957, 1
      %v8959 = vadd.s32 %v8957, %v8958
      %v8960 = vrot.slane %v8894, 4
      %v8961 = vadd.s32 %v8894, %v8960
      %v8962 = vrot.slane %v8961, 2
      %v8963 = vadd.s32 %v8961, %v8962
      %v8964 = vrot.slane %v8963, 1
      %v8965 = vadd.s32 %v8963, %v8964
      %v8966 = vrot.slane %v8895, 4
      %v8967 = vadd.s32 %v8895, %v8966
      %v8968 = vrot.slane %v8967, 2
      %v8969 = vadd.s32 %v8967, %v8968
      %v8970 = vrot.slane %v8969, 1
      %v8971 = vadd.s32 %v8969, %v8970
      %v8972 = vrot.slane %v8896, 4
      %v8973 = vadd.s32 %v8896, %v8972
      %v8974 = vrot.slane %v8973, 2
      %v8975 = vadd.s32 %v8973, %v8974
      %v8976 = vrot.slane %v8975, 1
      %v8977 = vadd.s32 %v8975, %v8976
      %v8978 = vrot.slane %v8897, 4
      %v8979 = vadd.s32 %v8897, %v8978
      %v8980 = vrot.slane %v8979, 2
      %v8981 = vadd.s32 %v8979, %v8980
      %v8982 = vrot.slane %v8981, 1
      %v8983 = vadd.s32 %v8981, %v8982
      %v8984 = vrot.slane %v8898, 4
      %v8985 = vadd.s32 %v8898, %v8984
      %v8986 = vrot.slane %v8985, 2
      %v8987 = vadd.s32 %v8985, %v8986
      %v8988 = vrot.slane %v8987, 1
      %v8989 = vadd.s32 %v8987, %v8988
      %v8990 = vrot.slane %v8899, 4
      %v8991 = vadd.s32 %v8899, %v8990
      %v8992 = vrot.slane %v8991, 2
      %v8993 = vadd.s32 %v8991, %v8992
      %v8994 = vrot.slane %v8993, 1
      %v8995 = vadd.s32 %v8993, %v8994
      %vm8996 = vcmp.eq.s32.totalorder %v8161, %v8905
      %vm8997 = vcmp.eq.s32.totalorder %v8161, %v8911
      %vm8998 = vcmp.eq.s32.totalorder %v8161, %v8917
      %vm8999 = vcmp.eq.s32.totalorder %v8161, %v8923
      %vm9000 = vcmp.eq.s32.totalorder %v8161, %v8929
      %vm9001 = vcmp.eq.s32.totalorder %v8161, %v8935
      %vm9002 = vcmp.eq.s32.totalorder %v8161, %v8941
      %vm9003 = vcmp.eq.s32.totalorder %v8161, %v8947
      %vm9004 = vcmp.eq.s32.totalorder %v8161, %v8953
      %vm9005 = vcmp.eq.s32.totalorder %v8161, %v8959
      %vm9006 = vcmp.eq.s32.totalorder %v8161, %v8965
      %vm9007 = vcmp.eq.s32.totalorder %v8161, %v8971
      %vm9008 = vcmp.eq.s32.totalorder %v8161, %v8977
      %vm9009 = vcmp.eq.s32.totalorder %v8161, %v8983
      %vm9010 = vcmp.eq.s32.totalorder %v8161, %v8989
      %vm9011 = vcmp.eq.s32.totalorder %v8161, %v8995
      %v9012 = vsel %vm8996, 1, 0
      %v9013 = vsel %vm8997, 1, 0
      %v9014 = vsel %vm8998, 1, 0
      %v9015 = vsel %vm8999, 1, 0
      %v9016 = vsel %vm9000, 1, 0
      %v9017 = vsel %vm9001, 1, 0
      %v9018 = vsel %vm9002, 1, 0
      %v9019 = vsel %vm9003, 1, 0
      %v9020 = vsel %vm9004, 1, 0
      %v9021 = vsel %vm9005, 1, 0
      %v9022 = vsel %vm9006, 1, 0
      %v9023 = vsel %vm9007, 1, 0
      %v9024 = vsel %vm9008, 1, 0
      %v9025 = vsel %vm9009, 1, 0
      %v9026 = vsel %vm9010, 1, 0
      %v9027 = vsel %vm9011, 1, 0
      %v9028 = vmul.u32 %v6344, %v9012
      %v9029 = vmul.u32 %v6464, %v9013
      %v9030 = vmul.u32 %v6584, %v9014
      %v9031 = vmul.u32 %v6704, %v9015
      %v9032 = vmul.u32 %v6824, %v9016
      %v9033 = vmul.u32 %v6944, %v9017
      %v9034 = vmul.u32 %v7064, %v9018
      %v9035 = vmul.u32 %v7184, %v9019
      %v9036 = vmul.u32 %v7304, %v9020
      %v9037 = vmul.u32 %v7424, %v9021
      %v9038 = vmul.u32 %v7544, %v9022
      %v9039 = vmul.u32 %v7664, %v9023
      %v9040 = vmul.u32 %v7784, %v9024
      %v9041 = vmul.u32 %v7904, %v9025
      %v9042 = vmul.u32 %v8024, %v9026
      %v9043 = vmul.u32 %v8144, %v9027
      %v9044 = vrot.slane %v9028, 4
      %v9045 = vadd.s32 %v9028, %v9044
      %v9046 = vrot.slane %v9045, 2
      %v9047 = vadd.s32 %v9045, %v9046
      %v9048 = vrot.slane %v9047, 1
      %v9049 = vadd.s32 %v9047, %v9048
      %v9050 = vrot.slane %v9029, 4
      %v9051 = vadd.s32 %v9029, %v9050
      %v9052 = vrot.slane %v9051, 2
      %v9053 = vadd.s32 %v9051, %v9052
      %v9054 = vrot.slane %v9053, 1
      %v9055 = vadd.s32 %v9053, %v9054
      %v9056 = vrot.slane %v9030, 4
      %v9057 = vadd.s32 %v9030, %v9056
      %v9058 = vrot.slane %v9057, 2
      %v9059 = vadd.s32 %v9057, %v9058
      %v9060 = vrot.slane %v9059, 1
      %v9061 = vadd.s32 %v9059, %v9060
      %v9062 = vrot.slane %v9031, 4
      %v9063 = vadd.s32 %v9031, %v9062
      %v9064 = vrot.slane %v9063, 2
      %v9065 = vadd.s32 %v9063, %v9064
      %v9066 = vrot.slane %v9065, 1
      %v9067 = vadd.s32 %v9065, %v9066
      %v9068 = vrot.slane %v9032, 4
      %v9069 = vadd.s32 %v9032, %v9068
      %v9070 = vrot.slane %v9069, 2
      %v9071 = vadd.s32 %v9069, %v9070
      %v9072 = vrot.slane %v9071, 1
      %v9073 = vadd.s32 %v9071, %v9072
      %v9074 = vrot.slane %v9033, 4
      %v9075 = vadd.s32 %v9033, %v9074
      %v9076 = vrot.slane %v9075, 2
      %v9077 = vadd.s32 %v9075, %v9076
      %v9078 = vrot.slane %v9077, 1
      %v9079 = vadd.s32 %v9077, %v9078
      %v9080 = vrot.slane %v9034, 4
      %v9081 = vadd.s32 %v9034, %v9080
      %v9082 = vrot.slane %v9081, 2
      %v9083 = vadd.s32 %v9081, %v9082
      %v9084 = vrot.slane %v9083, 1
      %v9085 = vadd.s32 %v9083, %v9084
      %v9086 = vrot.slane %v9035, 4
      %v9087 = vadd.s32 %v9035, %v9086
      %v9088 = vrot.slane %v9087, 2
      %v9089 = vadd.s32 %v9087, %v9088
      %v9090 = vrot.slane %v9089, 1
      %v9091 = vadd.s32 %v9089, %v9090
      %v9092 = vrot.slane %v9036, 4
      %v9093 = vadd.s32 %v9036, %v9092
      %v9094 = vrot.slane %v9093, 2
      %v9095 = vadd.s32 %v9093, %v9094
      %v9096 = vrot.slane %v9095, 1
      %v9097 = vadd.s32 %v9095, %v9096
      %v9098 = vrot.slane %v9037, 4
      %v9099 = vadd.s32 %v9037, %v9098
      %v9100 = vrot.slane %v9099, 2
      %v9101 = vadd.s32 %v9099, %v9100
      %v9102 = vrot.slane %v9101, 1
      %v9103 = vadd.s32 %v9101, %v9102
      %v9104 = vrot.slane %v9038, 4
      %v9105 = vadd.s32 %v9038, %v9104
      %v9106 = vrot.slane %v9105, 2
      %v9107 = vadd.s32 %v9105, %v9106
      %v9108 = vrot.slane %v9107, 1
      %v9109 = vadd.s32 %v9107, %v9108
      %v9110 = vrot.slane %v9039, 4
      %v9111 = vadd.s32 %v9039, %v9110
      %v9112 = vrot.slane %v9111, 2
      %v9113 = vadd.s32 %v9111, %v9112
      %v9114 = vrot.slane %v9113, 1
      %v9115 = vadd.s32 %v9113, %v9114
      %v9116 = vrot.slane %v9040, 4
      %v9117 = vadd.s32 %v9040, %v9116
      %v9118 = vrot.slane %v9117, 2
      %v9119 = vadd.s32 %v9117, %v9118
      %v9120 = vrot.slane %v9119, 1
      %v9121 = vadd.s32 %v9119, %v9120
      %v9122 = vrot.slane %v9041, 4
      %v9123 = vadd.s32 %v9041, %v9122
      %v9124 = vrot.slane %v9123, 2
      %v9125 = vadd.s32 %v9123, %v9124
      %v9126 = vrot.slane %v9125, 1
      %v9127 = vadd.s32 %v9125, %v9126
      %v9128 = vrot.slane %v9042, 4
      %v9129 = vadd.s32 %v9042, %v9128
      %v9130 = vrot.slane %v9129, 2
      %v9131 = vadd.s32 %v9129, %v9130
      %v9132 = vrot.slane %v9131, 1
      %v9133 = vadd.s32 %v9131, %v9132
      %v9134 = vrot.slane %v9043, 4
      %v9135 = vadd.s32 %v9043, %v9134
      %v9136 = vrot.slane %v9135, 2
      %v9137 = vadd.s32 %v9135, %v9136
      %v9138 = vrot.slane %v9137, 1
      %v9139 = vadd.s32 %v9137, %v9138
      %vm9140 = vcmp.eq.s32.totalorder %v8161, %v9049
      %vm9141 = vcmp.eq.s32.totalorder %v8161, %v9055
      %vm9142 = vcmp.eq.s32.totalorder %v8161, %v9061
      %vm9143 = vcmp.eq.s32.totalorder %v8161, %v9067
      %vm9144 = vcmp.eq.s32.totalorder %v8161, %v9073
      %vm9145 = vcmp.eq.s32.totalorder %v8161, %v9079
      %vm9146 = vcmp.eq.s32.totalorder %v8161, %v9085
      %vm9147 = vcmp.eq.s32.totalorder %v8161, %v9091
      %vm9148 = vcmp.eq.s32.totalorder %v8161, %v9097
      %vm9149 = vcmp.eq.s32.totalorder %v8161, %v9103
      %vm9150 = vcmp.eq.s32.totalorder %v8161, %v9109
      %vm9151 = vcmp.eq.s32.totalorder %v8161, %v9115
      %vm9152 = vcmp.eq.s32.totalorder %v8161, %v9121
      %vm9153 = vcmp.eq.s32.totalorder %v8161, %v9127
      %vm9154 = vcmp.eq.s32.totalorder %v8161, %v9133
      %vm9155 = vcmp.eq.s32.totalorder %v8161, %v9139
      %v9156 = vsel %vm9140, 1, 0
      %v9157 = vsel %vm9141, 1, 0
      %v9158 = vsel %vm9142, 1, 0
      %v9159 = vsel %vm9143, 1, 0
      %v9160 = vsel %vm9144, 1, 0
      %v9161 = vsel %vm9145, 1, 0
      %v9162 = vsel %vm9146, 1, 0
      %v9163 = vsel %vm9147, 1, 0
      %v9164 = vsel %vm9148, 1, 0
      %v9165 = vsel %vm9149, 1, 0
      %v9166 = vsel %vm9150, 1, 0
      %v9167 = vsel %vm9151, 1, 0
      %v9168 = vsel %vm9152, 1, 0
      %v9169 = vsel %vm9153, 1, 0
      %v9170 = vsel %vm9154, 1, 0
      %v9171 = vsel %vm9155, 1, 0
      %v9172 = vmul.u32 %v6359, %v9156
      %v9173 = vmul.u32 %v6479, %v9157
      %v9174 = vmul.u32 %v6599, %v9158
      %v9175 = vmul.u32 %v6719, %v9159
      %v9176 = vmul.u32 %v6839, %v9160
      %v9177 = vmul.u32 %v6959, %v9161
      %v9178 = vmul.u32 %v7079, %v9162
      %v9179 = vmul.u32 %v7199, %v9163
      %v9180 = vmul.u32 %v7319, %v9164
      %v9181 = vmul.u32 %v7439, %v9165
      %v9182 = vmul.u32 %v7559, %v9166
      %v9183 = vmul.u32 %v7679, %v9167
      %v9184 = vmul.u32 %v7799, %v9168
      %v9185 = vmul.u32 %v7919, %v9169
      %v9186 = vmul.u32 %v8039, %v9170
      %v9187 = vmul.u32 %v8159, %v9171
      %v9188 = vrot.slane %v9172, 4
      %v9189 = vadd.s32 %v9172, %v9188
      %v9190 = vrot.slane %v9189, 2
      %v9191 = vadd.s32 %v9189, %v9190
      %v9192 = vrot.slane %v9191, 1
      %v9193 = vadd.s32 %v9191, %v9192
      %v9194 = vrot.slane %v9173, 4
      %v9195 = vadd.s32 %v9173, %v9194
      %v9196 = vrot.slane %v9195, 2
      %v9197 = vadd.s32 %v9195, %v9196
      %v9198 = vrot.slane %v9197, 1
      %v9199 = vadd.s32 %v9197, %v9198
      %v9200 = vrot.slane %v9174, 4
      %v9201 = vadd.s32 %v9174, %v9200
      %v9202 = vrot.slane %v9201, 2
      %v9203 = vadd.s32 %v9201, %v9202
      %v9204 = vrot.slane %v9203, 1
      %v9205 = vadd.s32 %v9203, %v9204
      %v9206 = vrot.slane %v9175, 4
      %v9207 = vadd.s32 %v9175, %v9206
      %v9208 = vrot.slane %v9207, 2
      %v9209 = vadd.s32 %v9207, %v9208
      %v9210 = vrot.slane %v9209, 1
      %v9211 = vadd.s32 %v9209, %v9210
      %v9212 = vrot.slane %v9176, 4
      %v9213 = vadd.s32 %v9176, %v9212
      %v9214 = vrot.slane %v9213, 2
      %v9215 = vadd.s32 %v9213, %v9214
      %v9216 = vrot.slane %v9215, 1
      %v9217 = vadd.s32 %v9215, %v9216
      %v9218 = vrot.slane %v9177, 4
      %v9219 = vadd.s32 %v9177, %v9218
      %v9220 = vrot.slane %v9219, 2
      %v9221 = vadd.s32 %v9219, %v9220
      %v9222 = vrot.slane %v9221, 1
      %v9223 = vadd.s32 %v9221, %v9222
      %v9224 = vrot.slane %v9178, 4
      %v9225 = vadd.s32 %v9178, %v9224
      %v9226 = vrot.slane %v9225, 2
      %v9227 = vadd.s32 %v9225, %v9226
      %v9228 = vrot.slane %v9227, 1
      %v9229 = vadd.s32 %v9227, %v9228
      %v9230 = vrot.slane %v9179, 4
      %v9231 = vadd.s32 %v9179, %v9230
      %v9232 = vrot.slane %v9231, 2
      %v9233 = vadd.s32 %v9231, %v9232
      %v9234 = vrot.slane %v9233, 1
      %v9235 = vadd.s32 %v9233, %v9234
      %v9236 = vrot.slane %v9180, 4
      %v9237 = vadd.s32 %v9180, %v9236
      %v9238 = vrot.slane %v9237, 2
      %v9239 = vadd.s32 %v9237, %v9238
      %v9240 = vrot.slane %v9239, 1
      %v9241 = vadd.s32 %v9239, %v9240
      %v9242 = vrot.slane %v9181, 4
      %v9243 = vadd.s32 %v9181, %v9242
      %v9244 = vrot.slane %v9243, 2
      %v9245 = vadd.s32 %v9243, %v9244
      %v9246 = vrot.slane %v9245, 1
      %v9247 = vadd.s32 %v9245, %v9246
      %v9248 = vrot.slane %v9182, 4
      %v9249 = vadd.s32 %v9182, %v9248
      %v9250 = vrot.slane %v9249, 2
      %v9251 = vadd.s32 %v9249, %v9250
      %v9252 = vrot.slane %v9251, 1
      %v9253 = vadd.s32 %v9251, %v9252
      %v9254 = vrot.slane %v9183, 4
      %v9255 = vadd.s32 %v9183, %v9254
      %v9256 = vrot.slane %v9255, 2
      %v9257 = vadd.s32 %v9255, %v9256
      %v9258 = vrot.slane %v9257, 1
      %v9259 = vadd.s32 %v9257, %v9258
      %v9260 = vrot.slane %v9184, 4
      %v9261 = vadd.s32 %v9184, %v9260
      %v9262 = vrot.slane %v9261, 2
      %v9263 = vadd.s32 %v9261, %v9262
      %v9264 = vrot.slane %v9263, 1
      %v9265 = vadd.s32 %v9263, %v9264
      %v9266 = vrot.slane %v9185, 4
      %v9267 = vadd.s32 %v9185, %v9266
      %v9268 = vrot.slane %v9267, 2
      %v9269 = vadd.s32 %v9267, %v9268
      %v9270 = vrot.slane %v9269, 1
      %v9271 = vadd.s32 %v9269, %v9270
      %v9272 = vrot.slane %v9186, 4
      %v9273 = vadd.s32 %v9186, %v9272
      %v9274 = vrot.slane %v9273, 2
      %v9275 = vadd.s32 %v9273, %v9274
      %v9276 = vrot.slane %v9275, 1
      %v9277 = vadd.s32 %v9275, %v9276
      %v9278 = vrot.slane %v9187, 4
      %v9279 = vadd.s32 %v9187, %v9278
      %v9280 = vrot.slane %v9279, 2
      %v9281 = vadd.s32 %v9279, %v9280
      %v9282 = vrot.slane %v9281, 1
      %v9283 = vadd.s32 %v9281, %v9282
      %v9284 = vcvt.s32.f32 %v8163
      %v9285 = vcvt.s32.f32 %v8292
      %v9286 = vcvt.s32.f32 %v8436
      %v9287 = vcvt.s32.f32 %v8580
      %v9288 = vcvt.s32.f32 %v8724
      %v9289 = vcvt.s32.f32 %v8868
      %v9290 = vcvt.s32.f32 %v9012
      %v9291 = vcvt.s32.f32 %v9156
      %v9292 = vcvt.s32.f32 %v8293
      %v9293 = vcvt.s32.f32 %v8437
      %v9294 = vcvt.s32.f32 %v8581
      %v9295 = vcvt.s32.f32 %v8725
      %v9296 = vcvt.s32.f32 %v8869
      %v9297 = vcvt.s32.f32 %v9013
      %v9298 = vcvt.s32.f32 %v9157
      %v9299 = vcvt.s32.f32 %v8294
      %v9300 = vcvt.s32.f32 %v8438
      %v9301 = vcvt.s32.f32 %v8582
      %v9302 = vcvt.s32.f32 %v8726
      %v9303 = vcvt.s32.f32 %v8870
      %v9304 = vcvt.s32.f32 %v9014
      %v9305 = vcvt.s32.f32 %v9158
      %v9306 = vcvt.s32.f32 %v8295
      %v9307 = vcvt.s32.f32 %v8439
      %v9308 = vcvt.s32.f32 %v8583
      %v9309 = vcvt.s32.f32 %v8727
      %v9310 = vcvt.s32.f32 %v8871
      %v9311 = vcvt.s32.f32 %v9015
      %v9312 = vcvt.s32.f32 %v9159
      %v9313 = vcvt.s32.f32 %v8296
      %v9314 = vcvt.s32.f32 %v8440
      %v9315 = vcvt.s32.f32 %v8584
      %v9316 = vcvt.s32.f32 %v8728
      %v9317 = vcvt.s32.f32 %v8872
      %v9318 = vcvt.s32.f32 %v9016
      %v9319 = vcvt.s32.f32 %v9160
      %v9320 = vcvt.s32.f32 %v8297
      %v9321 = vcvt.s32.f32 %v8441
      %v9322 = vcvt.s32.f32 %v8585
      %v9323 = vcvt.s32.f32 %v8729
      %v9324 = vcvt.s32.f32 %v8873
      %v9325 = vcvt.s32.f32 %v9017
      %v9326 = vcvt.s32.f32 %v9161
      %v9327 = vcvt.s32.f32 %v8298
      %v9328 = vcvt.s32.f32 %v8442
      %v9329 = vcvt.s32.f32 %v8586
      %v9330 = vcvt.s32.f32 %v8730
      %v9331 = vcvt.s32.f32 %v8874
      %v9332 = vcvt.s32.f32 %v9018
      %v9333 = vcvt.s32.f32 %v9162
      %v9334 = vcvt.s32.f32 %v8299
      %v9335 = vcvt.s32.f32 %v8443
      %v9336 = vcvt.s32.f32 %v8587
      %v9337 = vcvt.s32.f32 %v8731
      %v9338 = vcvt.s32.f32 %v8875
      %v9339 = vcvt.s32.f32 %v9019
      %v9340 = vcvt.s32.f32 %v9163
      %v9341 = vcvt.s32.f32 %v8300
      %v9342 = vcvt.s32.f32 %v8444
      %v9343 = vcvt.s32.f32 %v8588
      %v9344 = vcvt.s32.f32 %v8732
      %v9345 = vcvt.s32.f32 %v8876
      %v9346 = vcvt.s32.f32 %v9020
      %v9347 = vcvt.s32.f32 %v9164
      %v9348 = vcvt.s32.f32 %v8301
      %v9349 = vcvt.s32.f32 %v8445
      %v9350 = vcvt.s32.f32 %v8589
      %v9351 = vcvt.s32.f32 %v8733
      %v9352 = vcvt.s32.f32 %v8877
      %v9353 = vcvt.s32.f32 %v9021
      %v9354 = vcvt.s32.f32 %v9165
      %v9355 = vcvt.s32.f32 %v8302
      %v9356 = vcvt.s32.f32 %v8446
      %v9357 = vcvt.s32.f32 %v8590
      %v9358 = vcvt.s32.f32 %v8734
      %v9359 = vcvt.s32.f32 %v8878
      %v9360 = vcvt.s32.f32 %v9022
      %v9361 = vcvt.s32.f32 %v9166
      %v9362 = vcvt.s32.f32 %v8303
      %v9363 = vcvt.s32.f32 %v8447
      %v9364 = vcvt.s32.f32 %v8591
      %v9365 = vcvt.s32.f32 %v8735
      %v9366 = vcvt.s32.f32 %v8879
      %v9367 = vcvt.s32.f32 %v9023
      %v9368 = vcvt.s32.f32 %v9167
      %v9369 = vcvt.s32.f32 %v8304
      %v9370 = vcvt.s32.f32 %v8448
      %v9371 = vcvt.s32.f32 %v8592
      %v9372 = vcvt.s32.f32 %v8736
      %v9373 = vcvt.s32.f32 %v8880
      %v9374 = vcvt.s32.f32 %v9024
      %v9375 = vcvt.s32.f32 %v9168
      %v9376 = vcvt.s32.f32 %v8305
      %v9377 = vcvt.s32.f32 %v8449
      %v9378 = vcvt.s32.f32 %v8593
      %v9379 = vcvt.s32.f32 %v8737
      %v9380 = vcvt.s32.f32 %v8881
      %v9381 = vcvt.s32.f32 %v9025
      %v9382 = vcvt.s32.f32 %v9169
      %v9383 = vcvt.s32.f32 %v8306
      %v9384 = vcvt.s32.f32 %v8450
      %v9385 = vcvt.s32.f32 %v8594
      %v9386 = vcvt.s32.f32 %v8738
      %v9387 = vcvt.s32.f32 %v8882
      %v9388 = vcvt.s32.f32 %v9026
      %v9389 = vcvt.s32.f32 %v9170
      %v9390 = vcvt.s32.f32 %v8307
      %v9391 = vcvt.s32.f32 %v8451
      %v9392 = vcvt.s32.f32 %v8595
      %v9393 = vcvt.s32.f32 %v8739
      %v9394 = vcvt.s32.f32 %v8883
      %v9395 = vcvt.s32.f32 %v9027
      %v9396 = vcvt.s32.f32 %v9171
      %v9397 = vsel %vm444, %v8185, %v8329
      %v9398 = vsel %vm444, %v8191, %v8335
      %v9399 = vsel %vm444, %v8197, %v8341
      %v9400 = vsel %vm444, %v8203, %v8347
      %v9401 = vsel %vm444, %v8209, %v8353
      %v9402 = vsel %vm444, %v8215, %v8359
      %v9403 = vsel %vm444, %v8221, %v8365
      %v9404 = vsel %vm444, %v8227, %v8371
      %v9405 = vsel %vm444, %v8233, %v8377
      %v9406 = vsel %vm444, %v8239, %v8383
      %v9407 = vsel %vm444, %v8245, %v8389
      %v9408 = vsel %vm444, %v8251, %v8395
      %v9409 = vsel %vm444, %v8257, %v8401
      %v9410 = vsel %vm444, %v8263, %v8407
      %v9411 = vsel %vm444, %v8269, %v8413
      %v9412 = vsel %vm444, %v8275, %v8419
      %vm9413 = vcmask 1041408
      %v9414 = vsel %vm9413, %v9397, %v8473
      %v9415 = vsel %vm9413, %v9398, %v8479
      %v9416 = vsel %vm9413, %v9399, %v8485
      %v9417 = vsel %vm9413, %v9400, %v8491
      %v9418 = vsel %vm9413, %v9401, %v8497
      %v9419 = vsel %vm9413, %v9402, %v8503
      %v9420 = vsel %vm9413, %v9403, %v8509
      %v9421 = vsel %vm9413, %v9404, %v8515
      %v9422 = vsel %vm9413, %v9405, %v8521
      %v9423 = vsel %vm9413, %v9406, %v8527
      %v9424 = vsel %vm9413, %v9407, %v8533
      %v9425 = vsel %vm9413, %v9408, %v8539
      %v9426 = vsel %vm9413, %v9409, %v8545
      %v9427 = vsel %vm9413, %v9410, %v8551
      %v9428 = vsel %vm9413, %v9411, %v8557
      %v9429 = vsel %vm9413, %v9412, %v8563
      %vm9430 = vcmask 1042432
      %v9431 = vsel %vm9430, %v9414, %v8617
      %v9432 = vsel %vm9430, %v9415, %v8623
      %v9433 = vsel %vm9430, %v9416, %v8629
      %v9434 = vsel %vm9430, %v9417, %v8635
      %v9435 = vsel %vm9430, %v9418, %v8641
      %v9436 = vsel %vm9430, %v9419, %v8647
      %v9437 = vsel %vm9430, %v9420, %v8653
      %v9438 = vsel %vm9430, %v9421, %v8659
      %v9439 = vsel %vm9430, %v9422, %v8665
      %v9440 = vsel %vm9430, %v9423, %v8671
      %v9441 = vsel %vm9430, %v9424, %v8677
      %v9442 = vsel %vm9430, %v9425, %v8683
      %v9443 = vsel %vm9430, %v9426, %v8689
      %v9444 = vsel %vm9430, %v9427, %v8695
      %v9445 = vsel %vm9430, %v9428, %v8701
      %v9446 = vsel %vm9430, %v9429, %v8707
      %vm9447 = vcmask 1043456
      %v9448 = vsel %vm9447, %v9431, %v8761
      %v9449 = vsel %vm9447, %v9432, %v8767
      %v9450 = vsel %vm9447, %v9433, %v8773
      %v9451 = vsel %vm9447, %v9434, %v8779
      %v9452 = vsel %vm9447, %v9435, %v8785
      %v9453 = vsel %vm9447, %v9436, %v8791
      %v9454 = vsel %vm9447, %v9437, %v8797
      %v9455 = vsel %vm9447, %v9438, %v8803
      %v9456 = vsel %vm9447, %v9439, %v8809
      %v9457 = vsel %vm9447, %v9440, %v8815
      %v9458 = vsel %vm9447, %v9441, %v8821
      %v9459 = vsel %vm9447, %v9442, %v8827
      %v9460 = vsel %vm9447, %v9443, %v8833
      %v9461 = vsel %vm9447, %v9444, %v8839
      %v9462 = vsel %vm9447, %v9445, %v8845
      %v9463 = vsel %vm9447, %v9446, %v8851
      %vm9464 = vcmask 1044480
      %v9465 = vsel %vm9464, %v9448, %v8905
      %v9466 = vsel %vm9464, %v9449, %v8911
      %v9467 = vsel %vm9464, %v9450, %v8917
      %v9468 = vsel %vm9464, %v9451, %v8923
      %v9469 = vsel %vm9464, %v9452, %v8929
      %v9470 = vsel %vm9464, %v9453, %v8935
      %v9471 = vsel %vm9464, %v9454, %v8941
      %v9472 = vsel %vm9464, %v9455, %v8947
      %v9473 = vsel %vm9464, %v9456, %v8953
      %v9474 = vsel %vm9464, %v9457, %v8959
      %v9475 = vsel %vm9464, %v9458, %v8965
      %v9476 = vsel %vm9464, %v9459, %v8971
      %v9477 = vsel %vm9464, %v9460, %v8977
      %v9478 = vsel %vm9464, %v9461, %v8983
      %v9479 = vsel %vm9464, %v9462, %v8989
      %v9480 = vsel %vm9464, %v9463, %v8995
      %vm9481 = vcmask 1045504
      %v9482 = vsel %vm9481, %v9465, %v9049
      %v9483 = vsel %vm9481, %v9466, %v9055
      %v9484 = vsel %vm9481, %v9467, %v9061
      %v9485 = vsel %vm9481, %v9468, %v9067
      %v9486 = vsel %vm9481, %v9469, %v9073
      %v9487 = vsel %vm9481, %v9470, %v9079
      %v9488 = vsel %vm9481, %v9471, %v9085
      %v9489 = vsel %vm9481, %v9472, %v9091
      %v9490 = vsel %vm9481, %v9473, %v9097
      %v9491 = vsel %vm9481, %v9474, %v9103
      %v9492 = vsel %vm9481, %v9475, %v9109
      %v9493 = vsel %vm9481, %v9476, %v9115
      %v9494 = vsel %vm9481, %v9477, %v9121
      %v9495 = vsel %vm9481, %v9478, %v9127
      %v9496 = vsel %vm9481, %v9479, %v9133
      %v9497 = vsel %vm9481, %v9480, %v9139
      %v9498 = vsel %vm464, %v9482, %v9193
      %v9499 = vsel %vm464, %v9483, %v9199
      %v9500 = vsel %vm464, %v9484, %v9205
      %v9501 = vsel %vm464, %v9485, %v9211
      %v9502 = vsel %vm464, %v9486, %v9217
      %v9503 = vsel %vm464, %v9487, %v9223
      %v9504 = vsel %vm464, %v9488, %v9229
      %v9505 = vsel %vm464, %v9489, %v9235
      %v9506 = vsel %vm464, %v9490, %v9241
      %v9507 = vsel %vm464, %v9491, %v9247
      %v9508 = vsel %vm464, %v9492, %v9253
      %v9509 = vsel %vm464, %v9493, %v9259
      %v9510 = vsel %vm464, %v9494, %v9265
      %v9511 = vsel %vm464, %v9495, %v9271
      %v9512 = vsel %vm464, %v9496, %v9277
      %v9513 = vsel %vm464, %v9497, %v9283
      %v9514 = vcvt.s32.f32 %v9498
      %v9515 = vcvt.s32.f32 %v9499
      %v9516 = vcvt.s32.f32 %v9500
      %v9517 = vcvt.s32.f32 %v9501
      %v9518 = vcvt.s32.f32 %v9502
      %v9519 = vcvt.s32.f32 %v9503
      %v9520 = vcvt.s32.f32 %v9504
      %v9521 = vcvt.s32.f32 %v9505
      %v9522 = vcvt.s32.f32 %v9506
      %v9523 = vcvt.s32.f32 %v9507
      %v9524 = vcvt.s32.f32 %v9508
      %v9525 = vcvt.s32.f32 %v9509
      %v9526 = vcvt.s32.f32 %v9510
      %v9527 = vcvt.s32.f32 %v9511
      %v9528 = vcvt.s32.f32 %v9512
      %v9529 = vcvt.s32.f32 %v9513
      %9531 = vset.pattern.permute.xlu0 0
      %9532 = vperm.xlu0 %9531, %v9284
      %v9533 = vpop.permute.xlu0 %9532
      %9536 = vset.pattern.permute.xlu0 0
      %9537 = vperm.xlu0 %9536, %v9285
      %v9538 = vpop.permute.xlu0 %9537
      %9541 = vset.pattern.permute.xlu0 0
      %9542 = vperm.xlu0 %9541, %v9286
      %v9543 = vpop.permute.xlu0 %9542
      %9546 = vset.pattern.permute.xlu0 0
      %9547 = vperm.xlu0 %9546, %v9287
      %v9548 = vpop.permute.xlu0 %9547
      %9551 = vset.pattern.permute.xlu0 0
      %9552 = vperm.xlu0 %9551, %v9288
      %v9553 = vpop.permute.xlu0 %9552
      %9556 = vset.pattern.permute.xlu0 0
      %9557 = vperm.xlu0 %9556, %v9289
      %v9558 = vpop.permute.xlu0 %9557
      %9561 = vset.pattern.permute.xlu0 0
      %9562 = vperm.xlu0 %9561, %v9290
      %v9563 = vpop.permute.xlu0 %9562
      %9566 = vset.pattern.permute.xlu0 0
      %9567 = vperm.xlu0 %9566, %v9291
      %v9568 = vpop.permute.xlu0 %9567
      %9571 = vset.pattern.permute.xlu0 0
      %9572 = vperm.xlu0 %9571, %v9292
      %v9573 = vpop.permute.xlu0 %9572
      %9576 = vset.pattern.permute.xlu0 0
      %9577 = vperm.xlu0 %9576, %v9293
      %v9578 = vpop.permute.xlu0 %9577
      %9581 = vset.pattern.permute.xlu0 0
      %9582 = vperm.xlu0 %9581, %v9294
      %v9583 = vpop.permute.xlu0 %9582
      %9586 = vset.pattern.permute.xlu0 0
      %9587 = vperm.xlu0 %9586, %v9295
      %v9588 = vpop.permute.xlu0 %9587
      %9591 = vset.pattern.permute.xlu0 0
      %9592 = vperm.xlu0 %9591, %v9296
      %v9593 = vpop.permute.xlu0 %9592
      %9596 = vset.pattern.permute.xlu0 0
      %9597 = vperm.xlu0 %9596, %v9297
      %v9598 = vpop.permute.xlu0 %9597
      %9601 = vset.pattern.permute.xlu0 0
      %9602 = vperm.xlu0 %9601, %v9298
      %v9603 = vpop.permute.xlu0 %9602
      %9606 = vset.pattern.permute.xlu0 0
      %9607 = vperm.xlu0 %9606, %v9299
      %v9608 = vpop.permute.xlu0 %9607
      %9611 = vset.pattern.permute.xlu0 0
      %9612 = vperm.xlu0 %9611, %v9300
      %v9613 = vpop.permute.xlu0 %9612
      %9616 = vset.pattern.permute.xlu0 0
      %9617 = vperm.xlu0 %9616, %v9301
      %v9618 = vpop.permute.xlu0 %9617
      %9621 = vset.pattern.permute.xlu0 0
      %9622 = vperm.xlu0 %9621, %v9302
      %v9623 = vpop.permute.xlu0 %9622
      %9626 = vset.pattern.permute.xlu0 0
      %9627 = vperm.xlu0 %9626, %v9303
      %v9628 = vpop.permute.xlu0 %9627
      %9631 = vset.pattern.permute.xlu0 0
      %9632 = vperm.xlu0 %9631, %v9304
      %v9633 = vpop.permute.xlu0 %9632
      %9636 = vset.pattern.permute.xlu0 0
      %9637 = vperm.xlu0 %9636, %v9305
      %v9638 = vpop.permute.xlu0 %9637
      %9641 = vset.pattern.permute.xlu0 0
      %9642 = vperm.xlu0 %9641, %v9306
      %v9643 = vpop.permute.xlu0 %9642
      %9646 = vset.pattern.permute.xlu0 0
      %9647 = vperm.xlu0 %9646, %v9307
      %v9648 = vpop.permute.xlu0 %9647
      %9651 = vset.pattern.permute.xlu0 0
      %9652 = vperm.xlu0 %9651, %v9308
      %v9653 = vpop.permute.xlu0 %9652
      %9656 = vset.pattern.permute.xlu0 0
      %9657 = vperm.xlu0 %9656, %v9309
      %v9658 = vpop.permute.xlu0 %9657
      %9661 = vset.pattern.permute.xlu0 0
      %9662 = vperm.xlu0 %9661, %v9310
      %v9663 = vpop.permute.xlu0 %9662
      %9666 = vset.pattern.permute.xlu0 0
      %9667 = vperm.xlu0 %9666, %v9311
      %v9668 = vpop.permute.xlu0 %9667
      %9671 = vset.pattern.permute.xlu0 0
      %9672 = vperm.xlu0 %9671, %v9312
      %v9673 = vpop.permute.xlu0 %9672
      %9676 = vset.pattern.permute.xlu0 0
      %9677 = vperm.xlu0 %9676, %v9313
      %v9678 = vpop.permute.xlu0 %9677
      %9681 = vset.pattern.permute.xlu0 0
      %9682 = vperm.xlu0 %9681, %v9314
      %v9683 = vpop.permute.xlu0 %9682
      %9686 = vset.pattern.permute.xlu0 0
      %9687 = vperm.xlu0 %9686, %v9315
      %v9688 = vpop.permute.xlu0 %9687
      %9691 = vset.pattern.permute.xlu0 0
      %9692 = vperm.xlu0 %9691, %v9316
      %v9693 = vpop.permute.xlu0 %9692
      %9696 = vset.pattern.permute.xlu0 0
      %9697 = vperm.xlu0 %9696, %v9317
      %v9698 = vpop.permute.xlu0 %9697
      %9701 = vset.pattern.permute.xlu0 0
      %9702 = vperm.xlu0 %9701, %v9318
      %v9703 = vpop.permute.xlu0 %9702
      %9706 = vset.pattern.permute.xlu0 0
      %9707 = vperm.xlu0 %9706, %v9319
      %v9708 = vpop.permute.xlu0 %9707
      %9711 = vset.pattern.permute.xlu0 0
      %9712 = vperm.xlu0 %9711, %v9320
      %v9713 = vpop.permute.xlu0 %9712
      %9716 = vset.pattern.permute.xlu0 0
      %9717 = vperm.xlu0 %9716, %v9321
      %v9718 = vpop.permute.xlu0 %9717
      %9721 = vset.pattern.permute.xlu0 0
      %9722 = vperm.xlu0 %9721, %v9322
      %v9723 = vpop.permute.xlu0 %9722
      %9726 = vset.pattern.permute.xlu0 0
      %9727 = vperm.xlu0 %9726, %v9323
      %v9728 = vpop.permute.xlu0 %9727
      %9731 = vset.pattern.permute.xlu0 0
      %9732 = vperm.xlu0 %9731, %v9324
      %v9733 = vpop.permute.xlu0 %9732
      %9736 = vset.pattern.permute.xlu0 0
      %9737 = vperm.xlu0 %9736, %v9325
      %v9738 = vpop.permute.xlu0 %9737
      %9741 = vset.pattern.permute.xlu0 0
      %9742 = vperm.xlu0 %9741, %v9326
      %v9743 = vpop.permute.xlu0 %9742
      %9746 = vset.pattern.permute.xlu0 0
      %9747 = vperm.xlu0 %9746, %v9327
      %v9748 = vpop.permute.xlu0 %9747
      %9751 = vset.pattern.permute.xlu0 0
      %9752 = vperm.xlu0 %9751, %v9328
      %v9753 = vpop.permute.xlu0 %9752
      %9756 = vset.pattern.permute.xlu0 0
      %9757 = vperm.xlu0 %9756, %v9329
      %v9758 = vpop.permute.xlu0 %9757
      %9761 = vset.pattern.permute.xlu0 0
      %9762 = vperm.xlu0 %9761, %v9330
      %v9763 = vpop.permute.xlu0 %9762
      %9766 = vset.pattern.permute.xlu0 0
      %9767 = vperm.xlu0 %9766, %v9331
      %v9768 = vpop.permute.xlu0 %9767
      %9771 = vset.pattern.permute.xlu0 0
      %9772 = vperm.xlu0 %9771, %v9332
      %v9773 = vpop.permute.xlu0 %9772
      %9776 = vset.pattern.permute.xlu0 0
      %9777 = vperm.xlu0 %9776, %v9333
      %v9778 = vpop.permute.xlu0 %9777
      %9781 = vset.pattern.permute.xlu0 0
      %9782 = vperm.xlu0 %9781, %v9334
      %v9783 = vpop.permute.xlu0 %9782
      %9786 = vset.pattern.permute.xlu0 0
      %9787 = vperm.xlu0 %9786, %v9335
      %v9788 = vpop.permute.xlu0 %9787
      %9791 = vset.pattern.permute.xlu0 0
      %9792 = vperm.xlu0 %9791, %v9336
      %v9793 = vpop.permute.xlu0 %9792
      %9796 = vset.pattern.permute.xlu0 0
      %9797 = vperm.xlu0 %9796, %v9337
      %v9798 = vpop.permute.xlu0 %9797
      %9801 = vset.pattern.permute.xlu0 0
      %9802 = vperm.xlu0 %9801, %v9338
      %v9803 = vpop.permute.xlu0 %9802
      %9806 = vset.pattern.permute.xlu0 0
      %9807 = vperm.xlu0 %9806, %v9339
      %v9808 = vpop.permute.xlu0 %9807
      %9811 = vset.pattern.permute.xlu0 0
      %9812 = vperm.xlu0 %9811, %v9340
      %v9813 = vpop.permute.xlu0 %9812
      %9816 = vset.pattern.permute.xlu0 0
      %9817 = vperm.xlu0 %9816, %v9341
      %v9818 = vpop.permute.xlu0 %9817
      %9821 = vset.pattern.permute.xlu0 0
      %9822 = vperm.xlu0 %9821, %v9342
      %v9823 = vpop.permute.xlu0 %9822
      %9826 = vset.pattern.permute.xlu0 0
      %9827 = vperm.xlu0 %9826, %v9343
      %v9828 = vpop.permute.xlu0 %9827
      %9831 = vset.pattern.permute.xlu0 0
      %9832 = vperm.xlu0 %9831, %v9344
      %v9833 = vpop.permute.xlu0 %9832
      %9836 = vset.pattern.permute.xlu0 0
      %9837 = vperm.xlu0 %9836, %v9345
      %v9838 = vpop.permute.xlu0 %9837
      %9841 = vset.pattern.permute.xlu0 0
      %9842 = vperm.xlu0 %9841, %v9346
      %v9843 = vpop.permute.xlu0 %9842
      %9846 = vset.pattern.permute.xlu0 0
      %9847 = vperm.xlu0 %9846, %v9347
      %v9848 = vpop.permute.xlu0 %9847
      %9851 = vset.pattern.permute.xlu0 0
      %9852 = vperm.xlu0 %9851, %v9348
      %v9853 = vpop.permute.xlu0 %9852
      %9856 = vset.pattern.permute.xlu0 0
      %9857 = vperm.xlu0 %9856, %v9349
      %v9858 = vpop.permute.xlu0 %9857
      %9861 = vset.pattern.permute.xlu0 0
      %9862 = vperm.xlu0 %9861, %v9350
      %v9863 = vpop.permute.xlu0 %9862
      %9866 = vset.pattern.permute.xlu0 0
      %9867 = vperm.xlu0 %9866, %v9351
      %v9868 = vpop.permute.xlu0 %9867
      %9871 = vset.pattern.permute.xlu0 0
      %9872 = vperm.xlu0 %9871, %v9352
      %v9873 = vpop.permute.xlu0 %9872
      %9876 = vset.pattern.permute.xlu0 0
      %9877 = vperm.xlu0 %9876, %v9353
      %v9878 = vpop.permute.xlu0 %9877
      %9881 = vset.pattern.permute.xlu0 0
      %9882 = vperm.xlu0 %9881, %v9354
      %v9883 = vpop.permute.xlu0 %9882
      %9886 = vset.pattern.permute.xlu0 0
      %9887 = vperm.xlu0 %9886, %v9355
      %v9888 = vpop.permute.xlu0 %9887
      %9891 = vset.pattern.permute.xlu0 0
      %9892 = vperm.xlu0 %9891, %v9356
      %v9893 = vpop.permute.xlu0 %9892
      %9896 = vset.pattern.permute.xlu0 0
      %9897 = vperm.xlu0 %9896, %v9357
      %v9898 = vpop.permute.xlu0 %9897
      %9901 = vset.pattern.permute.xlu0 0
      %9902 = vperm.xlu0 %9901, %v9358
      %v9903 = vpop.permute.xlu0 %9902
      %9906 = vset.pattern.permute.xlu0 0
      %9907 = vperm.xlu0 %9906, %v9359
      %v9908 = vpop.permute.xlu0 %9907
      %9911 = vset.pattern.permute.xlu0 0
      %9912 = vperm.xlu0 %9911, %v9360
      %v9913 = vpop.permute.xlu0 %9912
      %9916 = vset.pattern.permute.xlu0 0
      %9917 = vperm.xlu0 %9916, %v9361
      %v9918 = vpop.permute.xlu0 %9917
      %9921 = vset.pattern.permute.xlu0 0
      %9922 = vperm.xlu0 %9921, %v9362
      %v9923 = vpop.permute.xlu0 %9922
      %9926 = vset.pattern.permute.xlu0 0
      %9927 = vperm.xlu0 %9926, %v9363
      %v9928 = vpop.permute.xlu0 %9927
      %9931 = vset.pattern.permute.xlu0 0
      %9932 = vperm.xlu0 %9931, %v9364
      %v9933 = vpop.permute.xlu0 %9932
      %9936 = vset.pattern.permute.xlu0 0
      %9937 = vperm.xlu0 %9936, %v9365
      %v9938 = vpop.permute.xlu0 %9937
      %9941 = vset.pattern.permute.xlu0 0
      %9942 = vperm.xlu0 %9941, %v9366
      %v9943 = vpop.permute.xlu0 %9942
      %9946 = vset.pattern.permute.xlu0 0
      %9947 = vperm.xlu0 %9946, %v9367
      %v9948 = vpop.permute.xlu0 %9947
      %9951 = vset.pattern.permute.xlu0 0
      %9952 = vperm.xlu0 %9951, %v9368
      %v9953 = vpop.permute.xlu0 %9952
      %9956 = vset.pattern.permute.xlu0 0
      %9957 = vperm.xlu0 %9956, %v9369
      %v9958 = vpop.permute.xlu0 %9957
      %9961 = vset.pattern.permute.xlu0 0
      %9962 = vperm.xlu0 %9961, %v9370
      %v9963 = vpop.permute.xlu0 %9962
      %9966 = vset.pattern.permute.xlu0 0
      %9967 = vperm.xlu0 %9966, %v9371
      %v9968 = vpop.permute.xlu0 %9967
      %9971 = vset.pattern.permute.xlu0 0
      %9972 = vperm.xlu0 %9971, %v9372
      %v9973 = vpop.permute.xlu0 %9972
      %9976 = vset.pattern.permute.xlu0 0
      %9977 = vperm.xlu0 %9976, %v9373
      %v9978 = vpop.permute.xlu0 %9977
      %9981 = vset.pattern.permute.xlu0 0
      %9982 = vperm.xlu0 %9981, %v9374
      %v9983 = vpop.permute.xlu0 %9982
      %9986 = vset.pattern.permute.xlu0 0
      %9987 = vperm.xlu0 %9986, %v9375
      %v9988 = vpop.permute.xlu0 %9987
      %9991 = vset.pattern.permute.xlu0 0
      %9992 = vperm.xlu0 %9991, %v9376
      %v9993 = vpop.permute.xlu0 %9992
      %9996 = vset.pattern.permute.xlu0 0
      %9997 = vperm.xlu0 %9996, %v9377
      %v9998 = vpop.permute.xlu0 %9997
      %10001 = vset.pattern.permute.xlu0 0
      %10002 = vperm.xlu0 %10001, %v9378
      %v10003 = vpop.permute.xlu0 %10002
      %10006 = vset.pattern.permute.xlu0 0
      %10007 = vperm.xlu0 %10006, %v9379
      %v10008 = vpop.permute.xlu0 %10007
      %10011 = vset.pattern.permute.xlu0 0
      %10012 = vperm.xlu0 %10011, %v9380
      %v10013 = vpop.permute.xlu0 %10012
      %10016 = vset.pattern.permute.xlu0 0
      %10017 = vperm.xlu0 %10016, %v9381
      %v10018 = vpop.permute.xlu0 %10017
      %10021 = vset.pattern.permute.xlu0 0
      %10022 = vperm.xlu0 %10021, %v9382
      %v10023 = vpop.permute.xlu0 %10022
      %10026 = vset.pattern.permute.xlu0 0
      %10027 = vperm.xlu0 %10026, %v9383
      %v10028 = vpop.permute.xlu0 %10027
      %10031 = vset.pattern.permute.xlu0 0
      %10032 = vperm.xlu0 %10031, %v9384
      %v10033 = vpop.permute.xlu0 %10032
      %10036 = vset.pattern.permute.xlu0 0
      %10037 = vperm.xlu0 %10036, %v9385
      %v10038 = vpop.permute.xlu0 %10037
      %10041 = vset.pattern.permute.xlu0 0
      %10042 = vperm.xlu0 %10041, %v9386
      %v10043 = vpop.permute.xlu0 %10042
      %10046 = vset.pattern.permute.xlu0 0
      %10047 = vperm.xlu0 %10046, %v9387
      %v10048 = vpop.permute.xlu0 %10047
      %10051 = vset.pattern.permute.xlu0 0
      %10052 = vperm.xlu0 %10051, %v9388
      %v10053 = vpop.permute.xlu0 %10052
      %10056 = vset.pattern.permute.xlu0 0
      %10057 = vperm.xlu0 %10056, %v9389
      %v10058 = vpop.permute.xlu0 %10057
      %10061 = vset.pattern.permute.xlu0 0
      %10062 = vperm.xlu0 %10061, %v9390
      %v10063 = vpop.permute.xlu0 %10062
      %10066 = vset.pattern.permute.xlu0 0
      %10067 = vperm.xlu0 %10066, %v9391
      %v10068 = vpop.permute.xlu0 %10067
      %10071 = vset.pattern.permute.xlu0 0
      %10072 = vperm.xlu0 %10071, %v9392
      %v10073 = vpop.permute.xlu0 %10072
      %10076 = vset.pattern.permute.xlu0 0
      %10077 = vperm.xlu0 %10076, %v9393
      %v10078 = vpop.permute.xlu0 %10077
      %10081 = vset.pattern.permute.xlu0 0
      %10082 = vperm.xlu0 %10081, %v9394
      %v10083 = vpop.permute.xlu0 %10082
      %10086 = vset.pattern.permute.xlu0 0
      %10087 = vperm.xlu0 %10086, %v9395
      %v10088 = vpop.permute.xlu0 %10087
      %10091 = vset.pattern.permute.xlu0 0
      %10092 = vperm.xlu0 %10091, %v9396
      %v10093 = vpop.permute.xlu0 %10092
      %v10095 = vmul.f32 %v5470, %v9533
      %v10096 = vmul.f32 %v5471, %v9538
      %v10097 = vmul.f32 %v5472, %v9543
      %v10098 = vmul.f32 %v5473, %v9548
      %v10099 = vmul.f32 %v5474, %v9553
      %v10100 = vmul.f32 %v5475, %v9558
      %v10101 = vmul.f32 %v5476, %v9563
      %v10102 = vmul.f32 %v5477, %v9568
      %v10103 = vmul.f32 %v5478, %v9533
      %v10104 = vmul.f32 %v5479, %v9573
      %v10105 = vmul.f32 %v5480, %v9578
      %v10106 = vmul.f32 %v5481, %v9583
      %v10107 = vmul.f32 %v5482, %v9588
      %v10108 = vmul.f32 %v5483, %v9593
      %v10109 = vmul.f32 %v5484, %v9598
      %v10110 = vmul.f32 %v5485, %v9603
      %v10111 = vmul.f32 %v5486, %v9533
      %v10112 = vmul.f32 %v5487, %v9608
      %v10113 = vmul.f32 %v5488, %v9613
      %v10114 = vmul.f32 %v5489, %v9618
      %v10115 = vmul.f32 %v5490, %v9623
      %v10116 = vmul.f32 %v5491, %v9628
      %v10117 = vmul.f32 %v5492, %v9633
      %v10118 = vmul.f32 %v5493, %v9638
      %v10119 = vmul.f32 %v5494, %v9533
      %v10120 = vmul.f32 %v5495, %v9643
      %v10121 = vmul.f32 %v5496, %v9648
      %v10122 = vmul.f32 %v5497, %v9653
      %v10123 = vmul.f32 %v5498, %v9658
      %v10124 = vmul.f32 %v5499, %v9663
      %v10125 = vmul.f32 %v5500, %v9668
      %v10126 = vmul.f32 %v5501, %v9673
      %v10127 = vmul.f32 %v5502, %v9533
      %v10128 = vmul.f32 %v5503, %v9678
      %v10129 = vmul.f32 %v5504, %v9683
      %v10130 = vmul.f32 %v5505, %v9688
      %v10131 = vmul.f32 %v5506, %v9693
      %v10132 = vmul.f32 %v5507, %v9698
      %v10133 = vmul.f32 %v5508, %v9703
      %v10134 = vmul.f32 %v5509, %v9708
      %v10135 = vmul.f32 %v5510, %v9533
      %v10136 = vmul.f32 %v5511, %v9713
      %v10137 = vmul.f32 %v5512, %v9718
      %v10138 = vmul.f32 %v5513, %v9723
      %v10139 = vmul.f32 %v5514, %v9728
      %v10140 = vmul.f32 %v5515, %v9733
      %v10141 = vmul.f32 %v5516, %v9738
      %v10142 = vmul.f32 %v5517, %v9743
      %v10143 = vmul.f32 %v5518, %v9533
      %v10144 = vmul.f32 %v5519, %v9748
      %v10145 = vmul.f32 %v5520, %v9753
      %v10146 = vmul.f32 %v5521, %v9758
      %v10147 = vmul.f32 %v5522, %v9763
      %v10148 = vmul.f32 %v5523, %v9768
      %v10149 = vmul.f32 %v5524, %v9773
      %v10150 = vmul.f32 %v5525, %v9778
      %v10151 = vmul.f32 %v5526, %v9533
      %v10152 = vmul.f32 %v5527, %v9783
      %v10153 = vmul.f32 %v5528, %v9788
      %v10154 = vmul.f32 %v5529, %v9793
      %v10155 = vmul.f32 %v5530, %v9798
      %v10156 = vmul.f32 %v5531, %v9803
      %v10157 = vmul.f32 %v5532, %v9808
      %v10158 = vmul.f32 %v5533, %v9813
      %v10159 = vmul.f32 %v5534, %v9533
      %v10160 = vmul.f32 %v5535, %v9818
      %v10161 = vmul.f32 %v5536, %v9823
      %v10162 = vmul.f32 %v5537, %v9828
      %v10163 = vmul.f32 %v5538, %v9833
      %v10164 = vmul.f32 %v5539, %v9838
      %v10165 = vmul.f32 %v5540, %v9843
      %v10166 = vmul.f32 %v5541, %v9848
      %v10167 = vmul.f32 %v5542, %v9533
      %v10168 = vmul.f32 %v5543, %v9853
      %v10169 = vmul.f32 %v5544, %v9858
      %v10170 = vmul.f32 %v5545, %v9863
      %v10171 = vmul.f32 %v5546, %v9868
      %v10172 = vmul.f32 %v5547, %v9873
      %v10173 = vmul.f32 %v5548, %v9878
      %v10174 = vmul.f32 %v5549, %v9883
      %v10175 = vmul.f32 %v5550, %v9533
      %v10176 = vmul.f32 %v5551, %v9888
      %v10177 = vmul.f32 %v5552, %v9893
      %v10178 = vmul.f32 %v5553, %v9898
      %v10179 = vmul.f32 %v5554, %v9903
      %v10180 = vmul.f32 %v5555, %v9908
      %v10181 = vmul.f32 %v5556, %v9913
      %v10182 = vmul.f32 %v5557, %v9918
      %v10183 = vmul.f32 %v5558, %v9533
      %v10184 = vmul.f32 %v5559, %v9923
      %v10185 = vmul.f32 %v5560, %v9928
      %v10186 = vmul.f32 %v5561, %v9933
      %v10187 = vmul.f32 %v5562, %v9938
      %v10188 = vmul.f32 %v5563, %v9943
      %v10189 = vmul.f32 %v5564, %v9948
      %v10190 = vmul.f32 %v5565, %v9953
      %v10191 = vmul.f32 %v5566, %v9533
      %v10192 = vmul.f32 %v5567, %v9958
      %v10193 = vmul.f32 %v5568, %v9963
      %v10194 = vmul.f32 %v5569, %v9968
      %v10195 = vmul.f32 %v5570, %v9973
      %v10196 = vmul.f32 %v5571, %v9978
      %v10197 = vmul.f32 %v5572, %v9983
      %v10198 = vmul.f32 %v5573, %v9988
      %v10199 = vmul.f32 %v5574, %v9533
      %v10200 = vmul.f32 %v5575, %v9993
      %v10201 = vmul.f32 %v5576, %v9998
      %v10202 = vmul.f32 %v5577, %v10003
      %v10203 = vmul.f32 %v5578, %v10008
      %v10204 = vmul.f32 %v5579, %v10013
      %v10205 = vmul.f32 %v5580, %v10018
      %v10206 = vmul.f32 %v5581, %v10023
      %v10207 = vmul.f32 %v5582, %v9533
      %v10208 = vmul.f32 %v5583, %v10028
      %v10209 = vmul.f32 %v5584, %v10033
      %v10210 = vmul.f32 %v5585, %v10038
      %v10211 = vmul.f32 %v5586, %v10043
      %v10212 = vmul.f32 %v5587, %v10048
      %v10213 = vmul.f32 %v5588, %v10053
      %v10214 = vmul.f32 %v5589, %v10058
      %v10215 = vmul.f32 %v5590, %v9533
      %v10216 = vmul.f32 %v5591, %v10063
      %v10217 = vmul.f32 %v5592, %v10068
      %v10218 = vmul.f32 %v5593, %v10073
      %v10219 = vmul.f32 %v5594, %v10078
      %v10220 = vmul.f32 %v5595, %v10083
      %v10221 = vmul.f32 %v5596, %v10088
      %v10222 = vmul.f32 %v5597, %v10093
      %v10223 = vsel %vm366, %v10095, 0.0
      %v10224 = vrot.slane %v10223, 4
      %v10225 = vadd.f32 %v10223, %v10224
      %v10226 = vrot.slane %v10225, 2
      %v10227 = vadd.f32 %v10225, %v10226
      %v10228 = vrot.slane %v10227, 1
      %v10229 = vadd.f32 %v10227, %v10228
      %v10230 = vsel %vm366, %v10096, 0.0
      %v10231 = vrot.slane %v10230, 4
      %v10232 = vadd.f32 %v10230, %v10231
      %v10233 = vrot.slane %v10232, 2
      %v10234 = vadd.f32 %v10232, %v10233
      %v10235 = vrot.slane %v10234, 1
      %v10236 = vadd.f32 %v10234, %v10235
      %v10237 = vsel %vm366, %v10097, 0.0
      %v10238 = vrot.slane %v10237, 4
      %v10239 = vadd.f32 %v10237, %v10238
      %v10240 = vrot.slane %v10239, 2
      %v10241 = vadd.f32 %v10239, %v10240
      %v10242 = vrot.slane %v10241, 1
      %v10243 = vadd.f32 %v10241, %v10242
      %v10244 = vsel %vm366, %v10098, 0.0
      %v10245 = vrot.slane %v10244, 4
      %v10246 = vadd.f32 %v10244, %v10245
      %v10247 = vrot.slane %v10246, 2
      %v10248 = vadd.f32 %v10246, %v10247
      %v10249 = vrot.slane %v10248, 1
      %v10250 = vadd.f32 %v10248, %v10249
      %v10251 = vsel %vm366, %v10099, 0.0
      %v10252 = vrot.slane %v10251, 4
      %v10253 = vadd.f32 %v10251, %v10252
      %v10254 = vrot.slane %v10253, 2
      %v10255 = vadd.f32 %v10253, %v10254
      %v10256 = vrot.slane %v10255, 1
      %v10257 = vadd.f32 %v10255, %v10256
      %v10258 = vsel %vm366, %v10100, 0.0
      %v10259 = vrot.slane %v10258, 4
      %v10260 = vadd.f32 %v10258, %v10259
      %v10261 = vrot.slane %v10260, 2
      %v10262 = vadd.f32 %v10260, %v10261
      %v10263 = vrot.slane %v10262, 1
      %v10264 = vadd.f32 %v10262, %v10263
      %v10265 = vsel %vm366, %v10101, 0.0
      %v10266 = vrot.slane %v10265, 4
      %v10267 = vadd.f32 %v10265, %v10266
      %v10268 = vrot.slane %v10267, 2
      %v10269 = vadd.f32 %v10267, %v10268
      %v10270 = vrot.slane %v10269, 1
      %v10271 = vadd.f32 %v10269, %v10270
      %v10272 = vsel %vm366, %v10102, 0.0
      %v10273 = vrot.slane %v10272, 4
      %v10274 = vadd.f32 %v10272, %v10273
      %v10275 = vrot.slane %v10274, 2
      %v10276 = vadd.f32 %v10274, %v10275
      %v10277 = vrot.slane %v10276, 1
      %v10278 = vadd.f32 %v10276, %v10277
      %v10279 = vsel %vm366, %v10103, 0.0
      %v10280 = vrot.slane %v10279, 4
      %v10281 = vadd.f32 %v10279, %v10280
      %v10282 = vrot.slane %v10281, 2
      %v10283 = vadd.f32 %v10281, %v10282
      %v10284 = vrot.slane %v10283, 1
      %v10285 = vadd.f32 %v10283, %v10284
      %v10286 = vsel %vm366, %v10104, 0.0
      %v10287 = vrot.slane %v10286, 4
      %v10288 = vadd.f32 %v10286, %v10287
      %v10289 = vrot.slane %v10288, 2
      %v10290 = vadd.f32 %v10288, %v10289
      %v10291 = vrot.slane %v10290, 1
      %v10292 = vadd.f32 %v10290, %v10291
      %v10293 = vsel %vm366, %v10105, 0.0
      %v10294 = vrot.slane %v10293, 4
      %v10295 = vadd.f32 %v10293, %v10294
      %v10296 = vrot.slane %v10295, 2
      %v10297 = vadd.f32 %v10295, %v10296
      %v10298 = vrot.slane %v10297, 1
      %v10299 = vadd.f32 %v10297, %v10298
      %v10300 = vsel %vm366, %v10106, 0.0
      %v10301 = vrot.slane %v10300, 4
      %v10302 = vadd.f32 %v10300, %v10301
      %v10303 = vrot.slane %v10302, 2
      %v10304 = vadd.f32 %v10302, %v10303
      %v10305 = vrot.slane %v10304, 1
      %v10306 = vadd.f32 %v10304, %v10305
      %v10307 = vsel %vm366, %v10107, 0.0
      %v10308 = vrot.slane %v10307, 4
      %v10309 = vadd.f32 %v10307, %v10308
      %v10310 = vrot.slane %v10309, 2
      %v10311 = vadd.f32 %v10309, %v10310
      %v10312 = vrot.slane %v10311, 1
      %v10313 = vadd.f32 %v10311, %v10312
      %v10314 = vsel %vm366, %v10108, 0.0
      %v10315 = vrot.slane %v10314, 4
      %v10316 = vadd.f32 %v10314, %v10315
      %v10317 = vrot.slane %v10316, 2
      %v10318 = vadd.f32 %v10316, %v10317
      %v10319 = vrot.slane %v10318, 1
      %v10320 = vadd.f32 %v10318, %v10319
      %v10321 = vsel %vm366, %v10109, 0.0
      %v10322 = vrot.slane %v10321, 4
      %v10323 = vadd.f32 %v10321, %v10322
      %v10324 = vrot.slane %v10323, 2
      %v10325 = vadd.f32 %v10323, %v10324
      %v10326 = vrot.slane %v10325, 1
      %v10327 = vadd.f32 %v10325, %v10326
      %v10328 = vsel %vm366, %v10110, 0.0
      %v10329 = vrot.slane %v10328, 4
      %v10330 = vadd.f32 %v10328, %v10329
      %v10331 = vrot.slane %v10330, 2
      %v10332 = vadd.f32 %v10330, %v10331
      %v10333 = vrot.slane %v10332, 1
      %v10334 = vadd.f32 %v10332, %v10333
      %v10335 = vsel %vm366, %v10111, 0.0
      %v10336 = vrot.slane %v10335, 4
      %v10337 = vadd.f32 %v10335, %v10336
      %v10338 = vrot.slane %v10337, 2
      %v10339 = vadd.f32 %v10337, %v10338
      %v10340 = vrot.slane %v10339, 1
      %v10341 = vadd.f32 %v10339, %v10340
      %v10342 = vsel %vm366, %v10112, 0.0
      %v10343 = vrot.slane %v10342, 4
      %v10344 = vadd.f32 %v10342, %v10343
      %v10345 = vrot.slane %v10344, 2
      %v10346 = vadd.f32 %v10344, %v10345
      %v10347 = vrot.slane %v10346, 1
      %v10348 = vadd.f32 %v10346, %v10347
      %v10349 = vsel %vm366, %v10113, 0.0
      %v10350 = vrot.slane %v10349, 4
      %v10351 = vadd.f32 %v10349, %v10350
      %v10352 = vrot.slane %v10351, 2
      %v10353 = vadd.f32 %v10351, %v10352
      %v10354 = vrot.slane %v10353, 1
      %v10355 = vadd.f32 %v10353, %v10354
      %v10356 = vsel %vm366, %v10114, 0.0
      %v10357 = vrot.slane %v10356, 4
      %v10358 = vadd.f32 %v10356, %v10357
      %v10359 = vrot.slane %v10358, 2
      %v10360 = vadd.f32 %v10358, %v10359
      %v10361 = vrot.slane %v10360, 1
      %v10362 = vadd.f32 %v10360, %v10361
      %v10363 = vsel %vm366, %v10115, 0.0
      %v10364 = vrot.slane %v10363, 4
      %v10365 = vadd.f32 %v10363, %v10364
      %v10366 = vrot.slane %v10365, 2
      %v10367 = vadd.f32 %v10365, %v10366
      %v10368 = vrot.slane %v10367, 1
      %v10369 = vadd.f32 %v10367, %v10368
      %v10370 = vsel %vm366, %v10116, 0.0
      %v10371 = vrot.slane %v10370, 4
      %v10372 = vadd.f32 %v10370, %v10371
      %v10373 = vrot.slane %v10372, 2
      %v10374 = vadd.f32 %v10372, %v10373
      %v10375 = vrot.slane %v10374, 1
      %v10376 = vadd.f32 %v10374, %v10375
      %v10377 = vsel %vm366, %v10117, 0.0
      %v10378 = vrot.slane %v10377, 4
      %v10379 = vadd.f32 %v10377, %v10378
      %v10380 = vrot.slane %v10379, 2
      %v10381 = vadd.f32 %v10379, %v10380
      %v10382 = vrot.slane %v10381, 1
      %v10383 = vadd.f32 %v10381, %v10382
      %v10384 = vsel %vm366, %v10118, 0.0
      %v10385 = vrot.slane %v10384, 4
      %v10386 = vadd.f32 %v10384, %v10385
      %v10387 = vrot.slane %v10386, 2
      %v10388 = vadd.f32 %v10386, %v10387
      %v10389 = vrot.slane %v10388, 1
      %v10390 = vadd.f32 %v10388, %v10389
      %v10391 = vsel %vm366, %v10119, 0.0
      %v10392 = vrot.slane %v10391, 4
      %v10393 = vadd.f32 %v10391, %v10392
      %v10394 = vrot.slane %v10393, 2
      %v10395 = vadd.f32 %v10393, %v10394
      %v10396 = vrot.slane %v10395, 1
      %v10397 = vadd.f32 %v10395, %v10396
      %v10398 = vsel %vm366, %v10120, 0.0
      %v10399 = vrot.slane %v10398, 4
      %v10400 = vadd.f32 %v10398, %v10399
      %v10401 = vrot.slane %v10400, 2
      %v10402 = vadd.f32 %v10400, %v10401
      %v10403 = vrot.slane %v10402, 1
      %v10404 = vadd.f32 %v10402, %v10403
      %v10405 = vsel %vm366, %v10121, 0.0
      %v10406 = vrot.slane %v10405, 4
      %v10407 = vadd.f32 %v10405, %v10406
      %v10408 = vrot.slane %v10407, 2
      %v10409 = vadd.f32 %v10407, %v10408
      %v10410 = vrot.slane %v10409, 1
      %v10411 = vadd.f32 %v10409, %v10410
      %v10412 = vsel %vm366, %v10122, 0.0
      %v10413 = vrot.slane %v10412, 4
      %v10414 = vadd.f32 %v10412, %v10413
      %v10415 = vrot.slane %v10414, 2
      %v10416 = vadd.f32 %v10414, %v10415
      %v10417 = vrot.slane %v10416, 1
      %v10418 = vadd.f32 %v10416, %v10417
      %v10419 = vsel %vm366, %v10123, 0.0
      %v10420 = vrot.slane %v10419, 4
      %v10421 = vadd.f32 %v10419, %v10420
      %v10422 = vrot.slane %v10421, 2
      %v10423 = vadd.f32 %v10421, %v10422
      %v10424 = vrot.slane %v10423, 1
      %v10425 = vadd.f32 %v10423, %v10424
      %v10426 = vsel %vm366, %v10124, 0.0
      %v10427 = vrot.slane %v10426, 4
      %v10428 = vadd.f32 %v10426, %v10427
      %v10429 = vrot.slane %v10428, 2
      %v10430 = vadd.f32 %v10428, %v10429
      %v10431 = vrot.slane %v10430, 1
      %v10432 = vadd.f32 %v10430, %v10431
      %v10433 = vsel %vm366, %v10125, 0.0
      %v10434 = vrot.slane %v10433, 4
      %v10435 = vadd.f32 %v10433, %v10434
      %v10436 = vrot.slane %v10435, 2
      %v10437 = vadd.f32 %v10435, %v10436
      %v10438 = vrot.slane %v10437, 1
      %v10439 = vadd.f32 %v10437, %v10438
      %v10440 = vsel %vm366, %v10126, 0.0
      %v10441 = vrot.slane %v10440, 4
      %v10442 = vadd.f32 %v10440, %v10441
      %v10443 = vrot.slane %v10442, 2
      %v10444 = vadd.f32 %v10442, %v10443
      %v10445 = vrot.slane %v10444, 1
      %v10446 = vadd.f32 %v10444, %v10445
      %v10447 = vsel %vm366, %v10127, 0.0
      %v10448 = vrot.slane %v10447, 4
      %v10449 = vadd.f32 %v10447, %v10448
      %v10450 = vrot.slane %v10449, 2
      %v10451 = vadd.f32 %v10449, %v10450
      %v10452 = vrot.slane %v10451, 1
      %v10453 = vadd.f32 %v10451, %v10452
      %v10454 = vsel %vm366, %v10128, 0.0
      %v10455 = vrot.slane %v10454, 4
      %v10456 = vadd.f32 %v10454, %v10455
      %v10457 = vrot.slane %v10456, 2
      %v10458 = vadd.f32 %v10456, %v10457
      %v10459 = vrot.slane %v10458, 1
      %v10460 = vadd.f32 %v10458, %v10459
      %v10461 = vsel %vm366, %v10129, 0.0
      %v10462 = vrot.slane %v10461, 4
      %v10463 = vadd.f32 %v10461, %v10462
      %v10464 = vrot.slane %v10463, 2
      %v10465 = vadd.f32 %v10463, %v10464
      %v10466 = vrot.slane %v10465, 1
      %v10467 = vadd.f32 %v10465, %v10466
      %v10468 = vsel %vm366, %v10130, 0.0
      %v10469 = vrot.slane %v10468, 4
      %v10470 = vadd.f32 %v10468, %v10469
      %v10471 = vrot.slane %v10470, 2
      %v10472 = vadd.f32 %v10470, %v10471
      %v10473 = vrot.slane %v10472, 1
      %v10474 = vadd.f32 %v10472, %v10473
      %v10475 = vsel %vm366, %v10131, 0.0
      %v10476 = vrot.slane %v10475, 4
      %v10477 = vadd.f32 %v10475, %v10476
      %v10478 = vrot.slane %v10477, 2
      %v10479 = vadd.f32 %v10477, %v10478
      %v10480 = vrot.slane %v10479, 1
      %v10481 = vadd.f32 %v10479, %v10480
      %v10482 = vsel %vm366, %v10132, 0.0
      %v10483 = vrot.slane %v10482, 4
      %v10484 = vadd.f32 %v10482, %v10483
      %v10485 = vrot.slane %v10484, 2
      %v10486 = vadd.f32 %v10484, %v10485
      %v10487 = vrot.slane %v10486, 1
      %v10488 = vadd.f32 %v10486, %v10487
      %v10489 = vsel %vm366, %v10133, 0.0
      %v10490 = vrot.slane %v10489, 4
      %v10491 = vadd.f32 %v10489, %v10490
      %v10492 = vrot.slane %v10491, 2
      %v10493 = vadd.f32 %v10491, %v10492
      %v10494 = vrot.slane %v10493, 1
      %v10495 = vadd.f32 %v10493, %v10494
      %v10496 = vsel %vm366, %v10134, 0.0
      %v10497 = vrot.slane %v10496, 4
      %v10498 = vadd.f32 %v10496, %v10497
      %v10499 = vrot.slane %v10498, 2
      %v10500 = vadd.f32 %v10498, %v10499
      %v10501 = vrot.slane %v10500, 1
      %v10502 = vadd.f32 %v10500, %v10501
      %v10503 = vsel %vm366, %v10135, 0.0
      %v10504 = vrot.slane %v10503, 4
      %v10505 = vadd.f32 %v10503, %v10504
      %v10506 = vrot.slane %v10505, 2
      %v10507 = vadd.f32 %v10505, %v10506
      %v10508 = vrot.slane %v10507, 1
      %v10509 = vadd.f32 %v10507, %v10508
      %v10510 = vsel %vm366, %v10136, 0.0
      %v10511 = vrot.slane %v10510, 4
      %v10512 = vadd.f32 %v10510, %v10511
      %v10513 = vrot.slane %v10512, 2
      %v10514 = vadd.f32 %v10512, %v10513
      %v10515 = vrot.slane %v10514, 1
      %v10516 = vadd.f32 %v10514, %v10515
      %v10517 = vsel %vm366, %v10137, 0.0
      %v10518 = vrot.slane %v10517, 4
      %v10519 = vadd.f32 %v10517, %v10518
      %v10520 = vrot.slane %v10519, 2
      %v10521 = vadd.f32 %v10519, %v10520
      %v10522 = vrot.slane %v10521, 1
      %v10523 = vadd.f32 %v10521, %v10522
      %v10524 = vsel %vm366, %v10138, 0.0
      %v10525 = vrot.slane %v10524, 4
      %v10526 = vadd.f32 %v10524, %v10525
      %v10527 = vrot.slane %v10526, 2
      %v10528 = vadd.f32 %v10526, %v10527
      %v10529 = vrot.slane %v10528, 1
      %v10530 = vadd.f32 %v10528, %v10529
      %v10531 = vsel %vm366, %v10139, 0.0
      %v10532 = vrot.slane %v10531, 4
      %v10533 = vadd.f32 %v10531, %v10532
      %v10534 = vrot.slane %v10533, 2
      %v10535 = vadd.f32 %v10533, %v10534
      %v10536 = vrot.slane %v10535, 1
      %v10537 = vadd.f32 %v10535, %v10536
      %v10538 = vsel %vm366, %v10140, 0.0
      %v10539 = vrot.slane %v10538, 4
      %v10540 = vadd.f32 %v10538, %v10539
      %v10541 = vrot.slane %v10540, 2
      %v10542 = vadd.f32 %v10540, %v10541
      %v10543 = vrot.slane %v10542, 1
      %v10544 = vadd.f32 %v10542, %v10543
      %v10545 = vsel %vm366, %v10141, 0.0
      %v10546 = vrot.slane %v10545, 4
      %v10547 = vadd.f32 %v10545, %v10546
      %v10548 = vrot.slane %v10547, 2
      %v10549 = vadd.f32 %v10547, %v10548
      %v10550 = vrot.slane %v10549, 1
      %v10551 = vadd.f32 %v10549, %v10550
      %v10552 = vsel %vm366, %v10142, 0.0
      %v10553 = vrot.slane %v10552, 4
      %v10554 = vadd.f32 %v10552, %v10553
      %v10555 = vrot.slane %v10554, 2
      %v10556 = vadd.f32 %v10554, %v10555
      %v10557 = vrot.slane %v10556, 1
      %v10558 = vadd.f32 %v10556, %v10557
      %v10559 = vsel %vm366, %v10143, 0.0
      %v10560 = vrot.slane %v10559, 4
      %v10561 = vadd.f32 %v10559, %v10560
      %v10562 = vrot.slane %v10561, 2
      %v10563 = vadd.f32 %v10561, %v10562
      %v10564 = vrot.slane %v10563, 1
      %v10565 = vadd.f32 %v10563, %v10564
      %v10566 = vsel %vm366, %v10144, 0.0
      %v10567 = vrot.slane %v10566, 4
      %v10568 = vadd.f32 %v10566, %v10567
      %v10569 = vrot.slane %v10568, 2
      %v10570 = vadd.f32 %v10568, %v10569
      %v10571 = vrot.slane %v10570, 1
      %v10572 = vadd.f32 %v10570, %v10571
      %v10573 = vsel %vm366, %v10145, 0.0
      %v10574 = vrot.slane %v10573, 4
      %v10575 = vadd.f32 %v10573, %v10574
      %v10576 = vrot.slane %v10575, 2
      %v10577 = vadd.f32 %v10575, %v10576
      %v10578 = vrot.slane %v10577, 1
      %v10579 = vadd.f32 %v10577, %v10578
      %v10580 = vsel %vm366, %v10146, 0.0
      %v10581 = vrot.slane %v10580, 4
      %v10582 = vadd.f32 %v10580, %v10581
      %v10583 = vrot.slane %v10582, 2
      %v10584 = vadd.f32 %v10582, %v10583
      %v10585 = vrot.slane %v10584, 1
      %v10586 = vadd.f32 %v10584, %v10585
      %v10587 = vsel %vm366, %v10147, 0.0
      %v10588 = vrot.slane %v10587, 4
      %v10589 = vadd.f32 %v10587, %v10588
      %v10590 = vrot.slane %v10589, 2
      %v10591 = vadd.f32 %v10589, %v10590
      %v10592 = vrot.slane %v10591, 1
      %v10593 = vadd.f32 %v10591, %v10592
      %v10594 = vsel %vm366, %v10148, 0.0
      %v10595 = vrot.slane %v10594, 4
      %v10596 = vadd.f32 %v10594, %v10595
      %v10597 = vrot.slane %v10596, 2
      %v10598 = vadd.f32 %v10596, %v10597
      %v10599 = vrot.slane %v10598, 1
      %v10600 = vadd.f32 %v10598, %v10599
      %v10601 = vsel %vm366, %v10149, 0.0
      %v10602 = vrot.slane %v10601, 4
      %v10603 = vadd.f32 %v10601, %v10602
      %v10604 = vrot.slane %v10603, 2
      %v10605 = vadd.f32 %v10603, %v10604
      %v10606 = vrot.slane %v10605, 1
      %v10607 = vadd.f32 %v10605, %v10606
      %v10608 = vsel %vm366, %v10150, 0.0
      %v10609 = vrot.slane %v10608, 4
      %v10610 = vadd.f32 %v10608, %v10609
      %v10611 = vrot.slane %v10610, 2
      %v10612 = vadd.f32 %v10610, %v10611
      %v10613 = vrot.slane %v10612, 1
      %v10614 = vadd.f32 %v10612, %v10613
      %v10615 = vsel %vm366, %v10151, 0.0
      %v10616 = vrot.slane %v10615, 4
      %v10617 = vadd.f32 %v10615, %v10616
      %v10618 = vrot.slane %v10617, 2
      %v10619 = vadd.f32 %v10617, %v10618
      %v10620 = vrot.slane %v10619, 1
      %v10621 = vadd.f32 %v10619, %v10620
      %v10622 = vsel %vm366, %v10152, 0.0
      %v10623 = vrot.slane %v10622, 4
      %v10624 = vadd.f32 %v10622, %v10623
      %v10625 = vrot.slane %v10624, 2
      %v10626 = vadd.f32 %v10624, %v10625
      %v10627 = vrot.slane %v10626, 1
      %v10628 = vadd.f32 %v10626, %v10627
      %v10629 = vsel %vm366, %v10153, 0.0
      %v10630 = vrot.slane %v10629, 4
      %v10631 = vadd.f32 %v10629, %v10630
      %v10632 = vrot.slane %v10631, 2
      %v10633 = vadd.f32 %v10631, %v10632
      %v10634 = vrot.slane %v10633, 1
      %v10635 = vadd.f32 %v10633, %v10634
      %v10636 = vsel %vm366, %v10154, 0.0
      %v10637 = vrot.slane %v10636, 4
      %v10638 = vadd.f32 %v10636, %v10637
      %v10639 = vrot.slane %v10638, 2
      %v10640 = vadd.f32 %v10638, %v10639
      %v10641 = vrot.slane %v10640, 1
      %v10642 = vadd.f32 %v10640, %v10641
      %v10643 = vsel %vm366, %v10155, 0.0
      %v10644 = vrot.slane %v10643, 4
      %v10645 = vadd.f32 %v10643, %v10644
      %v10646 = vrot.slane %v10645, 2
      %v10647 = vadd.f32 %v10645, %v10646
      %v10648 = vrot.slane %v10647, 1
      %v10649 = vadd.f32 %v10647, %v10648
      %v10650 = vsel %vm366, %v10156, 0.0
      %v10651 = vrot.slane %v10650, 4
      %v10652 = vadd.f32 %v10650, %v10651
      %v10653 = vrot.slane %v10652, 2
      %v10654 = vadd.f32 %v10652, %v10653
      %v10655 = vrot.slane %v10654, 1
      %v10656 = vadd.f32 %v10654, %v10655
      %v10657 = vsel %vm366, %v10157, 0.0
      %v10658 = vrot.slane %v10657, 4
      %v10659 = vadd.f32 %v10657, %v10658
      %v10660 = vrot.slane %v10659, 2
      %v10661 = vadd.f32 %v10659, %v10660
      %v10662 = vrot.slane %v10661, 1
      %v10663 = vadd.f32 %v10661, %v10662
      %v10664 = vsel %vm366, %v10158, 0.0
      %v10665 = vrot.slane %v10664, 4
      %v10666 = vadd.f32 %v10664, %v10665
      %v10667 = vrot.slane %v10666, 2
      %v10668 = vadd.f32 %v10666, %v10667
      %v10669 = vrot.slane %v10668, 1
      %v10670 = vadd.f32 %v10668, %v10669
      %v10671 = vsel %vm366, %v10159, 0.0
      %v10672 = vrot.slane %v10671, 4
      %v10673 = vadd.f32 %v10671, %v10672
      %v10674 = vrot.slane %v10673, 2
      %v10675 = vadd.f32 %v10673, %v10674
      %v10676 = vrot.slane %v10675, 1
      %v10677 = vadd.f32 %v10675, %v10676
      %v10678 = vsel %vm366, %v10160, 0.0
      %v10679 = vrot.slane %v10678, 4
      %v10680 = vadd.f32 %v10678, %v10679
      %v10681 = vrot.slane %v10680, 2
      %v10682 = vadd.f32 %v10680, %v10681
      %v10683 = vrot.slane %v10682, 1
      %v10684 = vadd.f32 %v10682, %v10683
      %v10685 = vsel %vm366, %v10161, 0.0
      %v10686 = vrot.slane %v10685, 4
      %v10687 = vadd.f32 %v10685, %v10686
      %v10688 = vrot.slane %v10687, 2
      %v10689 = vadd.f32 %v10687, %v10688
      %v10690 = vrot.slane %v10689, 1
      %v10691 = vadd.f32 %v10689, %v10690
      %v10692 = vsel %vm366, %v10162, 0.0
      %v10693 = vrot.slane %v10692, 4
      %v10694 = vadd.f32 %v10692, %v10693
      %v10695 = vrot.slane %v10694, 2
      %v10696 = vadd.f32 %v10694, %v10695
      %v10697 = vrot.slane %v10696, 1
      %v10698 = vadd.f32 %v10696, %v10697
      %v10699 = vsel %vm366, %v10163, 0.0
      %v10700 = vrot.slane %v10699, 4
      %v10701 = vadd.f32 %v10699, %v10700
      %v10702 = vrot.slane %v10701, 2
      %v10703 = vadd.f32 %v10701, %v10702
      %v10704 = vrot.slane %v10703, 1
      %v10705 = vadd.f32 %v10703, %v10704
      %v10706 = vsel %vm366, %v10164, 0.0
      %v10707 = vrot.slane %v10706, 4
      %v10708 = vadd.f32 %v10706, %v10707
      %v10709 = vrot.slane %v10708, 2
      %v10710 = vadd.f32 %v10708, %v10709
      %v10711 = vrot.slane %v10710, 1
      %v10712 = vadd.f32 %v10710, %v10711
      %v10713 = vsel %vm366, %v10165, 0.0
      %v10714 = vrot.slane %v10713, 4
      %v10715 = vadd.f32 %v10713, %v10714
      %v10716 = vrot.slane %v10715, 2
      %v10717 = vadd.f32 %v10715, %v10716
      %v10718 = vrot.slane %v10717, 1
      %v10719 = vadd.f32 %v10717, %v10718
      %v10720 = vsel %vm366, %v10166, 0.0
      %v10721 = vrot.slane %v10720, 4
      %v10722 = vadd.f32 %v10720, %v10721
      %v10723 = vrot.slane %v10722, 2
      %v10724 = vadd.f32 %v10722, %v10723
      %v10725 = vrot.slane %v10724, 1
      %v10726 = vadd.f32 %v10724, %v10725
      %v10727 = vsel %vm366, %v10167, 0.0
      %v10728 = vrot.slane %v10727, 4
      %v10729 = vadd.f32 %v10727, %v10728
      %v10730 = vrot.slane %v10729, 2
      %v10731 = vadd.f32 %v10729, %v10730
      %v10732 = vrot.slane %v10731, 1
      %v10733 = vadd.f32 %v10731, %v10732
      %v10734 = vsel %vm366, %v10168, 0.0
      %v10735 = vrot.slane %v10734, 4
      %v10736 = vadd.f32 %v10734, %v10735
      %v10737 = vrot.slane %v10736, 2
      %v10738 = vadd.f32 %v10736, %v10737
      %v10739 = vrot.slane %v10738, 1
      %v10740 = vadd.f32 %v10738, %v10739
      %v10741 = vsel %vm366, %v10169, 0.0
      %v10742 = vrot.slane %v10741, 4
      %v10743 = vadd.f32 %v10741, %v10742
      %v10744 = vrot.slane %v10743, 2
      %v10745 = vadd.f32 %v10743, %v10744
      %v10746 = vrot.slane %v10745, 1
      %v10747 = vadd.f32 %v10745, %v10746
      %v10748 = vsel %vm366, %v10170, 0.0
      %v10749 = vrot.slane %v10748, 4
      %v10750 = vadd.f32 %v10748, %v10749
      %v10751 = vrot.slane %v10750, 2
      %v10752 = vadd.f32 %v10750, %v10751
      %v10753 = vrot.slane %v10752, 1
      %v10754 = vadd.f32 %v10752, %v10753
      %v10755 = vsel %vm366, %v10171, 0.0
      %v10756 = vrot.slane %v10755, 4
      %v10757 = vadd.f32 %v10755, %v10756
      %v10758 = vrot.slane %v10757, 2
      %v10759 = vadd.f32 %v10757, %v10758
      %v10760 = vrot.slane %v10759, 1
      %v10761 = vadd.f32 %v10759, %v10760
      %v10762 = vsel %vm366, %v10172, 0.0
      %v10763 = vrot.slane %v10762, 4
      %v10764 = vadd.f32 %v10762, %v10763
      %v10765 = vrot.slane %v10764, 2
      %v10766 = vadd.f32 %v10764, %v10765
      %v10767 = vrot.slane %v10766, 1
      %v10768 = vadd.f32 %v10766, %v10767
      %v10769 = vsel %vm366, %v10173, 0.0
      %v10770 = vrot.slane %v10769, 4
      %v10771 = vadd.f32 %v10769, %v10770
      %v10772 = vrot.slane %v10771, 2
      %v10773 = vadd.f32 %v10771, %v10772
      %v10774 = vrot.slane %v10773, 1
      %v10775 = vadd.f32 %v10773, %v10774
      %v10776 = vsel %vm366, %v10174, 0.0
      %v10777 = vrot.slane %v10776, 4
      %v10778 = vadd.f32 %v10776, %v10777
      %v10779 = vrot.slane %v10778, 2
      %v10780 = vadd.f32 %v10778, %v10779
      %v10781 = vrot.slane %v10780, 1
      %v10782 = vadd.f32 %v10780, %v10781
      %v10783 = vsel %vm366, %v10175, 0.0
      %v10784 = vrot.slane %v10783, 4
      %v10785 = vadd.f32 %v10783, %v10784
      %v10786 = vrot.slane %v10785, 2
      %v10787 = vadd.f32 %v10785, %v10786
      %v10788 = vrot.slane %v10787, 1
      %v10789 = vadd.f32 %v10787, %v10788
      %v10790 = vsel %vm366, %v10176, 0.0
      %v10791 = vrot.slane %v10790, 4
      %v10792 = vadd.f32 %v10790, %v10791
      %v10793 = vrot.slane %v10792, 2
      %v10794 = vadd.f32 %v10792, %v10793
      %v10795 = vrot.slane %v10794, 1
      %v10796 = vadd.f32 %v10794, %v10795
      %v10797 = vsel %vm366, %v10177, 0.0
      %v10798 = vrot.slane %v10797, 4
      %v10799 = vadd.f32 %v10797, %v10798
      %v10800 = vrot.slane %v10799, 2
      %v10801 = vadd.f32 %v10799, %v10800
      %v10802 = vrot.slane %v10801, 1
      %v10803 = vadd.f32 %v10801, %v10802
      %v10804 = vsel %vm366, %v10178, 0.0
      %v10805 = vrot.slane %v10804, 4
      %v10806 = vadd.f32 %v10804, %v10805
      %v10807 = vrot.slane %v10806, 2
      %v10808 = vadd.f32 %v10806, %v10807
      %v10809 = vrot.slane %v10808, 1
      %v10810 = vadd.f32 %v10808, %v10809
      %v10811 = vsel %vm366, %v10179, 0.0
      %v10812 = vrot.slane %v10811, 4
      %v10813 = vadd.f32 %v10811, %v10812
      %v10814 = vrot.slane %v10813, 2
      %v10815 = vadd.f32 %v10813, %v10814
      %v10816 = vrot.slane %v10815, 1
      %v10817 = vadd.f32 %v10815, %v10816
      %v10818 = vsel %vm366, %v10180, 0.0
      %v10819 = vrot.slane %v10818, 4
      %v10820 = vadd.f32 %v10818, %v10819
      %v10821 = vrot.slane %v10820, 2
      %v10822 = vadd.f32 %v10820, %v10821
      %v10823 = vrot.slane %v10822, 1
      %v10824 = vadd.f32 %v10822, %v10823
      %v10825 = vsel %vm366, %v10181, 0.0
      %v10826 = vrot.slane %v10825, 4
      %v10827 = vadd.f32 %v10825, %v10826
      %v10828 = vrot.slane %v10827, 2
      %v10829 = vadd.f32 %v10827, %v10828
      %v10830 = vrot.slane %v10829, 1
      %v10831 = vadd.f32 %v10829, %v10830
      %v10832 = vsel %vm366, %v10182, 0.0
      %v10833 = vrot.slane %v10832, 4
      %v10834 = vadd.f32 %v10832, %v10833
      %v10835 = vrot.slane %v10834, 2
      %v10836 = vadd.f32 %v10834, %v10835
      %v10837 = vrot.slane %v10836, 1
      %v10838 = vadd.f32 %v10836, %v10837
      %v10839 = vsel %vm366, %v10183, 0.0
      %v10840 = vrot.slane %v10839, 4
      %v10841 = vadd.f32 %v10839, %v10840
      %v10842 = vrot.slane %v10841, 2
      %v10843 = vadd.f32 %v10841, %v10842
      %v10844 = vrot.slane %v10843, 1
      %v10845 = vadd.f32 %v10843, %v10844
      %v10846 = vsel %vm366, %v10184, 0.0
      %v10847 = vrot.slane %v10846, 4
      %v10848 = vadd.f32 %v10846, %v10847
      %v10849 = vrot.slane %v10848, 2
      %v10850 = vadd.f32 %v10848, %v10849
      %v10851 = vrot.slane %v10850, 1
      %v10852 = vadd.f32 %v10850, %v10851
      %v10853 = vsel %vm366, %v10185, 0.0
      %v10854 = vrot.slane %v10853, 4
      %v10855 = vadd.f32 %v10853, %v10854
      %v10856 = vrot.slane %v10855, 2
      %v10857 = vadd.f32 %v10855, %v10856
      %v10858 = vrot.slane %v10857, 1
      %v10859 = vadd.f32 %v10857, %v10858
      %v10860 = vsel %vm366, %v10186, 0.0
      %v10861 = vrot.slane %v10860, 4
      %v10862 = vadd.f32 %v10860, %v10861
      %v10863 = vrot.slane %v10862, 2
      %v10864 = vadd.f32 %v10862, %v10863
      %v10865 = vrot.slane %v10864, 1
      %v10866 = vadd.f32 %v10864, %v10865
      %v10867 = vsel %vm366, %v10187, 0.0
      %v10868 = vrot.slane %v10867, 4
      %v10869 = vadd.f32 %v10867, %v10868
      %v10870 = vrot.slane %v10869, 2
      %v10871 = vadd.f32 %v10869, %v10870
      %v10872 = vrot.slane %v10871, 1
      %v10873 = vadd.f32 %v10871, %v10872
      %v10874 = vsel %vm366, %v10188, 0.0
      %v10875 = vrot.slane %v10874, 4
      %v10876 = vadd.f32 %v10874, %v10875
      %v10877 = vrot.slane %v10876, 2
      %v10878 = vadd.f32 %v10876, %v10877
      %v10879 = vrot.slane %v10878, 1
      %v10880 = vadd.f32 %v10878, %v10879
      %v10881 = vsel %vm366, %v10189, 0.0
      %v10882 = vrot.slane %v10881, 4
      %v10883 = vadd.f32 %v10881, %v10882
      %v10884 = vrot.slane %v10883, 2
      %v10885 = vadd.f32 %v10883, %v10884
      %v10886 = vrot.slane %v10885, 1
      %v10887 = vadd.f32 %v10885, %v10886
      %v10888 = vsel %vm366, %v10190, 0.0
      %v10889 = vrot.slane %v10888, 4
      %v10890 = vadd.f32 %v10888, %v10889
      %v10891 = vrot.slane %v10890, 2
      %v10892 = vadd.f32 %v10890, %v10891
      %v10893 = vrot.slane %v10892, 1
      %v10894 = vadd.f32 %v10892, %v10893
      %v10895 = vsel %vm366, %v10191, 0.0
      %v10896 = vrot.slane %v10895, 4
      %v10897 = vadd.f32 %v10895, %v10896
      %v10898 = vrot.slane %v10897, 2
      %v10899 = vadd.f32 %v10897, %v10898
      %v10900 = vrot.slane %v10899, 1
      %v10901 = vadd.f32 %v10899, %v10900
      %v10902 = vsel %vm366, %v10192, 0.0
      %v10903 = vrot.slane %v10902, 4
      %v10904 = vadd.f32 %v10902, %v10903
      %v10905 = vrot.slane %v10904, 2
      %v10906 = vadd.f32 %v10904, %v10905
      %v10907 = vrot.slane %v10906, 1
      %v10908 = vadd.f32 %v10906, %v10907
      %v10909 = vsel %vm366, %v10193, 0.0
      %v10910 = vrot.slane %v10909, 4
      %v10911 = vadd.f32 %v10909, %v10910
      %v10912 = vrot.slane %v10911, 2
      %v10913 = vadd.f32 %v10911, %v10912
      %v10914 = vrot.slane %v10913, 1
      %v10915 = vadd.f32 %v10913, %v10914
      %v10916 = vsel %vm366, %v10194, 0.0
      %v10917 = vrot.slane %v10916, 4
      %v10918 = vadd.f32 %v10916, %v10917
      %v10919 = vrot.slane %v10918, 2
      %v10920 = vadd.f32 %v10918, %v10919
      %v10921 = vrot.slane %v10920, 1
      %v10922 = vadd.f32 %v10920, %v10921
      %v10923 = vsel %vm366, %v10195, 0.0
      %v10924 = vrot.slane %v10923, 4
      %v10925 = vadd.f32 %v10923, %v10924
      %v10926 = vrot.slane %v10925, 2
      %v10927 = vadd.f32 %v10925, %v10926
      %v10928 = vrot.slane %v10927, 1
      %v10929 = vadd.f32 %v10927, %v10928
      %v10930 = vsel %vm366, %v10196, 0.0
      %v10931 = vrot.slane %v10930, 4
      %v10932 = vadd.f32 %v10930, %v10931
      %v10933 = vrot.slane %v10932, 2
      %v10934 = vadd.f32 %v10932, %v10933
      %v10935 = vrot.slane %v10934, 1
      %v10936 = vadd.f32 %v10934, %v10935
      %v10937 = vsel %vm366, %v10197, 0.0
      %v10938 = vrot.slane %v10937, 4
      %v10939 = vadd.f32 %v10937, %v10938
      %v10940 = vrot.slane %v10939, 2
      %v10941 = vadd.f32 %v10939, %v10940
      %v10942 = vrot.slane %v10941, 1
      %v10943 = vadd.f32 %v10941, %v10942
      %v10944 = vsel %vm366, %v10198, 0.0
      %v10945 = vrot.slane %v10944, 4
      %v10946 = vadd.f32 %v10944, %v10945
      %v10947 = vrot.slane %v10946, 2
      %v10948 = vadd.f32 %v10946, %v10947
      %v10949 = vrot.slane %v10948, 1
      %v10950 = vadd.f32 %v10948, %v10949
      %v10951 = vsel %vm366, %v10199, 0.0
      %v10952 = vrot.slane %v10951, 4
      %v10953 = vadd.f32 %v10951, %v10952
      %v10954 = vrot.slane %v10953, 2
      %v10955 = vadd.f32 %v10953, %v10954
      %v10956 = vrot.slane %v10955, 1
      %v10957 = vadd.f32 %v10955, %v10956
      %v10958 = vsel %vm366, %v10200, 0.0
      %v10959 = vrot.slane %v10958, 4
      %v10960 = vadd.f32 %v10958, %v10959
      %v10961 = vrot.slane %v10960, 2
      %v10962 = vadd.f32 %v10960, %v10961
      %v10963 = vrot.slane %v10962, 1
      %v10964 = vadd.f32 %v10962, %v10963
      %v10965 = vsel %vm366, %v10201, 0.0
      %v10966 = vrot.slane %v10965, 4
      %v10967 = vadd.f32 %v10965, %v10966
      %v10968 = vrot.slane %v10967, 2
      %v10969 = vadd.f32 %v10967, %v10968
      %v10970 = vrot.slane %v10969, 1
      %v10971 = vadd.f32 %v10969, %v10970
      %v10972 = vsel %vm366, %v10202, 0.0
      %v10973 = vrot.slane %v10972, 4
      %v10974 = vadd.f32 %v10972, %v10973
      %v10975 = vrot.slane %v10974, 2
      %v10976 = vadd.f32 %v10974, %v10975
      %v10977 = vrot.slane %v10976, 1
      %v10978 = vadd.f32 %v10976, %v10977
      %v10979 = vsel %vm366, %v10203, 0.0
      %v10980 = vrot.slane %v10979, 4
      %v10981 = vadd.f32 %v10979, %v10980
      %v10982 = vrot.slane %v10981, 2
      %v10983 = vadd.f32 %v10981, %v10982
      %v10984 = vrot.slane %v10983, 1
      %v10985 = vadd.f32 %v10983, %v10984
      %v10986 = vsel %vm366, %v10204, 0.0
      %v10987 = vrot.slane %v10986, 4
      %v10988 = vadd.f32 %v10986, %v10987
      %v10989 = vrot.slane %v10988, 2
      %v10990 = vadd.f32 %v10988, %v10989
      %v10991 = vrot.slane %v10990, 1
      %v10992 = vadd.f32 %v10990, %v10991
      %v10993 = vsel %vm366, %v10205, 0.0
      %v10994 = vrot.slane %v10993, 4
      %v10995 = vadd.f32 %v10993, %v10994
      %v10996 = vrot.slane %v10995, 2
      %v10997 = vadd.f32 %v10995, %v10996
      %v10998 = vrot.slane %v10997, 1
      %v10999 = vadd.f32 %v10997, %v10998
      %v11000 = vsel %vm366, %v10206, 0.0
      %v11001 = vrot.slane %v11000, 4
      %v11002 = vadd.f32 %v11000, %v11001
      %v11003 = vrot.slane %v11002, 2
      %v11004 = vadd.f32 %v11002, %v11003
      %v11005 = vrot.slane %v11004, 1
      %v11006 = vadd.f32 %v11004, %v11005
      %v11007 = vsel %vm366, %v10207, 0.0
      %v11008 = vrot.slane %v11007, 4
      %v11009 = vadd.f32 %v11007, %v11008
      %v11010 = vrot.slane %v11009, 2
      %v11011 = vadd.f32 %v11009, %v11010
      %v11012 = vrot.slane %v11011, 1
      %v11013 = vadd.f32 %v11011, %v11012
      %v11014 = vsel %vm366, %v10208, 0.0
      %v11015 = vrot.slane %v11014, 4
      %v11016 = vadd.f32 %v11014, %v11015
      %v11017 = vrot.slane %v11016, 2
      %v11018 = vadd.f32 %v11016, %v11017
      %v11019 = vrot.slane %v11018, 1
      %v11020 = vadd.f32 %v11018, %v11019
      %v11021 = vsel %vm366, %v10209, 0.0
      %v11022 = vrot.slane %v11021, 4
      %v11023 = vadd.f32 %v11021, %v11022
      %v11024 = vrot.slane %v11023, 2
      %v11025 = vadd.f32 %v11023, %v11024
      %v11026 = vrot.slane %v11025, 1
      %v11027 = vadd.f32 %v11025, %v11026
      %v11028 = vsel %vm366, %v10210, 0.0
      %v11029 = vrot.slane %v11028, 4
      %v11030 = vadd.f32 %v11028, %v11029
      %v11031 = vrot.slane %v11030, 2
      %v11032 = vadd.f32 %v11030, %v11031
      %v11033 = vrot.slane %v11032, 1
      %v11034 = vadd.f32 %v11032, %v11033
      %v11035 = vsel %vm366, %v10211, 0.0
      %v11036 = vrot.slane %v11035, 4
      %v11037 = vadd.f32 %v11035, %v11036
      %v11038 = vrot.slane %v11037, 2
      %v11039 = vadd.f32 %v11037, %v11038
      %v11040 = vrot.slane %v11039, 1
      %v11041 = vadd.f32 %v11039, %v11040
      %v11042 = vsel %vm366, %v10212, 0.0
      %v11043 = vrot.slane %v11042, 4
      %v11044 = vadd.f32 %v11042, %v11043
      %v11045 = vrot.slane %v11044, 2
      %v11046 = vadd.f32 %v11044, %v11045
      %v11047 = vrot.slane %v11046, 1
      %v11048 = vadd.f32 %v11046, %v11047
      %v11049 = vsel %vm366, %v10213, 0.0
      %v11050 = vrot.slane %v11049, 4
      %v11051 = vadd.f32 %v11049, %v11050
      %v11052 = vrot.slane %v11051, 2
      %v11053 = vadd.f32 %v11051, %v11052
      %v11054 = vrot.slane %v11053, 1
      %v11055 = vadd.f32 %v11053, %v11054
      %v11056 = vsel %vm366, %v10214, 0.0
      %v11057 = vrot.slane %v11056, 4
      %v11058 = vadd.f32 %v11056, %v11057
      %v11059 = vrot.slane %v11058, 2
      %v11060 = vadd.f32 %v11058, %v11059
      %v11061 = vrot.slane %v11060, 1
      %v11062 = vadd.f32 %v11060, %v11061
      %v11063 = vsel %vm366, %v10215, 0.0
      %v11064 = vrot.slane %v11063, 4
      %v11065 = vadd.f32 %v11063, %v11064
      %v11066 = vrot.slane %v11065, 2
      %v11067 = vadd.f32 %v11065, %v11066
      %v11068 = vrot.slane %v11067, 1
      %v11069 = vadd.f32 %v11067, %v11068
      %v11070 = vsel %vm366, %v10216, 0.0
      %v11071 = vrot.slane %v11070, 4
      %v11072 = vadd.f32 %v11070, %v11071
      %v11073 = vrot.slane %v11072, 2
      %v11074 = vadd.f32 %v11072, %v11073
      %v11075 = vrot.slane %v11074, 1
      %v11076 = vadd.f32 %v11074, %v11075
      %v11077 = vsel %vm366, %v10217, 0.0
      %v11078 = vrot.slane %v11077, 4
      %v11079 = vadd.f32 %v11077, %v11078
      %v11080 = vrot.slane %v11079, 2
      %v11081 = vadd.f32 %v11079, %v11080
      %v11082 = vrot.slane %v11081, 1
      %v11083 = vadd.f32 %v11081, %v11082
      %v11084 = vsel %vm366, %v10218, 0.0
      %v11085 = vrot.slane %v11084, 4
      %v11086 = vadd.f32 %v11084, %v11085
      %v11087 = vrot.slane %v11086, 2
      %v11088 = vadd.f32 %v11086, %v11087
      %v11089 = vrot.slane %v11088, 1
      %v11090 = vadd.f32 %v11088, %v11089
      %v11091 = vsel %vm366, %v10219, 0.0
      %v11092 = vrot.slane %v11091, 4
      %v11093 = vadd.f32 %v11091, %v11092
      %v11094 = vrot.slane %v11093, 2
      %v11095 = vadd.f32 %v11093, %v11094
      %v11096 = vrot.slane %v11095, 1
      %v11097 = vadd.f32 %v11095, %v11096
      %v11098 = vsel %vm366, %v10220, 0.0
      %v11099 = vrot.slane %v11098, 4
      %v11100 = vadd.f32 %v11098, %v11099
      %v11101 = vrot.slane %v11100, 2
      %v11102 = vadd.f32 %v11100, %v11101
      %v11103 = vrot.slane %v11102, 1
      %v11104 = vadd.f32 %v11102, %v11103
      %v11105 = vsel %vm366, %v10221, 0.0
      %v11106 = vrot.slane %v11105, 4
      %v11107 = vadd.f32 %v11105, %v11106
      %v11108 = vrot.slane %v11107, 2
      %v11109 = vadd.f32 %v11107, %v11108
      %v11110 = vrot.slane %v11109, 1
      %v11111 = vadd.f32 %v11109, %v11110
      %v11112 = vsel %vm366, %v10222, 0.0
      %v11113 = vrot.slane %v11112, 4
      %v11114 = vadd.f32 %v11112, %v11113
      %v11115 = vrot.slane %v11114, 2
      %v11116 = vadd.f32 %v11114, %v11115
      %v11117 = vrot.slane %v11116, 1
      %v11118 = vadd.f32 %v11116, %v11117
      %v11247 = vsel %vm446, %v10236, %v10229
      %v11248 = vsel %vm449, %v10243, %v11247
      %v11249 = vsel %vm452, %v10250, %v11248
      %v11250 = vsel %vm455, %v10257, %v11249
      %v11251 = vsel %vm458, %v10264, %v11250
      %v11252 = vsel %vm461, %v10271, %v11251
      %vm11253 = vcmask 1047559
      %v11254 = vsel %vm11253, %v10278, %v11252
      %v11255 = vsel %vm446, %v10292, %v10285
      %v11256 = vsel %vm449, %v10299, %v11255
      %v11257 = vsel %vm452, %v10306, %v11256
      %v11258 = vsel %vm455, %v10313, %v11257
      %v11259 = vsel %vm458, %v10320, %v11258
      %v11260 = vsel %vm461, %v10327, %v11259
      %v11261 = vsel %vm11253, %v10334, %v11260
      %v11262 = vsel %vm446, %v10348, %v10341
      %v11263 = vsel %vm449, %v10355, %v11262
      %v11264 = vsel %vm452, %v10362, %v11263
      %v11265 = vsel %vm455, %v10369, %v11264
      %v11266 = vsel %vm458, %v10376, %v11265
      %v11267 = vsel %vm461, %v10383, %v11266
      %v11268 = vsel %vm11253, %v10390, %v11267
      %v11269 = vsel %vm446, %v10404, %v10397
      %v11270 = vsel %vm449, %v10411, %v11269
      %v11271 = vsel %vm452, %v10418, %v11270
      %v11272 = vsel %vm455, %v10425, %v11271
      %v11273 = vsel %vm458, %v10432, %v11272
      %v11274 = vsel %vm461, %v10439, %v11273
      %v11275 = vsel %vm11253, %v10446, %v11274
      %v11276 = vsel %vm446, %v10460, %v10453
      %v11277 = vsel %vm449, %v10467, %v11276
      %v11278 = vsel %vm452, %v10474, %v11277
      %v11279 = vsel %vm455, %v10481, %v11278
      %v11280 = vsel %vm458, %v10488, %v11279
      %v11281 = vsel %vm461, %v10495, %v11280
      %v11282 = vsel %vm11253, %v10502, %v11281
      %v11283 = vsel %vm446, %v10516, %v10509
      %v11284 = vsel %vm449, %v10523, %v11283
      %v11285 = vsel %vm452, %v10530, %v11284
      %v11286 = vsel %vm455, %v10537, %v11285
      %v11287 = vsel %vm458, %v10544, %v11286
      %v11288 = vsel %vm461, %v10551, %v11287
      %v11289 = vsel %vm11253, %v10558, %v11288
      %v11290 = vsel %vm446, %v10572, %v10565
      %v11291 = vsel %vm449, %v10579, %v11290
      %v11292 = vsel %vm452, %v10586, %v11291
      %v11293 = vsel %vm455, %v10593, %v11292
      %v11294 = vsel %vm458, %v10600, %v11293
      %v11295 = vsel %vm461, %v10607, %v11294
      %v11296 = vsel %vm11253, %v10614, %v11295
      %v11297 = vsel %vm446, %v10628, %v10621
      %v11298 = vsel %vm449, %v10635, %v11297
      %v11299 = vsel %vm452, %v10642, %v11298
      %v11300 = vsel %vm455, %v10649, %v11299
      %v11301 = vsel %vm458, %v10656, %v11300
      %v11302 = vsel %vm461, %v10663, %v11301
      %v11303 = vsel %vm11253, %v10670, %v11302
      %v11304 = vsel %vm446, %v10684, %v10677
      %v11305 = vsel %vm449, %v10691, %v11304
      %v11306 = vsel %vm452, %v10698, %v11305
      %v11307 = vsel %vm455, %v10705, %v11306
      %v11308 = vsel %vm458, %v10712, %v11307
      %v11309 = vsel %vm461, %v10719, %v11308
      %v11310 = vsel %vm11253, %v10726, %v11309
      %v11311 = vsel %vm446, %v10740, %v10733
      %v11312 = vsel %vm449, %v10747, %v11311
      %v11313 = vsel %vm452, %v10754, %v11312
      %v11314 = vsel %vm455, %v10761, %v11313
      %v11315 = vsel %vm458, %v10768, %v11314
      %v11316 = vsel %vm461, %v10775, %v11315
      %v11317 = vsel %vm11253, %v10782, %v11316
      %v11318 = vsel %vm446, %v10796, %v10789
      %v11319 = vsel %vm449, %v10803, %v11318
      %v11320 = vsel %vm452, %v10810, %v11319
      %v11321 = vsel %vm455, %v10817, %v11320
      %v11322 = vsel %vm458, %v10824, %v11321
      %v11323 = vsel %vm461, %v10831, %v11322
      %v11324 = vsel %vm11253, %v10838, %v11323
      %v11325 = vsel %vm446, %v10852, %v10845
      %v11326 = vsel %vm449, %v10859, %v11325
      %v11327 = vsel %vm452, %v10866, %v11326
      %v11328 = vsel %vm455, %v10873, %v11327
      %v11329 = vsel %vm458, %v10880, %v11328
      %v11330 = vsel %vm461, %v10887, %v11329
      %v11331 = vsel %vm11253, %v10894, %v11330
      %v11332 = vsel %vm446, %v10908, %v10901
      %v11333 = vsel %vm449, %v10915, %v11332
      %v11334 = vsel %vm452, %v10922, %v11333
      %v11335 = vsel %vm455, %v10929, %v11334
      %v11336 = vsel %vm458, %v10936, %v11335
      %v11337 = vsel %vm461, %v10943, %v11336
      %v11338 = vsel %vm11253, %v10950, %v11337
      %v11339 = vsel %vm446, %v10964, %v10957
      %v11340 = vsel %vm449, %v10971, %v11339
      %v11341 = vsel %vm452, %v10978, %v11340
      %v11342 = vsel %vm455, %v10985, %v11341
      %v11343 = vsel %vm458, %v10992, %v11342
      %v11344 = vsel %vm461, %v10999, %v11343
      %v11345 = vsel %vm11253, %v11006, %v11344
      %v11346 = vsel %vm446, %v11020, %v11013
      %v11347 = vsel %vm449, %v11027, %v11346
      %v11348 = vsel %vm452, %v11034, %v11347
      %v11349 = vsel %vm455, %v11041, %v11348
      %v11350 = vsel %vm458, %v11048, %v11349
      %v11351 = vsel %vm461, %v11055, %v11350
      %v11352 = vsel %vm11253, %v11062, %v11351
      %v11353 = vsel %vm446, %v11076, %v11069
      %v11354 = vsel %vm449, %v11083, %v11353
      %v11355 = vsel %vm452, %v11090, %v11354
      %v11356 = vsel %vm455, %v11097, %v11355
      %v11357 = vsel %vm458, %v11104, %v11356
      %v11358 = vsel %vm461, %v11111, %v11357
      %v11359 = vsel %vm11253, %v11118, %v11358
      %11392 = vrot.lane.b32.xlu0 %v9514, 8
      %v11393 = vpop.permute.xlu0 %11392
      %11394 = vrot.lane.b32.xlu0 %v9515, 8
      %v11395 = vpop.permute.xlu0 %11394
      %11396 = vrot.lane.b32.xlu0 %v9516, 8
      %v11397 = vpop.permute.xlu0 %11396
      %11398 = vrot.lane.b32.xlu0 %v9517, 8
      %v11399 = vpop.permute.xlu0 %11398
      %11400 = vrot.lane.b32.xlu0 %v9518, 8
      %v11401 = vpop.permute.xlu0 %11400
      %11402 = vrot.lane.b32.xlu0 %v9519, 8
      %v11403 = vpop.permute.xlu0 %11402
      %11404 = vrot.lane.b32.xlu0 %v9520, 8
      %v11405 = vpop.permute.xlu0 %11404
      %11406 = vrot.lane.b32.xlu0 %v9521, 8
      %v11407 = vpop.permute.xlu0 %11406
      %11408 = vrot.lane.b32.xlu0 %v9522, 8
      %v11409 = vpop.permute.xlu0 %11408
      %11410 = vrot.lane.b32.xlu0 %v9523, 8
      %v11411 = vpop.permute.xlu0 %11410
      %11412 = vrot.lane.b32.xlu0 %v9524, 8
      %v11413 = vpop.permute.xlu0 %11412
      %11414 = vrot.lane.b32.xlu0 %v9525, 8
      %v11415 = vpop.permute.xlu0 %11414
      %11416 = vrot.lane.b32.xlu0 %v9526, 8
      %v11417 = vpop.permute.xlu0 %11416
      %11418 = vrot.lane.b32.xlu0 %v9527, 8
      %v11419 = vpop.permute.xlu0 %11418
      %11420 = vrot.lane.b32.xlu0 %v9528, 8
      %v11421 = vpop.permute.xlu0 %11420
      %11422 = vrot.lane.b32.xlu0 %v9529, 8
      %v11423 = vpop.permute.xlu0 %11422
      %v11440 = vsel %vm366, %v11254, %v11393
      %v11441 = vsel %vm366, %v11261, %v11395
      %v11442 = vsel %vm366, %v11268, %v11397
      %v11443 = vsel %vm366, %v11275, %v11399
      %v11444 = vsel %vm366, %v11282, %v11401
      %v11445 = vsel %vm366, %v11289, %v11403
      %v11446 = vsel %vm366, %v11296, %v11405
      %v11447 = vsel %vm366, %v11303, %v11407
      %v11448 = vsel %vm366, %v11310, %v11409
      %v11449 = vsel %vm366, %v11317, %v11411
      %v11450 = vsel %vm366, %v11324, %v11413
      %v11451 = vsel %vm366, %v11331, %v11415
      %v11452 = vsel %vm366, %v11338, %v11417
      %v11453 = vsel %vm366, %v11345, %v11419
      %v11454 = vsel %vm366, %v11352, %v11421
      %v11455 = vsel %vm366, %v11359, %v11423
      %vm11456 = vcmask 72704
      %v11457 = vsel %vm11456, %v11440, 0.0
      %v11458 = vsel %vm11456, %v11441, 0.0
      %v11459 = vsel %vm11456, %v11442, 0.0
      %v11460 = vsel %vm11456, %v11443, 0.0
      %v11461 = vsel %vm11456, %v11444, 0.0
      %v11462 = vsel %vm11456, %v11445, 0.0
      %v11463 = vsel %vm11456, %v11446, 0.0
      %v11464 = vsel %vm11456, %v11447, 0.0
      %v11465 = vsel %vm11456, %v11448, 0.0
      %v11466 = vsel %vm11456, %v11449, 0.0
      %v11467 = vsel %vm11456, %v11450, 0.0
      %v11468 = vsel %vm11456, %v11451, 0.0
      %v11469 = vsel %vm11456, %v11452, 0.0
      %v11470 = vsel %vm11456, %v11453, 0.0
      %v11471 = vsel %vm11456, %v11454, 0.0
      %v11472 = vsel %vm11456, %v11455, 0.0
      %11473 = vst [vmem:[%s307] sm:$0xff] %v11457
      %11474 = vst [vmem:[%s307 + $0x8] sm:$0xff] %v11458
      %11475 = vst [vmem:[%s307 + $0x10] sm:$0xff] %v11459
      %11476 = vst [vmem:[%s307 + $0x18] sm:$0xff] %v11460
      %11477 = vst [vmem:[%s307 + $0x20] sm:$0xff] %v11461
      %11478 = vst [vmem:[%s307 + $0x28] sm:$0xff] %v11462
      %11479 = vst [vmem:[%s307 + $0x30] sm:$0xff] %v11463
      %11480 = vst [vmem:[%s307 + $0x38] sm:$0xff] %v11464
      %11481 = vst [vmem:[%s307 + $0x40] sm:$0xff] %v11465
      %11482 = vst [vmem:[%s307 + $0x48] sm:$0xff] %v11466
      %11483 = vst [vmem:[%s307 + $0x50] sm:$0xff] %v11467
      %11484 = vst [vmem:[%s307 + $0x58] sm:$0xff] %v11468
      %11485 = vst [vmem:[%s307 + $0x60] sm:$0xff] %v11469
      %11486 = vst [vmem:[%s307 + $0x68] sm:$0xff] %v11470
      %11487 = vst [vmem:[%s307 + $0x70] sm:$0xff] %v11471
      %11488 = vst [vmem:[%s307 + $0x78] sm:$0xff] %v11472
      %s11489 = smul.u32 16, %s19
      %p11490 = scmp.lt.s32.totalorder %s11489, 31
      %s11491 = scalar_select %p11490, %s11489, 31
      %s11492 = smul.addr %s11491, 8
      %s11493 = scalar_lea.vmem %s8, %s11492
      // Predicated region
      $region53: #{physics_diffusion_forward.1} parent=51 // pred_check
        %p11494 = pneg %p210
      $region54: #{physics_diffusion_forward.1} parent=51 // pred_check_branch
        %11496 = sbr.rel (%p11494) target = $region56
      $region55: #{physics_diffusion_forward.1} parent=51 // pred_region
        %s11497 = smul.u32 16, %s19
      $region56: #{physics_diffusion_forward.1} parent=51 // pred_fallthru
        _
    $region52: #{physics_diffusion_forward.1} parent=5 // pred_fallthru
      _
    %p11498 = scmp.le.s32.totalorder 2, %s14
    // Predicated region
    $region57: #{physics_diffusion_forward.1} parent=5 // pred_check
      %p11499 = pneg %p11498
    $region58: #{physics_diffusion_forward.1} parent=5 // pred_check_branch
      %11501 = sbr.rel (%p11499) target = $region60
    $region59: #{physics_diffusion_forward.1} parent=5 // pred_region
      %s11502 = ssub.s32 %s14, 2
      // Predicated region
      $region61: #{physics_diffusion_forward.1} parent=59 // pred_check
        %p11503 = pneg %p216
      $region62: #{physics_diffusion_forward.1} parent=59 // pred_check_branch
        %11505 = sbr.rel (%p11503) target = $region64
      $region63: #{physics_diffusion_forward.1} parent=59 // pred_region
        %s11506 = smul.u32 16, %s20
        %p11507 = scmp.lt.s32.totalorder %s11506, 31
        %s11508 = scalar_select %p11507, %s11506, 31
        %s11509 = smul.addr %s11508, 8
        %s11510 = scalar_lea.vmem %s8, %s11509
      $region64: #{physics_diffusion_forward.1} parent=59 // pred_fallthru
        _
    $region60: #{physics_diffusion_forward.1} parent=5 // pred_fallthru
      _
  $region6: #{physics_diffusion_forward.1} parent=0 // loop_footer
    %s18 = sadd.s32 1, %s14
  $region7: #{physics_diffusion_forward.1} parent=0 // loop_footer_branch
    %13 = sbr.rel target = $region3
  $region8: #{physics_diffusion_forward.1} parent=0 // loop_exit
    _

</llo_original>
